<compile_context>
chip_gen: v7x
topology: tpu7x:2x2x1
jax: 0.10.0
libtpu: 0.0.40
codegen_flags: <defaults>
</compile_context>

<pallas_src>
import math

import jax
import jax.numpy as jnp
import numpy as np
from jax.experimental import pallas as pl
from jax.experimental.pallas import tpu as pltpu

# ---------------- small, module-consistent configuration ---------------------
B = 2               # batch
C = 64              # feature_dim (convnext_small would be 768; small stand-in)
H = W = 16          # spatial size of the backbone feature map
HW = H * W
NUM_CLASSES = 5
NUM_DOMAINS = 5
RED = 8             # reduction_ratio in LesionAttentionModule
KS = 7              # spatial attention kernel size
PAD = (KS - 1) // 2
BN_EPS = 1e-5

SEG = 128           # lane-aligned segment per head in the fused output
TOTAL_OUT = 4 * SEG  # [logits | grade | ordinal | domain], each in its own segment


def _sigmoid(v):
    return 1.0 / (1.0 + jnp.exp(-v))


def _gelu(v):
    # tanh approximation of GELU (see TODO above); kept in f32 (v5e EUP/VPU).
    c = math.sqrt(2.0 / math.pi)
    return 0.5 * v * (1.0 + jnp.tanh(c * (v + 0.044715 * v * v * v)))


# -------------- Toeplitz form of the 7x7 "same" conv (built in wrapper) -------
def _toeplitz_indices():
    rows, cols, widx = [], [], []
    for c in range(2):
        for oy in range(H):
            for ox in range(W):
                for dy in range(KS):
                    for dx in range(KS):
                        iy = oy + dy - PAD
                        ix = ox + dx - PAD
                        if 0 <= iy < H and 0 <= ix < W:
                            rows.append(oy * W + ox)
                            cols.append(c * HW + iy * W + ix)
                            widx.append(c * KS * KS + dy * KS + dx)
    return (np.asarray(rows, np.int32), np.asarray(cols, np.int32),
            np.asarray(widx, np.int32))


_T_ROWS, _T_COLS, _T_WIDX = _toeplitz_indices()


def _build_toeplitz(wsp_flat):
    """(HW, 2*HW) matrix T with conv(out) = T[:, :HW] @ avg_map + T[:, HW:] @ max_map."""
    t = jnp.zeros((HW, 2 * HW), jnp.float32)
    return t.at[_T_ROWS, _T_COLS].set(wsp_flat[_T_WIDX].astype(jnp.float32))


# ------------------------------- Pallas kernel --------------------------------
def _enhanced_dr_kernel(
    x_ref,                                   # (HW, C) f32  one sample
    wa1t_ref, wa2t_ref,                      # (C, C//RED), (C//RED, C) f32
    ta_ref, tm_ref,                          # (HW, HW) f32 Toeplitz conv (avg / max maps)
    cw1_ref, cb1_ref, cs1_ref, ct1_ref,      # classifier L1 (bf16 W) + bias + fused BN
    cw2_ref, cb2_ref, cs2_ref, ct2_ref,
    cw3_ref, cb3_ref,
    gw1_ref, gb1_ref, gs1_ref, gt1_ref,      # grade predictor
    gw2_ref, gb2_ref, gs2_ref, gt2_ref,
    gw3_ref, gb3_ref,
    ow1_ref, ob1_ref, ow2_ref, ob2_ref,      # ordinal encoder
    dw1_ref, db1_ref, dw2_ref, db2_ref,      # domain classifier
    out_ref,                                 # (1, TOTAL_OUT) f32, 4 lane-aligned segments
):
    xs = x_ref[...]                                         # (HW, C) f32

    # ---- channel attention: shared 1x1-conv MLP on avg/max pooled vectors ----
    avg_c = jnp.mean(xs, axis=0, keepdims=True)             # (1, C)
    max_c = jnp.max(xs, axis=0, keepdims=True)              # (1, C)
    wa1t = wa1t_ref[...]
    # relu(avg@W1) @ W2 + relu(max@W1) @ W2 == (relu(avg@W1)+relu(max@W1)) @ W2
    mid = (jnp.maximum(jnp.dot(avg_c, wa1t, preferred_element_type=jnp.float32), 0.0)
           + jnp.maximum(jnp.dot(max_c, wa1t, preferred_element_type=jnp.float32), 0.0))
    ch_att = _sigmoid(jnp.dot(mid, wa2t_ref[...],
                              preferred_element_type=jnp.float32))     # (1, C)
    x_ch = xs * ch_att                                      # broadcast over sublanes

    # ---- spatial attention: 7x7 conv as Toeplitz matmuls on the MXU ----------
    avg_sp = jnp.mean(x_ch, axis=1, keepdims=True)          # (HW, 1)
    max_sp = jnp.max(x_ch, axis=1, keepdims=True)           # (HW, 1)
    conv = (jnp.dot(ta_ref[...], avg_sp, preferred_element_type=jnp.float32)
            + jnp.dot(tm_ref[...], max_sp, preferred_element_type=jnp.float32))
    sp_att = _sigmoid(conv)                                 # (HW, 1)
    attended = x_ch * sp_att                                # broadcast over lanes

    # ---- global average pool -> lane-dense feature row -----------------------
    h = jnp.mean(attended, axis=0, keepdims=True)           # (1, C) f32

    def linear(v, w_ref, b_ref, cast_bf16):
        if cast_bf16:
            v = v.astype(jnp.bfloat16)                      # bf16 MXU, f32 accumulate
        return jnp.dot(v, w_ref[...], preferred_element_type=jnp.float32) + b_ref[...]

    def bn(v, s_ref, t_ref):                                # eval-mode BN (running stats)
        return v * s_ref[...] + t_ref[...]

    # ---- classifier head (dropout == identity in eval) -----------------------
    z = _gelu(bn(linear(h, cw1_ref, cb1_ref, True), cs1_ref, ct1_ref))
    z = _gelu(bn(linear(z, cw2_ref, cb2_ref, True), cs2_ref, ct2_ref))
    logits = linear(z, cw3_ref, cb3_ref, False)             # (1, 5)

    # ---- GradeConsistencyHead -------------------------------------------------
    g = _gelu(bn(linear(h, gw1_ref, gb1_ref, True), gs1_ref, gt1_ref))
    g = _gelu(bn(linear(g, gw2_ref, gb2_ref, True), gs2_ref, gt2_ref))
    grade = linear(g, gw3_ref, gb3_ref, False)              # (1, 5)

    o = _gelu(linear(h, ow1_ref, ob1_ref, True))
    ordn = linear(o, ow2_ref, ob2_ref, False)               # (1, 4)

    # ---- domain classifier (GradientReversal forward == identity) ------------
    d = jnp.maximum(linear(h, dw1_ref, db1_ref, True), 0.0)
    dom = linear(d, dw2_ref, db2_ref, False)                # (1, 5)

    # ---- fused, lane-aligned output: one output DMA per sample ---------------
    out_ref[...] = jnp.zeros_like(out_ref)
    out_ref[:, 0:NUM_CLASSES] = logits
    out_ref[:, SEG:SEG + NUM_CLASSES] = grade
    out_ref[:, 2 * SEG:2 * SEG + (NUM_CLASSES - 1)] = ordn
    out_ref[:, 3 * SEG:3 * SEG + NUM_DOMAINS] = dom


# ------------------------------- wrapper --------------------------------------
def _prep_args(x, p):
    f32, bf16 = jnp.float32, jnp.bfloat16
    # (B, C, H, W) -> (B, HW, C): spatial on sublanes, channels on lanes.
    x3 = x.reshape(B, C, HW).transpose(0, 2, 1).astype(f32)

    def wt(name, dt):
        return p[name].T.astype(dt)

    def row(name):
        return p[name].reshape(1, -1).astype(f32)

    tsp = _build_toeplitz(p["wsp"])
    ta, tm = tsp[:, :HW], tsp[:, HW:]

    return [
        x3,
        wt("wa1", f32), wt("wa2", f32), ta, tm,
        wt("cw1", bf16), row("cb1"), row("cs1"), row("ct1"),
        wt("cw2", bf16), row("cb2"), row("cs2"), row("ct2"),
        wt("cw3", f32), row("cb3"),
        wt("gw1", bf16), row("gb1"), row("gs1"), row("gt1"),
        wt("gw2", bf16), row("gb2"), row("gs2"), row("gt2"),
        wt("gw3", f32), row("gb3"),
        wt("ow1", bf16), row("ob1"),
        wt("ow2", f32), row("ob2"),
        wt("dw1", bf16), row("db1"),
        wt("dw2", f32), row("db2"),
    ]


@jax.jit
def _forward_jit(x, params):
    args = _prep_args(x, params)
    in_specs = [pl.BlockSpec((None, HW, C), lambda b: (b, 0, 0))] + [
        pl.BlockSpec(a.shape, lambda b: (0, 0)) for a in args[1:]
    ]
    out3 = pl.pallas_call(
        _enhanced_dr_kernel,
        out_shape=jax.ShapeDtypeStruct((B, 1, TOTAL_OUT), jnp.float32),
        grid=(B,),
        in_specs=in_specs,
        out_specs=pl.BlockSpec((None, 1, TOTAL_OUT), lambda b: (b, 0, 0)),
        compiler_params=pltpu.CompilerParams(
            dimension_semantics=("parallel",)),   # both TCs on v7x; no-op on v5e/v6e
    )(*args)
    out = out3.reshape(B, TOTAL_OUT)
    logits = out[:, 0:NUM_CLASSES]
    grade = out[:, SEG:SEG + NUM_CLASSES]
    ordinal = out[:, 2 * SEG:2 * SEG + (NUM_CLASSES - 1)]
    domain = out[:, 3 * SEG:3 * SEG + NUM_DOMAINS]
    return logits, grade, ordinal, domain


def enhanced_dr_forward(x, params, alpha=0.0):
    """x: (B, C, H, W) NCHW backbone feature map, float32."""
    logits, grade, ordinal, domain = _forward_jit(x, params)
    domain_logits = domain if alpha > 0 else None
    return logits, (grade, ordinal), domain_logits


# ------------------------ deterministic parameter init ------------------------
def make_params(key):
    keys = iter(jax.random.split(key, 32))

    def rnd(shape, scale):
        return jax.random.normal(next(keys), shape, jnp.float32) * scale

    def linear_wb(out_dim, in_dim):
        w = rnd((out_dim, in_dim), 2.0 / np.sqrt(in_dim))
        b = rnd((out_dim, 1), 0.1)
        return w, b

    def bn_scale_shift(dim):
        gamma = jnp.ones((dim, 1), jnp.float32)
        beta = jnp.zeros((dim, 1), jnp.float32)
        rmean = jnp.zeros((dim, 1), jnp.float32)
        rvar = jnp.ones((dim, 1), jnp.float32)
        s = gamma / jnp.sqrt(rvar + BN_EPS)
        t = beta - rmean * s
        return s, t

    p = {}
    # LesionAttentionModule
    p["wa1"] = rnd((C // RED, C), 1.0 / np.sqrt(C))
    p["wa2"] = rnd((C, C // RED), 1.0 / np.sqrt(C // RED))
    p["wsp"] = rnd((2 * KS * KS,), 1.0 / np.sqrt(2 * KS * KS))
    # classifier
    p["cw1"], p["cb1"] = linear_wb(1024, C)
    p["cs1"], p["ct1"] = bn_scale_shift(1024)
    p["cw2"], p["cb2"] = linear_wb(512, 1024)
    p["cs2"], p["ct2"] = bn_scale_shift(512)
    p["cw3"], p["cb3"] = linear_wb(NUM_CLASSES, 512)
    # grade predictor
    p["gw1"], p["gb1"] = linear_wb(512, C)
    p["gs1"], p["gt1"] = bn_scale_shift(512)
    p["gw2"], p["gb2"] = linear_wb(256, 512)
    p["gs2"], p["gt2"] = bn_scale_shift(256)
    p["gw3"], p["gb3"] = linear_wb(NUM_CLASSES, 256)
    # ordinal encoder
    p["ow1"], p["ob1"] = linear_wb(256, C)
    p["ow2"], p["ob2"] = linear_wb(NUM_CLASSES - 1, 256)
    # domain classifier
    p["dw1"], p["db1"] = linear_wb(256, C)
    p["dw2"], p["db2"] = linear_wb(NUM_DOMAINS, 256)
    return p


# ------------------------ plain-JAX reference (for checking) ------------------
def reference_forward(x, params, alpha=0.0):
    avg_c = jnp.mean(x, axis=(2, 3))
    max_c = jnp.max(x, axis=(2, 3))

    def mlp(v):
        return jnp.maximum(v @ params["wa1"].T, 0.0) @ params["wa2"].T

    ch_att = _sigmoid(mlp(avg_c) + mlp(max_c))
    x_ch = x * ch_att[:, :, None, None]
    avg_sp = jnp.mean(x_ch, axis=1, keepdims=True)
    max_sp = jnp.max(x_ch, axis=1, keepdims=True)
    sp_in = jnp.concatenate([avg_sp, max_sp], axis=1)
    wconv = params["wsp"].reshape(1, 2, KS, KS)
    conv = jax.lax.conv_general_dilated(
        sp_in, wconv, window_strides=(1, 1), padding=[(PAD, PAD), (PAD, PAD)],
        dimension_numbers=("NCHW", "OIHW", "NCHW"))
    sp_att = _sigmoid(conv)
    attended = x_ch * sp_att
    h = jnp.mean(attended, axis=(2, 3))

    def lin(v, wk, bk):
        return v @ params[wk].T + params[bk][:, 0]

    def bnorm(v, sk, tk):
        return v * params[sk][:, 0] + params[tk][:, 0]

    z = _gelu(bnorm(lin(h, "cw1", "cb1"), "cs1", "ct1"))
    z = _gelu(bnorm(lin(z, "cw2", "cb2"), "cs2", "ct2"))
    logits = lin(z, "cw3", "cb3")
    g = _gelu(bnorm(lin(h, "gw1", "gb1"), "gs1", "gt1"))
    g = _gelu(bnorm(lin(g, "gw2", "gb2"), "gs2", "gt2"))
    grade_logits = lin(g, "gw3", "gb3")
    o = _gelu(lin(h, "ow1", "ob1"))
    ordinal = lin(o, "ow2", "ob2")
    if alpha > 0:
        d = jnp.maximum(lin(h, "dw1", "db1"), 0.0)
        domain_logits = lin(d, "dw2", "db2")
    else:
        domain_logits = None
    return logits, (grade_logits, ordinal), domain_logits


if __name__ == "__main__":
    key = jax.random.PRNGKey(0)
    kx, kp = jax.random.split(key)
    x = jax.random.normal(kx, (B, C, H, W), jnp.float32)   # backbone feature map
    params = make_params(kp)

    logits, (grade_logits, ordinal), domain_logits = enhanced_dr_forward(
        x, params, alpha=0.0)
    jax.block_until_ready((logits, grade_logits, ordinal))
    assert domain_logits is None

    # alpha > 0 additionally returns the domain-classifier logits
    _, _, dom = enhanced_dr_forward(x, params, alpha=1.0)
    jax.block_until_ready(dom)

    # sanity check against the plain-JAX reference (bf16 head weights in the
    # kernel, f32 reference -> tolerance 5e-2 / 1e-2)
    ref_logits, (ref_grade, ref_ord), ref_dom = reference_forward(
        x, params, alpha=1.0)
    assert logits.shape == (B, NUM_CLASSES)
    assert grade_logits.shape == (B, NUM_CLASSES)
    assert ordinal.shape == (B, NUM_CLASSES - 1)
    assert dom.shape == (B, NUM_DOMAINS)
    assert bool(jnp.allclose(logits, ref_logits, rtol=5e-2, atol=1e-2))
    assert bool(jnp.allclose(grade_logits, ref_grade, rtol=5e-2, atol=1e-2))
    assert bool(jnp.allclose(ordinal, ref_ord, rtol=5e-2, atol=1e-2))
    assert bool(jnp.allclose(dom, ref_dom, rtol=5e-2, atol=1e-2))

    print("KERNEL_OK")
</pallas_src>

<mosaic_0001>
module attributes {stable_mosaic.version = 11 : i64} {
  func.func @_enhanced_dr_kernel(%arg0: i32, %arg1: memref<1x256x64xf32, #tpu.memory_space<vmem>>, %arg2: memref<64x8xf32, #tpu.memory_space<vmem>>, %arg3: memref<8x64xf32, #tpu.memory_space<vmem>>, %arg4: memref<256x256xf32, #tpu.memory_space<vmem>>, %arg5: memref<256x256xf32, #tpu.memory_space<vmem>>, %arg6: memref<64x1024xbf16, #tpu.memory_space<vmem>>, %arg7: memref<1x1024xf32, #tpu.memory_space<vmem>>, %arg8: memref<1x1024xf32, #tpu.memory_space<vmem>>, %arg9: memref<1x1024xf32, #tpu.memory_space<vmem>>, %arg10: memref<1024x512xbf16, #tpu.memory_space<vmem>>, %arg11: memref<1x512xf32, #tpu.memory_space<vmem>>, %arg12: memref<1x512xf32, #tpu.memory_space<vmem>>, %arg13: memref<1x512xf32, #tpu.memory_space<vmem>>, %arg14: memref<512x5xf32, #tpu.memory_space<vmem>>, %arg15: memref<1x5xf32, #tpu.memory_space<vmem>>, %arg16: memref<64x512xbf16, #tpu.memory_space<vmem>>, %arg17: memref<1x512xf32, #tpu.memory_space<vmem>>, %arg18: memref<1x512xf32, #tpu.memory_space<vmem>>, %arg19: memref<1x512xf32, #tpu.memory_space<vmem>>, %arg20: memref<512x256xbf16, #tpu.memory_space<vmem>>, %arg21: memref<1x256xf32, #tpu.memory_space<vmem>>, %arg22: memref<1x256xf32, #tpu.memory_space<vmem>>, %arg23: memref<1x256xf32, #tpu.memory_space<vmem>>, %arg24: memref<256x5xf32, #tpu.memory_space<vmem>>, %arg25: memref<1x5xf32, #tpu.memory_space<vmem>>, %arg26: memref<64x256xbf16, #tpu.memory_space<vmem>>, %arg27: memref<1x256xf32, #tpu.memory_space<vmem>>, %arg28: memref<256x4xf32, #tpu.memory_space<vmem>>, %arg29: memref<1x4xf32, #tpu.memory_space<vmem>>, %arg30: memref<64x256xbf16, #tpu.memory_space<vmem>>, %arg31: memref<1x256xf32, #tpu.memory_space<vmem>>, %arg32: memref<256x5xf32, #tpu.memory_space<vmem>>, %arg33: memref<1x5xf32, #tpu.memory_space<vmem>>, %arg34: memref<1x1x512xf32, #tpu.memory_space<vmem>>) attributes {dimension_semantics = [#tpu.dimension_semantics<parallel>], iteration_bounds = array<i64: 2>, scalar_prefetch = 0 : i64, scratch_operands = 0 : i64, tpu.core_type = #tpu.core_type<tc>, window_params = [{transform_indices = @transform_0, window_bounds = array<i64: 1, 256, 64>}, {pipeline_mode = #tpu.pipeline_mode<synchronous>, transform_indices = @transform_1, window_bounds = array<i64: 64, 8>}, {pipeline_mode = #tpu.pipeline_mode<synchronous>, transform_indices = @transform_2, window_bounds = array<i64: 8, 64>}, {pipeline_mode = #tpu.pipeline_mode<synchronous>, transform_indices = @transform_3, window_bounds = array<i64: 256, 256>}, {pipeline_mode = #tpu.pipeline_mode<synchronous>, transform_indices = @transform_4, window_bounds = array<i64: 256, 256>}, {pipeline_mode = #tpu.pipeline_mode<synchronous>, transform_indices = @transform_5, window_bounds = array<i64: 64, 1024>}, {pipeline_mode = #tpu.pipeline_mode<synchronous>, transform_indices = @transform_6, window_bounds = array<i64: 1, 1024>}, {pipeline_mode = #tpu.pipeline_mode<synchronous>, transform_indices = @transform_7, window_bounds = array<i64: 1, 1024>}, {pipeline_mode = #tpu.pipeline_mode<synchronous>, transform_indices = @transform_8, window_bounds = array<i64: 1, 1024>}, {pipeline_mode = #tpu.pipeline_mode<synchronous>, transform_indices = @transform_9, window_bounds = array<i64: 1024, 512>}, {pipeline_mode = #tpu.pipeline_mode<synchronous>, transform_indices = @transform_10, window_bounds = array<i64: 1, 512>}, {pipeline_mode = #tpu.pipeline_mode<synchronous>, transform_indices = @transform_11, window_bounds = array<i64: 1, 512>}, {pipeline_mode = #tpu.pipeline_mode<synchronous>, transform_indices = @transform_12, window_bounds = array<i64: 1, 512>}, {pipeline_mode = #tpu.pipeline_mode<synchronous>, transform_indices = @transform_13, window_bounds = array<i64: 512, 5>}, {pipeline_mode = #tpu.pipeline_mode<synchronous>, transform_indices = @transform_14, window_bounds = array<i64: 1, 5>}, {pipeline_mode = #tpu.pipeline_mode<synchronous>, transform_indices = @transform_15, window_bounds = array<i64: 64, 512>}, {pipeline_mode = #tpu.pipeline_mode<synchronous>, transform_indices = @transform_16, window_bounds = array<i64: 1, 512>}, {pipeline_mode = #tpu.pipeline_mode<synchronous>, transform_indices = @transform_17, window_bounds = array<i64: 1, 512>}, {pipeline_mode = #tpu.pipeline_mode<synchronous>, transform_indices = @transform_18, window_bounds = array<i64: 1, 512>}, {pipeline_mode = #tpu.pipeline_mode<synchronous>, transform_indices = @transform_19, window_bounds = array<i64: 512, 256>}, {pipeline_mode = #tpu.pipeline_mode<synchronous>, transform_indices = @transform_20, window_bounds = array<i64: 1, 256>}, {pipeline_mode = #tpu.pipeline_mode<synchronous>, transform_indices = @transform_21, window_bounds = array<i64: 1, 256>}, {pipeline_mode = #tpu.pipeline_mode<synchronous>, transform_indices = @transform_22, window_bounds = array<i64: 1, 256>}, {pipeline_mode = #tpu.pipeline_mode<synchronous>, transform_indices = @transform_23, window_bounds = array<i64: 256, 5>}, {pipeline_mode = #tpu.pipeline_mode<synchronous>, transform_indices = @transform_24, window_bounds = array<i64: 1, 5>}, {pipeline_mode = #tpu.pipeline_mode<synchronous>, transform_indices = @transform_25, window_bounds = array<i64: 64, 256>}, {pipeline_mode = #tpu.pipeline_mode<synchronous>, transform_indices = @transform_26, window_bounds = array<i64: 1, 256>}, {pipeline_mode = #tpu.pipeline_mode<synchronous>, transform_indices = @transform_27, window_bounds = array<i64: 256, 4>}, {pipeline_mode = #tpu.pipeline_mode<synchronous>, transform_indices = @transform_28, window_bounds = array<i64: 1, 4>}, {pipeline_mode = #tpu.pipeline_mode<synchronous>, transform_indices = @transform_29, window_bounds = array<i64: 64, 256>}, {pipeline_mode = #tpu.pipeline_mode<synchronous>, transform_indices = @transform_30, window_bounds = array<i64: 1, 256>}, {pipeline_mode = #tpu.pipeline_mode<synchronous>, transform_indices = @transform_31, window_bounds = array<i64: 256, 5>}, {pipeline_mode = #tpu.pipeline_mode<synchronous>, transform_indices = @transform_32, window_bounds = array<i64: 1, 5>}, {transform_indices = @transform_33, window_bounds = array<i64: 1, 1, 512>}]} {
    %c0 = arith.constant 0 : index
    %c0_0 = arith.constant 0 : index
    %c0_1 = arith.constant 0 : index
    %0 = vector.load %arg1[%c0, %c0_0, %c0_1] : memref<1x256x64xf32, #tpu.memory_space<vmem>>, vector<1x256x64xf32>
    %1 = vector.shape_cast %0 : vector<1x256x64xf32> to vector<256x64xf32>
    %cst = arith.constant dense<0.000000e+00> : vector<64xf32>
    %2 = vector.multi_reduction <add>, %1, %cst [0] : vector<256x64xf32> to vector<64xf32>
    %3 = vector.shape_cast %2 : vector<64xf32> to vector<1x64xf32>
    %cst_2 = arith.constant 2.560000e+02 : f32
    %4 = vector.broadcast %cst_2 : f32 to vector<1x64xf32>
    %5 = arith.divf %3, %4 : vector<1x64xf32>
    %cst_3 = arith.constant dense<0xFF800000> : vector<64xf32>
    %6 = vector.multi_reduction <maximumf>, %1, %cst_3 [0] : vector<256x64xf32> to vector<64xf32>
    %7 = vector.shape_cast %6 : vector<64xf32> to vector<1x64xf32>
    %c0_4 = arith.constant 0 : index
    %c0_5 = arith.constant 0 : index
    %8 = vector.load %arg2[%c0_4, %c0_5] : memref<64x8xf32, #tpu.memory_space<vmem>>, vector<64x8xf32>
    %cst_6 = arith.constant dense<0.000000e+00> : vector<1x8xf32>
    %9 = tpu.matmul %5, %8, %cst_6 {dimension_numbers = #tpu.dot_dimension_numbers<[1], [0], [0], [1], [0, 0, 1, 1], [], []>} : vector<1x64xf32>, vector<64x8xf32>, vector<1x8xf32> -> vector<1x8xf32>
    %cst_7 = arith.constant 0.000000e+00 : f32
    %10 = vector.broadcast %cst_7 : f32 to vector<1x8xf32>
    %11 = arith.maximumf %9, %10 : vector<1x8xf32>
    %cst_8 = arith.constant dense<0.000000e+00> : vector<1x8xf32>
    %12 = tpu.matmul %7, %8, %cst_8 {dimension_numbers = #tpu.dot_dimension_numbers<[1], [0], [0], [1], [0, 0, 1, 1], [], []>} : vector<1x64xf32>, vector<64x8xf32>, vector<1x8xf32> -> vector<1x8xf32>
    %cst_9 = arith.constant 0.000000e+00 : f32
    %13 = vector.broadcast %cst_9 : f32 to vector<1x8xf32>
    %14 = arith.maximumf %12, %13 : vector<1x8xf32>
    %15 = arith.addf %11, %14 : vector<1x8xf32>
    %c0_10 = arith.constant 0 : index
    %c0_11 = arith.constant 0 : index
    %16 = vector.load %arg3[%c0_10, %c0_11] : memref<8x64xf32, #tpu.memory_space<vmem>>, vector<8x64xf32>
    %cst_12 = arith.constant dense<0.000000e+00> : vector<1x64xf32>
    %17 = tpu.matmul %15, %16, %cst_12 {dimension_numbers = #tpu.dot_dimension_numbers<[1], [0], [0], [1], [0, 0, 1, 1], [], []>} : vector<1x8xf32>, vector<8x64xf32>, vector<1x64xf32> -> vector<1x64xf32>
    %cst_13 = arith.constant 0.000000e+00 : f32
    %18 = vector.broadcast %cst_13 : f32 to vector<1x64xf32>
    %19 = arith.subf %18, %17 : vector<1x64xf32>
    %20 = math.exp %19 : vector<1x64xf32>
    %cst_14 = arith.constant 1.000000e+00 : f32
    %21 = vector.broadcast %cst_14 : f32 to vector<1x64xf32>
    %22 = arith.addf %21, %20 : vector<1x64xf32>
    %cst_15 = arith.constant 1.000000e+00 : f32
    %23 = vector.broadcast %cst_15 : f32 to vector<1x64xf32>
    %24 = arith.divf %23, %22 : vector<1x64xf32>
    %25 = vector.broadcast %24 : vector<1x64xf32> to vector<256x64xf32>
    %26 = arith.mulf %1, %25 : vector<256x64xf32>
    %cst_16 = arith.constant dense<0.000000e+00> : vector<256xf32>
    %27 = vector.multi_reduction <add>, %26, %cst_16 [1] : vector<256x64xf32> to vector<256xf32>
    %28 = vector.shape_cast %27 : vector<256xf32> to vector<256x1xf32>
    %cst_17 = arith.constant 6.400000e+01 : f32
    %29 = vector.broadcast %cst_17 : f32 to vector<256x1xf32>
    %30 = arith.divf %28, %29 : vector<256x1xf32>
    %cst_18 = arith.constant dense<0xFF800000> : vector<256xf32>
    %31 = vector.multi_reduction <maximumf>, %26, %cst_18 [1] : vector<256x64xf32> to vector<256xf32>
    %32 = vector.shape_cast %31 : vector<256xf32> to vector<256x1xf32>
    %c0_19 = arith.constant 0 : index
    %c0_20 = arith.constant 0 : index
    %33 = vector.load %arg4[%c0_19, %c0_20] : memref<256x256xf32, #tpu.memory_space<vmem>>, vector<256x256xf32>
    %cst_21 = arith.constant dense<0.000000e+00> : vector<256x1xf32>
    %34 = tpu.matmul %33, %30, %cst_21 {dimension_numbers = #tpu.dot_dimension_numbers<[1], [0], [0], [1], [0, 0, 1, 1], [], []>} : vector<256x256xf32>, vector<256x1xf32>, vector<256x1xf32> -> vector<256x1xf32>
    %c0_22 = arith.constant 0 : index
    %c0_23 = arith.constant 0 : index
    %35 = vector.load %arg5[%c0_22, %c0_23] : memref<256x256xf32, #tpu.memory_space<vmem>>, vector<256x256xf32>
    %cst_24 = arith.constant dense<0.000000e+00> : vector<256x1xf32>
    %36 = tpu.matmul %35, %32, %cst_24 {dimension_numbers = #tpu.dot_dimension_numbers<[1], [0], [0], [1], [0, 0, 1, 1], [], []>} : vector<256x256xf32>, vector<256x1xf32>, vector<256x1xf32> -> vector<256x1xf32>
    %37 = arith.addf %34, %36 : vector<256x1xf32>
    %cst_25 = arith.constant 0.000000e+00 : f32
    %38 = vector.broadcast %cst_25 : f32 to vector<256x1xf32>
    %39 = arith.subf %38, %37 : vector<256x1xf32>
    %40 = math.exp %39 : vector<256x1xf32>
    %cst_26 = arith.constant 1.000000e+00 : f32
    %41 = vector.broadcast %cst_26 : f32 to vector<256x1xf32>
    %42 = arith.addf %41, %40 : vector<256x1xf32>
    %cst_27 = arith.constant 1.000000e+00 : f32
    %43 = vector.broadcast %cst_27 : f32 to vector<256x1xf32>
    %44 = arith.divf %43, %42 : vector<256x1xf32>
    %45 = vector.broadcast %44 : vector<256x1xf32> to vector<256x64xf32>
    %46 = arith.mulf %26, %45 : vector<256x64xf32>
    %cst_28 = arith.constant dense<0.000000e+00> : vector<64xf32>
    %47 = vector.multi_reduction <add>, %46, %cst_28 [0] : vector<256x64xf32> to vector<64xf32>
    %48 = vector.shape_cast %47 : vector<64xf32> to vector<1x64xf32>
    %cst_29 = arith.constant 2.560000e+02 : f32
    %49 = vector.broadcast %cst_29 : f32 to vector<1x64xf32>
    %50 = arith.divf %48, %49 : vector<1x64xf32>
    %51 = arith.truncf %50 : vector<1x64xf32> to vector<1x64xbf16>
    %c0_30 = arith.constant 0 : index
    %c0_31 = arith.constant 0 : index
    %52 = vector.load %arg6[%c0_30, %c0_31] : memref<64x1024xbf16, #tpu.memory_space<vmem>>, vector<64x1024xbf16>
    %cst_32 = arith.constant dense<0.000000e+00> : vector<1x1024xf32>
    %53 = tpu.matmul %51, %52, %cst_32 {dimension_numbers = #tpu.dot_dimension_numbers<[1], [0], [0], [1], [0, 0, 1, 1], [], []>} : vector<1x64xbf16>, vector<64x1024xbf16>, vector<1x1024xf32> -> vector<1x1024xf32>
    %c0_33 = arith.constant 0 : index
    %c0_34 = arith.constant 0 : index
    %54 = vector.load %arg7[%c0_33, %c0_34] : memref<1x1024xf32, #tpu.memory_space<vmem>>, vector<1x1024xf32>
    %55 = arith.addf %53, %54 : vector<1x1024xf32>
    %c0_35 = arith.constant 0 : index
    %c0_36 = arith.constant 0 : index
    %56 = vector.load %arg8[%c0_35, %c0_36] : memref<1x1024xf32, #tpu.memory_space<vmem>>, vector<1x1024xf32>
    %57 = arith.mulf %55, %56 : vector<1x1024xf32>
    %c0_37 = arith.constant 0 : index
    %c0_38 = arith.constant 0 : index
    %58 = vector.load %arg9[%c0_37, %c0_38] : memref<1x1024xf32, #tpu.memory_space<vmem>>, vector<1x1024xf32>
    %59 = arith.addf %57, %58 : vector<1x1024xf32>
    %cst_39 = arith.constant 5.000000e-01 : f32
    %60 = vector.broadcast %cst_39 : f32 to vector<1x1024xf32>
    %61 = arith.mulf %60, %59 : vector<1x1024xf32>
    %cst_40 = arith.constant 4.471500e-02 : f32
    %62 = vector.broadcast %cst_40 : f32 to vector<1x1024xf32>
    %63 = arith.mulf %62, %59 : vector<1x1024xf32>
    %64 = arith.mulf %63, %59 : vector<1x1024xf32>
    %65 = arith.mulf %64, %59 : vector<1x1024xf32>
    %66 = arith.addf %59, %65 : vector<1x1024xf32>
    %cst_41 = arith.constant 0.797884583 : f32
    %67 = vector.broadcast %cst_41 : f32 to vector<1x1024xf32>
    %68 = arith.mulf %67, %66 : vector<1x1024xf32>
    %69 = math.tanh %68 : vector<1x1024xf32>
    %cst_42 = arith.constant 1.000000e+00 : f32
    %70 = vector.broadcast %cst_42 : f32 to vector<1x1024xf32>
    %71 = arith.addf %70, %69 : vector<1x1024xf32>
    %72 = arith.mulf %61, %71 : vector<1x1024xf32>
    %73 = arith.truncf %72 : vector<1x1024xf32> to vector<1x1024xbf16>
    %c0_43 = arith.constant 0 : index
    %c0_44 = arith.constant 0 : index
    %74 = vector.load %arg10[%c0_43, %c0_44] : memref<1024x512xbf16, #tpu.memory_space<vmem>>, vector<1024x512xbf16>
    %cst_45 = arith.constant dense<0.000000e+00> : vector<1x512xf32>
    %75 = tpu.matmul %73, %74, %cst_45 {dimension_numbers = #tpu.dot_dimension_numbers<[1], [0], [0], [1], [0, 0, 1, 1], [], []>} : vector<1x1024xbf16>, vector<1024x512xbf16>, vector<1x512xf32> -> vector<1x512xf32>
    %c0_46 = arith.constant 0 : index
    %c0_47 = arith.constant 0 : index
    %76 = vector.load %arg11[%c0_46, %c0_47] : memref<1x512xf32, #tpu.memory_space<vmem>>, vector<1x512xf32>
    %77 = arith.addf %75, %76 : vector<1x512xf32>
    %c0_48 = arith.constant 0 : index
    %c0_49 = arith.constant 0 : index
    %78 = vector.load %arg12[%c0_48, %c0_49] : memref<1x512xf32, #tpu.memory_space<vmem>>, vector<1x512xf32>
    %79 = arith.mulf %77, %78 : vector<1x512xf32>
    %c0_50 = arith.constant 0 : index
    %c0_51 = arith.constant 0 : index
    %80 = vector.load %arg13[%c0_50, %c0_51] : memref<1x512xf32, #tpu.memory_space<vmem>>, vector<1x512xf32>
    %81 = arith.addf %79, %80 : vector<1x512xf32>
    %cst_52 = arith.constant 5.000000e-01 : f32
    %82 = vector.broadcast %cst_52 : f32 to vector<1x512xf32>
    %83 = arith.mulf %82, %81 : vector<1x512xf32>
    %cst_53 = arith.constant 4.471500e-02 : f32
    %84 = vector.broadcast %cst_53 : f32 to vector<1x512xf32>
    %85 = arith.mulf %84, %81 : vector<1x512xf32>
    %86 = arith.mulf %85, %81 : vector<1x512xf32>
    %87 = arith.mulf %86, %81 : vector<1x512xf32>
    %88 = arith.addf %81, %87 : vector<1x512xf32>
    %cst_54 = arith.constant 0.797884583 : f32
    %89 = vector.broadcast %cst_54 : f32 to vector<1x512xf32>
    %90 = arith.mulf %89, %88 : vector<1x512xf32>
    %91 = math.tanh %90 : vector<1x512xf32>
    %cst_55 = arith.constant 1.000000e+00 : f32
    %92 = vector.broadcast %cst_55 : f32 to vector<1x512xf32>
    %93 = arith.addf %92, %91 : vector<1x512xf32>
    %94 = arith.mulf %83, %93 : vector<1x512xf32>
    %c0_56 = arith.constant 0 : index
    %c0_57 = arith.constant 0 : index
    %95 = vector.load %arg14[%c0_56, %c0_57] : memref<512x5xf32, #tpu.memory_space<vmem>>, vector<512x5xf32>
    %cst_58 = arith.constant dense<0.000000e+00> : vector<1x5xf32>
    %96 = tpu.matmul %94, %95, %cst_58 {dimension_numbers = #tpu.dot_dimension_numbers<[1], [0], [0], [1], [0, 0, 1, 1], [], []>} : vector<1x512xf32>, vector<512x5xf32>, vector<1x5xf32> -> vector<1x5xf32>
    %c0_59 = arith.constant 0 : index
    %c0_60 = arith.constant 0 : index
    %97 = vector.load %arg15[%c0_59, %c0_60] : memref<1x5xf32, #tpu.memory_space<vmem>>, vector<1x5xf32>
    %98 = arith.addf %96, %97 : vector<1x5xf32>
    %99 = arith.truncf %50 : vector<1x64xf32> to vector<1x64xbf16>
    %c0_61 = arith.constant 0 : index
    %c0_62 = arith.constant 0 : index
    %100 = vector.load %arg16[%c0_61, %c0_62] : memref<64x512xbf16, #tpu.memory_space<vmem>>, vector<64x512xbf16>
    %cst_63 = arith.constant dense<0.000000e+00> : vector<1x512xf32>
    %101 = tpu.matmul %99, %100, %cst_63 {dimension_numbers = #tpu.dot_dimension_numbers<[1], [0], [0], [1], [0, 0, 1, 1], [], []>} : vector<1x64xbf16>, vector<64x512xbf16>, vector<1x512xf32> -> vector<1x512xf32>
    %c0_64 = arith.constant 0 : index
    %c0_65 = arith.constant 0 : index
    %102 = vector.load %arg17[%c0_64, %c0_65] : memref<1x512xf32, #tpu.memory_space<vmem>>, vector<1x512xf32>
    %103 = arith.addf %101, %102 : vector<1x512xf32>
    %c0_66 = arith.constant 0 : index
    %c0_67 = arith.constant 0 : index
    %104 = vector.load %arg18[%c0_66, %c0_67] : memref<1x512xf32, #tpu.memory_space<vmem>>, vector<1x512xf32>
    %105 = arith.mulf %103, %104 : vector<1x512xf32>
    %c0_68 = arith.constant 0 : index
    %c0_69 = arith.constant 0 : index
    %106 = vector.load %arg19[%c0_68, %c0_69] : memref<1x512xf32, #tpu.memory_space<vmem>>, vector<1x512xf32>
    %107 = arith.addf %105, %106 : vector<1x512xf32>
    %cst_70 = arith.constant 5.000000e-01 : f32
    %108 = vector.broadcast %cst_70 : f32 to vector<1x512xf32>
    %109 = arith.mulf %108, %107 : vector<1x512xf32>
    %cst_71 = arith.constant 4.471500e-02 : f32
    %110 = vector.broadcast %cst_71 : f32 to vector<1x512xf32>
    %111 = arith.mulf %110, %107 : vector<1x512xf32>
    %112 = arith.mulf %111, %107 : vector<1x512xf32>
    %113 = arith.mulf %112, %107 : vector<1x512xf32>
    %114 = arith.addf %107, %113 : vector<1x512xf32>
    %cst_72 = arith.constant 0.797884583 : f32
    %115 = vector.broadcast %cst_72 : f32 to vector<1x512xf32>
    %116 = arith.mulf %115, %114 : vector<1x512xf32>
    %117 = math.tanh %116 : vector<1x512xf32>
    %cst_73 = arith.constant 1.000000e+00 : f32
    %118 = vector.broadcast %cst_73 : f32 to vector<1x512xf32>
    %119 = arith.addf %118, %117 : vector<1x512xf32>
    %120 = arith.mulf %109, %119 : vector<1x512xf32>
    %121 = arith.truncf %120 : vector<1x512xf32> to vector<1x512xbf16>
    %c0_74 = arith.constant 0 : index
    %c0_75 = arith.constant 0 : index
    %122 = vector.load %arg20[%c0_74, %c0_75] : memref<512x256xbf16, #tpu.memory_space<vmem>>, vector<512x256xbf16>
    %cst_76 = arith.constant dense<0.000000e+00> : vector<1x256xf32>
    %123 = tpu.matmul %121, %122, %cst_76 {dimension_numbers = #tpu.dot_dimension_numbers<[1], [0], [0], [1], [0, 0, 1, 1], [], []>} : vector<1x512xbf16>, vector<512x256xbf16>, vector<1x256xf32> -> vector<1x256xf32>
    %c0_77 = arith.constant 0 : index
    %c0_78 = arith.constant 0 : index
    %124 = vector.load %arg21[%c0_77, %c0_78] : memref<1x256xf32, #tpu.memory_space<vmem>>, vector<1x256xf32>
    %125 = arith.addf %123, %124 : vector<1x256xf32>
    %c0_79 = arith.constant 0 : index
    %c0_80 = arith.constant 0 : index
    %126 = vector.load %arg22[%c0_79, %c0_80] : memref<1x256xf32, #tpu.memory_space<vmem>>, vector<1x256xf32>
    %127 = arith.mulf %125, %126 : vector<1x256xf32>
    %c0_81 = arith.constant 0 : index
    %c0_82 = arith.constant 0 : index
    %128 = vector.load %arg23[%c0_81, %c0_82] : memref<1x256xf32, #tpu.memory_space<vmem>>, vector<1x256xf32>
    %129 = arith.addf %127, %128 : vector<1x256xf32>
    %cst_83 = arith.constant 5.000000e-01 : f32
    %130 = vector.broadcast %cst_83 : f32 to vector<1x256xf32>
    %131 = arith.mulf %130, %129 : vector<1x256xf32>
    %cst_84 = arith.constant 4.471500e-02 : f32
    %132 = vector.broadcast %cst_84 : f32 to vector<1x256xf32>
    %133 = arith.mulf %132, %129 : vector<1x256xf32>
    %134 = arith.mulf %133, %129 : vector<1x256xf32>
    %135 = arith.mulf %134, %129 : vector<1x256xf32>
    %136 = arith.addf %129, %135 : vector<1x256xf32>
    %cst_85 = arith.constant 0.797884583 : f32
    %137 = vector.broadcast %cst_85 : f32 to vector<1x256xf32>
    %138 = arith.mulf %137, %136 : vector<1x256xf32>
    %139 = math.tanh %138 : vector<1x256xf32>
    %cst_86 = arith.constant 1.000000e+00 : f32
    %140 = vector.broadcast %cst_86 : f32 to vector<1x256xf32>
    %141 = arith.addf %140, %139 : vector<1x256xf32>
    %142 = arith.mulf %131, %141 : vector<1x256xf32>
    %c0_87 = arith.constant 0 : index
    %c0_88 = arith.constant 0 : index
    %143 = vector.load %arg24[%c0_87, %c0_88] : memref<256x5xf32, #tpu.memory_space<vmem>>, vector<256x5xf32>
    %cst_89 = arith.constant dense<0.000000e+00> : vector<1x5xf32>
    %144 = tpu.matmul %142, %143, %cst_89 {dimension_numbers = #tpu.dot_dimension_numbers<[1], [0], [0], [1], [0, 0, 1, 1], [], []>} : vector<1x256xf32>, vector<256x5xf32>, vector<1x5xf32> -> vector<1x5xf32>
    %c0_90 = arith.constant 0 : index
    %c0_91 = arith.constant 0 : index
    %145 = vector.load %arg25[%c0_90, %c0_91] : memref<1x5xf32, #tpu.memory_space<vmem>>, vector<1x5xf32>
    %146 = arith.addf %144, %145 : vector<1x5xf32>
    %147 = arith.truncf %50 : vector<1x64xf32> to vector<1x64xbf16>
    %c0_92 = arith.constant 0 : index
    %c0_93 = arith.constant 0 : index
    %148 = vector.load %arg26[%c0_92, %c0_93] : memref<64x256xbf16, #tpu.memory_space<vmem>>, vector<64x256xbf16>
    %cst_94 = arith.constant dense<0.000000e+00> : vector<1x256xf32>
    %149 = tpu.matmul %147, %148, %cst_94 {dimension_numbers = #tpu.dot_dimension_numbers<[1], [0], [0], [1], [0, 0, 1, 1], [], []>} : vector<1x64xbf16>, vector<64x256xbf16>, vector<1x256xf32> -> vector<1x256xf32>
    %c0_95 = arith.constant 0 : index
    %c0_96 = arith.constant 0 : index
    %150 = vector.load %arg27[%c0_95, %c0_96] : memref<1x256xf32, #tpu.memory_space<vmem>>, vector<1x256xf32>
    %151 = arith.addf %149, %150 : vector<1x256xf32>
    %cst_97 = arith.constant 5.000000e-01 : f32
    %152 = vector.broadcast %cst_97 : f32 to vector<1x256xf32>
    %153 = arith.mulf %152, %151 : vector<1x256xf32>
    %cst_98 = arith.constant 4.471500e-02 : f32
    %154 = vector.broadcast %cst_98 : f32 to vector<1x256xf32>
    %155 = arith.mulf %154, %151 : vector<1x256xf32>
    %156 = arith.mulf %155, %151 : vector<1x256xf32>
    %157 = arith.mulf %156, %151 : vector<1x256xf32>
    %158 = arith.addf %151, %157 : vector<1x256xf32>
    %cst_99 = arith.constant 0.797884583 : f32
    %159 = vector.broadcast %cst_99 : f32 to vector<1x256xf32>
    %160 = arith.mulf %159, %158 : vector<1x256xf32>
    %161 = math.tanh %160 : vector<1x256xf32>
    %cst_100 = arith.constant 1.000000e+00 : f32
    %162 = vector.broadcast %cst_100 : f32 to vector<1x256xf32>
    %163 = arith.addf %162, %161 : vector<1x256xf32>
    %164 = arith.mulf %153, %163 : vector<1x256xf32>
    %c0_101 = arith.constant 0 : index
    %c0_102 = arith.constant 0 : index
    %165 = vector.load %arg28[%c0_101, %c0_102] : memref<256x4xf32, #tpu.memory_space<vmem>>, vector<256x4xf32>
    %cst_103 = arith.constant dense<0.000000e+00> : vector<1x4xf32>
    %166 = tpu.matmul %164, %165, %cst_103 {dimension_numbers = #tpu.dot_dimension_numbers<[1], [0], [0], [1], [0, 0, 1, 1], [], []>} : vector<1x256xf32>, vector<256x4xf32>, vector<1x4xf32> -> vector<1x4xf32>
    %c0_104 = arith.constant 0 : index
    %c0_105 = arith.constant 0 : index
    %167 = vector.load %arg29[%c0_104, %c0_105] : memref<1x4xf32, #tpu.memory_space<vmem>>, vector<1x4xf32>
    %168 = arith.addf %166, %167 : vector<1x4xf32>
    %169 = arith.truncf %50 : vector<1x64xf32> to vector<1x64xbf16>
    %c0_106 = arith.constant 0 : index
    %c0_107 = arith.constant 0 : index
    %170 = vector.load %arg30[%c0_106, %c0_107] : memref<64x256xbf16, #tpu.memory_space<vmem>>, vector<64x256xbf16>
    %cst_108 = arith.constant dense<0.000000e+00> : vector<1x256xf32>
    %171 = tpu.matmul %169, %170, %cst_108 {dimension_numbers = #tpu.dot_dimension_numbers<[1], [0], [0], [1], [0, 0, 1, 1], [], []>} : vector<1x64xbf16>, vector<64x256xbf16>, vector<1x256xf32> -> vector<1x256xf32>
    %c0_109 = arith.constant 0 : index
    %c0_110 = arith.constant 0 : index
    %172 = vector.load %arg31[%c0_109, %c0_110] : memref<1x256xf32, #tpu.memory_space<vmem>>, vector<1x256xf32>
    %173 = arith.addf %171, %172 : vector<1x256xf32>
    %cst_111 = arith.constant 0.000000e+00 : f32
    %174 = vector.broadcast %cst_111 : f32 to vector<1x256xf32>
    %175 = arith.maximumf %173, %174 : vector<1x256xf32>
    %c0_112 = arith.constant 0 : index
    %c0_113 = arith.constant 0 : index
    %176 = vector.load %arg32[%c0_112, %c0_113] : memref<256x5xf32, #tpu.memory_space<vmem>>, vector<256x5xf32>
    %cst_114 = arith.constant dense<0.000000e+00> : vector<1x5xf32>
    %177 = tpu.matmul %175, %176, %cst_114 {dimension_numbers = #tpu.dot_dimension_numbers<[1], [0], [0], [1], [0, 0, 1, 1], [], []>} : vector<1x256xf32>, vector<256x5xf32>, vector<1x5xf32> -> vector<1x5xf32>
    %c0_115 = arith.constant 0 : index
    %c0_116 = arith.constant 0 : index
    %178 = vector.load %arg33[%c0_115, %c0_116] : memref<1x5xf32, #tpu.memory_space<vmem>>, vector<1x5xf32>
    %179 = arith.addf %177, %178 : vector<1x5xf32>
    %cst_117 = arith.constant 0.000000e+00 : f32
    %180 = vector.broadcast %cst_117 : f32 to vector<1x512xf32>
    %c0_118 = arith.constant 0 : index
    %c0_119 = arith.constant 0 : index
    %c0_120 = arith.constant 0 : index
    %181 = vector.load %arg34[%c0_118, %c0_119, %c0_120] : memref<1x1x512xf32, #tpu.memory_space<vmem>>, vector<1x1x512xf32>
    %182 = vector.shape_cast %181 : vector<1x1x512xf32> to vector<1x512xf32>
    %183 = vector.shape_cast %180 : vector<1x512xf32> to vector<1x1x512xf32>
    tpu.vector_store %arg34[%c0_118, %c0_119, %c0_120], %183 {strides = array<i32>} : memref<1x1x512xf32, #tpu.memory_space<vmem>>, vector<1x1x512xf32>,
    %c0_121 = arith.constant 0 : index
    %c0_122 = arith.constant 0 : index
    %c0_123 = arith.constant 0 : index
    %184 = vector.load %arg34[%c0_121, %c0_122, %c0_123] : memref<1x1x512xf32, #tpu.memory_space<vmem>>, vector<1x1x5xf32>
    %185 = vector.shape_cast %184 : vector<1x1x5xf32> to vector<1x5xf32>
    %186 = vector.shape_cast %98 : vector<1x5xf32> to vector<1x1x5xf32>
    tpu.vector_store %arg34[%c0_121, %c0_122, %c0_123], %186 {strides = array<i32>} : memref<1x1x512xf32, #tpu.memory_space<vmem>>, vector<1x1x5xf32>,
    %c0_124 = arith.constant 0 : index
    %c0_125 = arith.constant 0 : index
    %c128 = arith.constant 128 : index
    %187 = vector.load %arg34[%c0_124, %c0_125, %c128] : memref<1x1x512xf32, #tpu.memory_space<vmem>>, vector<1x1x5xf32>
    %188 = vector.shape_cast %187 : vector<1x1x5xf32> to vector<1x5xf32>
    %189 = vector.shape_cast %146 : vector<1x5xf32> to vector<1x1x5xf32>
    tpu.vector_store %arg34[%c0_124, %c0_125, %c128], %189 {strides = array<i32>} : memref<1x1x512xf32, #tpu.memory_space<vmem>>, vector<1x1x5xf32>,
    %c0_126 = arith.constant 0 : index
    %c0_127 = arith.constant 0 : index
    %c256 = arith.constant 256 : index
    %190 = vector.load %arg34[%c0_126, %c0_127, %c256] : memref<1x1x512xf32, #tpu.memory_space<vmem>>, vector<1x1x4xf32>
    %191 = vector.shape_cast %190 : vector<1x1x4xf32> to vector<1x4xf32>
    %192 = vector.shape_cast %168 : vector<1x4xf32> to vector<1x1x4xf32>
    tpu.vector_store %arg34[%c0_126, %c0_127, %c256], %192 {strides = array<i32>} : memref<1x1x512xf32, #tpu.memory_space<vmem>>, vector<1x1x4xf32>,
    %c0_128 = arith.constant 0 : index
    %c0_129 = arith.constant 0 : index
    %c384 = arith.constant 384 : index
    %193 = vector.load %arg34[%c0_128, %c0_129, %c384] : memref<1x1x512xf32, #tpu.memory_space<vmem>>, vector<1x1x5xf32>
    %194 = vector.shape_cast %193 : vector<1x1x5xf32> to vector<1x5xf32>
    %195 = vector.shape_cast %179 : vector<1x5xf32> to vector<1x1x5xf32>
    tpu.vector_store %arg34[%c0_128, %c0_129, %c384], %195 {strides = array<i32>} : memref<1x1x512xf32, #tpu.memory_space<vmem>>, vector<1x1x5xf32>,
    return
  }
  func.func @transform_0(%arg0: i32) -> (i32, i32, i32) {
    %c0_i32 = arith.constant 0 : i32
    %c0_i32_0 = arith.constant 0 : i32
    %c0_i32_1 = arith.constant 0 : i32
    return %arg0, %c0_i32, %c0_i32_0 : i32, i32, i32
  }
  func.func @transform_1(%arg0: i32) -> (i32, i32) {
    %c0_i32 = arith.constant 0 : i32
    %c0_i32_0 = arith.constant 0 : i32
    %c0_i32_1 = arith.constant 0 : i32
    return %c0_i32, %c0_i32_0 : i32, i32
  }
  func.func @transform_2(%arg0: i32) -> (i32, i32) {
    %c0_i32 = arith.constant 0 : i32
    %c0_i32_0 = arith.constant 0 : i32
    %c0_i32_1 = arith.constant 0 : i32
    return %c0_i32, %c0_i32_0 : i32, i32
  }
  func.func @transform_3(%arg0: i32) -> (i32, i32) {
    %c0_i32 = arith.constant 0 : i32
    %c0_i32_0 = arith.constant 0 : i32
    %c0_i32_1 = arith.constant 0 : i32
    return %c0_i32, %c0_i32_0 : i32, i32
  }
  func.func @transform_4(%arg0: i32) -> (i32, i32) {
    %c0_i32 = arith.constant 0 : i32
    %c0_i32_0 = arith.constant 0 : i32
    %c0_i32_1 = arith.constant 0 : i32
    return %c0_i32, %c0_i32_0 : i32, i32
  }
  func.func @transform_5(%arg0: i32) -> (i32, i32) {
    %c0_i32 = arith.constant 0 : i32
    %c0_i32_0 = arith.constant 0 : i32
    %c0_i32_1 = arith.constant 0 : i32
    return %c0_i32, %c0_i32_0 : i32, i32
  }
  func.func @transform_6(%arg0: i32) -> (i32, i32) {
    %c0_i32 = arith.constant 0 : i32
    %c0_i32_0 = arith.constant 0 : i32
    %c0_i32_1 = arith.constant 0 : i32
    return %c0_i32, %c0_i32_0 : i32, i32
  }
  func.func @transform_7(%arg0: i32) -> (i32, i32) {
    %c0_i32 = arith.constant 0 : i32
    %c0_i32_0 = arith.constant 0 : i32
    %c0_i32_1 = arith.constant 0 : i32
    return %c0_i32, %c0_i32_0 : i32, i32
  }
  func.func @transform_8(%arg0: i32) -> (i32, i32) {
    %c0_i32 = arith.constant 0 : i32
    %c0_i32_0 = arith.constant 0 : i32
    %c0_i32_1 = arith.constant 0 : i32
    return %c0_i32, %c0_i32_0 : i32, i32
  }
  func.func @transform_9(%arg0: i32) -> (i32, i32) {
    %c0_i32 = arith.constant 0 : i32
    %c0_i32_0 = arith.constant 0 : i32
    %c0_i32_1 = arith.constant 0 : i32
    return %c0_i32, %c0_i32_0 : i32, i32
  }
  func.func @transform_10(%arg0: i32) -> (i32, i32) {
    %c0_i32 = arith.constant 0 : i32
    %c0_i32_0 = arith.constant 0 : i32
    %c0_i32_1 = arith.constant 0 : i32
    return %c0_i32, %c0_i32_0 : i32, i32
  }
  func.func @transform_11(%arg0: i32) -> (i32, i32) {
    %c0_i32 = arith.constant 0 : i32
    %c0_i32_0 = arith.constant 0 : i32
    %c0_i32_1 = arith.constant 0 : i32
    return %c0_i32, %c0_i32_0 : i32, i32
  }
  func.func @transform_12(%arg0: i32) -> (i32, i32) {
    %c0_i32 = arith.constant 0 : i32
    %c0_i32_0 = arith.constant 0 : i32
    %c0_i32_1 = arith.constant 0 : i32
    return %c0_i32, %c0_i32_0 : i32, i32
  }
  func.func @transform_13(%arg0: i32) -> (i32, i32) {
    %c0_i32 = arith.constant 0 : i32
    %c0_i32_0 = arith.constant 0 : i32
    %c0_i32_1 = arith.constant 0 : i32
    return %c0_i32, %c0_i32_0 : i32, i32
  }
  func.func @transform_14(%arg0: i32) -> (i32, i32) {
    %c0_i32 = arith.constant 0 : i32
    %c0_i32_0 = arith.constant 0 : i32
    %c0_i32_1 = arith.constant 0 : i32
    return %c0_i32, %c0_i32_0 : i32, i32
  }
  func.func @transform_15(%arg0: i32) -> (i32, i32) {
    %c0_i32 = arith.constant 0 : i32
    %c0_i32_0 = arith.constant 0 : i32
    %c0_i32_1 = arith.constant 0 : i32
    return %c0_i32, %c0_i32_0 : i32, i32
  }
  func.func @transform_16(%arg0: i32) -> (i32, i32) {
    %c0_i32 = arith.constant 0 : i32
    %c0_i32_0 = arith.constant 0 : i32
    %c0_i32_1 = arith.constant 0 : i32
    return %c0_i32, %c0_i32_0 : i32, i32
  }
  func.func @transform_17(%arg0: i32) -> (i32, i32) {
    %c0_i32 = arith.constant 0 : i32
    %c0_i32_0 = arith.constant 0 : i32
    %c0_i32_1 = arith.constant 0 : i32
    return %c0_i32, %c0_i32_0 : i32, i32
  }
  func.func @transform_18(%arg0: i32) -> (i32, i32) {
    %c0_i32 = arith.constant 0 : i32
    %c0_i32_0 = arith.constant 0 : i32
    %c0_i32_1 = arith.constant 0 : i32
    return %c0_i32, %c0_i32_0 : i32, i32
  }
  func.func @transform_19(%arg0: i32) -> (i32, i32) {
    %c0_i32 = arith.constant 0 : i32
    %c0_i32_0 = arith.constant 0 : i32
    %c0_i32_1 = arith.constant 0 : i32
    return %c0_i32, %c0_i32_0 : i32, i32
  }
  func.func @transform_20(%arg0: i32) -> (i32, i32) {
    %c0_i32 = arith.constant 0 : i32
    %c0_i32_0 = arith.constant 0 : i32
    %c0_i32_1 = arith.constant 0 : i32
    return %c0_i32, %c0_i32_0 : i32, i32
  }
  func.func @transform_21(%arg0: i32) -> (i32, i32) {
    %c0_i32 = arith.constant 0 : i32
    %c0_i32_0 = arith.constant 0 : i32
    %c0_i32_1 = arith.constant 0 : i32
    return %c0_i32, %c0_i32_0 : i32, i32
  }
  func.func @transform_22(%arg0: i32) -> (i32, i32) {
    %c0_i32 = arith.constant 0 : i32
    %c0_i32_0 = arith.constant 0 : i32
    %c0_i32_1 = arith.constant 0 : i32
    return %c0_i32, %c0_i32_0 : i32, i32
  }
  func.func @transform_23(%arg0: i32) -> (i32, i32) {
    %c0_i32 = arith.constant 0 : i32
    %c0_i32_0 = arith.constant 0 : i32
    %c0_i32_1 = arith.constant 0 : i32
    return %c0_i32, %c0_i32_0 : i32, i32
  }
  func.func @transform_24(%arg0: i32) -> (i32, i32) {
    %c0_i32 = arith.constant 0 : i32
    %c0_i32_0 = arith.constant 0 : i32
    %c0_i32_1 = arith.constant 0 : i32
    return %c0_i32, %c0_i32_0 : i32, i32
  }
  func.func @transform_25(%arg0: i32) -> (i32, i32) {
    %c0_i32 = arith.constant 0 : i32
    %c0_i32_0 = arith.constant 0 : i32
    %c0_i32_1 = arith.constant 0 : i32
    return %c0_i32, %c0_i32_0 : i32, i32
  }
  func.func @transform_26(%arg0: i32) -> (i32, i32) {
    %c0_i32 = arith.constant 0 : i32
    %c0_i32_0 = arith.constant 0 : i32
    %c0_i32_1 = arith.constant 0 : i32
    return %c0_i32, %c0_i32_0 : i32, i32
  }
  func.func @transform_27(%arg0: i32) -> (i32, i32) {
    %c0_i32 = arith.constant 0 : i32
    %c0_i32_0 = arith.constant 0 : i32
    %c0_i32_1 = arith.constant 0 : i32
    return %c0_i32, %c0_i32_0 : i32, i32
  }
  func.func @transform_28(%arg0: i32) -> (i32, i32) {
    %c0_i32 = arith.constant 0 : i32
    %c0_i32_0 = arith.constant 0 : i32
    %c0_i32_1 = arith.constant 0 : i32
    return %c0_i32, %c0_i32_0 : i32, i32
  }
  func.func @transform_29(%arg0: i32) -> (i32, i32) {
    %c0_i32 = arith.constant 0 : i32
    %c0_i32_0 = arith.constant 0 : i32
    %c0_i32_1 = arith.constant 0 : i32
    return %c0_i32, %c0_i32_0 : i32, i32
  }
  func.func @transform_30(%arg0: i32) -> (i32, i32) {
    %c0_i32 = arith.constant 0 : i32
    %c0_i32_0 = arith.constant 0 : i32
    %c0_i32_1 = arith.constant 0 : i32
    return %c0_i32, %c0_i32_0 : i32, i32
  }
  func.func @transform_31(%arg0: i32) -> (i32, i32) {
    %c0_i32 = arith.constant 0 : i32
    %c0_i32_0 = arith.constant 0 : i32
    %c0_i32_1 = arith.constant 0 : i32
    return %c0_i32, %c0_i32_0 : i32, i32
  }
  func.func @transform_32(%arg0: i32) -> (i32, i32) {
    %c0_i32 = arith.constant 0 : i32
    %c0_i32_0 = arith.constant 0 : i32
    %c0_i32_1 = arith.constant 0 : i32
    return %c0_i32, %c0_i32_0 : i32, i32
  }
  func.func @transform_33(%arg0: i32) -> (i32, i32, i32) {
    %c0_i32 = arith.constant 0 : i32
    %c0_i32_0 = arith.constant 0 : i32
    %c0_i32_1 = arith.constant 0 : i32
    return %arg0, %c0_i32, %c0_i32_0 : i32, i32, i32
  }
}

</mosaic_0001>

<llo_original>
// kernel: _forward_jit.1
$region0: #{_forward_jit.1}
  #allocation0 [shape = 'u32[]', space=smem, size = 0x4, offset = 0x4, fixed_abs, tag = 'smem constant byte address 0x4 - core index']
  #allocation1 [shape = 'u32[144,128]{1,0:T(1,128)}', space=vmem, size = 0x12000, scoped, tag = 'internal scratch']
  %s0 = inlined_call_operand.smem [shape: u32[34], index: -1, kind: input, shape index: {}]
  %s1 = sld [smem:[%s0]]
  %s2 = scalar_lea.smem %s0, 1
  %s3 = sld [smem:[%s2]]
  %s4 = scalar_lea.smem %s0, 2
  %s5 = sld [smem:[%s4]]
  %s6 = scalar_lea.smem %s0, 3
  %s7 = sld [smem:[%s6]]
  %s8 = scalar_lea.smem %s0, 4
  %s9 = sld [smem:[%s8]]
  %s10 = scalar_lea.smem %s0, 5
  %s11 = sld [smem:[%s10]]
  %s12 = scalar_lea.smem %s0, 6
  %s13 = sld [smem:[%s12]]
  %s14 = scalar_lea.smem %s0, 7
  %s15 = sld [smem:[%s14]]
  %s16 = scalar_lea.smem %s0, 8
  %s17 = sld [smem:[%s16]]
  %s18 = scalar_lea.smem %s0, 9
  %s19 = sld [smem:[%s18]]
  %s20 = scalar_lea.smem %s0, 10
  %s21 = sld [smem:[%s20]]
  %s22 = scalar_lea.smem %s0, 11
  %s23 = sld [smem:[%s22]]
  %s24 = scalar_lea.smem %s0, 12
  %s25 = sld [smem:[%s24]]
  %s26 = scalar_lea.smem %s0, 13
  %s27 = sld [smem:[%s26]]
  %s28 = scalar_lea.smem %s0, 14
  %s29 = sld [smem:[%s28]]
  %s30 = scalar_lea.smem %s0, 15
  %s31 = sld [smem:[%s30]]
  %s32 = scalar_lea.smem %s0, 16
  %s33 = sld [smem:[%s32]]
  %s34 = scalar_lea.smem %s0, 17
  %s35 = sld [smem:[%s34]]
  %s36 = scalar_lea.smem %s0, 18
  %s37 = sld [smem:[%s36]]
  %s38 = scalar_lea.smem %s0, 19
  %s39 = sld [smem:[%s38]]
  %s40 = scalar_lea.smem %s0, 20
  %s41 = sld [smem:[%s40]]
  %s42 = scalar_lea.smem %s0, 21
  %s43 = sld [smem:[%s42]]
  %s44 = scalar_lea.smem %s0, 22
  %s45 = sld [smem:[%s44]]
  %s46 = scalar_lea.smem %s0, 23
  %s47 = sld [smem:[%s46]]
  %s48 = scalar_lea.smem %s0, 24
  %s49 = sld [smem:[%s48]]
  %s50 = scalar_lea.smem %s0, 25
  %s51 = sld [smem:[%s50]]
  %s52 = scalar_lea.smem %s0, 26
  %s53 = sld [smem:[%s52]]
  %s54 = scalar_lea.smem %s0, 27
  %s55 = sld [smem:[%s54]]
  %s56 = scalar_lea.smem %s0, 28
  %s57 = sld [smem:[%s56]]
  %s58 = scalar_lea.smem %s0, 29
  %s59 = sld [smem:[%s58]]
  %s60 = scalar_lea.smem %s0, 30
  %s61 = sld [smem:[%s60]]
  %s62 = scalar_lea.smem %s0, 31
  %s63 = sld [smem:[%s62]]
  %s64 = scalar_lea.smem %s0, 32
  %s65 = sld [smem:[%s64]]
  %s66 = scalar_lea.smem %s0, 33
  %s67 = sld [smem:[%s66]]
  %s68 = sld [smem:[#allocation0]]
  $region165: #{_forward_jit.1} parent=0
    _
  %s70 = ssub.s32 1, %s68
  %s71 = scalar_select 0, %s70, %s68
  loop: start=0, step=1, limit=4
  $region2: #{_forward_jit.1} parent=0 // loop_pre_header
    _
  $region3: #{_forward_jit.1} parent=0 // loop_header
    %s73 = sphi 0, %s77
    %p74 = scmp.ge.s32.totalorder %s73, 4
    %s83 = sphi 0, %s85
    %s86 = sphi 0, %s83
    %s87 = sphi 0, %s86
    %s103 = sphi 0, %s87
    %s107 = sphi 0, %s107
    %s109 = sphi 0, %s107
    %s110 = sphi 0, %s109
    %s124 = sphi 0, %s110
    %s128 = sphi 0, %s128
    %s130 = sphi 0, %s128
    %s131 = sphi 0, %s130
    %s145 = sphi 0, %s131
    %s149 = sphi 0, %s149
    %s151 = sphi 0, %s149
    %s152 = sphi 0, %s151
    %s166 = sphi 0, %s152
    %s170 = sphi 0, %s170
    %s172 = sphi 0, %s170
    %s173 = sphi 0, %s172
    %s187 = sphi 0, %s173
    %s191 = sphi 0, %s191
    %s193 = sphi 0, %s191
    %s194 = sphi 0, %s193
    %s208 = sphi 0, %s194
    %s212 = sphi 0, %s212
    %s214 = sphi 0, %s212
    %s215 = sphi 0, %s214
    %s229 = sphi 0, %s215
    %s233 = sphi 0, %s233
    %s235 = sphi 0, %s233
    %s236 = sphi 0, %s235
    %s250 = sphi 0, %s236
    %s254 = sphi 0, %s254
    %s256 = sphi 0, %s254
    %s257 = sphi 0, %s256
    %s271 = sphi 0, %s257
    %s275 = sphi 0, %s275
    %s277 = sphi 0, %s275
    %s278 = sphi 0, %s277
    %s292 = sphi 0, %s278
    %s296 = sphi 0, %s296
    %s298 = sphi 0, %s296
    %s299 = sphi 0, %s298
    %s313 = sphi 0, %s299
    %s317 = sphi 0, %s317
    %s319 = sphi 0, %s317
    %s320 = sphi 0, %s319
    %s334 = sphi 0, %s320
    %s338 = sphi 0, %s338
    %s340 = sphi 0, %s338
    %s341 = sphi 0, %s340
    %s355 = sphi 0, %s341
    %s359 = sphi 0, %s359
    %s361 = sphi 0, %s359
    %s362 = sphi 0, %s361
    %s376 = sphi 0, %s362
    %s380 = sphi 0, %s380
    %s382 = sphi 0, %s380
    %s383 = sphi 0, %s382
    %s397 = sphi 0, %s383
    %s401 = sphi 0, %s401
    %s403 = sphi 0, %s401
    %s404 = sphi 0, %s403
    %s418 = sphi 0, %s404
    %s422 = sphi 0, %s422
    %s424 = sphi 0, %s422
    %s425 = sphi 0, %s424
    %s439 = sphi 0, %s425
    %s443 = sphi 0, %s443
    %s445 = sphi 0, %s443
    %s446 = sphi 0, %s445
    %s460 = sphi 0, %s446
    %s464 = sphi 0, %s464
    %s466 = sphi 0, %s464
    %s467 = sphi 0, %s466
    %s481 = sphi 0, %s467
    %s485 = sphi 0, %s485
    %s487 = sphi 0, %s485
    %s488 = sphi 0, %s487
    %s502 = sphi 0, %s488
    %s506 = sphi 0, %s506
    %s508 = sphi 0, %s506
    %s509 = sphi 0, %s508
    %s523 = sphi 0, %s509
    %s527 = sphi 0, %s527
    %s529 = sphi 0, %s527
    %s530 = sphi 0, %s529
    %s544 = sphi 0, %s530
    %s548 = sphi 0, %s548
    %s550 = sphi 0, %s548
    %s551 = sphi 0, %s550
    %s565 = sphi 0, %s551
    %s569 = sphi 0, %s569
    %s571 = sphi 0, %s569
    %s572 = sphi 0, %s571
    %s586 = sphi 0, %s572
    %s590 = sphi 0, %s590
    %s592 = sphi 0, %s590
    %s593 = sphi 0, %s592
    %s607 = sphi 0, %s593
    %s611 = sphi 0, %s611
    %s613 = sphi 0, %s611
    %s614 = sphi 0, %s613
    %s628 = sphi 0, %s614
    %s632 = sphi 0, %s632
    %s634 = sphi 0, %s632
    %s635 = sphi 0, %s634
    %s649 = sphi 0, %s635
    %s653 = sphi 0, %s653
    %s655 = sphi 0, %s653
    %s656 = sphi 0, %s655
    %s670 = sphi 0, %s656
    %s674 = sphi 0, %s674
    %s676 = sphi 0, %s674
    %s677 = sphi 0, %s676
    %s691 = sphi 0, %s677
    %s695 = sphi 0, %s695
    %s697 = sphi 0, %s695
    %s698 = sphi 0, %s697
    %s712 = sphi 0, %s698
    %s716 = sphi 0, %s716
    %s718 = sphi 0, %s716
    %s719 = sphi 0, %s718
    %s733 = sphi 0, %s719
    %s737 = sphi 0, %s737
    %s739 = sphi 0, %s737
    %s740 = sphi 0, %s739
    %s754 = sphi 0, %s740
    %s758 = sphi 0, %s758
    %s760 = sphi 0, %s758
    %s761 = sphi 0, %s760
    %s775 = sphi 0, %s761
    %s781 = sphi 0, %s783
    %s784 = sphi 0, %s781
    %s785 = sphi 0, %s784
    %s801 = sphi 0, %s785
  $region4: #{_forward_jit.1} parent=0 // loop_header_branch
    %76 = sbr.rel (%p74) target = $region8
  $region5: #{_forward_jit.1} parent=0 // loop_body
    %s78 = ssub.s32 %s73, 1
    %s79 = ssub.s32 %s73, 2
    %s80 = sadd.s32 %s73, 1
    %s81 = ssub.s32 %s73, %s80
    %p82 = scmp.eq.s32.totalorder %s81, 0
    %s84 = sadd.s32 %s83, 1
    %s85 = scalar_select %p82, %s83, %s84
    %p88 = pneg %p82
    %p89 = scmp.eq.s32.totalorder %s73, 1
    %p90 = por %p88, %p89
    %p91 = scmp.ne.s32.totalorder %s83, %s86
    %p92 = scmp.eq.s32.totalorder %s73, 0
    %p93 = por %p91, %p92
    %p94 = scmp.ne.s32.totalorder %s83, %s86
    %p95 = scmp.eq.s32.totalorder %s78, 1
    %p96 = por %p94, %p95
    %p97 = scmp.ne.s32.totalorder %s86, %s87
    %p98 = scmp.eq.s32.totalorder %s78, 0
    %p99 = por %p97, %p98
    %p100 = scmp.ne.s32.totalorder %s86, %s87
    %p101 = scmp.eq.s32.totalorder %s79, 1
    %p102 = por %p100, %p101
    %p104 = scmp.ne.s32.totalorder %s87, %s103
    %p105 = scmp.eq.s32.totalorder %s79, 0
    %p106 = por %p104, %p105
    %s108 = sadd.s32 %s107, 1
    %p111 = scmp.eq.s32.totalorder %s73, 1
    %p112 = scmp.ne.s32.totalorder %s107, %s109
    %p113 = scmp.eq.s32.totalorder %s73, 0
    %p114 = por %p112, %p113
    %p115 = scmp.ne.s32.totalorder %s107, %s109
    %p116 = scmp.eq.s32.totalorder %s78, 1
    %p117 = por %p115, %p116
    %p118 = scmp.ne.s32.totalorder %s109, %s110
    %p119 = scmp.eq.s32.totalorder %s78, 0
    %p120 = por %p118, %p119
    %p121 = scmp.ne.s32.totalorder %s109, %s110
    %p122 = scmp.eq.s32.totalorder %s79, 1
    %p123 = por %p121, %p122
    %p125 = scmp.ne.s32.totalorder %s110, %s124
    %p126 = scmp.eq.s32.totalorder %s79, 0
    %p127 = por %p125, %p126
    %s129 = sadd.s32 %s128, 1
    %p132 = scmp.eq.s32.totalorder %s73, 1
    %p133 = scmp.ne.s32.totalorder %s128, %s130
    %p134 = scmp.eq.s32.totalorder %s73, 0
    %p135 = por %p133, %p134
    %p136 = scmp.ne.s32.totalorder %s128, %s130
    %p137 = scmp.eq.s32.totalorder %s78, 1
    %p138 = por %p136, %p137
    %p139 = scmp.ne.s32.totalorder %s130, %s131
    %p140 = scmp.eq.s32.totalorder %s78, 0
    %p141 = por %p139, %p140
    %p142 = scmp.ne.s32.totalorder %s130, %s131
    %p143 = scmp.eq.s32.totalorder %s79, 1
    %p144 = por %p142, %p143
    %p146 = scmp.ne.s32.totalorder %s131, %s145
    %p147 = scmp.eq.s32.totalorder %s79, 0
    %p148 = por %p146, %p147
    %s150 = sadd.s32 %s149, 1
    %p153 = scmp.eq.s32.totalorder %s73, 1
    %p154 = scmp.ne.s32.totalorder %s149, %s151
    %p155 = scmp.eq.s32.totalorder %s73, 0
    %p156 = por %p154, %p155
    %p157 = scmp.ne.s32.totalorder %s149, %s151
    %p158 = scmp.eq.s32.totalorder %s78, 1
    %p159 = por %p157, %p158
    %p160 = scmp.ne.s32.totalorder %s151, %s152
    %p161 = scmp.eq.s32.totalorder %s78, 0
    %p162 = por %p160, %p161
    %p163 = scmp.ne.s32.totalorder %s151, %s152
    %p164 = scmp.eq.s32.totalorder %s79, 1
    %p165 = por %p163, %p164
    %p167 = scmp.ne.s32.totalorder %s152, %s166
    %p168 = scmp.eq.s32.totalorder %s79, 0
    %p169 = por %p167, %p168
    %s171 = sadd.s32 %s170, 1
    %p174 = scmp.eq.s32.totalorder %s73, 1
    %p175 = scmp.ne.s32.totalorder %s170, %s172
    %p176 = scmp.eq.s32.totalorder %s73, 0
    %p177 = por %p175, %p176
    %p178 = scmp.ne.s32.totalorder %s170, %s172
    %p179 = scmp.eq.s32.totalorder %s78, 1
    %p180 = por %p178, %p179
    %p181 = scmp.ne.s32.totalorder %s172, %s173
    %p182 = scmp.eq.s32.totalorder %s78, 0
    %p183 = por %p181, %p182
    %p184 = scmp.ne.s32.totalorder %s172, %s173
    %p185 = scmp.eq.s32.totalorder %s79, 1
    %p186 = por %p184, %p185
    %p188 = scmp.ne.s32.totalorder %s173, %s187
    %p189 = scmp.eq.s32.totalorder %s79, 0
    %p190 = por %p188, %p189
    %s192 = sadd.s32 %s191, 1
    %p195 = scmp.eq.s32.totalorder %s73, 1
    %p196 = scmp.ne.s32.totalorder %s191, %s193
    %p197 = scmp.eq.s32.totalorder %s73, 0
    %p198 = por %p196, %p197
    %p199 = scmp.ne.s32.totalorder %s191, %s193
    %p200 = scmp.eq.s32.totalorder %s78, 1
    %p201 = por %p199, %p200
    %p202 = scmp.ne.s32.totalorder %s193, %s194
    %p203 = scmp.eq.s32.totalorder %s78, 0
    %p204 = por %p202, %p203
    %p205 = scmp.ne.s32.totalorder %s193, %s194
    %p206 = scmp.eq.s32.totalorder %s79, 1
    %p207 = por %p205, %p206
    %p209 = scmp.ne.s32.totalorder %s194, %s208
    %p210 = scmp.eq.s32.totalorder %s79, 0
    %p211 = por %p209, %p210
    %s213 = sadd.s32 %s212, 1
    %p216 = scmp.eq.s32.totalorder %s73, 1
    %p217 = scmp.ne.s32.totalorder %s212, %s214
    %p218 = scmp.eq.s32.totalorder %s73, 0
    %p219 = por %p217, %p218
    %p220 = scmp.ne.s32.totalorder %s212, %s214
    %p221 = scmp.eq.s32.totalorder %s78, 1
    %p222 = por %p220, %p221
    %p223 = scmp.ne.s32.totalorder %s214, %s215
    %p224 = scmp.eq.s32.totalorder %s78, 0
    %p225 = por %p223, %p224
    %p226 = scmp.ne.s32.totalorder %s214, %s215
    %p227 = scmp.eq.s32.totalorder %s79, 1
    %p228 = por %p226, %p227
    %p230 = scmp.ne.s32.totalorder %s215, %s229
    %p231 = scmp.eq.s32.totalorder %s79, 0
    %p232 = por %p230, %p231
    %s234 = sadd.s32 %s233, 1
    %p237 = scmp.eq.s32.totalorder %s73, 1
    %p238 = scmp.ne.s32.totalorder %s233, %s235
    %p239 = scmp.eq.s32.totalorder %s73, 0
    %p240 = por %p238, %p239
    %p241 = scmp.ne.s32.totalorder %s233, %s235
    %p242 = scmp.eq.s32.totalorder %s78, 1
    %p243 = por %p241, %p242
    %p244 = scmp.ne.s32.totalorder %s235, %s236
    %p245 = scmp.eq.s32.totalorder %s78, 0
    %p246 = por %p244, %p245
    %p247 = scmp.ne.s32.totalorder %s235, %s236
    %p248 = scmp.eq.s32.totalorder %s79, 1
    %p249 = por %p247, %p248
    %p251 = scmp.ne.s32.totalorder %s236, %s250
    %p252 = scmp.eq.s32.totalorder %s79, 0
    %p253 = por %p251, %p252
    %s255 = sadd.s32 %s254, 1
    %p258 = scmp.eq.s32.totalorder %s73, 1
    %p259 = scmp.ne.s32.totalorder %s254, %s256
    %p260 = scmp.eq.s32.totalorder %s73, 0
    %p261 = por %p259, %p260
    %p262 = scmp.ne.s32.totalorder %s254, %s256
    %p263 = scmp.eq.s32.totalorder %s78, 1
    %p264 = por %p262, %p263
    %p265 = scmp.ne.s32.totalorder %s256, %s257
    %p266 = scmp.eq.s32.totalorder %s78, 0
    %p267 = por %p265, %p266
    %p268 = scmp.ne.s32.totalorder %s256, %s257
    %p269 = scmp.eq.s32.totalorder %s79, 1
    %p270 = por %p268, %p269
    %p272 = scmp.ne.s32.totalorder %s257, %s271
    %p273 = scmp.eq.s32.totalorder %s79, 0
    %p274 = por %p272, %p273
    %s276 = sadd.s32 %s275, 1
    %p279 = scmp.eq.s32.totalorder %s73, 1
    %p280 = scmp.ne.s32.totalorder %s275, %s277
    %p281 = scmp.eq.s32.totalorder %s73, 0
    %p282 = por %p280, %p281
    %p283 = scmp.ne.s32.totalorder %s275, %s277
    %p284 = scmp.eq.s32.totalorder %s78, 1
    %p285 = por %p283, %p284
    %p286 = scmp.ne.s32.totalorder %s277, %s278
    %p287 = scmp.eq.s32.totalorder %s78, 0
    %p288 = por %p286, %p287
    %p289 = scmp.ne.s32.totalorder %s277, %s278
    %p290 = scmp.eq.s32.totalorder %s79, 1
    %p291 = por %p289, %p290
    %p293 = scmp.ne.s32.totalorder %s278, %s292
    %p294 = scmp.eq.s32.totalorder %s79, 0
    %p295 = por %p293, %p294
    %s297 = sadd.s32 %s296, 1
    %p300 = scmp.eq.s32.totalorder %s73, 1
    %p301 = scmp.ne.s32.totalorder %s296, %s298
    %p302 = scmp.eq.s32.totalorder %s73, 0
    %p303 = por %p301, %p302
    %p304 = scmp.ne.s32.totalorder %s296, %s298
    %p305 = scmp.eq.s32.totalorder %s78, 1
    %p306 = por %p304, %p305
    %p307 = scmp.ne.s32.totalorder %s298, %s299
    %p308 = scmp.eq.s32.totalorder %s78, 0
    %p309 = por %p307, %p308
    %p310 = scmp.ne.s32.totalorder %s298, %s299
    %p311 = scmp.eq.s32.totalorder %s79, 1
    %p312 = por %p310, %p311
    %p314 = scmp.ne.s32.totalorder %s299, %s313
    %p315 = scmp.eq.s32.totalorder %s79, 0
    %p316 = por %p314, %p315
    %s318 = sadd.s32 %s317, 1
    %p321 = scmp.eq.s32.totalorder %s73, 1
    %p322 = scmp.ne.s32.totalorder %s317, %s319
    %p323 = scmp.eq.s32.totalorder %s73, 0
    %p324 = por %p322, %p323
    %p325 = scmp.ne.s32.totalorder %s317, %s319
    %p326 = scmp.eq.s32.totalorder %s78, 1
    %p327 = por %p325, %p326
    %p328 = scmp.ne.s32.totalorder %s319, %s320
    %p329 = scmp.eq.s32.totalorder %s78, 0
    %p330 = por %p328, %p329
    %p331 = scmp.ne.s32.totalorder %s319, %s320
    %p332 = scmp.eq.s32.totalorder %s79, 1
    %p333 = por %p331, %p332
    %p335 = scmp.ne.s32.totalorder %s320, %s334
    %p336 = scmp.eq.s32.totalorder %s79, 0
    %p337 = por %p335, %p336
    %s339 = sadd.s32 %s338, 1
    %p342 = scmp.eq.s32.totalorder %s73, 1
    %p343 = scmp.ne.s32.totalorder %s338, %s340
    %p344 = scmp.eq.s32.totalorder %s73, 0
    %p345 = por %p343, %p344
    %p346 = scmp.ne.s32.totalorder %s338, %s340
    %p347 = scmp.eq.s32.totalorder %s78, 1
    %p348 = por %p346, %p347
    %p349 = scmp.ne.s32.totalorder %s340, %s341
    %p350 = scmp.eq.s32.totalorder %s78, 0
    %p351 = por %p349, %p350
    %p352 = scmp.ne.s32.totalorder %s340, %s341
    %p353 = scmp.eq.s32.totalorder %s79, 1
    %p354 = por %p352, %p353
    %p356 = scmp.ne.s32.totalorder %s341, %s355
    %p357 = scmp.eq.s32.totalorder %s79, 0
    %p358 = por %p356, %p357
    %s360 = sadd.s32 %s359, 1
    %p363 = scmp.eq.s32.totalorder %s73, 1
    %p364 = scmp.ne.s32.totalorder %s359, %s361
    %p365 = scmp.eq.s32.totalorder %s73, 0
    %p366 = por %p364, %p365
    %p367 = scmp.ne.s32.totalorder %s359, %s361
    %p368 = scmp.eq.s32.totalorder %s78, 1
    %p369 = por %p367, %p368
    %p370 = scmp.ne.s32.totalorder %s361, %s362
    %p371 = scmp.eq.s32.totalorder %s78, 0
    %p372 = por %p370, %p371
    %p373 = scmp.ne.s32.totalorder %s361, %s362
    %p374 = scmp.eq.s32.totalorder %s79, 1
    %p375 = por %p373, %p374
    %p377 = scmp.ne.s32.totalorder %s362, %s376
    %p378 = scmp.eq.s32.totalorder %s79, 0
    %p379 = por %p377, %p378
    %s381 = sadd.s32 %s380, 1
    %p384 = scmp.eq.s32.totalorder %s73, 1
    %p385 = scmp.ne.s32.totalorder %s380, %s382
    %p386 = scmp.eq.s32.totalorder %s73, 0
    %p387 = por %p385, %p386
    %p388 = scmp.ne.s32.totalorder %s380, %s382
    %p389 = scmp.eq.s32.totalorder %s78, 1
    %p390 = por %p388, %p389
    %p391 = scmp.ne.s32.totalorder %s382, %s383
    %p392 = scmp.eq.s32.totalorder %s78, 0
    %p393 = por %p391, %p392
    %p394 = scmp.ne.s32.totalorder %s382, %s383
    %p395 = scmp.eq.s32.totalorder %s79, 1
    %p396 = por %p394, %p395
    %p398 = scmp.ne.s32.totalorder %s383, %s397
    %p399 = scmp.eq.s32.totalorder %s79, 0
    %p400 = por %p398, %p399
    %s402 = sadd.s32 %s401, 1
    %p405 = scmp.eq.s32.totalorder %s73, 1
    %p406 = scmp.ne.s32.totalorder %s401, %s403
    %p407 = scmp.eq.s32.totalorder %s73, 0
    %p408 = por %p406, %p407
    %p409 = scmp.ne.s32.totalorder %s401, %s403
    %p410 = scmp.eq.s32.totalorder %s78, 1
    %p411 = por %p409, %p410
    %p412 = scmp.ne.s32.totalorder %s403, %s404
    %p413 = scmp.eq.s32.totalorder %s78, 0
    %p414 = por %p412, %p413
    %p415 = scmp.ne.s32.totalorder %s403, %s404
    %p416 = scmp.eq.s32.totalorder %s79, 1
    %p417 = por %p415, %p416
    %p419 = scmp.ne.s32.totalorder %s404, %s418
    %p420 = scmp.eq.s32.totalorder %s79, 0
    %p421 = por %p419, %p420
    %s423 = sadd.s32 %s422, 1
    %p426 = scmp.eq.s32.totalorder %s73, 1
    %p427 = scmp.ne.s32.totalorder %s422, %s424
    %p428 = scmp.eq.s32.totalorder %s73, 0
    %p429 = por %p427, %p428
    %p430 = scmp.ne.s32.totalorder %s422, %s424
    %p431 = scmp.eq.s32.totalorder %s78, 1
    %p432 = por %p430, %p431
    %p433 = scmp.ne.s32.totalorder %s424, %s425
    %p434 = scmp.eq.s32.totalorder %s78, 0
    %p435 = por %p433, %p434
    %p436 = scmp.ne.s32.totalorder %s424, %s425
    %p437 = scmp.eq.s32.totalorder %s79, 1
    %p438 = por %p436, %p437
    %p440 = scmp.ne.s32.totalorder %s425, %s439
    %p441 = scmp.eq.s32.totalorder %s79, 0
    %p442 = por %p440, %p441
    %s444 = sadd.s32 %s443, 1
    %p447 = scmp.eq.s32.totalorder %s73, 1
    %p448 = scmp.ne.s32.totalorder %s443, %s445
    %p449 = scmp.eq.s32.totalorder %s73, 0
    %p450 = por %p448, %p449
    %p451 = scmp.ne.s32.totalorder %s443, %s445
    %p452 = scmp.eq.s32.totalorder %s78, 1
    %p453 = por %p451, %p452
    %p454 = scmp.ne.s32.totalorder %s445, %s446
    %p455 = scmp.eq.s32.totalorder %s78, 0
    %p456 = por %p454, %p455
    %p457 = scmp.ne.s32.totalorder %s445, %s446
    %p458 = scmp.eq.s32.totalorder %s79, 1
    %p459 = por %p457, %p458
    %p461 = scmp.ne.s32.totalorder %s446, %s460
    %p462 = scmp.eq.s32.totalorder %s79, 0
    %p463 = por %p461, %p462
    %s465 = sadd.s32 %s464, 1
    %p468 = scmp.eq.s32.totalorder %s73, 1
    %p469 = scmp.ne.s32.totalorder %s464, %s466
    %p470 = scmp.eq.s32.totalorder %s73, 0
    %p471 = por %p469, %p470
    %p472 = scmp.ne.s32.totalorder %s464, %s466
    %p473 = scmp.eq.s32.totalorder %s78, 1
    %p474 = por %p472, %p473
    %p475 = scmp.ne.s32.totalorder %s466, %s467
    %p476 = scmp.eq.s32.totalorder %s78, 0
    %p477 = por %p475, %p476
    %p478 = scmp.ne.s32.totalorder %s466, %s467
    %p479 = scmp.eq.s32.totalorder %s79, 1
    %p480 = por %p478, %p479
    %p482 = scmp.ne.s32.totalorder %s467, %s481
    %p483 = scmp.eq.s32.totalorder %s79, 0
    %p484 = por %p482, %p483
    %s486 = sadd.s32 %s485, 1
    %p489 = scmp.eq.s32.totalorder %s73, 1
    %p490 = scmp.ne.s32.totalorder %s485, %s487
    %p491 = scmp.eq.s32.totalorder %s73, 0
    %p492 = por %p490, %p491
    %p493 = scmp.ne.s32.totalorder %s485, %s487
    %p494 = scmp.eq.s32.totalorder %s78, 1
    %p495 = por %p493, %p494
    %p496 = scmp.ne.s32.totalorder %s487, %s488
    %p497 = scmp.eq.s32.totalorder %s78, 0
    %p498 = por %p496, %p497
    %p499 = scmp.ne.s32.totalorder %s487, %s488
    %p500 = scmp.eq.s32.totalorder %s79, 1
    %p501 = por %p499, %p500
    %p503 = scmp.ne.s32.totalorder %s488, %s502
    %p504 = scmp.eq.s32.totalorder %s79, 0
    %p505 = por %p503, %p504
    %s507 = sadd.s32 %s506, 1
    %p510 = scmp.eq.s32.totalorder %s73, 1
    %p511 = scmp.ne.s32.totalorder %s506, %s508
    %p512 = scmp.eq.s32.totalorder %s73, 0
    %p513 = por %p511, %p512
    %p514 = scmp.ne.s32.totalorder %s506, %s508
    %p515 = scmp.eq.s32.totalorder %s78, 1
    %p516 = por %p514, %p515
    %p517 = scmp.ne.s32.totalorder %s508, %s509
    %p518 = scmp.eq.s32.totalorder %s78, 0
    %p519 = por %p517, %p518
    %p520 = scmp.ne.s32.totalorder %s508, %s509
    %p521 = scmp.eq.s32.totalorder %s79, 1
    %p522 = por %p520, %p521
    %p524 = scmp.ne.s32.totalorder %s509, %s523
    %p525 = scmp.eq.s32.totalorder %s79, 0
    %p526 = por %p524, %p525
    %s528 = sadd.s32 %s527, 1
    %p531 = scmp.eq.s32.totalorder %s73, 1
    %p532 = scmp.ne.s32.totalorder %s527, %s529
    %p533 = scmp.eq.s32.totalorder %s73, 0
    %p534 = por %p532, %p533
    %p535 = scmp.ne.s32.totalorder %s527, %s529
    %p536 = scmp.eq.s32.totalorder %s78, 1
    %p537 = por %p535, %p536
    %p538 = scmp.ne.s32.totalorder %s529, %s530
    %p539 = scmp.eq.s32.totalorder %s78, 0
    %p540 = por %p538, %p539
    %p541 = scmp.ne.s32.totalorder %s529, %s530
    %p542 = scmp.eq.s32.totalorder %s79, 1
    %p543 = por %p541, %p542
    %p545 = scmp.ne.s32.totalorder %s530, %s544
    %p546 = scmp.eq.s32.totalorder %s79, 0
    %p547 = por %p545, %p546
    %s549 = sadd.s32 %s548, 1
    %p552 = scmp.eq.s32.totalorder %s73, 1
    %p553 = scmp.ne.s32.totalorder %s548, %s550
    %p554 = scmp.eq.s32.totalorder %s73, 0
    %p555 = por %p553, %p554
    %p556 = scmp.ne.s32.totalorder %s548, %s550
    %p557 = scmp.eq.s32.totalorder %s78, 1
    %p558 = por %p556, %p557
    %p559 = scmp.ne.s32.totalorder %s550, %s551
    %p560 = scmp.eq.s32.totalorder %s78, 0
    %p561 = por %p559, %p560
    %p562 = scmp.ne.s32.totalorder %s550, %s551
    %p563 = scmp.eq.s32.totalorder %s79, 1
    %p564 = por %p562, %p563
    %p566 = scmp.ne.s32.totalorder %s551, %s565
    %p567 = scmp.eq.s32.totalorder %s79, 0
    %p568 = por %p566, %p567
    %s570 = sadd.s32 %s569, 1
    %p573 = scmp.eq.s32.totalorder %s73, 1
    %p574 = scmp.ne.s32.totalorder %s569, %s571
    %p575 = scmp.eq.s32.totalorder %s73, 0
    %p576 = por %p574, %p575
    %p577 = scmp.ne.s32.totalorder %s569, %s571
    %p578 = scmp.eq.s32.totalorder %s78, 1
    %p579 = por %p577, %p578
    %p580 = scmp.ne.s32.totalorder %s571, %s572
    %p581 = scmp.eq.s32.totalorder %s78, 0
    %p582 = por %p580, %p581
    %p583 = scmp.ne.s32.totalorder %s571, %s572
    %p584 = scmp.eq.s32.totalorder %s79, 1
    %p585 = por %p583, %p584
    %p587 = scmp.ne.s32.totalorder %s572, %s586
    %p588 = scmp.eq.s32.totalorder %s79, 0
    %p589 = por %p587, %p588
    %s591 = sadd.s32 %s590, 1
    %p594 = scmp.eq.s32.totalorder %s73, 1
    %p595 = scmp.ne.s32.totalorder %s590, %s592
    %p596 = scmp.eq.s32.totalorder %s73, 0
    %p597 = por %p595, %p596
    %p598 = scmp.ne.s32.totalorder %s590, %s592
    %p599 = scmp.eq.s32.totalorder %s78, 1
    %p600 = por %p598, %p599
    %p601 = scmp.ne.s32.totalorder %s592, %s593
    %p602 = scmp.eq.s32.totalorder %s78, 0
    %p603 = por %p601, %p602
    %p604 = scmp.ne.s32.totalorder %s592, %s593
    %p605 = scmp.eq.s32.totalorder %s79, 1
    %p606 = por %p604, %p605
    %p608 = scmp.ne.s32.totalorder %s593, %s607
    %p609 = scmp.eq.s32.totalorder %s79, 0
    %p610 = por %p608, %p609
    %s612 = sadd.s32 %s611, 1
    %p615 = scmp.eq.s32.totalorder %s73, 1
    %p616 = scmp.ne.s32.totalorder %s611, %s613
    %p617 = scmp.eq.s32.totalorder %s73, 0
    %p618 = por %p616, %p617
    %p619 = scmp.ne.s32.totalorder %s611, %s613
    %p620 = scmp.eq.s32.totalorder %s78, 1
    %p621 = por %p619, %p620
    %p622 = scmp.ne.s32.totalorder %s613, %s614
    %p623 = scmp.eq.s32.totalorder %s78, 0
    %p624 = por %p622, %p623
    %p625 = scmp.ne.s32.totalorder %s613, %s614
    %p626 = scmp.eq.s32.totalorder %s79, 1
    %p627 = por %p625, %p626
    %p629 = scmp.ne.s32.totalorder %s614, %s628
    %p630 = scmp.eq.s32.totalorder %s79, 0
    %p631 = por %p629, %p630
    %s633 = sadd.s32 %s632, 1
    %p636 = scmp.eq.s32.totalorder %s73, 1
    %p637 = scmp.ne.s32.totalorder %s632, %s634
    %p638 = scmp.eq.s32.totalorder %s73, 0
    %p639 = por %p637, %p638
    %p640 = scmp.ne.s32.totalorder %s632, %s634
    %p641 = scmp.eq.s32.totalorder %s78, 1
    %p642 = por %p640, %p641
    %p643 = scmp.ne.s32.totalorder %s634, %s635
    %p644 = scmp.eq.s32.totalorder %s78, 0
    %p645 = por %p643, %p644
    %p646 = scmp.ne.s32.totalorder %s634, %s635
    %p647 = scmp.eq.s32.totalorder %s79, 1
    %p648 = por %p646, %p647
    %p650 = scmp.ne.s32.totalorder %s635, %s649
    %p651 = scmp.eq.s32.totalorder %s79, 0
    %p652 = por %p650, %p651
    %s654 = sadd.s32 %s653, 1
    %p657 = scmp.eq.s32.totalorder %s73, 1
    %p658 = scmp.ne.s32.totalorder %s653, %s655
    %p659 = scmp.eq.s32.totalorder %s73, 0
    %p660 = por %p658, %p659
    %p661 = scmp.ne.s32.totalorder %s653, %s655
    %p662 = scmp.eq.s32.totalorder %s78, 1
    %p663 = por %p661, %p662
    %p664 = scmp.ne.s32.totalorder %s655, %s656
    %p665 = scmp.eq.s32.totalorder %s78, 0
    %p666 = por %p664, %p665
    %p667 = scmp.ne.s32.totalorder %s655, %s656
    %p668 = scmp.eq.s32.totalorder %s79, 1
    %p669 = por %p667, %p668
    %p671 = scmp.ne.s32.totalorder %s656, %s670
    %p672 = scmp.eq.s32.totalorder %s79, 0
    %p673 = por %p671, %p672
    %s675 = sadd.s32 %s674, 1
    %p678 = scmp.eq.s32.totalorder %s73, 1
    %p679 = scmp.ne.s32.totalorder %s674, %s676
    %p680 = scmp.eq.s32.totalorder %s73, 0
    %p681 = por %p679, %p680
    %p682 = scmp.ne.s32.totalorder %s674, %s676
    %p683 = scmp.eq.s32.totalorder %s78, 1
    %p684 = por %p682, %p683
    %p685 = scmp.ne.s32.totalorder %s676, %s677
    %p686 = scmp.eq.s32.totalorder %s78, 0
    %p687 = por %p685, %p686
    %p688 = scmp.ne.s32.totalorder %s676, %s677
    %p689 = scmp.eq.s32.totalorder %s79, 1
    %p690 = por %p688, %p689
    %p692 = scmp.ne.s32.totalorder %s677, %s691
    %p693 = scmp.eq.s32.totalorder %s79, 0
    %p694 = por %p692, %p693
    %s696 = sadd.s32 %s695, 1
    %p699 = scmp.eq.s32.totalorder %s73, 1
    %p700 = scmp.ne.s32.totalorder %s695, %s697
    %p701 = scmp.eq.s32.totalorder %s73, 0
    %p702 = por %p700, %p701
    %p703 = scmp.ne.s32.totalorder %s695, %s697
    %p704 = scmp.eq.s32.totalorder %s78, 1
    %p705 = por %p703, %p704
    %p706 = scmp.ne.s32.totalorder %s697, %s698
    %p707 = scmp.eq.s32.totalorder %s78, 0
    %p708 = por %p706, %p707
    %p709 = scmp.ne.s32.totalorder %s697, %s698
    %p710 = scmp.eq.s32.totalorder %s79, 1
    %p711 = por %p709, %p710
    %p713 = scmp.ne.s32.totalorder %s698, %s712
    %p714 = scmp.eq.s32.totalorder %s79, 0
    %p715 = por %p713, %p714
    %s717 = sadd.s32 %s716, 1
    %p720 = scmp.eq.s32.totalorder %s73, 1
    %p721 = scmp.ne.s32.totalorder %s716, %s718
    %p722 = scmp.eq.s32.totalorder %s73, 0
    %p723 = por %p721, %p722
    %p724 = scmp.ne.s32.totalorder %s716, %s718
    %p725 = scmp.eq.s32.totalorder %s78, 1
    %p726 = por %p724, %p725
    %p727 = scmp.ne.s32.totalorder %s718, %s719
    %p728 = scmp.eq.s32.totalorder %s78, 0
    %p729 = por %p727, %p728
    %p730 = scmp.ne.s32.totalorder %s718, %s719
    %p731 = scmp.eq.s32.totalorder %s79, 1
    %p732 = por %p730, %p731
    %p734 = scmp.ne.s32.totalorder %s719, %s733
    %p735 = scmp.eq.s32.totalorder %s79, 0
    %p736 = por %p734, %p735
    %s738 = sadd.s32 %s737, 1
    %p741 = scmp.eq.s32.totalorder %s73, 1
    %p742 = scmp.ne.s32.totalorder %s737, %s739
    %p743 = scmp.eq.s32.totalorder %s73, 0
    %p744 = por %p742, %p743
    %p745 = scmp.ne.s32.totalorder %s737, %s739
    %p746 = scmp.eq.s32.totalorder %s78, 1
    %p747 = por %p745, %p746
    %p748 = scmp.ne.s32.totalorder %s739, %s740
    %p749 = scmp.eq.s32.totalorder %s78, 0
    %p750 = por %p748, %p749
    %p751 = scmp.ne.s32.totalorder %s739, %s740
    %p752 = scmp.eq.s32.totalorder %s79, 1
    %p753 = por %p751, %p752
    %p755 = scmp.ne.s32.totalorder %s740, %s754
    %p756 = scmp.eq.s32.totalorder %s79, 0
    %p757 = por %p755, %p756
    %s759 = sadd.s32 %s758, 1
    %p762 = scmp.eq.s32.totalorder %s73, 1
    %p763 = scmp.ne.s32.totalorder %s758, %s760
    %p764 = scmp.eq.s32.totalorder %s73, 0
    %p765 = por %p763, %p764
    %p766 = scmp.ne.s32.totalorder %s758, %s760
    %p767 = scmp.eq.s32.totalorder %s78, 1
    %p768 = por %p766, %p767
    %p769 = scmp.ne.s32.totalorder %s760, %s761
    %p770 = scmp.eq.s32.totalorder %s78, 0
    %p771 = por %p769, %p770
    %p772 = scmp.ne.s32.totalorder %s760, %s761
    %p773 = scmp.eq.s32.totalorder %s79, 1
    %p774 = por %p772, %p773
    %p776 = scmp.ne.s32.totalorder %s761, %s775
    %p777 = scmp.eq.s32.totalorder %s79, 0
    %p778 = por %p776, %p777
    %s779 = ssub.s32 %s73, %s80
    %p780 = scmp.eq.s32.totalorder %s779, 0
    %s782 = sadd.s32 %s781, 1
    %s783 = scalar_select %p780, %s781, %s782
    %p786 = pneg %p780
    %p787 = scmp.eq.s32.totalorder %s73, 1
    %p788 = por %p786, %p787
    %p789 = scmp.ne.s32.totalorder %s781, %s784
    %p790 = scmp.eq.s32.totalorder %s73, 0
    %p791 = por %p789, %p790
    %p792 = scmp.ne.s32.totalorder %s781, %s784
    %p793 = scmp.eq.s32.totalorder %s78, 1
    %p794 = por %p792, %p793
    %p795 = scmp.ne.s32.totalorder %s784, %s785
    %p796 = scmp.eq.s32.totalorder %s78, 0
    %p797 = por %p795, %p796
    %p798 = scmp.ne.s32.totalorder %s784, %s785
    %p799 = scmp.eq.s32.totalorder %s79, 1
    %p800 = por %p798, %p799
    %p802 = scmp.ne.s32.totalorder %s785, %s801
    %p803 = scmp.eq.s32.totalorder %s79, 0
    %p804 = por %p802, %p803
    %p805 = scmp.le.s32.totalorder 1, %s73
    %p806 = scmp.lt.s32.totalorder %s73, 3
    %p807 = pnand %p805, %p806
    %p808 = pneg %p807
    // Predicated region
    $region9: #{_forward_jit.1} parent=5 // pred_check
      _
    $region10: #{_forward_jit.1} parent=5 // pred_check_branch
      %810 = sbr.rel (%p807) target = $region12
    $region11: #{_forward_jit.1} parent=5 // pred_region
      %s811 = ssub.s32 %s73, 1
      // Predicated region
      $region13: #{_forward_jit.1} parent=11 // pred_check
        %p812 = pneg %p120
      $region14: #{_forward_jit.1} parent=11 // pred_check_branch
        %814 = sbr.rel (%p812) target = $region16
      $region15: #{_forward_jit.1} parent=11 // pred_region
        _
      $region16: #{_forward_jit.1} parent=11 // pred_fallthru
        _
      // Predicated region
      $region17: #{_forward_jit.1} parent=11 // pred_check
        %p815 = pneg %p141
      $region18: #{_forward_jit.1} parent=11 // pred_check_branch
        %817 = sbr.rel (%p815) target = $region20
      $region19: #{_forward_jit.1} parent=11 // pred_region
        _
      $region20: #{_forward_jit.1} parent=11 // pred_fallthru
        _
      // Predicated region
      $region21: #{_forward_jit.1} parent=11 // pred_check
        %p818 = pneg %p162
      $region22: #{_forward_jit.1} parent=11 // pred_check_branch
        %820 = sbr.rel (%p818) target = $region24
      $region23: #{_forward_jit.1} parent=11 // pred_region
        _
      $region24: #{_forward_jit.1} parent=11 // pred_fallthru
        _
      // Predicated region
      $region25: #{_forward_jit.1} parent=11 // pred_check
        %p821 = pneg %p183
      $region26: #{_forward_jit.1} parent=11 // pred_check_branch
        %823 = sbr.rel (%p821) target = $region28
      $region27: #{_forward_jit.1} parent=11 // pred_region
        _
      $region28: #{_forward_jit.1} parent=11 // pred_fallthru
        _
      // Predicated region
      $region29: #{_forward_jit.1} parent=11 // pred_check
        %p824 = pneg %p204
      $region30: #{_forward_jit.1} parent=11 // pred_check_branch
        %826 = sbr.rel (%p824) target = $region32
      $region31: #{_forward_jit.1} parent=11 // pred_region
        _
      $region32: #{_forward_jit.1} parent=11 // pred_fallthru
        _
      // Predicated region
      $region33: #{_forward_jit.1} parent=11 // pred_check
        %p827 = pneg %p225
      $region34: #{_forward_jit.1} parent=11 // pred_check_branch
        %829 = sbr.rel (%p827) target = $region36
      $region35: #{_forward_jit.1} parent=11 // pred_region
        _
      $region36: #{_forward_jit.1} parent=11 // pred_fallthru
        _
      // Predicated region
      $region37: #{_forward_jit.1} parent=11 // pred_check
        %p830 = pneg %p246
      $region38: #{_forward_jit.1} parent=11 // pred_check_branch
        %832 = sbr.rel (%p830) target = $region40
      $region39: #{_forward_jit.1} parent=11 // pred_region
        _
      $region40: #{_forward_jit.1} parent=11 // pred_fallthru
        _
      // Predicated region
      $region41: #{_forward_jit.1} parent=11 // pred_check
        %p833 = pneg %p267
      $region42: #{_forward_jit.1} parent=11 // pred_check_branch
        %835 = sbr.rel (%p833) target = $region44
      $region43: #{_forward_jit.1} parent=11 // pred_region
        _
      $region44: #{_forward_jit.1} parent=11 // pred_fallthru
        _
      // Predicated region
      $region45: #{_forward_jit.1} parent=11 // pred_check
        %p836 = pneg %p288
      $region46: #{_forward_jit.1} parent=11 // pred_check_branch
        %838 = sbr.rel (%p836) target = $region48
      $region47: #{_forward_jit.1} parent=11 // pred_region
        _
      $region48: #{_forward_jit.1} parent=11 // pred_fallthru
        _
      // Predicated region
      $region49: #{_forward_jit.1} parent=11 // pred_check
        %p839 = pneg %p309
      $region50: #{_forward_jit.1} parent=11 // pred_check_branch
        %841 = sbr.rel (%p839) target = $region52
      $region51: #{_forward_jit.1} parent=11 // pred_region
        _
      $region52: #{_forward_jit.1} parent=11 // pred_fallthru
        _
      // Predicated region
      $region53: #{_forward_jit.1} parent=11 // pred_check
        %p842 = pneg %p330
      $region54: #{_forward_jit.1} parent=11 // pred_check_branch
        %844 = sbr.rel (%p842) target = $region56
      $region55: #{_forward_jit.1} parent=11 // pred_region
        _
      $region56: #{_forward_jit.1} parent=11 // pred_fallthru
        _
      // Predicated region
      $region57: #{_forward_jit.1} parent=11 // pred_check
        %p845 = pneg %p351
      $region58: #{_forward_jit.1} parent=11 // pred_check_branch
        %847 = sbr.rel (%p845) target = $region60
      $region59: #{_forward_jit.1} parent=11 // pred_region
        _
      $region60: #{_forward_jit.1} parent=11 // pred_fallthru
        _
      // Predicated region
      $region61: #{_forward_jit.1} parent=11 // pred_check
        %p848 = pneg %p372
      $region62: #{_forward_jit.1} parent=11 // pred_check_branch
        %850 = sbr.rel (%p848) target = $region64
      $region63: #{_forward_jit.1} parent=11 // pred_region
        _
      $region64: #{_forward_jit.1} parent=11 // pred_fallthru
        _
      // Predicated region
      $region65: #{_forward_jit.1} parent=11 // pred_check
        %p851 = pneg %p393
      $region66: #{_forward_jit.1} parent=11 // pred_check_branch
        %853 = sbr.rel (%p851) target = $region68
      $region67: #{_forward_jit.1} parent=11 // pred_region
        _
      $region68: #{_forward_jit.1} parent=11 // pred_fallthru
        _
      // Predicated region
      $region69: #{_forward_jit.1} parent=11 // pred_check
        %p854 = pneg %p414
      $region70: #{_forward_jit.1} parent=11 // pred_check_branch
        %856 = sbr.rel (%p854) target = $region72
      $region71: #{_forward_jit.1} parent=11 // pred_region
        _
      $region72: #{_forward_jit.1} parent=11 // pred_fallthru
        _
      // Predicated region
      $region73: #{_forward_jit.1} parent=11 // pred_check
        %p857 = pneg %p435
      $region74: #{_forward_jit.1} parent=11 // pred_check_branch
        %859 = sbr.rel (%p857) target = $region76
      $region75: #{_forward_jit.1} parent=11 // pred_region
        _
      $region76: #{_forward_jit.1} parent=11 // pred_fallthru
        _
      // Predicated region
      $region77: #{_forward_jit.1} parent=11 // pred_check
        %p860 = pneg %p456
      $region78: #{_forward_jit.1} parent=11 // pred_check_branch
        %862 = sbr.rel (%p860) target = $region80
      $region79: #{_forward_jit.1} parent=11 // pred_region
        _
      $region80: #{_forward_jit.1} parent=11 // pred_fallthru
        _
      // Predicated region
      $region81: #{_forward_jit.1} parent=11 // pred_check
        %p863 = pneg %p477
      $region82: #{_forward_jit.1} parent=11 // pred_check_branch
        %865 = sbr.rel (%p863) target = $region84
      $region83: #{_forward_jit.1} parent=11 // pred_region
        _
      $region84: #{_forward_jit.1} parent=11 // pred_fallthru
        _
      // Predicated region
      $region85: #{_forward_jit.1} parent=11 // pred_check
        %p866 = pneg %p498
      $region86: #{_forward_jit.1} parent=11 // pred_check_branch
        %868 = sbr.rel (%p866) target = $region88
      $region87: #{_forward_jit.1} parent=11 // pred_region
        _
      $region88: #{_forward_jit.1} parent=11 // pred_fallthru
        _
      // Predicated region
      $region89: #{_forward_jit.1} parent=11 // pred_check
        %p869 = pneg %p519
      $region90: #{_forward_jit.1} parent=11 // pred_check_branch
        %871 = sbr.rel (%p869) target = $region92
      $region91: #{_forward_jit.1} parent=11 // pred_region
        _
      $region92: #{_forward_jit.1} parent=11 // pred_fallthru
        _
      // Predicated region
      $region93: #{_forward_jit.1} parent=11 // pred_check
        %p872 = pneg %p540
      $region94: #{_forward_jit.1} parent=11 // pred_check_branch
        %874 = sbr.rel (%p872) target = $region96
      $region95: #{_forward_jit.1} parent=11 // pred_region
        _
      $region96: #{_forward_jit.1} parent=11 // pred_fallthru
        _
      // Predicated region
      $region97: #{_forward_jit.1} parent=11 // pred_check
        %p875 = pneg %p561
      $region98: #{_forward_jit.1} parent=11 // pred_check_branch
        %877 = sbr.rel (%p875) target = $region100
      $region99: #{_forward_jit.1} parent=11 // pred_region
        _
      $region100: #{_forward_jit.1} parent=11 // pred_fallthru
        _
      // Predicated region
      $region101: #{_forward_jit.1} parent=11 // pred_check
        %p878 = pneg %p582
      $region102: #{_forward_jit.1} parent=11 // pred_check_branch
        %880 = sbr.rel (%p878) target = $region104
      $region103: #{_forward_jit.1} parent=11 // pred_region
        _
      $region104: #{_forward_jit.1} parent=11 // pred_fallthru
        _
      // Predicated region
      $region105: #{_forward_jit.1} parent=11 // pred_check
        %p881 = pneg %p603
      $region106: #{_forward_jit.1} parent=11 // pred_check_branch
        %883 = sbr.rel (%p881) target = $region108
      $region107: #{_forward_jit.1} parent=11 // pred_region
        _
      $region108: #{_forward_jit.1} parent=11 // pred_fallthru
        _
      // Predicated region
      $region109: #{_forward_jit.1} parent=11 // pred_check
        %p884 = pneg %p624
      $region110: #{_forward_jit.1} parent=11 // pred_check_branch
        %886 = sbr.rel (%p884) target = $region112
      $region111: #{_forward_jit.1} parent=11 // pred_region
        _
      $region112: #{_forward_jit.1} parent=11 // pred_fallthru
        _
      // Predicated region
      $region113: #{_forward_jit.1} parent=11 // pred_check
        %p887 = pneg %p645
      $region114: #{_forward_jit.1} parent=11 // pred_check_branch
        %889 = sbr.rel (%p887) target = $region116
      $region115: #{_forward_jit.1} parent=11 // pred_region
        _
      $region116: #{_forward_jit.1} parent=11 // pred_fallthru
        _
      // Predicated region
      $region117: #{_forward_jit.1} parent=11 // pred_check
        %p890 = pneg %p666
      $region118: #{_forward_jit.1} parent=11 // pred_check_branch
        %892 = sbr.rel (%p890) target = $region120
      $region119: #{_forward_jit.1} parent=11 // pred_region
        _
      $region120: #{_forward_jit.1} parent=11 // pred_fallthru
        _
      // Predicated region
      $region121: #{_forward_jit.1} parent=11 // pred_check
        %p893 = pneg %p687
      $region122: #{_forward_jit.1} parent=11 // pred_check_branch
        %895 = sbr.rel (%p893) target = $region124
      $region123: #{_forward_jit.1} parent=11 // pred_region
        _
      $region124: #{_forward_jit.1} parent=11 // pred_fallthru
        _
      // Predicated region
      $region125: #{_forward_jit.1} parent=11 // pred_check
        %p896 = pneg %p708
      $region126: #{_forward_jit.1} parent=11 // pred_check_branch
        %898 = sbr.rel (%p896) target = $region128
      $region127: #{_forward_jit.1} parent=11 // pred_region
        _
      $region128: #{_forward_jit.1} parent=11 // pred_fallthru
        _
      // Predicated region
      $region129: #{_forward_jit.1} parent=11 // pred_check
        %p899 = pneg %p729
      $region130: #{_forward_jit.1} parent=11 // pred_check_branch
        %901 = sbr.rel (%p899) target = $region132
      $region131: #{_forward_jit.1} parent=11 // pred_region
        _
      $region132: #{_forward_jit.1} parent=11 // pred_fallthru
        _
      // Predicated region
      $region133: #{_forward_jit.1} parent=11 // pred_check
        %p902 = pneg %p750
      $region134: #{_forward_jit.1} parent=11 // pred_check_branch
        %904 = sbr.rel (%p902) target = $region136
      $region135: #{_forward_jit.1} parent=11 // pred_region
        _
      $region136: #{_forward_jit.1} parent=11 // pred_fallthru
        _
      // Predicated region
      $region137: #{_forward_jit.1} parent=11 // pred_check
        %p905 = pneg %p771
      $region138: #{_forward_jit.1} parent=11 // pred_check_branch
        %907 = sbr.rel (%p905) target = $region140
      $region139: #{_forward_jit.1} parent=11 // pred_region
        _
      $region140: #{_forward_jit.1} parent=11 // pred_fallthru
        _
    $region12: #{_forward_jit.1} parent=5 // pred_fallthru
      _
    %p908 = scmp.lt.s32.totalorder %s73, 2
    // Predicated region
    $region141: #{_forward_jit.1} parent=5 // pred_check
      %p909 = pneg %p908
    $region142: #{_forward_jit.1} parent=5 // pred_check_branch
      %911 = sbr.rel (%p909) target = $region144
    $region143: #{_forward_jit.1} parent=5 // pred_region
      // Predicated region
      $region145: #{_forward_jit.1} parent=143 // pred_check
        %p912 = pneg %p93
      $region146: #{_forward_jit.1} parent=143 // pred_check_branch
        %914 = sbr.rel (%p912) target = $region148
      $region147: #{_forward_jit.1} parent=143 // pred_region
        %p915 = scmp.lt.s32.totalorder %s73, 1
        %s916 = scalar_select %p915, %s73, 1
        %s917 = smul.addr %s916, 32
        %s918 = smul.addr %s917, 8
        %s919 = scalar_lea.vmem %s1, %s918
      $region148: #{_forward_jit.1} parent=143 // pred_fallthru
        _
    $region144: #{_forward_jit.1} parent=5 // pred_fallthru
      _
    %p920 = scmp.le.s32.totalorder 1, %s73
    %p921 = scmp.lt.s32.totalorder %s73, 3
    %p922 = pnand %p920, %p921
    %p923 = pneg %p922
    // Predicated region
    $region149: #{_forward_jit.1} parent=5 // pred_check
      _
    $region150: #{_forward_jit.1} parent=5 // pred_check_branch
      %925 = sbr.rel (%p922) target = $region152
    $region151: #{_forward_jit.1} parent=5 // pred_region
      %s926 = ssub.s32 %s73, 1
      %p927 = scmp.lt.s32.totalorder %s78, 1
      %s928 = scalar_select %p927, %s78, 1
      %s929 = smul.addr %s928, 32
      %s930 = smul.addr %s929, 8
      %s931 = scalar_lea.vmem %s1, %s930
      %p932 = pneg %p99
      %p933 = pneg %p96
      %p934 = pneg %p120
      %p935 = pneg %p117
      %p936 = pneg %p141
      %p937 = pneg %p138
      %p938 = pneg %p162
      %p939 = pneg %p159
      %p940 = pneg %p183
      %p941 = pneg %p180
      %p942 = pneg %p204
      %p943 = pneg %p201
      %p944 = pneg %p225
      %p945 = pneg %p222
      %p946 = pneg %p246
      %p947 = pneg %p243
      %p948 = pneg %p267
      %p949 = pneg %p264
      %p950 = pneg %p288
      %p951 = pneg %p285
      %p952 = pneg %p309
      %p953 = pneg %p306
      %p954 = pneg %p330
      %p955 = pneg %p327
      %p956 = pneg %p351
      %p957 = pneg %p348
      %p958 = pneg %p372
      %p959 = pneg %p369
      %p960 = pneg %p393
      %p961 = pneg %p390
      %p962 = pneg %p414
      %p963 = pneg %p411
      %p964 = pneg %p435
      %p965 = pneg %p432
      %p966 = pneg %p456
      %p967 = pneg %p453
      %p968 = pneg %p477
      %p969 = pneg %p474
      %p970 = pneg %p498
      %p971 = pneg %p495
      %p972 = pneg %p519
      %p973 = pneg %p516
      %p974 = pneg %p540
      %p975 = pneg %p537
      %p976 = pneg %p561
      %p977 = pneg %p558
      %p978 = pneg %p582
      %p979 = pneg %p579
      %p980 = pneg %p603
      %p981 = pneg %p600
      %p982 = pneg %p624
      %p983 = pneg %p621
      %p984 = pneg %p645
      %p985 = pneg %p642
      %p986 = pneg %p666
      %p987 = pneg %p663
      %p988 = pneg %p687
      %p989 = pneg %p684
      %p990 = pneg %p708
      %p991 = pneg %p705
      %p992 = pneg %p729
      %p993 = pneg %p726
      %p994 = pneg %p750
      %p995 = pneg %p747
      %p996 = pneg %p771
      %p997 = pneg %p768
      %p998 = pneg %p797
      %p999 = pneg %p794
      %p1000 = scmp.lt.s32.totalorder %s78, 1
      %s1001 = scalar_select %p1000, %s78, 1
      %s1002 = smul.addr %s1001, 4
      %s1003 = scalar_lea.vmem %s67, %s1002
      %p1004 = scmp.lt.s32.totalorder %s78, 1
      %s1005 = scalar_select %p1004, %s78, 1
      %s1006 = smul.addr %s1005, 32
      %s1007 = smul.addr %s1006, 8
      %s1008 = scalar_lea.vmem %s1, %s1007
      %p1009 = scmp.lt.s32.totalorder %s78, 1
      %s1010 = scalar_select %p1009, %s78, 1
      %s1011 = smul.addr %s1010, 4
      %s1012 = scalar_lea.vmem %s67, %s1011
      %v1014 = vld [vmem:[%s1008] sm:$0xff]
      %v1015 = vld [vmem:[%s1008 + $0x8] sm:$0xff]
      %v1016 = vld [vmem:[%s1008 + $0x10] sm:$0xff]
      %v1017 = vld [vmem:[%s1008 + $0x18] sm:$0xff]
      %v1018 = vld [vmem:[%s1008 + $0x20] sm:$0xff]
      %v1019 = vld [vmem:[%s1008 + $0x28] sm:$0xff]
      %v1020 = vld [vmem:[%s1008 + $0x30] sm:$0xff]
      %v1021 = vld [vmem:[%s1008 + $0x38] sm:$0xff]
      %v1022 = vld [vmem:[%s1008 + $0x40] sm:$0xff]
      %v1023 = vld [vmem:[%s1008 + $0x48] sm:$0xff]
      %v1024 = vld [vmem:[%s1008 + $0x50] sm:$0xff]
      %v1025 = vld [vmem:[%s1008 + $0x58] sm:$0xff]
      %v1026 = vld [vmem:[%s1008 + $0x60] sm:$0xff]
      %v1027 = vld [vmem:[%s1008 + $0x68] sm:$0xff]
      %v1028 = vld [vmem:[%s1008 + $0x70] sm:$0xff]
      %v1029 = vld [vmem:[%s1008 + $0x78] sm:$0xff]
      %v1030 = vld [vmem:[%s1008 + $0x80] sm:$0xff]
      %v1031 = vld [vmem:[%s1008 + $0x88] sm:$0xff]
      %v1032 = vld [vmem:[%s1008 + $0x90] sm:$0xff]
      %v1033 = vld [vmem:[%s1008 + $0x98] sm:$0xff]
      %v1034 = vld [vmem:[%s1008 + $0xa0] sm:$0xff]
      %v1035 = vld [vmem:[%s1008 + $0xa8] sm:$0xff]
      %v1036 = vld [vmem:[%s1008 + $0xb0] sm:$0xff]
      %v1037 = vld [vmem:[%s1008 + $0xb8] sm:$0xff]
      %v1038 = vld [vmem:[%s1008 + $0xc0] sm:$0xff]
      %v1039 = vld [vmem:[%s1008 + $0xc8] sm:$0xff]
      %v1040 = vld [vmem:[%s1008 + $0xd0] sm:$0xff]
      %v1041 = vld [vmem:[%s1008 + $0xd8] sm:$0xff]
      %v1042 = vld [vmem:[%s1008 + $0xe0] sm:$0xff]
      %v1043 = vld [vmem:[%s1008 + $0xe8] sm:$0xff]
      %v1044 = vld [vmem:[%s1008 + $0xf0] sm:$0xff]
      %v1045 = vld [vmem:[%s1008 + $0xf8] sm:$0xff]
      %vm1046 = vcmask 523264
      %v1047 = vsel %vm1046, %v1014, 0.0
      %v1048 = vsel %vm1046, %v1015, 0.0
      %v1049 = vadd.f32 %v1047, %v1048
      %v1050 = vsel %vm1046, %v1016, 0.0
      %v1051 = vadd.f32 %v1049, %v1050
      %v1052 = vsel %vm1046, %v1017, 0.0
      %v1053 = vadd.f32 %v1051, %v1052
      %v1054 = vsel %vm1046, %v1018, 0.0
      %v1055 = vadd.f32 %v1053, %v1054
      %v1056 = vsel %vm1046, %v1019, 0.0
      %v1057 = vadd.f32 %v1055, %v1056
      %v1058 = vsel %vm1046, %v1020, 0.0
      %v1059 = vadd.f32 %v1057, %v1058
      %v1060 = vsel %vm1046, %v1021, 0.0
      %v1061 = vadd.f32 %v1059, %v1060
      %v1062 = vsel %vm1046, %v1022, 0.0
      %v1063 = vadd.f32 %v1061, %v1062
      %v1064 = vsel %vm1046, %v1023, 0.0
      %v1065 = vadd.f32 %v1063, %v1064
      %v1066 = vsel %vm1046, %v1024, 0.0
      %v1067 = vadd.f32 %v1065, %v1066
      %v1068 = vsel %vm1046, %v1025, 0.0
      %v1069 = vadd.f32 %v1067, %v1068
      %v1070 = vsel %vm1046, %v1026, 0.0
      %v1071 = vadd.f32 %v1069, %v1070
      %v1072 = vsel %vm1046, %v1027, 0.0
      %v1073 = vadd.f32 %v1071, %v1072
      %v1074 = vsel %vm1046, %v1028, 0.0
      %v1075 = vadd.f32 %v1073, %v1074
      %v1076 = vsel %vm1046, %v1029, 0.0
      %v1077 = vadd.f32 %v1075, %v1076
      %v1078 = vsel %vm1046, %v1030, 0.0
      %v1079 = vadd.f32 %v1077, %v1078
      %v1080 = vsel %vm1046, %v1031, 0.0
      %v1081 = vadd.f32 %v1079, %v1080
      %v1082 = vsel %vm1046, %v1032, 0.0
      %v1083 = vadd.f32 %v1081, %v1082
      %v1084 = vsel %vm1046, %v1033, 0.0
      %v1085 = vadd.f32 %v1083, %v1084
      %v1086 = vsel %vm1046, %v1034, 0.0
      %v1087 = vadd.f32 %v1085, %v1086
      %v1088 = vsel %vm1046, %v1035, 0.0
      %v1089 = vadd.f32 %v1087, %v1088
      %v1090 = vsel %vm1046, %v1036, 0.0
      %v1091 = vadd.f32 %v1089, %v1090
      %v1092 = vsel %vm1046, %v1037, 0.0
      %v1093 = vadd.f32 %v1091, %v1092
      %v1094 = vsel %vm1046, %v1038, 0.0
      %v1095 = vadd.f32 %v1093, %v1094
      %v1096 = vsel %vm1046, %v1039, 0.0
      %v1097 = vadd.f32 %v1095, %v1096
      %v1098 = vsel %vm1046, %v1040, 0.0
      %v1099 = vadd.f32 %v1097, %v1098
      %v1100 = vsel %vm1046, %v1041, 0.0
      %v1101 = vadd.f32 %v1099, %v1100
      %v1102 = vsel %vm1046, %v1042, 0.0
      %v1103 = vadd.f32 %v1101, %v1102
      %v1104 = vsel %vm1046, %v1043, 0.0
      %v1105 = vadd.f32 %v1103, %v1104
      %v1106 = vsel %vm1046, %v1044, 0.0
      %v1107 = vadd.f32 %v1105, %v1106
      %v1108 = vsel %vm1046, %v1045, 0.0
      %v1109 = vadd.f32 %v1107, %v1108
      %v1110 = vrot.slane %v1109, 4
      %v1111 = vadd.f32 %v1109, %v1110
      %v1112 = vrot.slane %v1111, 2
      %v1113 = vadd.f32 %v1111, %v1112
      %v1114 = vrot.slane %v1113, 1
      %v1115 = vadd.f32 %v1113, %v1114
      %v1116 = vrcp.pop 256.0
      %v1117 = vmul.f32 %v1115, %v1116
      %v1118 = vsel %vm1046, %v1014, -inf
      %v1119 = vsel %vm1046, %v1015, -inf
      %v1120 = vsel %vm1046, %v1016, -inf
      %v1121 = vsel %vm1046, %v1017, -inf
      %v1122 = vsel %vm1046, %v1018, -inf
      %v1123 = vmax.f32 %v1118, %v1122
      %v1124 = vsel %vm1046, %v1019, -inf
      %v1125 = vmax.f32 %v1119, %v1124
      %v1126 = vsel %vm1046, %v1020, -inf
      %v1127 = vmax.f32 %v1120, %v1126
      %v1128 = vsel %vm1046, %v1021, -inf
      %v1129 = vmax.f32 %v1121, %v1128
      %v1130 = vsel %vm1046, %v1022, -inf
      %v1131 = vmax.f32 %v1123, %v1130
      %v1132 = vsel %vm1046, %v1023, -inf
      %v1133 = vmax.f32 %v1125, %v1132
      %v1134 = vsel %vm1046, %v1024, -inf
      %v1135 = vmax.f32 %v1127, %v1134
      %v1136 = vsel %vm1046, %v1025, -inf
      %v1137 = vmax.f32 %v1129, %v1136
      %v1138 = vsel %vm1046, %v1026, -inf
      %v1139 = vmax.f32 %v1131, %v1138
      %v1140 = vsel %vm1046, %v1027, -inf
      %v1141 = vmax.f32 %v1133, %v1140
      %v1142 = vsel %vm1046, %v1028, -inf
      %v1143 = vmax.f32 %v1135, %v1142
      %v1144 = vsel %vm1046, %v1029, -inf
      %v1145 = vmax.f32 %v1137, %v1144
      %v1146 = vsel %vm1046, %v1030, -inf
      %v1147 = vmax.f32 %v1139, %v1146
      %v1148 = vsel %vm1046, %v1031, -inf
      %v1149 = vmax.f32 %v1141, %v1148
      %v1150 = vsel %vm1046, %v1032, -inf
      %v1151 = vmax.f32 %v1143, %v1150
      %v1152 = vsel %vm1046, %v1033, -inf
      %v1153 = vmax.f32 %v1145, %v1152
      %v1154 = vsel %vm1046, %v1034, -inf
      %v1155 = vmax.f32 %v1147, %v1154
      %v1156 = vsel %vm1046, %v1035, -inf
      %v1157 = vmax.f32 %v1149, %v1156
      %v1158 = vsel %vm1046, %v1036, -inf
      %v1159 = vmax.f32 %v1151, %v1158
      %v1160 = vsel %vm1046, %v1037, -inf
      %v1161 = vmax.f32 %v1153, %v1160
      %v1162 = vsel %vm1046, %v1038, -inf
      %v1163 = vmax.f32 %v1155, %v1162
      %v1164 = vsel %vm1046, %v1039, -inf
      %v1165 = vmax.f32 %v1157, %v1164
      %v1166 = vsel %vm1046, %v1040, -inf
      %v1167 = vmax.f32 %v1159, %v1166
      %v1168 = vsel %vm1046, %v1041, -inf
      %v1169 = vmax.f32 %v1161, %v1168
      %v1170 = vsel %vm1046, %v1042, -inf
      %v1171 = vmax.f32 %v1163, %v1170
      %v1172 = vsel %vm1046, %v1043, -inf
      %v1173 = vmax.f32 %v1165, %v1172
      %v1174 = vsel %vm1046, %v1044, -inf
      %v1175 = vmax.f32 %v1167, %v1174
      %v1176 = vsel %vm1046, %v1045, -inf
      %v1177 = vmax.f32 %v1169, %v1176
      %v1178 = vmax.f32 %v1171, %v1173
      %v1179 = vmax.f32 %v1175, %v1177
      %v1180 = vmax.f32 %v1178, %v1179
      %v1181 = vrot.slane %v1180, 4
      %v1182 = vmax.f32 %v1180, %v1181
      %v1183 = vrot.slane %v1182, 2
      %v1184 = vmax.f32 %v1182, %v1183
      %v1185 = vrot.slane %v1184, 1
      %v1186 = vmax.f32 %v1184, %v1185
      %v1187 = vld [vmem:[%s3] sm:$0xff]
      %v1188 = vld [vmem:[%s3 + $0x8] sm:$0xff]
      %v1189 = vld [vmem:[%s3 + $0x10] sm:$0xff]
      %v1190 = vld [vmem:[%s3 + $0x18] sm:$0xff]
      %v1191 = vld [vmem:[%s3 + $0x20] sm:$0xff]
      %v1192 = vld [vmem:[%s3 + $0x28] sm:$0xff]
      %v1193 = vld [vmem:[%s3 + $0x30] sm:$0xff]
      %v1194 = vld [vmem:[%s3 + $0x38] sm:$0xff]
      %v1196 = vsel %vm1046, %v1117, 0
      %1198 = vmatprep.subr.mxu0 0.0
      %1199 = vmatpush1.msra.mxu0 %v1187
      %1200 = vmatprep.subr.mxu0 0.0
      %1201 = vmatpush1.msra.mxu0 %v1188
      %1202 = vmatprep.subr.mxu0 0.0
      %1203 = vmatpush1.msra.mxu0 %v1189
      %1204 = vmatprep.subr.mxu0 0.0
      %1205 = vmatpush1.msra.mxu0 %v1190
      %1206 = vmatprep.subr.mxu0 0.0
      %1207 = vmatpush1.msra.mxu0 %v1191
      %1208 = vmatprep.subr.mxu0 0.0
      %1209 = vmatpush1.msra.mxu0 %v1192
      %1210 = vmatprep.subr.mxu0 0.0
      %1211 = vmatpush1.msra.mxu0 %v1193
      %1212 = vmatprep.subr.mxu0 0.0
      %1213 = vmatpush1.msra.mxu0 %v1194
      %1214 = vmatprep.subr.mxu0 0.0
      %1215 = vmatpush1.msra.mxu0 0.0
      %1216 = vmatprep.subr.mxu0 0.0
      %1217 = vmatpush1.msra.mxu0 0.0
      %1218 = vmatprep.subr.mxu0 0.0
      %1219 = vmatpush1.msra.mxu0 0.0
      %1220 = vmatprep.subr.mxu0 0.0
      %1221 = vmatpush1.msra.mxu0 0.0
      %1222 = vmatprep.subr.mxu0 0.0
      %1223 = vmatpush1.msra.mxu0 0.0
      %1224 = vmatprep.subr.mxu0 0.0
      %1225 = vmatpush1.msra.mxu0 0.0
      %1226 = vmatprep.subr.mxu0 0.0
      %1227 = vmatpush1.msra.mxu0 0.0
      %1228 = vmatprep.subr.mxu0 0.0
      %1229 = vmatpush1.msra.mxu0 0.0
      %1230 = vmatprep.subr.mxu0 0.0
      %1231 = vmatpush1.msra.mxu0 0.0
      %1232 = vmatprep.subr.mxu0 0.0
      %1233 = vmatpush1.msra.mxu0 0.0
      %1234 = vmatprep.subr.mxu0 0.0
      %1235 = vmatpush1.msra.mxu0 0.0
      %1236 = vmatprep.subr.mxu0 0.0
      %1237 = vmatpush1.msra.mxu0 0.0
      %1238 = vmatprep.subr.mxu0 0.0
      %1239 = vmatpush1.msra.mxu0 0.0
      %1240 = vmatprep.subr.mxu0 0.0
      %1241 = vmatpush1.msra.mxu0 0.0
      %1242 = vmatprep.subr.mxu0 0.0
      %1243 = vmatpush1.msra.mxu0 0.0
      %1244 = vmatprep.subr.mxu0 0.0
      %1245 = vmatpush1.msra.mxu0 0.0
      %1246 = vmatprep.subr.mxu0 0.0
      %1247 = vmatpush1.msra.mxu0 0.0
      %1248 = vmatprep.subr.mxu0 0.0
      %1249 = vmatpush1.msra.mxu0 0.0
      %1250 = vmatprep.subr.mxu0 0.0
      %1251 = vmatpush1.msra.mxu0 0.0
      %1252 = vmatprep.subr.mxu0 0.0
      %1253 = vmatpush1.msra.mxu0 0.0
      %1254 = vmatprep.subr.mxu0 0.0
      %1255 = vmatpush1.msra.mxu0 0.0
      %1256 = vmatprep.subr.mxu0 0.0
      %1257 = vmatpush1.msra.mxu0 0.0
      %1258 = vmatprep.subr.mxu0 0.0
      %1259 = vmatpush1.msra.mxu0 0.0
      %1260 = vmatprep.subr.mxu0 0.0
      %1261 = vmatpush1.msra.mxu0 0.0
      %1262 = vmatprep.mubr.f32.mxu0 0.0
      %1263 = vmatmul.mubr.f32.gmra.mrb[0].mxu0 %v1196
      %v1264 = vpop.f32.mrb[0].mxu0
      %v1265 = vadd.f32 0.0, %v1264
      %v1266 = vpop.f32.mrb[0].mxu0
      %1267 = vdwg.mxu0
      %v1268 = vmax.f32 %v1265, 0.0
      %v1270 = vsel %vm1046, %v1186, 0
      %1272 = vmatprep.subr.mxu0 0.0
      %1273 = vmatpush1.msra.mxu0 %v1187
      %1274 = vmatprep.subr.mxu0 0.0
      %1275 = vmatpush1.msra.mxu0 %v1188
      %1276 = vmatprep.subr.mxu0 0.0
      %1277 = vmatpush1.msra.mxu0 %v1189
      %1278 = vmatprep.subr.mxu0 0.0
      %1279 = vmatpush1.msra.mxu0 %v1190
      %1280 = vmatprep.subr.mxu0 0.0
      %1281 = vmatpush1.msra.mxu0 %v1191
      %1282 = vmatprep.subr.mxu0 0.0
      %1283 = vmatpush1.msra.mxu0 %v1192
      %1284 = vmatprep.subr.mxu0 0.0
      %1285 = vmatpush1.msra.mxu0 %v1193
      %1286 = vmatprep.subr.mxu0 0.0
      %1287 = vmatpush1.msra.mxu0 %v1194
      %1288 = vmatprep.subr.mxu0 0.0
      %1289 = vmatpush1.msra.mxu0 0.0
      %1290 = vmatprep.subr.mxu0 0.0
      %1291 = vmatpush1.msra.mxu0 0.0
      %1292 = vmatprep.subr.mxu0 0.0
      %1293 = vmatpush1.msra.mxu0 0.0
      %1294 = vmatprep.subr.mxu0 0.0
      %1295 = vmatpush1.msra.mxu0 0.0
      %1296 = vmatprep.subr.mxu0 0.0
      %1297 = vmatpush1.msra.mxu0 0.0
      %1298 = vmatprep.subr.mxu0 0.0
      %1299 = vmatpush1.msra.mxu0 0.0
      %1300 = vmatprep.subr.mxu0 0.0
      %1301 = vmatpush1.msra.mxu0 0.0
      %1302 = vmatprep.subr.mxu0 0.0
      %1303 = vmatpush1.msra.mxu0 0.0
      %1304 = vmatprep.subr.mxu0 0.0
      %1305 = vmatpush1.msra.mxu0 0.0
      %1306 = vmatprep.subr.mxu0 0.0
      %1307 = vmatpush1.msra.mxu0 0.0
      %1308 = vmatprep.subr.mxu0 0.0
      %1309 = vmatpush1.msra.mxu0 0.0
      %1310 = vmatprep.subr.mxu0 0.0
      %1311 = vmatpush1.msra.mxu0 0.0
      %1312 = vmatprep.subr.mxu0 0.0
      %1313 = vmatpush1.msra.mxu0 0.0
      %1314 = vmatprep.subr.mxu0 0.0
      %1315 = vmatpush1.msra.mxu0 0.0
      %1316 = vmatprep.subr.mxu0 0.0
      %1317 = vmatpush1.msra.mxu0 0.0
      %1318 = vmatprep.subr.mxu0 0.0
      %1319 = vmatpush1.msra.mxu0 0.0
      %1320 = vmatprep.subr.mxu0 0.0
      %1321 = vmatpush1.msra.mxu0 0.0
      %1322 = vmatprep.subr.mxu0 0.0
      %1323 = vmatpush1.msra.mxu0 0.0
      %1324 = vmatprep.subr.mxu0 0.0
      %1325 = vmatpush1.msra.mxu0 0.0
      %1326 = vmatprep.subr.mxu0 0.0
      %1327 = vmatpush1.msra.mxu0 0.0
      %1328 = vmatprep.subr.mxu0 0.0
      %1329 = vmatpush1.msra.mxu0 0.0
      %1330 = vmatprep.subr.mxu0 0.0
      %1331 = vmatpush1.msra.mxu0 0.0
      %1332 = vmatprep.subr.mxu0 0.0
      %1333 = vmatpush1.msra.mxu0 0.0
      %1334 = vmatprep.subr.mxu0 0.0
      %1335 = vmatpush1.msra.mxu0 0.0
      %1336 = vmatprep.mubr.f32.mxu0 0.0
      %1337 = vmatmul.mubr.f32.gmra.mrb[0].mxu0 %v1270
      %v1338 = vpop.f32.mrb[0].mxu0
      %v1339 = vadd.f32 0.0, %v1338
      %v1340 = vpop.f32.mrb[0].mxu0
      %1341 = vdwg.mxu0
      %v1342 = vmax.f32 %v1339, 0.0
      %v1343 = vadd.f32 %v1268, %v1342
      %v1344 = vld [vmem:[%s5] sm:$0xff]
      %vm1345 = vcmask 64512
      %v1347 = vsel %vm1345, %v1343, 0
      %1349 = vmatprep.subr.mxu0 0.0
      %1350 = vmatpush1.msra.mxu0 %v1344
      %1351 = vmatprep.subr.mxu0 0.0
      %1352 = vmatpush1.msra.mxu0 0.0
      %1353 = vmatprep.subr.mxu0 0.0
      %1354 = vmatpush1.msra.mxu0 0.0
      %1355 = vmatprep.subr.mxu0 0.0
      %1356 = vmatpush1.msra.mxu0 0.0
      %1357 = vmatprep.subr.mxu0 0.0
      %1358 = vmatpush1.msra.mxu0 0.0
      %1359 = vmatprep.subr.mxu0 0.0
      %1360 = vmatpush1.msra.mxu0 0.0
      %1361 = vmatprep.subr.mxu0 0.0
      %1362 = vmatpush1.msra.mxu0 0.0
      %1363 = vmatprep.subr.mxu0 0.0
      %1364 = vmatpush1.msra.mxu0 0.0
      %1365 = vmatprep.subr.mxu0 0.0
      %1366 = vmatpush1.msra.mxu0 0.0
      %1367 = vmatprep.subr.mxu0 0.0
      %1368 = vmatpush1.msra.mxu0 0.0
      %1369 = vmatprep.subr.mxu0 0.0
      %1370 = vmatpush1.msra.mxu0 0.0
      %1371 = vmatprep.subr.mxu0 0.0
      %1372 = vmatpush1.msra.mxu0 0.0
      %1373 = vmatprep.subr.mxu0 0.0
      %1374 = vmatpush1.msra.mxu0 0.0
      %1375 = vmatprep.subr.mxu0 0.0
      %1376 = vmatpush1.msra.mxu0 0.0
      %1377 = vmatprep.subr.mxu0 0.0
      %1378 = vmatpush1.msra.mxu0 0.0
      %1379 = vmatprep.subr.mxu0 0.0
      %1380 = vmatpush1.msra.mxu0 0.0
      %1381 = vmatprep.subr.mxu0 0.0
      %1382 = vmatpush1.msra.mxu0 0.0
      %1383 = vmatprep.subr.mxu0 0.0
      %1384 = vmatpush1.msra.mxu0 0.0
      %1385 = vmatprep.subr.mxu0 0.0
      %1386 = vmatpush1.msra.mxu0 0.0
      %1387 = vmatprep.subr.mxu0 0.0
      %1388 = vmatpush1.msra.mxu0 0.0
      %1389 = vmatprep.subr.mxu0 0.0
      %1390 = vmatpush1.msra.mxu0 0.0
      %1391 = vmatprep.subr.mxu0 0.0
      %1392 = vmatpush1.msra.mxu0 0.0
      %1393 = vmatprep.subr.mxu0 0.0
      %1394 = vmatpush1.msra.mxu0 0.0
      %1395 = vmatprep.subr.mxu0 0.0
      %1396 = vmatpush1.msra.mxu0 0.0
      %1397 = vmatprep.subr.mxu0 0.0
      %1398 = vmatpush1.msra.mxu0 0.0
      %1399 = vmatprep.subr.mxu0 0.0
      %1400 = vmatpush1.msra.mxu0 0.0
      %1401 = vmatprep.subr.mxu0 0.0
      %1402 = vmatpush1.msra.mxu0 0.0
      %1403 = vmatprep.subr.mxu0 0.0
      %1404 = vmatpush1.msra.mxu0 0.0
      %1405 = vmatprep.subr.mxu0 0.0
      %1406 = vmatpush1.msra.mxu0 0.0
      %1407 = vmatprep.subr.mxu0 0.0
      %1408 = vmatpush1.msra.mxu0 0.0
      %1409 = vmatprep.subr.mxu0 0.0
      %1410 = vmatpush1.msra.mxu0 0.0
      %1411 = vmatprep.subr.mxu0 0.0
      %1412 = vmatpush1.msra.mxu0 0.0
      %1413 = vmatprep.mubr.f32.mxu0 0.0
      %1414 = vmatmul.mubr.f32.gmra.mrb[0].mxu0 %v1347
      %v1415 = vpop.f32.mrb[0].mxu0
      %v1416 = vadd.f32 0.0, %v1415
      %v1417 = vpop.f32.mrb[0].mxu0
      %1418 = vdwg.mxu0
      %v1419 = vsub.f32 0.0, %v1416
      %v1420 = vmul.f32 %v1419, 1.442695
      %v1421 = vpow.pop %v1420
      %v1422 = vadd.f32 %v1421, 1.0
      %v1423 = vrcp.pop %v1422
      %v1424 = vmul.f32 1.0, %v1423
      %v1425 = vlaneseq
      %v1426 = vshrl.u32 %v1425, 7
      %v1427 = vsub.s32 0, %v1426
      %v1428 = vrot.slane %v1424, %v1427
      %v1429 = vmul.f32 %v1014, %v1428
      %v1430 = vmul.f32 %v1015, %v1428
      %v1431 = vmul.f32 %v1016, %v1428
      %v1432 = vmul.f32 %v1017, %v1428
      %v1433 = vmul.f32 %v1018, %v1428
      %v1434 = vmul.f32 %v1019, %v1428
      %v1435 = vmul.f32 %v1020, %v1428
      %v1436 = vmul.f32 %v1021, %v1428
      %v1437 = vmul.f32 %v1022, %v1428
      %v1438 = vmul.f32 %v1023, %v1428
      %v1439 = vmul.f32 %v1024, %v1428
      %v1440 = vmul.f32 %v1025, %v1428
      %v1441 = vmul.f32 %v1026, %v1428
      %v1442 = vmul.f32 %v1027, %v1428
      %v1443 = vmul.f32 %v1028, %v1428
      %v1444 = vmul.f32 %v1029, %v1428
      %v1445 = vmul.f32 %v1030, %v1428
      %v1446 = vmul.f32 %v1031, %v1428
      %v1447 = vmul.f32 %v1032, %v1428
      %v1448 = vmul.f32 %v1033, %v1428
      %v1449 = vmul.f32 %v1034, %v1428
      %v1450 = vmul.f32 %v1035, %v1428
      %v1451 = vmul.f32 %v1036, %v1428
      %v1452 = vmul.f32 %v1037, %v1428
      %v1453 = vmul.f32 %v1038, %v1428
      %v1454 = vmul.f32 %v1039, %v1428
      %v1455 = vmul.f32 %v1040, %v1428
      %v1456 = vmul.f32 %v1041, %v1428
      %v1457 = vmul.f32 %v1042, %v1428
      %v1458 = vmul.f32 %v1043, %v1428
      %v1459 = vmul.f32 %v1044, %v1428
      %v1460 = vmul.f32 %v1045, %v1428
      %v1461 = vsel %vm1046, %v1429, 0.0
      %1462 = vadd.xlane.f32.xlu0 %v1461
      %v1463 = vpop.xlane.xlu0 %1462
      %v1464 = vsel %vm1046, %v1430, 0.0
      %1465 = vadd.xlane.f32.xlu0 %v1464
      %v1466 = vpop.xlane.xlu0 %1465
      %v1467 = vsel %vm1046, %v1431, 0.0
      %1468 = vadd.xlane.f32.xlu0 %v1467
      %v1469 = vpop.xlane.xlu0 %1468
      %v1470 = vsel %vm1046, %v1432, 0.0
      %1471 = vadd.xlane.f32.xlu0 %v1470
      %v1472 = vpop.xlane.xlu0 %1471
      %v1473 = vsel %vm1046, %v1433, 0.0
      %1474 = vadd.xlane.f32.xlu0 %v1473
      %v1475 = vpop.xlane.xlu0 %1474
      %v1476 = vsel %vm1046, %v1434, 0.0
      %1477 = vadd.xlane.f32.xlu0 %v1476
      %v1478 = vpop.xlane.xlu0 %1477
      %v1479 = vsel %vm1046, %v1435, 0.0
      %1480 = vadd.xlane.f32.xlu0 %v1479
      %v1481 = vpop.xlane.xlu0 %1480
      %v1482 = vsel %vm1046, %v1436, 0.0
      %1483 = vadd.xlane.f32.xlu0 %v1482
      %v1484 = vpop.xlane.xlu0 %1483
      %v1485 = vsel %vm1046, %v1437, 0.0
      %1486 = vadd.xlane.f32.xlu0 %v1485
      %v1487 = vpop.xlane.xlu0 %1486
      %v1488 = vsel %vm1046, %v1438, 0.0
      %1489 = vadd.xlane.f32.xlu0 %v1488
      %v1490 = vpop.xlane.xlu0 %1489
      %v1491 = vsel %vm1046, %v1439, 0.0
      %1492 = vadd.xlane.f32.xlu0 %v1491
      %v1493 = vpop.xlane.xlu0 %1492
      %v1494 = vsel %vm1046, %v1440, 0.0
      %1495 = vadd.xlane.f32.xlu0 %v1494
      %v1496 = vpop.xlane.xlu0 %1495
      %v1497 = vsel %vm1046, %v1441, 0.0
      %1498 = vadd.xlane.f32.xlu0 %v1497
      %v1499 = vpop.xlane.xlu0 %1498
      %v1500 = vsel %vm1046, %v1442, 0.0
      %1501 = vadd.xlane.f32.xlu0 %v1500
      %v1502 = vpop.xlane.xlu0 %1501
      %v1503 = vsel %vm1046, %v1443, 0.0
      %1504 = vadd.xlane.f32.xlu0 %v1503
      %v1505 = vpop.xlane.xlu0 %1504
      %v1506 = vsel %vm1046, %v1444, 0.0
      %1507 = vadd.xlane.f32.xlu0 %v1506
      %v1508 = vpop.xlane.xlu0 %1507
      %v1509 = vsel %vm1046, %v1445, 0.0
      %1510 = vadd.xlane.f32.xlu0 %v1509
      %v1511 = vpop.xlane.xlu0 %1510
      %v1512 = vsel %vm1046, %v1446, 0.0
      %1513 = vadd.xlane.f32.xlu0 %v1512
      %v1514 = vpop.xlane.xlu0 %1513
      %v1515 = vsel %vm1046, %v1447, 0.0
      %1516 = vadd.xlane.f32.xlu0 %v1515
      %v1517 = vpop.xlane.xlu0 %1516
      %v1518 = vsel %vm1046, %v1448, 0.0
      %1519 = vadd.xlane.f32.xlu0 %v1518
      %v1520 = vpop.xlane.xlu0 %1519
      %v1521 = vsel %vm1046, %v1449, 0.0
      %1522 = vadd.xlane.f32.xlu0 %v1521
      %v1523 = vpop.xlane.xlu0 %1522
      %v1524 = vsel %vm1046, %v1450, 0.0
      %1525 = vadd.xlane.f32.xlu0 %v1524
      %v1526 = vpop.xlane.xlu0 %1525
      %v1527 = vsel %vm1046, %v1451, 0.0
      %1528 = vadd.xlane.f32.xlu0 %v1527
      %v1529 = vpop.xlane.xlu0 %1528
      %v1530 = vsel %vm1046, %v1452, 0.0
      %1531 = vadd.xlane.f32.xlu0 %v1530
      %v1532 = vpop.xlane.xlu0 %1531
      %v1533 = vsel %vm1046, %v1453, 0.0
      %1534 = vadd.xlane.f32.xlu0 %v1533
      %v1535 = vpop.xlane.xlu0 %1534
      %v1536 = vsel %vm1046, %v1454, 0.0
      %1537 = vadd.xlane.f32.xlu0 %v1536
      %v1538 = vpop.xlane.xlu0 %1537
      %v1539 = vsel %vm1046, %v1455, 0.0
      %1540 = vadd.xlane.f32.xlu0 %v1539
      %v1541 = vpop.xlane.xlu0 %1540
      %v1542 = vsel %vm1046, %v1456, 0.0
      %1543 = vadd.xlane.f32.xlu0 %v1542
      %v1544 = vpop.xlane.xlu0 %1543
      %v1545 = vsel %vm1046, %v1457, 0.0
      %1546 = vadd.xlane.f32.xlu0 %v1545
      %v1547 = vpop.xlane.xlu0 %1546
      %v1548 = vsel %vm1046, %v1458, 0.0
      %1549 = vadd.xlane.f32.xlu0 %v1548
      %v1550 = vpop.xlane.xlu0 %1549
      %v1551 = vsel %vm1046, %v1459, 0.0
      %1552 = vadd.xlane.f32.xlu0 %v1551
      %v1553 = vpop.xlane.xlu0 %1552
      %v1554 = vsel %vm1046, %v1460, 0.0
      %1555 = vadd.xlane.f32.xlu0 %v1554
      %v1556 = vpop.xlane.xlu0 %1555
      %v1557 = vrcp.pop 64.0
      %v1558 = vmul.f32 %v1463, %v1557
      %v1559 = vmul.f32 %v1466, %v1557
      %v1560 = vmul.f32 %v1469, %v1557
      %v1561 = vmul.f32 %v1472, %v1557
      %v1562 = vmul.f32 %v1475, %v1557
      %v1563 = vmul.f32 %v1478, %v1557
      %v1564 = vmul.f32 %v1481, %v1557
      %v1565 = vmul.f32 %v1484, %v1557
      %v1566 = vmul.f32 %v1487, %v1557
      %v1567 = vmul.f32 %v1490, %v1557
      %v1568 = vmul.f32 %v1493, %v1557
      %v1569 = vmul.f32 %v1496, %v1557
      %v1570 = vmul.f32 %v1499, %v1557
      %v1571 = vmul.f32 %v1502, %v1557
      %v1572 = vmul.f32 %v1505, %v1557
      %v1573 = vmul.f32 %v1508, %v1557
      %v1574 = vmul.f32 %v1511, %v1557
      %v1575 = vmul.f32 %v1514, %v1557
      %v1576 = vmul.f32 %v1517, %v1557
      %v1577 = vmul.f32 %v1520, %v1557
      %v1578 = vmul.f32 %v1523, %v1557
      %v1579 = vmul.f32 %v1526, %v1557
      %v1580 = vmul.f32 %v1529, %v1557
      %v1581 = vmul.f32 %v1532, %v1557
      %v1582 = vmul.f32 %v1535, %v1557
      %v1583 = vmul.f32 %v1538, %v1557
      %v1584 = vmul.f32 %v1541, %v1557
      %v1585 = vmul.f32 %v1544, %v1557
      %v1586 = vmul.f32 %v1547, %v1557
      %v1587 = vmul.f32 %v1550, %v1557
      %v1588 = vmul.f32 %v1553, %v1557
      %v1589 = vmul.f32 %v1556, %v1557
      %v1590 = vsel %vm1046, %v1429, -inf
      %1591 = vmax.xlane.f32.xlu0 %v1590
      %v1592 = vpop.xlane.xlu0 %1591
      %v1593 = vsel %vm1046, %v1430, -inf
      %1594 = vmax.xlane.f32.xlu0 %v1593
      %v1595 = vpop.xlane.xlu0 %1594
      %v1596 = vsel %vm1046, %v1431, -inf
      %1597 = vmax.xlane.f32.xlu0 %v1596
      %v1598 = vpop.xlane.xlu0 %1597
      %v1599 = vsel %vm1046, %v1432, -inf
      %1600 = vmax.xlane.f32.xlu0 %v1599
      %v1601 = vpop.xlane.xlu0 %1600
      %v1602 = vsel %vm1046, %v1433, -inf
      %1603 = vmax.xlane.f32.xlu0 %v1602
      %v1604 = vpop.xlane.xlu0 %1603
      %v1605 = vsel %vm1046, %v1434, -inf
      %1606 = vmax.xlane.f32.xlu0 %v1605
      %v1607 = vpop.xlane.xlu0 %1606
      %v1608 = vsel %vm1046, %v1435, -inf
      %1609 = vmax.xlane.f32.xlu0 %v1608
      %v1610 = vpop.xlane.xlu0 %1609
      %v1611 = vsel %vm1046, %v1436, -inf
      %1612 = vmax.xlane.f32.xlu0 %v1611
      %v1613 = vpop.xlane.xlu0 %1612
      %v1614 = vsel %vm1046, %v1437, -inf
      %1615 = vmax.xlane.f32.xlu0 %v1614
      %v1616 = vpop.xlane.xlu0 %1615
      %v1617 = vsel %vm1046, %v1438, -inf
      %1618 = vmax.xlane.f32.xlu0 %v1617
      %v1619 = vpop.xlane.xlu0 %1618
      %v1620 = vsel %vm1046, %v1439, -inf
      %1621 = vmax.xlane.f32.xlu0 %v1620
      %v1622 = vpop.xlane.xlu0 %1621
      %v1623 = vsel %vm1046, %v1440, -inf
      %1624 = vmax.xlane.f32.xlu0 %v1623
      %v1625 = vpop.xlane.xlu0 %1624
      %v1626 = vsel %vm1046, %v1441, -inf
      %1627 = vmax.xlane.f32.xlu0 %v1626
      %v1628 = vpop.xlane.xlu0 %1627
      %v1629 = vsel %vm1046, %v1442, -inf
      %1630 = vmax.xlane.f32.xlu0 %v1629
      %v1631 = vpop.xlane.xlu0 %1630
      %v1632 = vsel %vm1046, %v1443, -inf
      %1633 = vmax.xlane.f32.xlu0 %v1632
      %v1634 = vpop.xlane.xlu0 %1633
      %v1635 = vsel %vm1046, %v1444, -inf
      %1636 = vmax.xlane.f32.xlu0 %v1635
      %v1637 = vpop.xlane.xlu0 %1636
      %v1638 = vsel %vm1046, %v1445, -inf
      %1639 = vmax.xlane.f32.xlu0 %v1638
      %v1640 = vpop.xlane.xlu0 %1639
      %v1641 = vsel %vm1046, %v1446, -inf
      %1642 = vmax.xlane.f32.xlu0 %v1641
      %v1643 = vpop.xlane.xlu0 %1642
      %v1644 = vsel %vm1046, %v1447, -inf
      %1645 = vmax.xlane.f32.xlu0 %v1644
      %v1646 = vpop.xlane.xlu0 %1645
      %v1647 = vsel %vm1046, %v1448, -inf
      %1648 = vmax.xlane.f32.xlu0 %v1647
      %v1649 = vpop.xlane.xlu0 %1648
      %v1650 = vsel %vm1046, %v1449, -inf
      %1651 = vmax.xlane.f32.xlu0 %v1650
      %v1652 = vpop.xlane.xlu0 %1651
      %v1653 = vsel %vm1046, %v1450, -inf
      %1654 = vmax.xlane.f32.xlu0 %v1653
      %v1655 = vpop.xlane.xlu0 %1654
      %v1656 = vsel %vm1046, %v1451, -inf
      %1657 = vmax.xlane.f32.xlu0 %v1656
      %v1658 = vpop.xlane.xlu0 %1657
      %v1659 = vsel %vm1046, %v1452, -inf
      %1660 = vmax.xlane.f32.xlu0 %v1659
      %v1661 = vpop.xlane.xlu0 %1660
      %v1662 = vsel %vm1046, %v1453, -inf
      %1663 = vmax.xlane.f32.xlu0 %v1662
      %v1664 = vpop.xlane.xlu0 %1663
      %v1665 = vsel %vm1046, %v1454, -inf
      %1666 = vmax.xlane.f32.xlu0 %v1665
      %v1667 = vpop.xlane.xlu0 %1666
      %v1668 = vsel %vm1046, %v1455, -inf
      %1669 = vmax.xlane.f32.xlu0 %v1668
      %v1670 = vpop.xlane.xlu0 %1669
      %v1671 = vsel %vm1046, %v1456, -inf
      %1672 = vmax.xlane.f32.xlu0 %v1671
      %v1673 = vpop.xlane.xlu0 %1672
      %v1674 = vsel %vm1046, %v1457, -inf
      %1675 = vmax.xlane.f32.xlu0 %v1674
      %v1676 = vpop.xlane.xlu0 %1675
      %v1677 = vsel %vm1046, %v1458, -inf
      %1678 = vmax.xlane.f32.xlu0 %v1677
      %v1679 = vpop.xlane.xlu0 %1678
      %v1680 = vsel %vm1046, %v1459, -inf
      %1681 = vmax.xlane.f32.xlu0 %v1680
      %v1682 = vpop.xlane.xlu0 %1681
      %v1683 = vsel %vm1046, %v1460, -inf
      %1684 = vmax.xlane.f32.xlu0 %v1683
      %v1685 = vpop.xlane.xlu0 %1684
      %v1686 = vld [vmem:[%s7] sm:$0xff]
      %v1687 = vld [vmem:[%s7 + $0x8] sm:$0xff]
      %v1688 = vld [vmem:[%s7 + $0x10] sm:$0xff]
      %v1689 = vld [vmem:[%s7 + $0x18] sm:$0xff]
      %v1690 = vld [vmem:[%s7 + $0x20] sm:$0xff]
      %v1691 = vld [vmem:[%s7 + $0x28] sm:$0xff]
      %v1692 = vld [vmem:[%s7 + $0x30] sm:$0xff]
      %v1693 = vld [vmem:[%s7 + $0x38] sm:$0xff]
      %v1694 = vld [vmem:[%s7 + $0x40] sm:$0xff]
      %v1695 = vld [vmem:[%s7 + $0x48] sm:$0xff]
      %v1696 = vld [vmem:[%s7 + $0x50] sm:$0xff]
      %v1697 = vld [vmem:[%s7 + $0x58] sm:$0xff]
      %v1698 = vld [vmem:[%s7 + $0x60] sm:$0xff]
      %v1699 = vld [vmem:[%s7 + $0x68] sm:$0xff]
      %v1700 = vld [vmem:[%s7 + $0x70] sm:$0xff]
      %v1701 = vld [vmem:[%s7 + $0x78] sm:$0xff]
      %v1702 = vld [vmem:[%s7 + $0x80] sm:$0xff]
      %v1703 = vld [vmem:[%s7 + $0x88] sm:$0xff]
      %v1704 = vld [vmem:[%s7 + $0x90] sm:$0xff]
      %v1705 = vld [vmem:[%s7 + $0x98] sm:$0xff]
      %v1706 = vld [vmem:[%s7 + $0xa0] sm:$0xff]
      %v1707 = vld [vmem:[%s7 + $0xa8] sm:$0xff]
      %v1708 = vld [vmem:[%s7 + $0xb0] sm:$0xff]
      %v1709 = vld [vmem:[%s7 + $0xb8] sm:$0xff]
      %v1710 = vld [vmem:[%s7 + $0xc0] sm:$0xff]
      %v1711 = vld [vmem:[%s7 + $0xc8] sm:$0xff]
      %v1712 = vld [vmem:[%s7 + $0xd0] sm:$0xff]
      %v1713 = vld [vmem:[%s7 + $0xd8] sm:$0xff]
      %v1714 = vld [vmem:[%s7 + $0xe0] sm:$0xff]
      %v1715 = vld [vmem:[%s7 + $0xe8] sm:$0xff]
      %v1716 = vld [vmem:[%s7 + $0xf0] sm:$0xff]
      %v1717 = vld [vmem:[%s7 + $0xf8] sm:$0xff]
      %v1718 = vld [vmem:[%s7 + $0x100] sm:$0xff]
      %v1719 = vld [vmem:[%s7 + $0x108] sm:$0xff]
      %v1720 = vld [vmem:[%s7 + $0x110] sm:$0xff]
      %v1721 = vld [vmem:[%s7 + $0x118] sm:$0xff]
      %v1722 = vld [vmem:[%s7 + $0x120] sm:$0xff]
      %v1723 = vld [vmem:[%s7 + $0x128] sm:$0xff]
      %v1724 = vld [vmem:[%s7 + $0x130] sm:$0xff]
      %v1725 = vld [vmem:[%s7 + $0x138] sm:$0xff]
      %v1726 = vld [vmem:[%s7 + $0x140] sm:$0xff]
      %v1727 = vld [vmem:[%s7 + $0x148] sm:$0xff]
      %v1728 = vld [vmem:[%s7 + $0x150] sm:$0xff]
      %v1729 = vld [vmem:[%s7 + $0x158] sm:$0xff]
      %v1730 = vld [vmem:[%s7 + $0x160] sm:$0xff]
      %v1731 = vld [vmem:[%s7 + $0x168] sm:$0xff]
      %v1732 = vld [vmem:[%s7 + $0x170] sm:$0xff]
      %v1733 = vld [vmem:[%s7 + $0x178] sm:$0xff]
      %v1734 = vld [vmem:[%s7 + $0x180] sm:$0xff]
      %v1735 = vld [vmem:[%s7 + $0x188] sm:$0xff]
      %v1736 = vld [vmem:[%s7 + $0x190] sm:$0xff]
      %v1737 = vld [vmem:[%s7 + $0x198] sm:$0xff]
      %v1738 = vld [vmem:[%s7 + $0x1a0] sm:$0xff]
      %v1739 = vld [vmem:[%s7 + $0x1a8] sm:$0xff]
      %v1740 = vld [vmem:[%s7 + $0x1b0] sm:$0xff]
      %v1741 = vld [vmem:[%s7 + $0x1b8] sm:$0xff]
      %v1742 = vld [vmem:[%s7 + $0x1c0] sm:$0xff]
      %v1743 = vld [vmem:[%s7 + $0x1c8] sm:$0xff]
      %v1744 = vld [vmem:[%s7 + $0x1d0] sm:$0xff]
      %v1745 = vld [vmem:[%s7 + $0x1d8] sm:$0xff]
      %v1746 = vld [vmem:[%s7 + $0x1e0] sm:$0xff]
      %v1747 = vld [vmem:[%s7 + $0x1e8] sm:$0xff]
      %v1748 = vld [vmem:[%s7 + $0x1f0] sm:$0xff]
      %v1749 = vld [vmem:[%s7 + $0x1f8] sm:$0xff]
      %v1750 = vld [vmem:[%s9] sm:$0xff]
      %v1751 = vld [vmem:[%s9 + $0x8] sm:$0xff]
      %v1752 = vld [vmem:[%s9 + $0x10] sm:$0xff]
      %v1753 = vld [vmem:[%s9 + $0x18] sm:$0xff]
      %v1754 = vld [vmem:[%s9 + $0x20] sm:$0xff]
      %v1755 = vld [vmem:[%s9 + $0x28] sm:$0xff]
      %v1756 = vld [vmem:[%s9 + $0x30] sm:$0xff]
      %v1757 = vld [vmem:[%s9 + $0x38] sm:$0xff]
      %v1758 = vld [vmem:[%s9 + $0x40] sm:$0xff]
      %v1759 = vld [vmem:[%s9 + $0x48] sm:$0xff]
      %v1760 = vld [vmem:[%s9 + $0x50] sm:$0xff]
      %v1761 = vld [vmem:[%s9 + $0x58] sm:$0xff]
      %v1762 = vld [vmem:[%s9 + $0x60] sm:$0xff]
      %v1763 = vld [vmem:[%s9 + $0x68] sm:$0xff]
      %v1764 = vld [vmem:[%s9 + $0x70] sm:$0xff]
      %v1765 = vld [vmem:[%s9 + $0x78] sm:$0xff]
      %v1766 = vld [vmem:[%s9 + $0x80] sm:$0xff]
      %v1767 = vld [vmem:[%s9 + $0x88] sm:$0xff]
      %v1768 = vld [vmem:[%s9 + $0x90] sm:$0xff]
      %v1769 = vld [vmem:[%s9 + $0x98] sm:$0xff]
      %v1770 = vld [vmem:[%s9 + $0xa0] sm:$0xff]
      %v1771 = vld [vmem:[%s9 + $0xa8] sm:$0xff]
      %v1772 = vld [vmem:[%s9 + $0xb0] sm:$0xff]
      %v1773 = vld [vmem:[%s9 + $0xb8] sm:$0xff]
      %v1774 = vld [vmem:[%s9 + $0xc0] sm:$0xff]
      %v1775 = vld [vmem:[%s9 + $0xc8] sm:$0xff]
      %v1776 = vld [vmem:[%s9 + $0xd0] sm:$0xff]
      %v1777 = vld [vmem:[%s9 + $0xd8] sm:$0xff]
      %v1778 = vld [vmem:[%s9 + $0xe0] sm:$0xff]
      %v1779 = vld [vmem:[%s9 + $0xe8] sm:$0xff]
      %v1780 = vld [vmem:[%s9 + $0xf0] sm:$0xff]
      %v1781 = vld [vmem:[%s9 + $0xf8] sm:$0xff]
      %v1782 = vld [vmem:[%s9 + $0x100] sm:$0xff]
      %v1783 = vld [vmem:[%s9 + $0x108] sm:$0xff]
      %v1784 = vld [vmem:[%s9 + $0x110] sm:$0xff]
      %v1785 = vld [vmem:[%s9 + $0x118] sm:$0xff]
      %v1786 = vld [vmem:[%s9 + $0x120] sm:$0xff]
      %v1787 = vld [vmem:[%s9 + $0x128] sm:$0xff]
      %v1788 = vld [vmem:[%s9 + $0x130] sm:$0xff]
      %v1789 = vld [vmem:[%s9 + $0x138] sm:$0xff]
      %v1790 = vld [vmem:[%s9 + $0x140] sm:$0xff]
      %v1791 = vld [vmem:[%s9 + $0x148] sm:$0xff]
      %v1792 = vld [vmem:[%s9 + $0x150] sm:$0xff]
      %v1793 = vld [vmem:[%s9 + $0x158] sm:$0xff]
      %v1794 = vld [vmem:[%s9 + $0x160] sm:$0xff]
      %v1795 = vld [vmem:[%s9 + $0x168] sm:$0xff]
      %v1796 = vld [vmem:[%s9 + $0x170] sm:$0xff]
      %v1797 = vld [vmem:[%s9 + $0x178] sm:$0xff]
      %v1798 = vld [vmem:[%s9 + $0x180] sm:$0xff]
      %v1799 = vld [vmem:[%s9 + $0x188] sm:$0xff]
      %v1800 = vld [vmem:[%s9 + $0x190] sm:$0xff]
      %v1801 = vld [vmem:[%s9 + $0x198] sm:$0xff]
      %v1802 = vld [vmem:[%s9 + $0x1a0] sm:$0xff]
      %v1803 = vld [vmem:[%s9 + $0x1a8] sm:$0xff]
      %v1804 = vld [vmem:[%s9 + $0x1b0] sm:$0xff]
      %v1805 = vld [vmem:[%s9 + $0x1b8] sm:$0xff]
      %v1806 = vld [vmem:[%s9 + $0x1c0] sm:$0xff]
      %v1807 = vld [vmem:[%s9 + $0x1c8] sm:$0xff]
      %v1808 = vld [vmem:[%s9 + $0x1d0] sm:$0xff]
      %v1809 = vld [vmem:[%s9 + $0x1d8] sm:$0xff]
      %v1810 = vld [vmem:[%s9 + $0x1e0] sm:$0xff]
      %v1811 = vld [vmem:[%s9 + $0x1e8] sm:$0xff]
      %v1812 = vld [vmem:[%s9 + $0x1f0] sm:$0xff]
      %v1813 = vld [vmem:[%s9 + $0x1f8] sm:$0xff]
      %1814 = vmatprep.subr.mxu0 0.0
      %1815 = vmatpush1.msra.mxu0 %v1592
      %1816 = vmatprep.subr.mxu0 0.0
      %1817 = vmatpush1.msra.mxu0 %v1595
      %1818 = vmatprep.subr.mxu0 0.0
      %1819 = vmatpush1.msra.mxu0 %v1598
      %1820 = vmatprep.subr.mxu0 0.0
      %1821 = vmatpush1.msra.mxu0 %v1601
      %1822 = vmatprep.subr.mxu0 0.0
      %1823 = vmatpush1.msra.mxu0 %v1604
      %1824 = vmatprep.subr.mxu0 0.0
      %1825 = vmatpush1.msra.mxu0 %v1607
      %1826 = vmatprep.subr.mxu0 0.0
      %1827 = vmatpush1.msra.mxu0 %v1610
      %1828 = vmatprep.subr.mxu0 0.0
      %1829 = vmatpush1.msra.mxu0 %v1613
      %1830 = vmatprep.subr.mxu0 0.0
      %1831 = vmatpush1.msra.mxu0 %v1616
      %1832 = vmatprep.subr.mxu0 0.0
      %1833 = vmatpush1.msra.mxu0 %v1619
      %1834 = vmatprep.subr.mxu0 0.0
      %1835 = vmatpush1.msra.mxu0 %v1622
      %1836 = vmatprep.subr.mxu0 0.0
      %1837 = vmatpush1.msra.mxu0 %v1625
      %1838 = vmatprep.subr.mxu0 0.0
      %1839 = vmatpush1.msra.mxu0 %v1628
      %1840 = vmatprep.subr.mxu0 0.0
      %1841 = vmatpush1.msra.mxu0 %v1631
      %1842 = vmatprep.subr.mxu0 0.0
      %1843 = vmatpush1.msra.mxu0 %v1634
      %1844 = vmatprep.subr.mxu0 0.0
      %1845 = vmatpush1.msra.mxu0 %v1637
      %1846 = vmatprep.subr.mxu0 0.0
      %1847 = vmatpush1.msra.mxu0 %v1640
      %1848 = vmatprep.subr.mxu0 0.0
      %1849 = vmatpush1.msra.mxu0 %v1643
      %1850 = vmatprep.subr.mxu0 0.0
      %1851 = vmatpush1.msra.mxu0 %v1646
      %1852 = vmatprep.subr.mxu0 0.0
      %1853 = vmatpush1.msra.mxu0 %v1649
      %1854 = vmatprep.subr.mxu0 0.0
      %1855 = vmatpush1.msra.mxu0 %v1652
      %1856 = vmatprep.subr.mxu0 0.0
      %1857 = vmatpush1.msra.mxu0 %v1655
      %1858 = vmatprep.subr.mxu0 0.0
      %1859 = vmatpush1.msra.mxu0 %v1658
      %1860 = vmatprep.subr.mxu0 0.0
      %1861 = vmatpush1.msra.mxu0 %v1661
      %1862 = vmatprep.subr.mxu0 0.0
      %1863 = vmatpush1.msra.mxu0 %v1664
      %1864 = vmatprep.subr.mxu0 0.0
      %1865 = vmatpush1.msra.mxu0 %v1667
      %1866 = vmatprep.subr.mxu0 0.0
      %1867 = vmatpush1.msra.mxu0 %v1670
      %1868 = vmatprep.subr.mxu0 0.0
      %1869 = vmatpush1.msra.mxu0 %v1673
      %1870 = vmatprep.subr.mxu0 0.0
      %1871 = vmatpush1.msra.mxu0 %v1676
      %1872 = vmatprep.subr.mxu0 0.0
      %1873 = vmatpush1.msra.mxu0 %v1679
      %1874 = vmatprep.subr.mxu0 0.0
      %1875 = vmatpush1.msra.mxu0 %v1682
      %1876 = vmatprep.subr.mxu0 0.0
      %1877 = vmatpush1.msra.mxu0 %v1685
      %1878 = vmatprep.mubr.f32.mxu0 %v1751
      %1879 = vmatmul.mubr.f32.gmra.mrb[0].mxu0 %v1750
      %v1880 = vpop.f32.mrb[0].mxu0
      %v1881 = vadd.f32 0.0, %v1880
      %v1882 = vpop.f32.mrb[0].mxu0
      %1883 = vmatprep.mubr.f32.mxu0 %v1753
      %1884 = vmatmul.mubr.f32.gmra.mrb[0].mxu0 %v1752
      %v1885 = vpop.f32.mrb[0].mxu0
      %v1886 = vadd.f32 0.0, %v1885
      %v1887 = vpop.f32.mrb[0].mxu0
      %1888 = vmatprep.mubr.f32.mxu0 %v1755
      %1889 = vmatmul.mubr.f32.gmra.mrb[0].mxu0 %v1754
      %v1890 = vpop.f32.mrb[0].mxu0
      %v1891 = vadd.f32 0.0, %v1890
      %v1892 = vpop.f32.mrb[0].mxu0
      %1893 = vmatprep.mubr.f32.mxu0 %v1757
      %1894 = vmatmul.mubr.f32.gmra.mrb[0].mxu0 %v1756
      %v1895 = vpop.f32.mrb[0].mxu0
      %v1896 = vadd.f32 0.0, %v1895
      %v1897 = vpop.f32.mrb[0].mxu0
      %1898 = vmatprep.mubr.f32.mxu0 %v1759
      %1899 = vmatmul.mubr.f32.gmra.mrb[0].mxu0 %v1758
      %v1900 = vpop.f32.mrb[0].mxu0
      %v1901 = vadd.f32 0.0, %v1900
      %v1902 = vpop.f32.mrb[0].mxu0
      %1903 = vmatprep.mubr.f32.mxu0 %v1761
      %1904 = vmatmul.mubr.f32.gmra.mrb[0].mxu0 %v1760
      %v1905 = vpop.f32.mrb[0].mxu0
      %v1906 = vadd.f32 0.0, %v1905
      %v1907 = vpop.f32.mrb[0].mxu0
      %1908 = vmatprep.mubr.f32.mxu0 %v1763
      %1909 = vmatmul.mubr.f32.gmra.mrb[0].mxu0 %v1762
      %v1910 = vpop.f32.mrb[0].mxu0
      %v1911 = vadd.f32 0.0, %v1910
      %v1912 = vpop.f32.mrb[0].mxu0
      %1913 = vmatprep.mubr.f32.mxu0 %v1765
      %1914 = vmatmul.mubr.f32.gmra.mrb[0].mxu0 %v1764
      %v1915 = vpop.f32.mrb[0].mxu0
      %v1916 = vadd.f32 0.0, %v1915
      %v1917 = vpop.f32.mrb[0].mxu0
      %1918 = vmatprep.mubr.f32.mxu0 %v1767
      %1919 = vmatmul.mubr.f32.gmra.mrb[0].mxu0 %v1766
      %v1920 = vpop.f32.mrb[0].mxu0
      %v1921 = vadd.f32 0.0, %v1920
      %v1922 = vpop.f32.mrb[0].mxu0
      %1923 = vmatprep.mubr.f32.mxu0 %v1769
      %1924 = vmatmul.mubr.f32.gmra.mrb[0].mxu0 %v1768
      %v1925 = vpop.f32.mrb[0].mxu0
      %v1926 = vadd.f32 0.0, %v1925
      %v1927 = vpop.f32.mrb[0].mxu0
      %1928 = vmatprep.mubr.f32.mxu0 %v1771
      %1929 = vmatmul.mubr.f32.gmra.mrb[0].mxu0 %v1770
      %v1930 = vpop.f32.mrb[0].mxu0
      %v1931 = vadd.f32 0.0, %v1930
      %v1932 = vpop.f32.mrb[0].mxu0
      %1933 = vmatprep.mubr.f32.mxu0 %v1773
      %1934 = vmatmul.mubr.f32.gmra.mrb[0].mxu0 %v1772
      %v1935 = vpop.f32.mrb[0].mxu0
      %v1936 = vadd.f32 0.0, %v1935
      %v1937 = vpop.f32.mrb[0].mxu0
      %1938 = vmatprep.mubr.f32.mxu0 %v1775
      %1939 = vmatmul.mubr.f32.gmra.mrb[0].mxu0 %v1774
      %v1940 = vpop.f32.mrb[0].mxu0
      %v1941 = vadd.f32 0.0, %v1940
      %v1942 = vpop.f32.mrb[0].mxu0
      %1943 = vmatprep.mubr.f32.mxu0 %v1777
      %1944 = vmatmul.mubr.f32.gmra.mrb[0].mxu0 %v1776
      %v1945 = vpop.f32.mrb[0].mxu0
      %v1946 = vadd.f32 0.0, %v1945
      %v1947 = vpop.f32.mrb[0].mxu0
      %1948 = vmatprep.mubr.f32.mxu0 %v1779
      %1949 = vmatmul.mubr.f32.gmra.mrb[0].mxu0 %v1778
      %v1950 = vpop.f32.mrb[0].mxu0
      %v1951 = vadd.f32 0.0, %v1950
      %v1952 = vpop.f32.mrb[0].mxu0
      %1953 = vmatprep.mubr.f32.mxu0 %v1781
      %1954 = vmatmul.mubr.f32.gmra.mrb[0].mxu0 %v1780
      %v1955 = vpop.f32.mrb[0].mxu0
      %v1956 = vadd.f32 0.0, %v1955
      %v1957 = vpop.f32.mrb[0].mxu0
      %1958 = vmatprep.mubr.f32.mxu0 %v1783
      %1959 = vmatmul.mubr.f32.gmra.mrb[0].mxu0 %v1782
      %v1960 = vpop.f32.mrb[0].mxu0
      %v1961 = vadd.f32 0.0, %v1960
      %v1962 = vpop.f32.mrb[0].mxu0
      %1963 = vmatprep.mubr.f32.mxu0 %v1785
      %1964 = vmatmul.mubr.f32.gmra.mrb[0].mxu0 %v1784
      %v1965 = vpop.f32.mrb[0].mxu0
      %v1966 = vadd.f32 0.0, %v1965
      %v1967 = vpop.f32.mrb[0].mxu0
      %1968 = vmatprep.mubr.f32.mxu0 %v1787
      %1969 = vmatmul.mubr.f32.gmra.mrb[0].mxu0 %v1786
      %v1970 = vpop.f32.mrb[0].mxu0
      %v1971 = vadd.f32 0.0, %v1970
      %v1972 = vpop.f32.mrb[0].mxu0
      %1973 = vmatprep.mubr.f32.mxu0 %v1789
      %1974 = vmatmul.mubr.f32.gmra.mrb[0].mxu0 %v1788
      %v1975 = vpop.f32.mrb[0].mxu0
      %v1976 = vadd.f32 0.0, %v1975
      %v1977 = vpop.f32.mrb[0].mxu0
      %1978 = vmatprep.mubr.f32.mxu0 %v1791
      %1979 = vmatmul.mubr.f32.gmra.mrb[0].mxu0 %v1790
      %v1980 = vpop.f32.mrb[0].mxu0
      %v1981 = vadd.f32 0.0, %v1980
      %v1982 = vpop.f32.mrb[0].mxu0
      %1983 = vmatprep.mubr.f32.mxu0 %v1793
      %1984 = vmatmul.mubr.f32.gmra.mrb[0].mxu0 %v1792
      %v1985 = vpop.f32.mrb[0].mxu0
      %v1986 = vadd.f32 0.0, %v1985
      %v1987 = vpop.f32.mrb[0].mxu0
      %1988 = vmatprep.mubr.f32.mxu0 %v1795
      %1989 = vmatmul.mubr.f32.gmra.mrb[0].mxu0 %v1794
      %v1990 = vpop.f32.mrb[0].mxu0
      %v1991 = vadd.f32 0.0, %v1990
      %v1992 = vpop.f32.mrb[0].mxu0
      %1993 = vmatprep.mubr.f32.mxu0 %v1797
      %1994 = vmatmul.mubr.f32.gmra.mrb[0].mxu0 %v1796
      %v1995 = vpop.f32.mrb[0].mxu0
      %v1996 = vadd.f32 0.0, %v1995
      %v1997 = vpop.f32.mrb[0].mxu0
      %1998 = vmatprep.mubr.f32.mxu0 %v1799
      %1999 = vmatmul.mubr.f32.gmra.mrb[0].mxu0 %v1798
      %v2000 = vpop.f32.mrb[0].mxu0
      %v2001 = vadd.f32 0.0, %v2000
      %v2002 = vpop.f32.mrb[0].mxu0
      %2003 = vmatprep.mubr.f32.mxu0 %v1801
      %2004 = vmatmul.mubr.f32.gmra.mrb[0].mxu0 %v1800
      %v2005 = vpop.f32.mrb[0].mxu0
      %v2006 = vadd.f32 0.0, %v2005
      %v2007 = vpop.f32.mrb[0].mxu0
      %2008 = vmatprep.mubr.f32.mxu0 %v1803
      %2009 = vmatmul.mubr.f32.gmra.mrb[0].mxu0 %v1802
      %v2010 = vpop.f32.mrb[0].mxu0
      %v2011 = vadd.f32 0.0, %v2010
      %v2012 = vpop.f32.mrb[0].mxu0
      %2013 = vmatprep.mubr.f32.mxu0 %v1805
      %2014 = vmatmul.mubr.f32.gmra.mrb[0].mxu0 %v1804
      %v2015 = vpop.f32.mrb[0].mxu0
      %v2016 = vadd.f32 0.0, %v2015
      %v2017 = vpop.f32.mrb[0].mxu0
      %2018 = vmatprep.mubr.f32.mxu0 %v1807
      %2019 = vmatmul.mubr.f32.gmra.mrb[0].mxu0 %v1806
      %v2020 = vpop.f32.mrb[0].mxu0
      %v2021 = vadd.f32 0.0, %v2020
      %v2022 = vpop.f32.mrb[0].mxu0
      %2023 = vmatprep.mubr.f32.mxu0 %v1809
      %2024 = vmatmul.mubr.f32.gmra.mrb[0].mxu0 %v1808
      %v2025 = vpop.f32.mrb[0].mxu0
      %v2026 = vadd.f32 0.0, %v2025
      %v2027 = vpop.f32.mrb[0].mxu0
      %2028 = vmatprep.mubr.f32.mxu0 %v1811
      %2029 = vmatmul.mubr.f32.gmra.mrb[0].mxu0 %v1810
      %v2030 = vpop.f32.mrb[0].mxu0
      %v2031 = vadd.f32 0.0, %v2030
      %v2032 = vpop.f32.mrb[0].mxu0
      %2033 = vmatprep.mubr.f32.mxu0 %v1813
      %2034 = vmatmul.mubr.f32.gmra.mrb[0].mxu0 %v1812
      %v2035 = vpop.f32.mrb[0].mxu0
      %v2036 = vadd.f32 0.0, %v2035
      %v2037 = vpop.f32.mrb[0].mxu0
      %2038 = vdwg.mxu0
      %2039 = vmatprep.subr.mxu0 0.0
      %2040 = vmatpush1.msra.mxu0 %v1558
      %2041 = vmatprep.subr.mxu0 0.0
      %2042 = vmatpush1.msra.mxu0 %v1559
      %2043 = vmatprep.subr.mxu0 0.0
      %2044 = vmatpush1.msra.mxu0 %v1560
      %2045 = vmatprep.subr.mxu0 0.0
      %2046 = vmatpush1.msra.mxu0 %v1561
      %2047 = vmatprep.subr.mxu0 0.0
      %2048 = vmatpush1.msra.mxu0 %v1562
      %2049 = vmatprep.subr.mxu0 0.0
      %2050 = vmatpush1.msra.mxu0 %v1563
      %2051 = vmatprep.subr.mxu0 0.0
      %2052 = vmatpush1.msra.mxu0 %v1564
      %2053 = vmatprep.subr.mxu0 0.0
      %2054 = vmatpush1.msra.mxu0 %v1565
      %2055 = vmatprep.subr.mxu0 0.0
      %2056 = vmatpush1.msra.mxu0 %v1566
      %2057 = vmatprep.subr.mxu0 0.0
      %2058 = vmatpush1.msra.mxu0 %v1567
      %2059 = vmatprep.subr.mxu0 0.0
      %2060 = vmatpush1.msra.mxu0 %v1568
      %2061 = vmatprep.subr.mxu0 0.0
      %2062 = vmatpush1.msra.mxu0 %v1569
      %2063 = vmatprep.subr.mxu0 0.0
      %2064 = vmatpush1.msra.mxu0 %v1570
      %2065 = vmatprep.subr.mxu0 0.0
      %2066 = vmatpush1.msra.mxu0 %v1571
      %2067 = vmatprep.subr.mxu0 0.0
      %2068 = vmatpush1.msra.mxu0 %v1572
      %2069 = vmatprep.subr.mxu0 0.0
      %2070 = vmatpush1.msra.mxu0 %v1573
      %2071 = vmatprep.subr.mxu0 0.0
      %2072 = vmatpush1.msra.mxu0 %v1574
      %2073 = vmatprep.subr.mxu0 0.0
      %2074 = vmatpush1.msra.mxu0 %v1575
      %2075 = vmatprep.subr.mxu0 0.0
      %2076 = vmatpush1.msra.mxu0 %v1576
      %2077 = vmatprep.subr.mxu0 0.0
      %2078 = vmatpush1.msra.mxu0 %v1577
      %2079 = vmatprep.subr.mxu0 0.0
      %2080 = vmatpush1.msra.mxu0 %v1578
      %2081 = vmatprep.subr.mxu0 0.0
      %2082 = vmatpush1.msra.mxu0 %v1579
      %2083 = vmatprep.subr.mxu0 0.0
      %2084 = vmatpush1.msra.mxu0 %v1580
      %2085 = vmatprep.subr.mxu0 0.0
      %2086 = vmatpush1.msra.mxu0 %v1581
      %2087 = vmatprep.subr.mxu0 0.0
      %2088 = vmatpush1.msra.mxu0 %v1582
      %2089 = vmatprep.subr.mxu0 0.0
      %2090 = vmatpush1.msra.mxu0 %v1583
      %2091 = vmatprep.subr.mxu0 0.0
      %2092 = vmatpush1.msra.mxu0 %v1584
      %2093 = vmatprep.subr.mxu0 0.0
      %2094 = vmatpush1.msra.mxu0 %v1585
      %2095 = vmatprep.subr.mxu0 0.0
      %2096 = vmatpush1.msra.mxu0 %v1586
      %2097 = vmatprep.subr.mxu0 0.0
      %2098 = vmatpush1.msra.mxu0 %v1587
      %2099 = vmatprep.subr.mxu0 0.0
      %2100 = vmatpush1.msra.mxu0 %v1588
      %2101 = vmatprep.subr.mxu0 0.0
      %2102 = vmatpush1.msra.mxu0 %v1589
      %2103 = vmatprep.mubr.f32.mxu0 %v1687
      %2104 = vmatmul.mubr.f32.gmra.mrb[0].mxu0 %v1686
      %v2105 = vpop.f32.mrb[0].mxu0
      %v2106 = vadd.f32 %v1881, %v2105
      %v2107 = vpop.f32.mrb[0].mxu0
      %2108 = vmatprep.mubr.f32.mxu0 %v1689
      %2109 = vmatmul.mubr.f32.gmra.mrb[0].mxu0 %v1688
      %v2110 = vpop.f32.mrb[0].mxu0
      %v2111 = vadd.f32 %v1886, %v2110
      %v2112 = vpop.f32.mrb[0].mxu0
      %2113 = vmatprep.mubr.f32.mxu0 %v1691
      %2114 = vmatmul.mubr.f32.gmra.mrb[0].mxu0 %v1690
      %v2115 = vpop.f32.mrb[0].mxu0
      %v2116 = vadd.f32 %v1891, %v2115
      %v2117 = vpop.f32.mrb[0].mxu0
      %2118 = vmatprep.mubr.f32.mxu0 %v1693
      %2119 = vmatmul.mubr.f32.gmra.mrb[0].mxu0 %v1692
      %v2120 = vpop.f32.mrb[0].mxu0
      %v2121 = vadd.f32 %v1896, %v2120
      %v2122 = vpop.f32.mrb[0].mxu0
      %2123 = vmatprep.mubr.f32.mxu0 %v1695
      %2124 = vmatmul.mubr.f32.gmra.mrb[0].mxu0 %v1694
      %v2125 = vpop.f32.mrb[0].mxu0
      %v2126 = vadd.f32 %v1901, %v2125
      %v2127 = vpop.f32.mrb[0].mxu0
      %2128 = vmatprep.mubr.f32.mxu0 %v1697
      %2129 = vmatmul.mubr.f32.gmra.mrb[0].mxu0 %v1696
      %v2130 = vpop.f32.mrb[0].mxu0
      %v2131 = vadd.f32 %v1906, %v2130
      %v2132 = vpop.f32.mrb[0].mxu0
      %2133 = vmatprep.mubr.f32.mxu0 %v1699
      %2134 = vmatmul.mubr.f32.gmra.mrb[0].mxu0 %v1698
      %v2135 = vpop.f32.mrb[0].mxu0
      %v2136 = vadd.f32 %v1911, %v2135
      %v2137 = vpop.f32.mrb[0].mxu0
      %2138 = vmatprep.mubr.f32.mxu0 %v1701
      %2139 = vmatmul.mubr.f32.gmra.mrb[0].mxu0 %v1700
      %v2140 = vpop.f32.mrb[0].mxu0
      %v2141 = vadd.f32 %v1916, %v2140
      %v2142 = vpop.f32.mrb[0].mxu0
      %2143 = vmatprep.mubr.f32.mxu0 %v1703
      %2144 = vmatmul.mubr.f32.gmra.mrb[0].mxu0 %v1702
      %v2145 = vpop.f32.mrb[0].mxu0
      %v2146 = vadd.f32 %v1921, %v2145
      %v2147 = vpop.f32.mrb[0].mxu0
      %2148 = vmatprep.mubr.f32.mxu0 %v1705
      %2149 = vmatmul.mubr.f32.gmra.mrb[0].mxu0 %v1704
      %v2150 = vpop.f32.mrb[0].mxu0
      %v2151 = vadd.f32 %v1926, %v2150
      %v2152 = vpop.f32.mrb[0].mxu0
      %2153 = vmatprep.mubr.f32.mxu0 %v1707
      %2154 = vmatmul.mubr.f32.gmra.mrb[0].mxu0 %v1706
      %v2155 = vpop.f32.mrb[0].mxu0
      %v2156 = vadd.f32 %v1931, %v2155
      %v2157 = vpop.f32.mrb[0].mxu0
      %2158 = vmatprep.mubr.f32.mxu0 %v1709
      %2159 = vmatmul.mubr.f32.gmra.mrb[0].mxu0 %v1708
      %v2160 = vpop.f32.mrb[0].mxu0
      %v2161 = vadd.f32 %v1936, %v2160
      %v2162 = vpop.f32.mrb[0].mxu0
      %2163 = vmatprep.mubr.f32.mxu0 %v1711
      %2164 = vmatmul.mubr.f32.gmra.mrb[0].mxu0 %v1710
      %v2165 = vpop.f32.mrb[0].mxu0
      %v2166 = vadd.f32 %v1941, %v2165
      %v2167 = vpop.f32.mrb[0].mxu0
      %2168 = vmatprep.mubr.f32.mxu0 %v1713
      %2169 = vmatmul.mubr.f32.gmra.mrb[0].mxu0 %v1712
      %v2170 = vpop.f32.mrb[0].mxu0
      %v2171 = vadd.f32 %v1946, %v2170
      %v2172 = vpop.f32.mrb[0].mxu0
      %2173 = vmatprep.mubr.f32.mxu0 %v1715
      %2174 = vmatmul.mubr.f32.gmra.mrb[0].mxu0 %v1714
      %v2175 = vpop.f32.mrb[0].mxu0
      %v2176 = vadd.f32 %v1951, %v2175
      %v2177 = vpop.f32.mrb[0].mxu0
      %2178 = vmatprep.mubr.f32.mxu0 %v1717
      %2179 = vmatmul.mubr.f32.gmra.mrb[0].mxu0 %v1716
      %v2180 = vpop.f32.mrb[0].mxu0
      %v2181 = vadd.f32 %v1956, %v2180
      %v2182 = vpop.f32.mrb[0].mxu0
      %2183 = vmatprep.mubr.f32.mxu0 %v1719
      %2184 = vmatmul.mubr.f32.gmra.mrb[0].mxu0 %v1718
      %v2185 = vpop.f32.mrb[0].mxu0
      %v2186 = vadd.f32 %v1961, %v2185
      %v2187 = vpop.f32.mrb[0].mxu0
      %2188 = vmatprep.mubr.f32.mxu0 %v1721
      %2189 = vmatmul.mubr.f32.gmra.mrb[0].mxu0 %v1720
      %v2190 = vpop.f32.mrb[0].mxu0
      %v2191 = vadd.f32 %v1966, %v2190
      %v2192 = vpop.f32.mrb[0].mxu0
      %2193 = vmatprep.mubr.f32.mxu0 %v1723
      %2194 = vmatmul.mubr.f32.gmra.mrb[0].mxu0 %v1722
      %v2195 = vpop.f32.mrb[0].mxu0
      %v2196 = vadd.f32 %v1971, %v2195
      %v2197 = vpop.f32.mrb[0].mxu0
      %2198 = vmatprep.mubr.f32.mxu0 %v1725
      %2199 = vmatmul.mubr.f32.gmra.mrb[0].mxu0 %v1724
      %v2200 = vpop.f32.mrb[0].mxu0
      %v2201 = vadd.f32 %v1976, %v2200
      %v2202 = vpop.f32.mrb[0].mxu0
      %2203 = vmatprep.mubr.f32.mxu0 %v1727
      %2204 = vmatmul.mubr.f32.gmra.mrb[0].mxu0 %v1726
      %v2205 = vpop.f32.mrb[0].mxu0
      %v2206 = vadd.f32 %v1981, %v2205
      %v2207 = vpop.f32.mrb[0].mxu0
      %2208 = vmatprep.mubr.f32.mxu0 %v1729
      %2209 = vmatmul.mubr.f32.gmra.mrb[0].mxu0 %v1728
      %v2210 = vpop.f32.mrb[0].mxu0
      %v2211 = vadd.f32 %v1986, %v2210
      %v2212 = vpop.f32.mrb[0].mxu0
      %2213 = vmatprep.mubr.f32.mxu0 %v1731
      %2214 = vmatmul.mubr.f32.gmra.mrb[0].mxu0 %v1730
      %v2215 = vpop.f32.mrb[0].mxu0
      %v2216 = vadd.f32 %v1991, %v2215
      %v2217 = vpop.f32.mrb[0].mxu0
      %2218 = vmatprep.mubr.f32.mxu0 %v1733
      %2219 = vmatmul.mubr.f32.gmra.mrb[0].mxu0 %v1732
      %v2220 = vpop.f32.mrb[0].mxu0
      %v2221 = vadd.f32 %v1996, %v2220
      %v2222 = vpop.f32.mrb[0].mxu0
      %2223 = vmatprep.mubr.f32.mxu0 %v1735
      %2224 = vmatmul.mubr.f32.gmra.mrb[0].mxu0 %v1734
      %v2225 = vpop.f32.mrb[0].mxu0
      %v2226 = vadd.f32 %v2001, %v2225
      %v2227 = vpop.f32.mrb[0].mxu0
      %2228 = vmatprep.mubr.f32.mxu0 %v1737
      %2229 = vmatmul.mubr.f32.gmra.mrb[0].mxu0 %v1736
      %v2230 = vpop.f32.mrb[0].mxu0
      %v2231 = vadd.f32 %v2006, %v2230
      %v2232 = vpop.f32.mrb[0].mxu0
      %2233 = vmatprep.mubr.f32.mxu0 %v1739
      %2234 = vmatmul.mubr.f32.gmra.mrb[0].mxu0 %v1738
      %v2235 = vpop.f32.mrb[0].mxu0
      %v2236 = vadd.f32 %v2011, %v2235
      %v2237 = vpop.f32.mrb[0].mxu0
      %2238 = vmatprep.mubr.f32.mxu0 %v1741
      %2239 = vmatmul.mubr.f32.gmra.mrb[0].mxu0 %v1740
      %v2240 = vpop.f32.mrb[0].mxu0
      %v2241 = vadd.f32 %v2016, %v2240
      %v2242 = vpop.f32.mrb[0].mxu0
      %2243 = vmatprep.mubr.f32.mxu0 %v1743
      %2244 = vmatmul.mubr.f32.gmra.mrb[0].mxu0 %v1742
      %v2245 = vpop.f32.mrb[0].mxu0
      %v2246 = vadd.f32 %v2021, %v2245
      %v2247 = vpop.f32.mrb[0].mxu0
      %2248 = vmatprep.mubr.f32.mxu0 %v1745
      %2249 = vmatmul.mubr.f32.gmra.mrb[0].mxu0 %v1744
      %v2250 = vpop.f32.mrb[0].mxu0
      %v2251 = vadd.f32 %v2026, %v2250
      %v2252 = vpop.f32.mrb[0].mxu0
      %2253 = vmatprep.mubr.f32.mxu0 %v1747
      %2254 = vmatmul.mubr.f32.gmra.mrb[0].mxu0 %v1746
      %v2255 = vpop.f32.mrb[0].mxu0
      %v2256 = vadd.f32 %v2031, %v2255
      %v2257 = vpop.f32.mrb[0].mxu0
      %2258 = vmatprep.mubr.f32.mxu0 %v1749
      %2259 = vmatmul.mubr.f32.gmra.mrb[0].mxu0 %v1748
      %v2260 = vpop.f32.mrb[0].mxu0
      %v2261 = vadd.f32 %v2036, %v2260
      %v2262 = vpop.f32.mrb[0].mxu0
      %2263 = vdwg.mxu0
      %v2264 = vsub.f32 0.0, %v2106
      %v2265 = vsub.f32 0.0, %v2111
      %v2266 = vsub.f32 0.0, %v2116
      %v2267 = vsub.f32 0.0, %v2121
      %v2268 = vsub.f32 0.0, %v2126
      %v2269 = vsub.f32 0.0, %v2131
      %v2270 = vsub.f32 0.0, %v2136
      %v2271 = vsub.f32 0.0, %v2141
      %v2272 = vsub.f32 0.0, %v2146
      %v2273 = vsub.f32 0.0, %v2151
      %v2274 = vsub.f32 0.0, %v2156
      %v2275 = vsub.f32 0.0, %v2161
      %v2276 = vsub.f32 0.0, %v2166
      %v2277 = vsub.f32 0.0, %v2171
      %v2278 = vsub.f32 0.0, %v2176
      %v2279 = vsub.f32 0.0, %v2181
      %v2280 = vsub.f32 0.0, %v2186
      %v2281 = vsub.f32 0.0, %v2191
      %v2282 = vsub.f32 0.0, %v2196
      %v2283 = vsub.f32 0.0, %v2201
      %v2284 = vsub.f32 0.0, %v2206
      %v2285 = vsub.f32 0.0, %v2211
      %v2286 = vsub.f32 0.0, %v2216
      %v2287 = vsub.f32 0.0, %v2221
      %v2288 = vsub.f32 0.0, %v2226
      %v2289 = vsub.f32 0.0, %v2231
      %v2290 = vsub.f32 0.0, %v2236
      %v2291 = vsub.f32 0.0, %v2241
      %v2292 = vsub.f32 0.0, %v2246
      %v2293 = vsub.f32 0.0, %v2251
      %v2294 = vsub.f32 0.0, %v2256
      %v2295 = vsub.f32 0.0, %v2261
      %v2296 = vmul.f32 %v2264, 1.442695
      %v2297 = vpow.pop %v2296
      %v2298 = vmul.f32 %v2265, 1.442695
      %v2299 = vpow.pop %v2298
      %v2300 = vmul.f32 %v2266, 1.442695
      %v2301 = vpow.pop %v2300
      %v2302 = vmul.f32 %v2267, 1.442695
      %v2303 = vpow.pop %v2302
      %v2304 = vmul.f32 %v2268, 1.442695
      %v2305 = vpow.pop %v2304
      %v2306 = vmul.f32 %v2269, 1.442695
      %v2307 = vpow.pop %v2306
      %v2308 = vmul.f32 %v2270, 1.442695
      %v2309 = vpow.pop %v2308
      %v2310 = vmul.f32 %v2271, 1.442695
      %v2311 = vpow.pop %v2310
      %v2312 = vmul.f32 %v2272, 1.442695
      %v2313 = vpow.pop %v2312
      %v2314 = vmul.f32 %v2273, 1.442695
      %v2315 = vpow.pop %v2314
      %v2316 = vmul.f32 %v2274, 1.442695
      %v2317 = vpow.pop %v2316
      %v2318 = vmul.f32 %v2275, 1.442695
      %v2319 = vpow.pop %v2318
      %v2320 = vmul.f32 %v2276, 1.442695
      %v2321 = vpow.pop %v2320
      %v2322 = vmul.f32 %v2277, 1.442695
      %v2323 = vpow.pop %v2322
      %v2324 = vmul.f32 %v2278, 1.442695
      %v2325 = vpow.pop %v2324
      %v2326 = vmul.f32 %v2279, 1.442695
      %v2327 = vpow.pop %v2326
      %v2328 = vmul.f32 %v2280, 1.442695
      %v2329 = vpow.pop %v2328
      %v2330 = vmul.f32 %v2281, 1.442695
      %v2331 = vpow.pop %v2330
      %v2332 = vmul.f32 %v2282, 1.442695
      %v2333 = vpow.pop %v2332
      %v2334 = vmul.f32 %v2283, 1.442695
      %v2335 = vpow.pop %v2334
      %v2336 = vmul.f32 %v2284, 1.442695
      %v2337 = vpow.pop %v2336
      %v2338 = vmul.f32 %v2285, 1.442695
      %v2339 = vpow.pop %v2338
      %v2340 = vmul.f32 %v2286, 1.442695
      %v2341 = vpow.pop %v2340
      %v2342 = vmul.f32 %v2287, 1.442695
      %v2343 = vpow.pop %v2342
      %v2344 = vmul.f32 %v2288, 1.442695
      %v2345 = vpow.pop %v2344
      %v2346 = vmul.f32 %v2289, 1.442695
      %v2347 = vpow.pop %v2346
      %v2348 = vmul.f32 %v2290, 1.442695
      %v2349 = vpow.pop %v2348
      %v2350 = vmul.f32 %v2291, 1.442695
      %v2351 = vpow.pop %v2350
      %v2352 = vmul.f32 %v2292, 1.442695
      %v2353 = vpow.pop %v2352
      %v2354 = vmul.f32 %v2293, 1.442695
      %v2355 = vpow.pop %v2354
      %v2356 = vmul.f32 %v2294, 1.442695
      %v2357 = vpow.pop %v2356
      %v2358 = vmul.f32 %v2295, 1.442695
      %v2359 = vpow.pop %v2358
      %v2360 = vadd.f32 %v2297, 1.0
      %v2361 = vadd.f32 %v2299, 1.0
      %v2362 = vadd.f32 %v2301, 1.0
      %v2363 = vadd.f32 %v2303, 1.0
      %v2364 = vadd.f32 %v2305, 1.0
      %v2365 = vadd.f32 %v2307, 1.0
      %v2366 = vadd.f32 %v2309, 1.0
      %v2367 = vadd.f32 %v2311, 1.0
      %v2368 = vadd.f32 %v2313, 1.0
      %v2369 = vadd.f32 %v2315, 1.0
      %v2370 = vadd.f32 %v2317, 1.0
      %v2371 = vadd.f32 %v2319, 1.0
      %v2372 = vadd.f32 %v2321, 1.0
      %v2373 = vadd.f32 %v2323, 1.0
      %v2374 = vadd.f32 %v2325, 1.0
      %v2375 = vadd.f32 %v2327, 1.0
      %v2376 = vadd.f32 %v2329, 1.0
      %v2377 = vadd.f32 %v2331, 1.0
      %v2378 = vadd.f32 %v2333, 1.0
      %v2379 = vadd.f32 %v2335, 1.0
      %v2380 = vadd.f32 %v2337, 1.0
      %v2381 = vadd.f32 %v2339, 1.0
      %v2382 = vadd.f32 %v2341, 1.0
      %v2383 = vadd.f32 %v2343, 1.0
      %v2384 = vadd.f32 %v2345, 1.0
      %v2385 = vadd.f32 %v2347, 1.0
      %v2386 = vadd.f32 %v2349, 1.0
      %v2387 = vadd.f32 %v2351, 1.0
      %v2388 = vadd.f32 %v2353, 1.0
      %v2389 = vadd.f32 %v2355, 1.0
      %v2390 = vadd.f32 %v2357, 1.0
      %v2391 = vadd.f32 %v2359, 1.0
      %v2392 = vrcp.pop %v2360
      %v2393 = vmul.f32 1.0, %v2392
      %v2394 = vrcp.pop %v2361
      %v2395 = vmul.f32 1.0, %v2394
      %v2396 = vrcp.pop %v2362
      %v2397 = vmul.f32 1.0, %v2396
      %v2398 = vrcp.pop %v2363
      %v2399 = vmul.f32 1.0, %v2398
      %v2400 = vrcp.pop %v2364
      %v2401 = vmul.f32 1.0, %v2400
      %v2402 = vrcp.pop %v2365
      %v2403 = vmul.f32 1.0, %v2402
      %v2404 = vrcp.pop %v2366
      %v2405 = vmul.f32 1.0, %v2404
      %v2406 = vrcp.pop %v2367
      %v2407 = vmul.f32 1.0, %v2406
      %v2408 = vrcp.pop %v2368
      %v2409 = vmul.f32 1.0, %v2408
      %v2410 = vrcp.pop %v2369
      %v2411 = vmul.f32 1.0, %v2410
      %v2412 = vrcp.pop %v2370
      %v2413 = vmul.f32 1.0, %v2412
      %v2414 = vrcp.pop %v2371
      %v2415 = vmul.f32 1.0, %v2414
      %v2416 = vrcp.pop %v2372
      %v2417 = vmul.f32 1.0, %v2416
      %v2418 = vrcp.pop %v2373
      %v2419 = vmul.f32 1.0, %v2418
      %v2420 = vrcp.pop %v2374
      %v2421 = vmul.f32 1.0, %v2420
      %v2422 = vrcp.pop %v2375
      %v2423 = vmul.f32 1.0, %v2422
      %v2424 = vrcp.pop %v2376
      %v2425 = vmul.f32 1.0, %v2424
      %v2426 = vrcp.pop %v2377
      %v2427 = vmul.f32 1.0, %v2426
      %v2428 = vrcp.pop %v2378
      %v2429 = vmul.f32 1.0, %v2428
      %v2430 = vrcp.pop %v2379
      %v2431 = vmul.f32 1.0, %v2430
      %v2432 = vrcp.pop %v2380
      %v2433 = vmul.f32 1.0, %v2432
      %v2434 = vrcp.pop %v2381
      %v2435 = vmul.f32 1.0, %v2434
      %v2436 = vrcp.pop %v2382
      %v2437 = vmul.f32 1.0, %v2436
      %v2438 = vrcp.pop %v2383
      %v2439 = vmul.f32 1.0, %v2438
      %v2440 = vrcp.pop %v2384
      %v2441 = vmul.f32 1.0, %v2440
      %v2442 = vrcp.pop %v2385
      %v2443 = vmul.f32 1.0, %v2442
      %v2444 = vrcp.pop %v2386
      %v2445 = vmul.f32 1.0, %v2444
      %v2446 = vrcp.pop %v2387
      %v2447 = vmul.f32 1.0, %v2446
      %v2448 = vrcp.pop %v2388
      %v2449 = vmul.f32 1.0, %v2448
      %v2450 = vrcp.pop %v2389
      %v2451 = vmul.f32 1.0, %v2450
      %v2452 = vrcp.pop %v2390
      %v2453 = vmul.f32 1.0, %v2452
      %v2454 = vrcp.pop %v2391
      %v2455 = vmul.f32 1.0, %v2454
      %2457 = vset.pattern.permute.xlu0 0
      %2458 = vperm.xlu0 %2457, %v2393
      %v2459 = vpop.permute.xlu0 %2458
      %2462 = vset.pattern.permute.xlu0 0
      %2463 = vperm.xlu0 %2462, %v2395
      %v2464 = vpop.permute.xlu0 %2463
      %2467 = vset.pattern.permute.xlu0 0
      %2468 = vperm.xlu0 %2467, %v2397
      %v2469 = vpop.permute.xlu0 %2468
      %2472 = vset.pattern.permute.xlu0 0
      %2473 = vperm.xlu0 %2472, %v2399
      %v2474 = vpop.permute.xlu0 %2473
      %2477 = vset.pattern.permute.xlu0 0
      %2478 = vperm.xlu0 %2477, %v2401
      %v2479 = vpop.permute.xlu0 %2478
      %2482 = vset.pattern.permute.xlu0 0
      %2483 = vperm.xlu0 %2482, %v2403
      %v2484 = vpop.permute.xlu0 %2483
      %2487 = vset.pattern.permute.xlu0 0
      %2488 = vperm.xlu0 %2487, %v2405
      %v2489 = vpop.permute.xlu0 %2488
      %2492 = vset.pattern.permute.xlu0 0
      %2493 = vperm.xlu0 %2492, %v2407
      %v2494 = vpop.permute.xlu0 %2493
      %2497 = vset.pattern.permute.xlu0 0
      %2498 = vperm.xlu0 %2497, %v2409
      %v2499 = vpop.permute.xlu0 %2498
      %2502 = vset.pattern.permute.xlu0 0
      %2503 = vperm.xlu0 %2502, %v2411
      %v2504 = vpop.permute.xlu0 %2503
      %2507 = vset.pattern.permute.xlu0 0
      %2508 = vperm.xlu0 %2507, %v2413
      %v2509 = vpop.permute.xlu0 %2508
      %2512 = vset.pattern.permute.xlu0 0
      %2513 = vperm.xlu0 %2512, %v2415
      %v2514 = vpop.permute.xlu0 %2513
      %2517 = vset.pattern.permute.xlu0 0
      %2518 = vperm.xlu0 %2517, %v2417
      %v2519 = vpop.permute.xlu0 %2518
      %2522 = vset.pattern.permute.xlu0 0
      %2523 = vperm.xlu0 %2522, %v2419
      %v2524 = vpop.permute.xlu0 %2523
      %2527 = vset.pattern.permute.xlu0 0
      %2528 = vperm.xlu0 %2527, %v2421
      %v2529 = vpop.permute.xlu0 %2528
      %2532 = vset.pattern.permute.xlu0 0
      %2533 = vperm.xlu0 %2532, %v2423
      %v2534 = vpop.permute.xlu0 %2533
      %2537 = vset.pattern.permute.xlu0 0
      %2538 = vperm.xlu0 %2537, %v2425
      %v2539 = vpop.permute.xlu0 %2538
      %2542 = vset.pattern.permute.xlu0 0
      %2543 = vperm.xlu0 %2542, %v2427
      %v2544 = vpop.permute.xlu0 %2543
      %2547 = vset.pattern.permute.xlu0 0
      %2548 = vperm.xlu0 %2547, %v2429
      %v2549 = vpop.permute.xlu0 %2548
      %2552 = vset.pattern.permute.xlu0 0
      %2553 = vperm.xlu0 %2552, %v2431
      %v2554 = vpop.permute.xlu0 %2553
      %2557 = vset.pattern.permute.xlu0 0
      %2558 = vperm.xlu0 %2557, %v2433
      %v2559 = vpop.permute.xlu0 %2558
      %2562 = vset.pattern.permute.xlu0 0
      %2563 = vperm.xlu0 %2562, %v2435
      %v2564 = vpop.permute.xlu0 %2563
      %2567 = vset.pattern.permute.xlu0 0
      %2568 = vperm.xlu0 %2567, %v2437
      %v2569 = vpop.permute.xlu0 %2568
      %2572 = vset.pattern.permute.xlu0 0
      %2573 = vperm.xlu0 %2572, %v2439
      %v2574 = vpop.permute.xlu0 %2573
      %2577 = vset.pattern.permute.xlu0 0
      %2578 = vperm.xlu0 %2577, %v2441
      %v2579 = vpop.permute.xlu0 %2578
      %2582 = vset.pattern.permute.xlu0 0
      %2583 = vperm.xlu0 %2582, %v2443
      %v2584 = vpop.permute.xlu0 %2583
      %2587 = vset.pattern.permute.xlu0 0
      %2588 = vperm.xlu0 %2587, %v2445
      %v2589 = vpop.permute.xlu0 %2588
      %2592 = vset.pattern.permute.xlu0 0
      %2593 = vperm.xlu0 %2592, %v2447
      %v2594 = vpop.permute.xlu0 %2593
      %2597 = vset.pattern.permute.xlu0 0
      %2598 = vperm.xlu0 %2597, %v2449
      %v2599 = vpop.permute.xlu0 %2598
      %2602 = vset.pattern.permute.xlu0 0
      %2603 = vperm.xlu0 %2602, %v2451
      %v2604 = vpop.permute.xlu0 %2603
      %2607 = vset.pattern.permute.xlu0 0
      %2608 = vperm.xlu0 %2607, %v2453
      %v2609 = vpop.permute.xlu0 %2608
      %2612 = vset.pattern.permute.xlu0 0
      %2613 = vperm.xlu0 %2612, %v2455
      %v2614 = vpop.permute.xlu0 %2613
      %v2616 = vmul.f32 %v1429, %v2459
      %v2617 = vmul.f32 %v1430, %v2464
      %v2618 = vmul.f32 %v1431, %v2469
      %v2619 = vmul.f32 %v1432, %v2474
      %v2620 = vmul.f32 %v1433, %v2479
      %v2621 = vmul.f32 %v1434, %v2484
      %v2622 = vmul.f32 %v1435, %v2489
      %v2623 = vmul.f32 %v1436, %v2494
      %v2624 = vmul.f32 %v1437, %v2499
      %v2625 = vmul.f32 %v1438, %v2504
      %v2626 = vmul.f32 %v1439, %v2509
      %v2627 = vmul.f32 %v1440, %v2514
      %v2628 = vmul.f32 %v1441, %v2519
      %v2629 = vmul.f32 %v1442, %v2524
      %v2630 = vmul.f32 %v1443, %v2529
      %v2631 = vmul.f32 %v1444, %v2534
      %v2632 = vmul.f32 %v1445, %v2539
      %v2633 = vmul.f32 %v1446, %v2544
      %v2634 = vmul.f32 %v1447, %v2549
      %v2635 = vmul.f32 %v1448, %v2554
      %v2636 = vmul.f32 %v1449, %v2559
      %v2637 = vmul.f32 %v1450, %v2564
      %v2638 = vmul.f32 %v1451, %v2569
      %v2639 = vmul.f32 %v1452, %v2574
      %v2640 = vmul.f32 %v1453, %v2579
      %v2641 = vmul.f32 %v1454, %v2584
      %v2642 = vmul.f32 %v1455, %v2589
      %v2643 = vmul.f32 %v1456, %v2594
      %v2644 = vmul.f32 %v1457, %v2599
      %v2645 = vmul.f32 %v1458, %v2604
      %v2646 = vmul.f32 %v1459, %v2609
      %v2647 = vmul.f32 %v1460, %v2614
      %v2648 = vsel %vm1046, %v2616, 0.0
      %v2649 = vsel %vm1046, %v2617, 0.0
      %v2650 = vadd.f32 %v2648, %v2649
      %v2651 = vsel %vm1046, %v2618, 0.0
      %v2652 = vadd.f32 %v2650, %v2651
      %v2653 = vsel %vm1046, %v2619, 0.0
      %v2654 = vadd.f32 %v2652, %v2653
      %v2655 = vsel %vm1046, %v2620, 0.0
      %v2656 = vadd.f32 %v2654, %v2655
      %v2657 = vsel %vm1046, %v2621, 0.0
      %v2658 = vadd.f32 %v2656, %v2657
      %v2659 = vsel %vm1046, %v2622, 0.0
      %v2660 = vadd.f32 %v2658, %v2659
      %v2661 = vsel %vm1046, %v2623, 0.0
      %v2662 = vadd.f32 %v2660, %v2661
      %v2663 = vsel %vm1046, %v2624, 0.0
      %v2664 = vadd.f32 %v2662, %v2663
      %v2665 = vsel %vm1046, %v2625, 0.0
      %v2666 = vadd.f32 %v2664, %v2665
      %v2667 = vsel %vm1046, %v2626, 0.0
      %v2668 = vadd.f32 %v2666, %v2667
      %v2669 = vsel %vm1046, %v2627, 0.0
      %v2670 = vadd.f32 %v2668, %v2669
      %v2671 = vsel %vm1046, %v2628, 0.0
      %v2672 = vadd.f32 %v2670, %v2671
      %v2673 = vsel %vm1046, %v2629, 0.0
      %v2674 = vadd.f32 %v2672, %v2673
      %v2675 = vsel %vm1046, %v2630, 0.0
      %v2676 = vadd.f32 %v2674, %v2675
      %v2677 = vsel %vm1046, %v2631, 0.0
      %v2678 = vadd.f32 %v2676, %v2677
      %v2679 = vsel %vm1046, %v2632, 0.0
      %v2680 = vadd.f32 %v2678, %v2679
      %v2681 = vsel %vm1046, %v2633, 0.0
      %v2682 = vadd.f32 %v2680, %v2681
      %v2683 = vsel %vm1046, %v2634, 0.0
      %v2684 = vadd.f32 %v2682, %v2683
      %v2685 = vsel %vm1046, %v2635, 0.0
      %v2686 = vadd.f32 %v2684, %v2685
      %v2687 = vsel %vm1046, %v2636, 0.0
      %v2688 = vadd.f32 %v2686, %v2687
      %v2689 = vsel %vm1046, %v2637, 0.0
      %v2690 = vadd.f32 %v2688, %v2689
      %v2691 = vsel %vm1046, %v2638, 0.0
      %v2692 = vadd.f32 %v2690, %v2691
      %v2693 = vsel %vm1046, %v2639, 0.0
      %v2694 = vadd.f32 %v2692, %v2693
      %v2695 = vsel %vm1046, %v2640, 0.0
      %v2696 = vadd.f32 %v2694, %v2695
      %v2697 = vsel %vm1046, %v2641, 0.0
      %v2698 = vadd.f32 %v2696, %v2697
      %v2699 = vsel %vm1046, %v2642, 0.0
      %v2700 = vadd.f32 %v2698, %v2699
      %v2701 = vsel %vm1046, %v2643, 0.0
      %v2702 = vadd.f32 %v2700, %v2701
      %v2703 = vsel %vm1046, %v2644, 0.0
      %v2704 = vadd.f32 %v2702, %v2703
      %v2705 = vsel %vm1046, %v2645, 0.0
      %v2706 = vadd.f32 %v2704, %v2705
      %v2707 = vsel %vm1046, %v2646, 0.0
      %v2708 = vadd.f32 %v2706, %v2707
      %v2709 = vsel %vm1046, %v2647, 0.0
      %v2710 = vadd.f32 %v2708, %v2709
      %v2711 = vrot.slane %v2710, 4
      %v2712 = vadd.f32 %v2710, %v2711
      %v2713 = vrot.slane %v2712, 2
      %v2714 = vadd.f32 %v2712, %v2713
      %v2715 = vrot.slane %v2714, 1
      %v2716 = vadd.f32 %v2714, %v2715
      %v2717 = vmul.f32 %v2716, %v1116
      %v2718 = vpack.c.bf16 %v2717, %v2717
      %v2719 = vld [vmem:[%s11] sm:$0xff]
      %v2720 = vld [vmem:[%s11 + $0x8] sm:$0xff]
      %v2721 = vld [vmem:[%s11 + $0x10] sm:$0xff]
      %v2722 = vld [vmem:[%s11 + $0x18] sm:$0xff]
      %v2723 = vld [vmem:[%s11 + $0x20] sm:$0xff]
      %v2724 = vld [vmem:[%s11 + $0x28] sm:$0xff]
      %v2725 = vld [vmem:[%s11 + $0x30] sm:$0xff]
      %v2726 = vld [vmem:[%s11 + $0x38] sm:$0xff]
      %v2727 = vld [vmem:[%s11 + $0x40] sm:$0xff]
      %v2728 = vld [vmem:[%s11 + $0x48] sm:$0xff]
      %v2729 = vld [vmem:[%s11 + $0x50] sm:$0xff]
      %v2730 = vld [vmem:[%s11 + $0x58] sm:$0xff]
      %v2731 = vld [vmem:[%s11 + $0x60] sm:$0xff]
      %v2732 = vld [vmem:[%s11 + $0x68] sm:$0xff]
      %v2733 = vld [vmem:[%s11 + $0x70] sm:$0xff]
      %v2734 = vld [vmem:[%s11 + $0x78] sm:$0xff]
      %v2735 = vld [vmem:[%s11 + $0x80] sm:$0xff]
      %v2736 = vld [vmem:[%s11 + $0x88] sm:$0xff]
      %v2737 = vld [vmem:[%s11 + $0x90] sm:$0xff]
      %v2738 = vld [vmem:[%s11 + $0x98] sm:$0xff]
      %v2739 = vld [vmem:[%s11 + $0xa0] sm:$0xff]
      %v2740 = vld [vmem:[%s11 + $0xa8] sm:$0xff]
      %v2741 = vld [vmem:[%s11 + $0xb0] sm:$0xff]
      %v2742 = vld [vmem:[%s11 + $0xb8] sm:$0xff]
      %v2743 = vld [vmem:[%s11 + $0xc0] sm:$0xff]
      %v2744 = vld [vmem:[%s11 + $0xc8] sm:$0xff]
      %v2745 = vld [vmem:[%s11 + $0xd0] sm:$0xff]
      %v2746 = vld [vmem:[%s11 + $0xd8] sm:$0xff]
      %v2747 = vld [vmem:[%s11 + $0xe0] sm:$0xff]
      %v2748 = vld [vmem:[%s11 + $0xe8] sm:$0xff]
      %v2749 = vld [vmem:[%s11 + $0xf0] sm:$0xff]
      %v2750 = vld [vmem:[%s11 + $0xf8] sm:$0xff]
      %v2751 = vld [vmem:[%s13] sm:$0xff]
      %v2784 = vunpack.c.l.b16 %v2719
      %v2785 = vunpack.c.h.b16 %v2719
      %v2786 = vunpack.c.l.b16 %v2720
      %v2787 = vunpack.c.h.b16 %v2720
      %v2788 = vunpack.c.l.b16 %v2721
      %v2789 = vunpack.c.h.b16 %v2721
      %v2790 = vunpack.c.l.b16 %v2722
      %v2791 = vunpack.c.h.b16 %v2722
      %v2792 = vunpack.c.l.b16 %v2723
      %v2793 = vunpack.c.h.b16 %v2723
      %v2794 = vunpack.c.l.b16 %v2724
      %v2795 = vunpack.c.h.b16 %v2724
      %v2796 = vunpack.c.l.b16 %v2725
      %v2797 = vunpack.c.h.b16 %v2725
      %v2798 = vunpack.c.l.b16 %v2726
      %v2799 = vunpack.c.h.b16 %v2726
      %v2800 = vunpack.c.l.b16 %v2727
      %v2801 = vunpack.c.h.b16 %v2727
      %v2802 = vunpack.c.l.b16 %v2728
      %v2803 = vunpack.c.h.b16 %v2728
      %v2804 = vunpack.c.l.b16 %v2729
      %v2805 = vunpack.c.h.b16 %v2729
      %v2806 = vunpack.c.l.b16 %v2730
      %v2807 = vunpack.c.h.b16 %v2730
      %v2808 = vunpack.c.l.b16 %v2731
      %v2809 = vunpack.c.h.b16 %v2731
      %v2810 = vunpack.c.l.b16 %v2732
      %v2811 = vunpack.c.h.b16 %v2732
      %v2812 = vunpack.c.l.b16 %v2733
      %v2813 = vunpack.c.h.b16 %v2733
      %v2814 = vunpack.c.l.b16 %v2734
      %v2815 = vunpack.c.h.b16 %v2734
      %v2816 = vunpack.c.l.b16 %v2735
      %v2817 = vunpack.c.h.b16 %v2735
      %v2818 = vunpack.c.l.b16 %v2736
      %v2819 = vunpack.c.h.b16 %v2736
      %v2820 = vunpack.c.l.b16 %v2737
      %v2821 = vunpack.c.h.b16 %v2737
      %v2822 = vunpack.c.l.b16 %v2738
      %v2823 = vunpack.c.h.b16 %v2738
      %v2824 = vunpack.c.l.b16 %v2739
      %v2825 = vunpack.c.h.b16 %v2739
      %v2826 = vunpack.c.l.b16 %v2740
      %v2827 = vunpack.c.h.b16 %v2740
      %v2828 = vunpack.c.l.b16 %v2741
      %v2829 = vunpack.c.h.b16 %v2741
      %v2830 = vunpack.c.l.b16 %v2742
      %v2831 = vunpack.c.h.b16 %v2742
      %v2832 = vunpack.c.l.b16 %v2743
      %v2833 = vunpack.c.h.b16 %v2743
      %v2834 = vunpack.c.l.b16 %v2744
      %v2835 = vunpack.c.h.b16 %v2744
      %v2836 = vunpack.c.l.b16 %v2745
      %v2837 = vunpack.c.h.b16 %v2745
      %v2838 = vunpack.c.l.b16 %v2746
      %v2839 = vunpack.c.h.b16 %v2746
      %v2840 = vunpack.c.l.b16 %v2747
      %v2841 = vunpack.c.h.b16 %v2747
      %v2842 = vunpack.c.l.b16 %v2748
      %v2843 = vunpack.c.h.b16 %v2748
      %v2844 = vunpack.c.l.b16 %v2749
      %v2845 = vunpack.c.h.b16 %v2749
      %v2846 = vunpack.c.l.b16 %v2750
      %v2847 = vunpack.c.h.b16 %v2750
      %v2848 = vpack.c.b16 %v2792, %v2784
      %v2849 = vpack.c.b16 %v2793, %v2785
      %v2850 = vpack.c.b16 %v2794, %v2786
      %v2851 = vpack.c.b16 %v2795, %v2787
      %v2852 = vpack.c.b16 %v2796, %v2788
      %v2853 = vpack.c.b16 %v2797, %v2789
      %v2854 = vpack.c.b16 %v2798, %v2790
      %v2855 = vpack.c.b16 %v2799, %v2791
      %v2856 = vpack.c.b16 %v2808, %v2800
      %v2857 = vpack.c.b16 %v2809, %v2801
      %v2858 = vpack.c.b16 %v2810, %v2802
      %v2859 = vpack.c.b16 %v2811, %v2803
      %v2860 = vpack.c.b16 %v2812, %v2804
      %v2861 = vpack.c.b16 %v2813, %v2805
      %v2862 = vpack.c.b16 %v2814, %v2806
      %v2863 = vpack.c.b16 %v2815, %v2807
      %v2864 = vpack.c.b16 %v2824, %v2816
      %v2865 = vpack.c.b16 %v2825, %v2817
      %v2866 = vpack.c.b16 %v2826, %v2818
      %v2867 = vpack.c.b16 %v2827, %v2819
      %v2868 = vpack.c.b16 %v2828, %v2820
      %v2869 = vpack.c.b16 %v2829, %v2821
      %v2870 = vpack.c.b16 %v2830, %v2822
      %v2871 = vpack.c.b16 %v2831, %v2823
      %v2872 = vpack.c.b16 %v2840, %v2832
      %v2873 = vpack.c.b16 %v2841, %v2833
      %v2874 = vpack.c.b16 %v2842, %v2834
      %v2875 = vpack.c.b16 %v2843, %v2835
      %v2876 = vpack.c.b16 %v2844, %v2836
      %v2877 = vpack.c.b16 %v2845, %v2837
      %v2878 = vpack.c.b16 %v2846, %v2838
      %v2879 = vpack.c.b16 %v2847, %v2839
      %v2913 = vlaneseq
      %v2914 = vshrl.u32 %v2913, 7
      %v2915 = vsub.s32 0, %v2914
      %v2916 = vrot.slane %v2751, %v2915
      %v2917 = vlaneseq
      %v2918 = vshrl.u32 %v2917, 7
      %v2919 = vsub.s32 1, %v2918
      %v2920 = vrot.slane %v2751, %v2919
      %v2921 = vlaneseq
      %v2922 = vshrl.u32 %v2921, 7
      %v2923 = vsub.s32 2, %v2922
      %v2924 = vrot.slane %v2751, %v2923
      %v2925 = vlaneseq
      %v2926 = vshrl.u32 %v2925, 7
      %v2927 = vsub.s32 3, %v2926
      %v2928 = vrot.slane %v2751, %v2927
      %v2929 = vlaneseq
      %v2930 = vshrl.u32 %v2929, 7
      %v2931 = vsub.s32 4, %v2930
      %v2932 = vrot.slane %v2751, %v2931
      %v2933 = vlaneseq
      %v2934 = vshrl.u32 %v2933, 7
      %v2935 = vsub.s32 5, %v2934
      %v2936 = vrot.slane %v2751, %v2935
      %v2937 = vlaneseq
      %v2938 = vshrl.u32 %v2937, 7
      %v2939 = vsub.s32 6, %v2938
      %v2940 = vrot.slane %v2751, %v2939
      %v2941 = vlaneseq
      %v2942 = vshrl.u32 %v2941, 7
      %v2943 = vsub.s32 7, %v2942
      %v2944 = vrot.slane %v2751, %v2943
      %v2954 = vsel %vm1046, %v2718, 0
      %2956 = vmatprep.subr.bf16.mxu0 %v2849
      %2957 = vmatpush1.bf16.msra.mxu0 %v2848
      %2958 = vmatprep.subr.bf16.mxu0 %v2857
      %2959 = vmatpush1.bf16.msra.mxu0 %v2856
      %2960 = vmatprep.subr.bf16.mxu0 %v2865
      %2961 = vmatpush1.bf16.msra.mxu0 %v2864
      %2962 = vmatprep.subr.bf16.mxu0 %v2873
      %2963 = vmatpush1.bf16.msra.mxu0 %v2872
      %2964 = vmatprep.subr.bf16.mxu0 0
      %2965 = vmatpush1.bf16.msra.mxu0 0
      %2966 = vmatprep.subr.bf16.mxu0 0
      %2967 = vmatpush1.bf16.msra.mxu0 0
      %2968 = vmatprep.subr.bf16.mxu0 0
      %2969 = vmatpush1.bf16.msra.mxu0 0
      %2970 = vmatprep.subr.bf16.mxu0 0
      %2971 = vmatpush1.bf16.msra.mxu0 0
      %2972 = vmatprep.subr.bf16.mxu0 0
      %2973 = vmatpush1.bf16.msra.mxu0 0
      %2974 = vmatprep.subr.bf16.mxu0 0
      %2975 = vmatpush1.bf16.msra.mxu0 0
      %2976 = vmatprep.subr.bf16.mxu0 0
      %2977 = vmatpush1.bf16.msra.mxu0 0
      %2978 = vmatprep.subr.bf16.mxu0 0
      %2979 = vmatpush1.bf16.msra.mxu0 0
      %2980 = vmatprep.subr.bf16.mxu0 0
      %2981 = vmatpush1.bf16.msra.mxu0 0
      %2982 = vmatprep.subr.bf16.mxu0 0
      %2983 = vmatpush1.bf16.msra.mxu0 0
      %2984 = vmatprep.subr.bf16.mxu0 0
      %2985 = vmatpush1.bf16.msra.mxu0 0
      %2986 = vmatprep.subr.bf16.mxu0 0
      %2987 = vmatpush1.bf16.msra.mxu0 0
      %2988 = vmatprep.mubr.bf16.mxu0 0
      %2989 = vmatmul.mubr.bf16.gmra.mrb[0].mxu0 %v2954
      %v2990 = vpop.f32.mrb[0].mxu0
      %v2991 = vadd.f32 %v2916, %v2990
      %v2992 = vpop.f32.mrb[0].mxu0
      %v2993 = vadd.f32 %v2920, %v2992
      %v2994 = vpop.f32.mrb[0].mxu0
      %v2995 = vpop.f32.mrb[0].mxu0
      %2996 = vdwg.mxu0
      %2997 = vmatprep.subr.bf16.mxu0 %v2851
      %2998 = vmatpush1.bf16.msra.mxu0 %v2850
      %2999 = vmatprep.subr.bf16.mxu0 %v2859
      %3000 = vmatpush1.bf16.msra.mxu0 %v2858
      %3001 = vmatprep.subr.bf16.mxu0 %v2867
      %3002 = vmatpush1.bf16.msra.mxu0 %v2866
      %3003 = vmatprep.subr.bf16.mxu0 %v2875
      %3004 = vmatpush1.bf16.msra.mxu0 %v2874
      %3005 = vmatprep.subr.bf16.mxu0 0
      %3006 = vmatpush1.bf16.msra.mxu0 0
      %3007 = vmatprep.subr.bf16.mxu0 0
      %3008 = vmatpush1.bf16.msra.mxu0 0
      %3009 = vmatprep.subr.bf16.mxu0 0
      %3010 = vmatpush1.bf16.msra.mxu0 0
      %3011 = vmatprep.subr.bf16.mxu0 0
      %3012 = vmatpush1.bf16.msra.mxu0 0
      %3013 = vmatprep.subr.bf16.mxu0 0
      %3014 = vmatpush1.bf16.msra.mxu0 0
      %3015 = vmatprep.subr.bf16.mxu0 0
      %3016 = vmatpush1.bf16.msra.mxu0 0
      %3017 = vmatprep.subr.bf16.mxu0 0
      %3018 = vmatpush1.bf16.msra.mxu0 0
      %3019 = vmatprep.subr.bf16.mxu0 0
      %3020 = vmatpush1.bf16.msra.mxu0 0
      %3021 = vmatprep.subr.bf16.mxu0 0
      %3022 = vmatpush1.bf16.msra.mxu0 0
      %3023 = vmatprep.subr.bf16.mxu0 0
      %3024 = vmatpush1.bf16.msra.mxu0 0
      %3025 = vmatprep.subr.bf16.mxu0 0
      %3026 = vmatpush1.bf16.msra.mxu0 0
      %3027 = vmatprep.subr.bf16.mxu0 0
      %3028 = vmatpush1.bf16.msra.mxu0 0
      %3029 = vmatprep.mubr.bf16.mxu0 0
      %3030 = vmatmul.mubr.bf16.gmra.mrb[0].mxu0 %v2954
      %v3031 = vpop.f32.mrb[0].mxu0
      %v3032 = vadd.f32 %v2924, %v3031
      %v3033 = vpop.f32.mrb[0].mxu0
      %v3034 = vadd.f32 %v2928, %v3033
      %v3035 = vpop.f32.mrb[0].mxu0
      %v3036 = vpop.f32.mrb[0].mxu0
      %3037 = vdwg.mxu0
      %3038 = vmatprep.subr.bf16.mxu0 %v2853
      %3039 = vmatpush1.bf16.msra.mxu0 %v2852
      %3040 = vmatprep.subr.bf16.mxu0 %v2861
      %3041 = vmatpush1.bf16.msra.mxu0 %v2860
      %3042 = vmatprep.subr.bf16.mxu0 %v2869
      %3043 = vmatpush1.bf16.msra.mxu0 %v2868
      %3044 = vmatprep.subr.bf16.mxu0 %v2877
      %3045 = vmatpush1.bf16.msra.mxu0 %v2876
      %3046 = vmatprep.subr.bf16.mxu0 0
      %3047 = vmatpush1.bf16.msra.mxu0 0
      %3048 = vmatprep.subr.bf16.mxu0 0
      %3049 = vmatpush1.bf16.msra.mxu0 0
      %3050 = vmatprep.subr.bf16.mxu0 0
      %3051 = vmatpush1.bf16.msra.mxu0 0
      %3052 = vmatprep.subr.bf16.mxu0 0
      %3053 = vmatpush1.bf16.msra.mxu0 0
      %3054 = vmatprep.subr.bf16.mxu0 0
      %3055 = vmatpush1.bf16.msra.mxu0 0
      %3056 = vmatprep.subr.bf16.mxu0 0
      %3057 = vmatpush1.bf16.msra.mxu0 0
      %3058 = vmatprep.subr.bf16.mxu0 0
      %3059 = vmatpush1.bf16.msra.mxu0 0
      %3060 = vmatprep.subr.bf16.mxu0 0
      %3061 = vmatpush1.bf16.msra.mxu0 0
      %3062 = vmatprep.subr.bf16.mxu0 0
      %3063 = vmatpush1.bf16.msra.mxu0 0
      %3064 = vmatprep.subr.bf16.mxu0 0
      %3065 = vmatpush1.bf16.msra.mxu0 0
      %3066 = vmatprep.subr.bf16.mxu0 0
      %3067 = vmatpush1.bf16.msra.mxu0 0
      %3068 = vmatprep.subr.bf16.mxu0 0
      %3069 = vmatpush1.bf16.msra.mxu0 0
      %3070 = vmatprep.mubr.bf16.mxu0 0
      %3071 = vmatmul.mubr.bf16.gmra.mrb[0].mxu0 %v2954
      %v3072 = vpop.f32.mrb[0].mxu0
      %v3073 = vadd.f32 %v2932, %v3072
      %v3074 = vpop.f32.mrb[0].mxu0
      %v3075 = vadd.f32 %v2936, %v3074
      %v3076 = vpop.f32.mrb[0].mxu0
      %v3077 = vpop.f32.mrb[0].mxu0
      %3078 = vdwg.mxu0
      %3079 = vmatprep.subr.bf16.mxu0 %v2855
      %3080 = vmatpush1.bf16.msra.mxu0 %v2854
      %3081 = vmatprep.subr.bf16.mxu0 %v2863
      %3082 = vmatpush1.bf16.msra.mxu0 %v2862
      %3083 = vmatprep.subr.bf16.mxu0 %v2871
      %3084 = vmatpush1.bf16.msra.mxu0 %v2870
      %3085 = vmatprep.subr.bf16.mxu0 %v2879
      %3086 = vmatpush1.bf16.msra.mxu0 %v2878
      %3087 = vmatprep.subr.bf16.mxu0 0
      %3088 = vmatpush1.bf16.msra.mxu0 0
      %3089 = vmatprep.subr.bf16.mxu0 0
      %3090 = vmatpush1.bf16.msra.mxu0 0
      %3091 = vmatprep.subr.bf16.mxu0 0
      %3092 = vmatpush1.bf16.msra.mxu0 0
      %3093 = vmatprep.subr.bf16.mxu0 0
      %3094 = vmatpush1.bf16.msra.mxu0 0
      %3095 = vmatprep.subr.bf16.mxu0 0
      %3096 = vmatpush1.bf16.msra.mxu0 0
      %3097 = vmatprep.subr.bf16.mxu0 0
      %3098 = vmatpush1.bf16.msra.mxu0 0
      %3099 = vmatprep.subr.bf16.mxu0 0
      %3100 = vmatpush1.bf16.msra.mxu0 0
      %3101 = vmatprep.subr.bf16.mxu0 0
      %3102 = vmatpush1.bf16.msra.mxu0 0
      %3103 = vmatprep.subr.bf16.mxu0 0
      %3104 = vmatpush1.bf16.msra.mxu0 0
      %3105 = vmatprep.subr.bf16.mxu0 0
      %3106 = vmatpush1.bf16.msra.mxu0 0
      %3107 = vmatprep.subr.bf16.mxu0 0
      %3108 = vmatpush1.bf16.msra.mxu0 0
      %3109 = vmatprep.subr.bf16.mxu0 0
      %3110 = vmatpush1.bf16.msra.mxu0 0
      %3111 = vmatprep.mubr.bf16.mxu0 0
      %3112 = vmatmul.mubr.bf16.gmra.mrb[0].mxu0 %v2954
      %v3113 = vpop.f32.mrb[0].mxu0
      %v3114 = vadd.f32 %v2940, %v3113
      %v3115 = vpop.f32.mrb[0].mxu0
      %v3116 = vadd.f32 %v2944, %v3115
      %v3117 = vpop.f32.mrb[0].mxu0
      %v3118 = vpop.f32.mrb[0].mxu0
      %3119 = vdwg.mxu0
      %v3120 = vld [vmem:[%s15] sm:$0xff]
      %v3122 = vlaneseq
      %v3123 = vshrl.u32 %v3122, 7
      %v3124 = vsub.s32 0, %v3123
      %v3125 = vrot.slane %v3120, %v3124
      %v3126 = vlaneseq
      %v3127 = vshrl.u32 %v3126, 7
      %v3128 = vsub.s32 1, %v3127
      %v3129 = vrot.slane %v3120, %v3128
      %v3130 = vlaneseq
      %v3131 = vshrl.u32 %v3130, 7
      %v3132 = vsub.s32 2, %v3131
      %v3133 = vrot.slane %v3120, %v3132
      %v3134 = vlaneseq
      %v3135 = vshrl.u32 %v3134, 7
      %v3136 = vsub.s32 3, %v3135
      %v3137 = vrot.slane %v3120, %v3136
      %v3138 = vlaneseq
      %v3139 = vshrl.u32 %v3138, 7
      %v3140 = vsub.s32 4, %v3139
      %v3141 = vrot.slane %v3120, %v3140
      %v3142 = vlaneseq
      %v3143 = vshrl.u32 %v3142, 7
      %v3144 = vsub.s32 5, %v3143
      %v3145 = vrot.slane %v3120, %v3144
      %v3146 = vlaneseq
      %v3147 = vshrl.u32 %v3146, 7
      %v3148 = vsub.s32 6, %v3147
      %v3149 = vrot.slane %v3120, %v3148
      %v3150 = vlaneseq
      %v3151 = vshrl.u32 %v3150, 7
      %v3152 = vsub.s32 7, %v3151
      %v3153 = vrot.slane %v3120, %v3152
      %v3162 = vmul.f32 %v2991, %v3125
      %v3163 = vmul.f32 %v2993, %v3129
      %v3164 = vmul.f32 %v3032, %v3133
      %v3165 = vmul.f32 %v3034, %v3137
      %v3166 = vmul.f32 %v3073, %v3141
      %v3167 = vmul.f32 %v3075, %v3145
      %v3168 = vmul.f32 %v3114, %v3149
      %v3169 = vmul.f32 %v3116, %v3153
      %v3170 = vld [vmem:[%s17] sm:$0xff]
      %v3172 = vlaneseq
      %v3173 = vshrl.u32 %v3172, 7
      %v3174 = vsub.s32 0, %v3173
      %v3175 = vrot.slane %v3170, %v3174
      %v3176 = vlaneseq
      %v3177 = vshrl.u32 %v3176, 7
      %v3178 = vsub.s32 1, %v3177
      %v3179 = vrot.slane %v3170, %v3178
      %v3180 = vlaneseq
      %v3181 = vshrl.u32 %v3180, 7
      %v3182 = vsub.s32 2, %v3181
      %v3183 = vrot.slane %v3170, %v3182
      %v3184 = vlaneseq
      %v3185 = vshrl.u32 %v3184, 7
      %v3186 = vsub.s32 3, %v3185
      %v3187 = vrot.slane %v3170, %v3186
      %v3188 = vlaneseq
      %v3189 = vshrl.u32 %v3188, 7
      %v3190 = vsub.s32 4, %v3189
      %v3191 = vrot.slane %v3170, %v3190
      %v3192 = vlaneseq
      %v3193 = vshrl.u32 %v3192, 7
      %v3194 = vsub.s32 5, %v3193
      %v3195 = vrot.slane %v3170, %v3194
      %v3196 = vlaneseq
      %v3197 = vshrl.u32 %v3196, 7
      %v3198 = vsub.s32 6, %v3197
      %v3199 = vrot.slane %v3170, %v3198
      %v3200 = vlaneseq
      %v3201 = vshrl.u32 %v3200, 7
      %v3202 = vsub.s32 7, %v3201
      %v3203 = vrot.slane %v3170, %v3202
      %v3212 = vadd.f32 %v3162, %v3175
      %v3213 = vadd.f32 %v3163, %v3179
      %v3214 = vadd.f32 %v3164, %v3183
      %v3215 = vadd.f32 %v3165, %v3187
      %v3216 = vadd.f32 %v3166, %v3191
      %v3217 = vadd.f32 %v3167, %v3195
      %v3218 = vadd.f32 %v3168, %v3199
      %v3219 = vadd.f32 %v3169, %v3203
      %v3220 = vmul.f32 %v3212, 0.5
      %v3221 = vmul.f32 %v3213, 0.5
      %v3222 = vmul.f32 %v3214, 0.5
      %v3223 = vmul.f32 %v3215, 0.5
      %v3224 = vmul.f32 %v3216, 0.5
      %v3225 = vmul.f32 %v3217, 0.5
      %v3226 = vmul.f32 %v3218, 0.5
      %v3227 = vmul.f32 %v3219, 0.5
      %v3228 = vmul.f32 %v3212, 0.044715
      %v3229 = vmul.f32 %v3213, 0.044715
      %v3230 = vmul.f32 %v3214, 0.044715
      %v3231 = vmul.f32 %v3215, 0.044715
      %v3232 = vmul.f32 %v3216, 0.044715
      %v3233 = vmul.f32 %v3217, 0.044715
      %v3234 = vmul.f32 %v3218, 0.044715
      %v3235 = vmul.f32 %v3219, 0.044715
      %v3236 = vmul.f32 %v3228, %v3212
      %v3237 = vmul.f32 %v3229, %v3213
      %v3238 = vmul.f32 %v3230, %v3214
      %v3239 = vmul.f32 %v3231, %v3215
      %v3240 = vmul.f32 %v3232, %v3216
      %v3241 = vmul.f32 %v3233, %v3217
      %v3242 = vmul.f32 %v3234, %v3218
      %v3243 = vmul.f32 %v3235, %v3219
      %v3244 = vmul.f32 %v3236, %v3212
      %v3245 = vmul.f32 %v3237, %v3213
      %v3246 = vmul.f32 %v3238, %v3214
      %v3247 = vmul.f32 %v3239, %v3215
      %v3248 = vmul.f32 %v3240, %v3216
      %v3249 = vmul.f32 %v3241, %v3217
      %v3250 = vmul.f32 %v3242, %v3218
      %v3251 = vmul.f32 %v3243, %v3219
      %v3252 = vadd.f32 %v3212, %v3244
      %v3253 = vadd.f32 %v3213, %v3245
      %v3254 = vadd.f32 %v3214, %v3246
      %v3255 = vadd.f32 %v3215, %v3247
      %v3256 = vadd.f32 %v3216, %v3248
      %v3257 = vadd.f32 %v3217, %v3249
      %v3258 = vadd.f32 %v3218, %v3250
      %v3259 = vadd.f32 %v3219, %v3251
      %v3260 = vmul.f32 %v3252, 0.7978846
      %v3261 = vmul.f32 %v3253, 0.7978846
      %v3262 = vmul.f32 %v3254, 0.7978846
      %v3263 = vmul.f32 %v3255, 0.7978846
      %v3264 = vmul.f32 %v3256, 0.7978846
      %v3265 = vmul.f32 %v3257, 0.7978846
      %v3266 = vmul.f32 %v3258, 0.7978846
      %v3267 = vmul.f32 %v3259, 0.7978846
      %v3268 = vtanh.pop %v3260
      %v3269 = vtanh.pop %v3261
      %v3270 = vtanh.pop %v3262
      %v3271 = vtanh.pop %v3263
      %v3272 = vtanh.pop %v3264
      %v3273 = vtanh.pop %v3265
      %v3274 = vtanh.pop %v3266
      %v3275 = vtanh.pop %v3267
      %v3276 = vadd.f32 %v3268, 1.0
      %v3277 = vadd.f32 %v3269, 1.0
      %v3278 = vadd.f32 %v3270, 1.0
      %v3279 = vadd.f32 %v3271, 1.0
      %v3280 = vadd.f32 %v3272, 1.0
      %v3281 = vadd.f32 %v3273, 1.0
      %v3282 = vadd.f32 %v3274, 1.0
      %v3283 = vadd.f32 %v3275, 1.0
      %v3284 = vmul.f32 %v3220, %v3276
      %v3285 = vmul.f32 %v3221, %v3277
      %v3286 = vmul.f32 %v3222, %v3278
      %v3287 = vmul.f32 %v3223, %v3279
      %v3288 = vmul.f32 %v3224, %v3280
      %v3289 = vmul.f32 %v3225, %v3281
      %v3290 = vmul.f32 %v3226, %v3282
      %v3291 = vmul.f32 %v3227, %v3283
      %v3292 = vpack.c.bf16 %v3284, %v3284
      %v3293 = vpack.c.bf16 %v3285, %v3285
      %v3294 = vpack.c.bf16 %v3286, %v3286
      %v3295 = vpack.c.bf16 %v3287, %v3287
      %v3296 = vpack.c.bf16 %v3288, %v3288
      %v3297 = vpack.c.bf16 %v3289, %v3289
      %v3298 = vpack.c.bf16 %v3290, %v3290
      %v3299 = vpack.c.bf16 %v3291, %v3291
      %v3300 = vld [vmem:[%s19] sm:$0xff]
      %v3301 = vld [vmem:[%s19 + $0x8] sm:$0xff]
      %v3302 = vld [vmem:[%s19 + $0x10] sm:$0xff]
      %v3303 = vld [vmem:[%s19 + $0x18] sm:$0xff]
      %v3304 = vld [vmem:[%s19 + $0x20] sm:$0xff]
      %v3305 = vld [vmem:[%s19 + $0x28] sm:$0xff]
      %v3306 = vld [vmem:[%s19 + $0x30] sm:$0xff]
      %v3307 = vld [vmem:[%s19 + $0x38] sm:$0xff]
      %v3308 = vld [vmem:[%s19 + $0x40] sm:$0xff]
      %v3309 = vld [vmem:[%s19 + $0x48] sm:$0xff]
      %v3310 = vld [vmem:[%s19 + $0x50] sm:$0xff]
      %v3311 = vld [vmem:[%s19 + $0x58] sm:$0xff]
      %v3312 = vld [vmem:[%s19 + $0x60] sm:$0xff]
      %v3313 = vld [vmem:[%s19 + $0x68] sm:$0xff]
      %v3314 = vld [vmem:[%s19 + $0x70] sm:$0xff]
      %v3315 = vld [vmem:[%s19 + $0x78] sm:$0xff]
      %v3316 = vld [vmem:[%s19 + $0x80] sm:$0xff]
      %v3317 = vld [vmem:[%s19 + $0x88] sm:$0xff]
      %v3318 = vld [vmem:[%s19 + $0x90] sm:$0xff]
      %v3319 = vld [vmem:[%s19 + $0x98] sm:$0xff]
      %v3320 = vld [vmem:[%s19 + $0xa0] sm:$0xff]
      %v3321 = vld [vmem:[%s19 + $0xa8] sm:$0xff]
      %v3322 = vld [vmem:[%s19 + $0xb0] sm:$0xff]
      %v3323 = vld [vmem:[%s19 + $0xb8] sm:$0xff]
      %v3324 = vld [vmem:[%s19 + $0xc0] sm:$0xff]
      %v3325 = vld [vmem:[%s19 + $0xc8] sm:$0xff]
      %v3326 = vld [vmem:[%s19 + $0xd0] sm:$0xff]
      %v3327 = vld [vmem:[%s19 + $0xd8] sm:$0xff]
      %v3328 = vld [vmem:[%s19 + $0xe0] sm:$0xff]
      %v3329 = vld [vmem:[%s19 + $0xe8] sm:$0xff]
      %v3330 = vld [vmem:[%s19 + $0xf0] sm:$0xff]
      %v3331 = vld [vmem:[%s19 + $0xf8] sm:$0xff]
      %v3332 = vld [vmem:[%s19 + $0x100] sm:$0xff]
      %v3333 = vld [vmem:[%s19 + $0x108] sm:$0xff]
      %v3334 = vld [vmem:[%s19 + $0x110] sm:$0xff]
      %v3335 = vld [vmem:[%s19 + $0x118] sm:$0xff]
      %v3336 = vld [vmem:[%s19 + $0x120] sm:$0xff]
      %v3337 = vld [vmem:[%s19 + $0x128] sm:$0xff]
      %v3338 = vld [vmem:[%s19 + $0x130] sm:$0xff]
      %v3339 = vld [vmem:[%s19 + $0x138] sm:$0xff]
      %v3340 = vld [vmem:[%s19 + $0x140] sm:$0xff]
      %v3341 = vld [vmem:[%s19 + $0x148] sm:$0xff]
      %v3342 = vld [vmem:[%s19 + $0x150] sm:$0xff]
      %v3343 = vld [vmem:[%s19 + $0x158] sm:$0xff]
      %v3344 = vld [vmem:[%s19 + $0x160] sm:$0xff]
      %v3345 = vld [vmem:[%s19 + $0x168] sm:$0xff]
      %v3346 = vld [vmem:[%s19 + $0x170] sm:$0xff]
      %v3347 = vld [vmem:[%s19 + $0x178] sm:$0xff]
      %v3348 = vld [vmem:[%s19 + $0x180] sm:$0xff]
      %v3349 = vld [vmem:[%s19 + $0x188] sm:$0xff]
      %v3350 = vld [vmem:[%s19 + $0x190] sm:$0xff]
      %v3351 = vld [vmem:[%s19 + $0x198] sm:$0xff]
      %v3352 = vld [vmem:[%s19 + $0x1a0] sm:$0xff]
      %v3353 = vld [vmem:[%s19 + $0x1a8] sm:$0xff]
      %v3354 = vld [vmem:[%s19 + $0x1b0] sm:$0xff]
      %v3355 = vld [vmem:[%s19 + $0x1b8] sm:$0xff]
      %v3356 = vld [vmem:[%s19 + $0x1c0] sm:$0xff]
      %v3357 = vld [vmem:[%s19 + $0x1c8] sm:$0xff]
      %v3358 = vld [vmem:[%s19 + $0x1d0] sm:$0xff]
      %v3359 = vld [vmem:[%s19 + $0x1d8] sm:$0xff]
      %v3360 = vld [vmem:[%s19 + $0x1e0] sm:$0xff]
      %v3361 = vld [vmem:[%s19 + $0x1e8] sm:$0xff]
      %v3362 = vld [vmem:[%s19 + $0x1f0] sm:$0xff]
      %v3363 = vld [vmem:[%s19 + $0x1f8] sm:$0xff]
      %v3364 = vld [vmem:[%s19 + $0x200] sm:$0xff]
      %v3365 = vld [vmem:[%s19 + $0x208] sm:$0xff]
      %v3366 = vld [vmem:[%s19 + $0x210] sm:$0xff]
      %v3367 = vld [vmem:[%s19 + $0x218] sm:$0xff]
      %v3368 = vld [vmem:[%s19 + $0x220] sm:$0xff]
      %v3369 = vld [vmem:[%s19 + $0x228] sm:$0xff]
      %v3370 = vld [vmem:[%s19 + $0x230] sm:$0xff]
      %v3371 = vld [vmem:[%s19 + $0x238] sm:$0xff]
      %v3372 = vld [vmem:[%s19 + $0x240] sm:$0xff]
      %v3373 = vld [vmem:[%s19 + $0x248] sm:$0xff]
      %v3374 = vld [vmem:[%s19 + $0x250] sm:$0xff]
      %v3375 = vld [vmem:[%s19 + $0x258] sm:$0xff]
      %v3376 = vld [vmem:[%s19 + $0x260] sm:$0xff]
      %v3377 = vld [vmem:[%s19 + $0x268] sm:$0xff]
      %v3378 = vld [vmem:[%s19 + $0x270] sm:$0xff]
      %v3379 = vld [vmem:[%s19 + $0x278] sm:$0xff]
      %v3380 = vld [vmem:[%s19 + $0x280] sm:$0xff]
      %v3381 = vld [vmem:[%s19 + $0x288] sm:$0xff]
      %v3382 = vld [vmem:[%s19 + $0x290] sm:$0xff]
      %v3383 = vld [vmem:[%s19 + $0x298] sm:$0xff]
      %v3384 = vld [vmem:[%s19 + $0x2a0] sm:$0xff]
      %v3385 = vld [vmem:[%s19 + $0x2a8] sm:$0xff]
      %v3386 = vld [vmem:[%s19 + $0x2b0] sm:$0xff]
      %v3387 = vld [vmem:[%s19 + $0x2b8] sm:$0xff]
      %v3388 = vld [vmem:[%s19 + $0x2c0] sm:$0xff]
      %v3389 = vld [vmem:[%s19 + $0x2c8] sm:$0xff]
      %v3390 = vld [vmem:[%s19 + $0x2d0] sm:$0xff]
      %v3391 = vld [vmem:[%s19 + $0x2d8] sm:$0xff]
      %v3392 = vld [vmem:[%s19 + $0x2e0] sm:$0xff]
      %v3393 = vld [vmem:[%s19 + $0x2e8] sm:$0xff]
      %v3394 = vld [vmem:[%s19 + $0x2f0] sm:$0xff]
      %v3395 = vld [vmem:[%s19 + $0x2f8] sm:$0xff]
      %v3396 = vld [vmem:[%s19 + $0x300] sm:$0xff]
      %v3397 = vld [vmem:[%s19 + $0x308] sm:$0xff]
      %v3398 = vld [vmem:[%s19 + $0x310] sm:$0xff]
      %v3399 = vld [vmem:[%s19 + $0x318] sm:$0xff]
      %v3400 = vld [vmem:[%s19 + $0x320] sm:$0xff]
      %v3401 = vld [vmem:[%s19 + $0x328] sm:$0xff]
      %v3402 = vld [vmem:[%s19 + $0x330] sm:$0xff]
      %v3403 = vld [vmem:[%s19 + $0x338] sm:$0xff]
      %v3404 = vld [vmem:[%s19 + $0x340] sm:$0xff]
      %v3405 = vld [vmem:[%s19 + $0x348] sm:$0xff]
      %v3406 = vld [vmem:[%s19 + $0x350] sm:$0xff]
      %v3407 = vld [vmem:[%s19 + $0x358] sm:$0xff]
      %v3408 = vld [vmem:[%s19 + $0x360] sm:$0xff]
      %v3409 = vld [vmem:[%s19 + $0x368] sm:$0xff]
      %v3410 = vld [vmem:[%s19 + $0x370] sm:$0xff]
      %v3411 = vld [vmem:[%s19 + $0x378] sm:$0xff]
      %v3412 = vld [vmem:[%s19 + $0x380] sm:$0xff]
      %v3413 = vld [vmem:[%s19 + $0x388] sm:$0xff]
      %v3414 = vld [vmem:[%s19 + $0x390] sm:$0xff]
      %v3415 = vld [vmem:[%s19 + $0x398] sm:$0xff]
      %v3416 = vld [vmem:[%s19 + $0x3a0] sm:$0xff]
      %v3417 = vld [vmem:[%s19 + $0x3a8] sm:$0xff]
      %v3418 = vld [vmem:[%s19 + $0x3b0] sm:$0xff]
      %v3419 = vld [vmem:[%s19 + $0x3b8] sm:$0xff]
      %v3420 = vld [vmem:[%s19 + $0x3c0] sm:$0xff]
      %v3421 = vld [vmem:[%s19 + $0x3c8] sm:$0xff]
      %v3422 = vld [vmem:[%s19 + $0x3d0] sm:$0xff]
      %v3423 = vld [vmem:[%s19 + $0x3d8] sm:$0xff]
      %v3424 = vld [vmem:[%s19 + $0x3e0] sm:$0xff]
      %v3425 = vld [vmem:[%s19 + $0x3e8] sm:$0xff]
      %v3426 = vld [vmem:[%s19 + $0x3f0] sm:$0xff]
      %v3427 = vld [vmem:[%s19 + $0x3f8] sm:$0xff]
      %v3428 = vld [vmem:[%s19 + $0x400] sm:$0xff]
      %v3429 = vld [vmem:[%s19 + $0x408] sm:$0xff]
      %v3430 = vld [vmem:[%s19 + $0x410] sm:$0xff]
      %v3431 = vld [vmem:[%s19 + $0x418] sm:$0xff]
      %v3432 = vld [vmem:[%s19 + $0x420] sm:$0xff]
      %v3433 = vld [vmem:[%s19 + $0x428] sm:$0xff]
      %v3434 = vld [vmem:[%s19 + $0x430] sm:$0xff]
      %v3435 = vld [vmem:[%s19 + $0x438] sm:$0xff]
      %v3436 = vld [vmem:[%s19 + $0x440] sm:$0xff]
      %v3437 = vld [vmem:[%s19 + $0x448] sm:$0xff]
      %v3438 = vld [vmem:[%s19 + $0x450] sm:$0xff]
      %v3439 = vld [vmem:[%s19 + $0x458] sm:$0xff]
      %v3440 = vld [vmem:[%s19 + $0x460] sm:$0xff]
      %v3441 = vld [vmem:[%s19 + $0x468] sm:$0xff]
      %v3442 = vld [vmem:[%s19 + $0x470] sm:$0xff]
      %v3443 = vld [vmem:[%s19 + $0x478] sm:$0xff]
      %v3444 = vld [vmem:[%s19 + $0x480] sm:$0xff]
      %v3445 = vld [vmem:[%s19 + $0x488] sm:$0xff]
      %v3446 = vld [vmem:[%s19 + $0x490] sm:$0xff]
      %v3447 = vld [vmem:[%s19 + $0x498] sm:$0xff]
      %v3448 = vld [vmem:[%s19 + $0x4a0] sm:$0xff]
      %v3449 = vld [vmem:[%s19 + $0x4a8] sm:$0xff]
      %v3450 = vld [vmem:[%s19 + $0x4b0] sm:$0xff]
      %v3451 = vld [vmem:[%s19 + $0x4b8] sm:$0xff]
      %v3452 = vld [vmem:[%s19 + $0x4c0] sm:$0xff]
      %v3453 = vld [vmem:[%s19 + $0x4c8] sm:$0xff]
      %v3454 = vld [vmem:[%s19 + $0x4d0] sm:$0xff]
      %v3455 = vld [vmem:[%s19 + $0x4d8] sm:$0xff]
      %v3456 = vld [vmem:[%s19 + $0x4e0] sm:$0xff]
      %v3457 = vld [vmem:[%s19 + $0x4e8] sm:$0xff]
      %v3458 = vld [vmem:[%s19 + $0x4f0] sm:$0xff]
      %v3459 = vld [vmem:[%s19 + $0x4f8] sm:$0xff]
      %v3460 = vld [vmem:[%s19 + $0x500] sm:$0xff]
      %v3461 = vld [vmem:[%s19 + $0x508] sm:$0xff]
      %v3462 = vld [vmem:[%s19 + $0x510] sm:$0xff]
      %v3463 = vld [vmem:[%s19 + $0x518] sm:$0xff]
      %v3464 = vld [vmem:[%s19 + $0x520] sm:$0xff]
      %v3465 = vld [vmem:[%s19 + $0x528] sm:$0xff]
      %v3466 = vld [vmem:[%s19 + $0x530] sm:$0xff]
      %v3467 = vld [vmem:[%s19 + $0x538] sm:$0xff]
      %v3468 = vld [vmem:[%s19 + $0x540] sm:$0xff]
      %v3469 = vld [vmem:[%s19 + $0x548] sm:$0xff]
      %v3470 = vld [vmem:[%s19 + $0x550] sm:$0xff]
      %v3471 = vld [vmem:[%s19 + $0x558] sm:$0xff]
      %v3472 = vld [vmem:[%s19 + $0x560] sm:$0xff]
      %v3473 = vld [vmem:[%s19 + $0x568] sm:$0xff]
      %v3474 = vld [vmem:[%s19 + $0x570] sm:$0xff]
      %v3475 = vld [vmem:[%s19 + $0x578] sm:$0xff]
      %v3476 = vld [vmem:[%s19 + $0x580] sm:$0xff]
      %v3477 = vld [vmem:[%s19 + $0x588] sm:$0xff]
      %v3478 = vld [vmem:[%s19 + $0x590] sm:$0xff]
      %v3479 = vld [vmem:[%s19 + $0x598] sm:$0xff]
      %v3480 = vld [vmem:[%s19 + $0x5a0] sm:$0xff]
      %v3481 = vld [vmem:[%s19 + $0x5a8] sm:$0xff]
      %v3482 = vld [vmem:[%s19 + $0x5b0] sm:$0xff]
      %v3483 = vld [vmem:[%s19 + $0x5b8] sm:$0xff]
      %v3484 = vld [vmem:[%s19 + $0x5c0] sm:$0xff]
      %v3485 = vld [vmem:[%s19 + $0x5c8] sm:$0xff]
      %v3486 = vld [vmem:[%s19 + $0x5d0] sm:$0xff]
      %v3487 = vld [vmem:[%s19 + $0x5d8] sm:$0xff]
      %v3488 = vld [vmem:[%s19 + $0x5e0] sm:$0xff]
      %v3489 = vld [vmem:[%s19 + $0x5e8] sm:$0xff]
      %v3490 = vld [vmem:[%s19 + $0x5f0] sm:$0xff]
      %v3491 = vld [vmem:[%s19 + $0x5f8] sm:$0xff]
      %v3492 = vld [vmem:[%s19 + $0x600] sm:$0xff]
      %v3493 = vld [vmem:[%s19 + $0x608] sm:$0xff]
      %v3494 = vld [vmem:[%s19 + $0x610] sm:$0xff]
      %v3495 = vld [vmem:[%s19 + $0x618] sm:$0xff]
      %v3496 = vld [vmem:[%s19 + $0x620] sm:$0xff]
      %v3497 = vld [vmem:[%s19 + $0x628] sm:$0xff]
      %v3498 = vld [vmem:[%s19 + $0x630] sm:$0xff]
      %v3499 = vld [vmem:[%s19 + $0x638] sm:$0xff]
      %v3500 = vld [vmem:[%s19 + $0x640] sm:$0xff]
      %v3501 = vld [vmem:[%s19 + $0x648] sm:$0xff]
      %v3502 = vld [vmem:[%s19 + $0x650] sm:$0xff]
      %v3503 = vld [vmem:[%s19 + $0x658] sm:$0xff]
      %v3504 = vld [vmem:[%s19 + $0x660] sm:$0xff]
      %v3505 = vld [vmem:[%s19 + $0x668] sm:$0xff]
      %v3506 = vld [vmem:[%s19 + $0x670] sm:$0xff]
      %v3507 = vld [vmem:[%s19 + $0x678] sm:$0xff]
      %v3508 = vld [vmem:[%s19 + $0x680] sm:$0xff]
      %v3509 = vld [vmem:[%s19 + $0x688] sm:$0xff]
      %v3510 = vld [vmem:[%s19 + $0x690] sm:$0xff]
      %v3511 = vld [vmem:[%s19 + $0x698] sm:$0xff]
      %v3512 = vld [vmem:[%s19 + $0x6a0] sm:$0xff]
      %v3513 = vld [vmem:[%s19 + $0x6a8] sm:$0xff]
      %v3514 = vld [vmem:[%s19 + $0x6b0] sm:$0xff]
      %v3515 = vld [vmem:[%s19 + $0x6b8] sm:$0xff]
      %v3516 = vld [vmem:[%s19 + $0x6c0] sm:$0xff]
      %v3517 = vld [vmem:[%s19 + $0x6c8] sm:$0xff]
      %v3518 = vld [vmem:[%s19 + $0x6d0] sm:$0xff]
      %v3519 = vld [vmem:[%s19 + $0x6d8] sm:$0xff]
      %v3520 = vld [vmem:[%s19 + $0x6e0] sm:$0xff]
      %v3521 = vld [vmem:[%s19 + $0x6e8] sm:$0xff]
      %v3522 = vld [vmem:[%s19 + $0x6f0] sm:$0xff]
      %v3523 = vld [vmem:[%s19 + $0x6f8] sm:$0xff]
      %v3524 = vld [vmem:[%s19 + $0x700] sm:$0xff]
      %v3525 = vld [vmem:[%s19 + $0x708] sm:$0xff]
      %v3526 = vld [vmem:[%s19 + $0x710] sm:$0xff]
      %v3527 = vld [vmem:[%s19 + $0x718] sm:$0xff]
      %v3528 = vld [vmem:[%s19 + $0x720] sm:$0xff]
      %v3529 = vld [vmem:[%s19 + $0x728] sm:$0xff]
      %v3530 = vld [vmem:[%s19 + $0x730] sm:$0xff]
      %v3531 = vld [vmem:[%s19 + $0x738] sm:$0xff]
      %v3532 = vld [vmem:[%s19 + $0x740] sm:$0xff]
      %v3533 = vld [vmem:[%s19 + $0x748] sm:$0xff]
      %v3534 = vld [vmem:[%s19 + $0x750] sm:$0xff]
      %v3535 = vld [vmem:[%s19 + $0x758] sm:$0xff]
      %v3536 = vld [vmem:[%s19 + $0x760] sm:$0xff]
      %v3537 = vld [vmem:[%s19 + $0x768] sm:$0xff]
      %v3538 = vld [vmem:[%s19 + $0x770] sm:$0xff]
      %v3539 = vld [vmem:[%s19 + $0x778] sm:$0xff]
      %v3540 = vld [vmem:[%s19 + $0x780] sm:$0xff]
      %v3541 = vld [vmem:[%s19 + $0x788] sm:$0xff]
      %v3542 = vld [vmem:[%s19 + $0x790] sm:$0xff]
      %v3543 = vld [vmem:[%s19 + $0x798] sm:$0xff]
      %v3544 = vld [vmem:[%s19 + $0x7a0] sm:$0xff]
      %v3545 = vld [vmem:[%s19 + $0x7a8] sm:$0xff]
      %v3546 = vld [vmem:[%s19 + $0x7b0] sm:$0xff]
      %v3547 = vld [vmem:[%s19 + $0x7b8] sm:$0xff]
      %v3548 = vld [vmem:[%s19 + $0x7c0] sm:$0xff]
      %v3549 = vld [vmem:[%s19 + $0x7c8] sm:$0xff]
      %v3550 = vld [vmem:[%s19 + $0x7d0] sm:$0xff]
      %v3551 = vld [vmem:[%s19 + $0x7d8] sm:$0xff]
      %v3552 = vld [vmem:[%s19 + $0x7e0] sm:$0xff]
      %v3553 = vld [vmem:[%s19 + $0x7e8] sm:$0xff]
      %v3554 = vld [vmem:[%s19 + $0x7f0] sm:$0xff]
      %v3555 = vld [vmem:[%s19 + $0x7f8] sm:$0xff]
      %v3556 = vld [vmem:[%s21] sm:$0xf]
      %v3813 = vunpack.c.l.b16 %v3300
      %v3814 = vunpack.c.h.b16 %v3300
      %v3815 = vunpack.c.l.b16 %v3301
      %v3816 = vunpack.c.h.b16 %v3301
      %v3817 = vunpack.c.l.b16 %v3302
      %v3818 = vunpack.c.h.b16 %v3302
      %v3819 = vunpack.c.l.b16 %v3303
      %v3820 = vunpack.c.h.b16 %v3303
      %v3821 = vunpack.c.l.b16 %v3304
      %v3822 = vunpack.c.h.b16 %v3304
      %v3823 = vunpack.c.l.b16 %v3305
      %v3824 = vunpack.c.h.b16 %v3305
      %v3825 = vunpack.c.l.b16 %v3306
      %v3826 = vunpack.c.h.b16 %v3306
      %v3827 = vunpack.c.l.b16 %v3307
      %v3828 = vunpack.c.h.b16 %v3307
      %v3829 = vunpack.c.l.b16 %v3308
      %v3830 = vunpack.c.h.b16 %v3308
      %v3831 = vunpack.c.l.b16 %v3309
      %v3832 = vunpack.c.h.b16 %v3309
      %v3833 = vunpack.c.l.b16 %v3310
      %v3834 = vunpack.c.h.b16 %v3310
      %v3835 = vunpack.c.l.b16 %v3311
      %v3836 = vunpack.c.h.b16 %v3311
      %v3837 = vunpack.c.l.b16 %v3312
      %v3838 = vunpack.c.h.b16 %v3312
      %v3839 = vunpack.c.l.b16 %v3313
      %v3840 = vunpack.c.h.b16 %v3313
      %v3841 = vunpack.c.l.b16 %v3314
      %v3842 = vunpack.c.h.b16 %v3314
      %v3843 = vunpack.c.l.b16 %v3315
      %v3844 = vunpack.c.h.b16 %v3315
      %v3845 = vunpack.c.l.b16 %v3316
      %v3846 = vunpack.c.h.b16 %v3316
      %v3847 = vunpack.c.l.b16 %v3317
      %v3848 = vunpack.c.h.b16 %v3317
      %v3849 = vunpack.c.l.b16 %v3318
      %v3850 = vunpack.c.h.b16 %v3318
      %v3851 = vunpack.c.l.b16 %v3319
      %v3852 = vunpack.c.h.b16 %v3319
      %v3853 = vunpack.c.l.b16 %v3320
      %v3854 = vunpack.c.h.b16 %v3320
      %v3855 = vunpack.c.l.b16 %v3321
      %v3856 = vunpack.c.h.b16 %v3321
      %v3857 = vunpack.c.l.b16 %v3322
      %v3858 = vunpack.c.h.b16 %v3322
      %v3859 = vunpack.c.l.b16 %v3323
      %v3860 = vunpack.c.h.b16 %v3323
      %v3861 = vunpack.c.l.b16 %v3324
      %v3862 = vunpack.c.h.b16 %v3324
      %v3863 = vunpack.c.l.b16 %v3325
      %v3864 = vunpack.c.h.b16 %v3325
      %v3865 = vunpack.c.l.b16 %v3326
      %v3866 = vunpack.c.h.b16 %v3326
      %v3867 = vunpack.c.l.b16 %v3327
      %v3868 = vunpack.c.h.b16 %v3327
      %v3869 = vunpack.c.l.b16 %v3328
      %v3870 = vunpack.c.h.b16 %v3328
      %v3871 = vunpack.c.l.b16 %v3329
      %v3872 = vunpack.c.h.b16 %v3329
      %v3873 = vunpack.c.l.b16 %v3330
      %v3874 = vunpack.c.h.b16 %v3330
      %v3875 = vunpack.c.l.b16 %v3331
      %v3876 = vunpack.c.h.b16 %v3331
      %v3877 = vunpack.c.l.b16 %v3332
      %v3878 = vunpack.c.h.b16 %v3332
      %v3879 = vunpack.c.l.b16 %v3333
      %v3880 = vunpack.c.h.b16 %v3333
      %v3881 = vunpack.c.l.b16 %v3334
      %v3882 = vunpack.c.h.b16 %v3334
      %v3883 = vunpack.c.l.b16 %v3335
      %v3884 = vunpack.c.h.b16 %v3335
      %v3885 = vunpack.c.l.b16 %v3336
      %v3886 = vunpack.c.h.b16 %v3336
      %v3887 = vunpack.c.l.b16 %v3337
      %v3888 = vunpack.c.h.b16 %v3337
      %v3889 = vunpack.c.l.b16 %v3338
      %v3890 = vunpack.c.h.b16 %v3338
      %v3891 = vunpack.c.l.b16 %v3339
      %v3892 = vunpack.c.h.b16 %v3339
      %v3893 = vunpack.c.l.b16 %v3340
      %v3894 = vunpack.c.h.b16 %v3340
      %v3895 = vunpack.c.l.b16 %v3341
      %v3896 = vunpack.c.h.b16 %v3341
      %v3897 = vunpack.c.l.b16 %v3342
      %v3898 = vunpack.c.h.b16 %v3342
      %v3899 = vunpack.c.l.b16 %v3343
      %v3900 = vunpack.c.h.b16 %v3343
      %v3901 = vunpack.c.l.b16 %v3344
      %v3902 = vunpack.c.h.b16 %v3344
      %v3903 = vunpack.c.l.b16 %v3345
      %v3904 = vunpack.c.h.b16 %v3345
      %v3905 = vunpack.c.l.b16 %v3346
      %v3906 = vunpack.c.h.b16 %v3346
      %v3907 = vunpack.c.l.b16 %v3347
      %v3908 = vunpack.c.h.b16 %v3347
      %v3909 = vunpack.c.l.b16 %v3348
      %v3910 = vunpack.c.h.b16 %v3348
      %v3911 = vunpack.c.l.b16 %v3349
      %v3912 = vunpack.c.h.b16 %v3349
      %v3913 = vunpack.c.l.b16 %v3350
      %v3914 = vunpack.c.h.b16 %v3350
      %v3915 = vunpack.c.l.b16 %v3351
      %v3916 = vunpack.c.h.b16 %v3351
      %v3917 = vunpack.c.l.b16 %v3352
      %v3918 = vunpack.c.h.b16 %v3352
      %v3919 = vunpack.c.l.b16 %v3353
      %v3920 = vunpack.c.h.b16 %v3353
      %v3921 = vunpack.c.l.b16 %v3354
      %v3922 = vunpack.c.h.b16 %v3354
      %v3923 = vunpack.c.l.b16 %v3355
      %v3924 = vunpack.c.h.b16 %v3355
      %v3925 = vunpack.c.l.b16 %v3356
      %v3926 = vunpack.c.h.b16 %v3356
      %v3927 = vunpack.c.l.b16 %v3357
      %v3928 = vunpack.c.h.b16 %v3357
      %v3929 = vunpack.c.l.b16 %v3358
      %v3930 = vunpack.c.h.b16 %v3358
      %v3931 = vunpack.c.l.b16 %v3359
      %v3932 = vunpack.c.h.b16 %v3359
      %v3933 = vunpack.c.l.b16 %v3360
      %v3934 = vunpack.c.h.b16 %v3360
      %v3935 = vunpack.c.l.b16 %v3361
      %v3936 = vunpack.c.h.b16 %v3361
      %v3937 = vunpack.c.l.b16 %v3362
      %v3938 = vunpack.c.h.b16 %v3362
      %v3939 = vunpack.c.l.b16 %v3363
      %v3940 = vunpack.c.h.b16 %v3363
      %v3941 = vunpack.c.l.b16 %v3364
      %v3942 = vunpack.c.h.b16 %v3364
      %v3943 = vunpack.c.l.b16 %v3365
      %v3944 = vunpack.c.h.b16 %v3365
      %v3945 = vunpack.c.l.b16 %v3366
      %v3946 = vunpack.c.h.b16 %v3366
      %v3947 = vunpack.c.l.b16 %v3367
      %v3948 = vunpack.c.h.b16 %v3367
      %v3949 = vunpack.c.l.b16 %v3368
      %v3950 = vunpack.c.h.b16 %v3368
      %v3951 = vunpack.c.l.b16 %v3369
      %v3952 = vunpack.c.h.b16 %v3369
      %v3953 = vunpack.c.l.b16 %v3370
      %v3954 = vunpack.c.h.b16 %v3370
      %v3955 = vunpack.c.l.b16 %v3371
      %v3956 = vunpack.c.h.b16 %v3371
      %v3957 = vunpack.c.l.b16 %v3372
      %v3958 = vunpack.c.h.b16 %v3372
      %v3959 = vunpack.c.l.b16 %v3373
      %v3960 = vunpack.c.h.b16 %v3373
      %v3961 = vunpack.c.l.b16 %v3374
      %v3962 = vunpack.c.h.b16 %v3374
      %v3963 = vunpack.c.l.b16 %v3375
      %v3964 = vunpack.c.h.b16 %v3375
      %v3965 = vunpack.c.l.b16 %v3376
      %v3966 = vunpack.c.h.b16 %v3376
      %v3967 = vunpack.c.l.b16 %v3377
      %v3968 = vunpack.c.h.b16 %v3377
      %v3969 = vunpack.c.l.b16 %v3378
      %v3970 = vunpack.c.h.b16 %v3378
      %v3971 = vunpack.c.l.b16 %v3379
      %v3972 = vunpack.c.h.b16 %v3379
      %v3973 = vunpack.c.l.b16 %v3380
      %v3974 = vunpack.c.h.b16 %v3380
      %v3975 = vunpack.c.l.b16 %v3381
      %v3976 = vunpack.c.h.b16 %v3381
      %v3977 = vunpack.c.l.b16 %v3382
      %v3978 = vunpack.c.h.b16 %v3382
      %v3979 = vunpack.c.l.b16 %v3383
      %v3980 = vunpack.c.h.b16 %v3383
      %v3981 = vunpack.c.l.b16 %v3384
      %v3982 = vunpack.c.h.b16 %v3384
      %v3983 = vunpack.c.l.b16 %v3385
      %v3984 = vunpack.c.h.b16 %v3385
      %v3985 = vunpack.c.l.b16 %v3386
      %v3986 = vunpack.c.h.b16 %v3386
      %v3987 = vunpack.c.l.b16 %v3387
      %v3988 = vunpack.c.h.b16 %v3387
      %v3989 = vunpack.c.l.b16 %v3388
      %v3990 = vunpack.c.h.b16 %v3388
      %v3991 = vunpack.c.l.b16 %v3389
      %v3992 = vunpack.c.h.b16 %v3389
      %v3993 = vunpack.c.l.b16 %v3390
      %v3994 = vunpack.c.h.b16 %v3390
      %v3995 = vunpack.c.l.b16 %v3391
      %v3996 = vunpack.c.h.b16 %v3391
      %v3997 = vunpack.c.l.b16 %v3392
      %v3998 = vunpack.c.h.b16 %v3392
      %v3999 = vunpack.c.l.b16 %v3393
      %v4000 = vunpack.c.h.b16 %v3393
      %v4001 = vunpack.c.l.b16 %v3394
      %v4002 = vunpack.c.h.b16 %v3394
      %v4003 = vunpack.c.l.b16 %v3395
      %v4004 = vunpack.c.h.b16 %v3395
      %v4005 = vunpack.c.l.b16 %v3396
      %v4006 = vunpack.c.h.b16 %v3396
      %v4007 = vunpack.c.l.b16 %v3397
      %v4008 = vunpack.c.h.b16 %v3397
      %v4009 = vunpack.c.l.b16 %v3398
      %v4010 = vunpack.c.h.b16 %v3398
      %v4011 = vunpack.c.l.b16 %v3399
      %v4012 = vunpack.c.h.b16 %v3399
      %v4013 = vunpack.c.l.b16 %v3400
      %v4014 = vunpack.c.h.b16 %v3400
      %v4015 = vunpack.c.l.b16 %v3401
      %v4016 = vunpack.c.h.b16 %v3401
      %v4017 = vunpack.c.l.b16 %v3402
      %v4018 = vunpack.c.h.b16 %v3402
      %v4019 = vunpack.c.l.b16 %v3403
      %v4020 = vunpack.c.h.b16 %v3403
      %v4021 = vunpack.c.l.b16 %v3404
      %v4022 = vunpack.c.h.b16 %v3404
      %v4023 = vunpack.c.l.b16 %v3405
      %v4024 = vunpack.c.h.b16 %v3405
      %v4025 = vunpack.c.l.b16 %v3406
      %v4026 = vunpack.c.h.b16 %v3406
      %v4027 = vunpack.c.l.b16 %v3407
      %v4028 = vunpack.c.h.b16 %v3407
      %v4029 = vunpack.c.l.b16 %v3408
      %v4030 = vunpack.c.h.b16 %v3408
      %v4031 = vunpack.c.l.b16 %v3409
      %v4032 = vunpack.c.h.b16 %v3409
      %v4033 = vunpack.c.l.b16 %v3410
      %v4034 = vunpack.c.h.b16 %v3410
      %v4035 = vunpack.c.l.b16 %v3411
      %v4036 = vunpack.c.h.b16 %v3411
      %v4037 = vunpack.c.l.b16 %v3412
      %v4038 = vunpack.c.h.b16 %v3412
      %v4039 = vunpack.c.l.b16 %v3413
      %v4040 = vunpack.c.h.b16 %v3413
      %v4041 = vunpack.c.l.b16 %v3414
      %v4042 = vunpack.c.h.b16 %v3414
      %v4043 = vunpack.c.l.b16 %v3415
      %v4044 = vunpack.c.h.b16 %v3415
      %v4045 = vunpack.c.l.b16 %v3416
      %v4046 = vunpack.c.h.b16 %v3416
      %v4047 = vunpack.c.l.b16 %v3417
      %v4048 = vunpack.c.h.b16 %v3417
      %v4049 = vunpack.c.l.b16 %v3418
      %v4050 = vunpack.c.h.b16 %v3418
      %v4051 = vunpack.c.l.b16 %v3419
      %v4052 = vunpack.c.h.b16 %v3419
      %v4053 = vunpack.c.l.b16 %v3420
      %v4054 = vunpack.c.h.b16 %v3420
      %v4055 = vunpack.c.l.b16 %v3421
      %v4056 = vunpack.c.h.b16 %v3421
      %v4057 = vunpack.c.l.b16 %v3422
      %v4058 = vunpack.c.h.b16 %v3422
      %v4059 = vunpack.c.l.b16 %v3423
      %v4060 = vunpack.c.h.b16 %v3423
      %v4061 = vunpack.c.l.b16 %v3424
      %v4062 = vunpack.c.h.b16 %v3424
      %v4063 = vunpack.c.l.b16 %v3425
      %v4064 = vunpack.c.h.b16 %v3425
      %v4065 = vunpack.c.l.b16 %v3426
      %v4066 = vunpack.c.h.b16 %v3426
      %v4067 = vunpack.c.l.b16 %v3427
      %v4068 = vunpack.c.h.b16 %v3427
      %v4069 = vunpack.c.l.b16 %v3428
      %v4070 = vunpack.c.h.b16 %v3428
      %v4071 = vunpack.c.l.b16 %v3429
      %v4072 = vunpack.c.h.b16 %v3429
      %v4073 = vunpack.c.l.b16 %v3430
      %v4074 = vunpack.c.h.b16 %v3430
      %v4075 = vunpack.c.l.b16 %v3431
      %v4076 = vunpack.c.h.b16 %v3431
      %v4077 = vunpack.c.l.b16 %v3432
      %v4078 = vunpack.c.h.b16 %v3432
      %v4079 = vunpack.c.l.b16 %v3433
      %v4080 = vunpack.c.h.b16 %v3433
      %v4081 = vunpack.c.l.b16 %v3434
      %v4082 = vunpack.c.h.b16 %v3434
      %v4083 = vunpack.c.l.b16 %v3435
      %v4084 = vunpack.c.h.b16 %v3435
      %v4085 = vunpack.c.l.b16 %v3436
      %v4086 = vunpack.c.h.b16 %v3436
      %v4087 = vunpack.c.l.b16 %v3437
      %v4088 = vunpack.c.h.b16 %v3437
      %v4089 = vunpack.c.l.b16 %v3438
      %v4090 = vunpack.c.h.b16 %v3438
      %v4091 = vunpack.c.l.b16 %v3439
      %v4092 = vunpack.c.h.b16 %v3439
      %v4093 = vunpack.c.l.b16 %v3440
      %v4094 = vunpack.c.h.b16 %v3440
      %v4095 = vunpack.c.l.b16 %v3441
      %v4096 = vunpack.c.h.b16 %v3441
      %v4097 = vunpack.c.l.b16 %v3442
      %v4098 = vunpack.c.h.b16 %v3442
      %v4099 = vunpack.c.l.b16 %v3443
      %v4100 = vunpack.c.h.b16 %v3443
      %v4101 = vunpack.c.l.b16 %v3444
      %v4102 = vunpack.c.h.b16 %v3444
      %v4103 = vunpack.c.l.b16 %v3445
      %v4104 = vunpack.c.h.b16 %v3445
      %v4105 = vunpack.c.l.b16 %v3446
      %v4106 = vunpack.c.h.b16 %v3446
      %v4107 = vunpack.c.l.b16 %v3447
      %v4108 = vunpack.c.h.b16 %v3447
      %v4109 = vunpack.c.l.b16 %v3448
      %v4110 = vunpack.c.h.b16 %v3448
      %v4111 = vunpack.c.l.b16 %v3449
      %v4112 = vunpack.c.h.b16 %v3449
      %v4113 = vunpack.c.l.b16 %v3450
      %v4114 = vunpack.c.h.b16 %v3450
      %v4115 = vunpack.c.l.b16 %v3451
      %v4116 = vunpack.c.h.b16 %v3451
      %v4117 = vunpack.c.l.b16 %v3452
      %v4118 = vunpack.c.h.b16 %v3452
      %v4119 = vunpack.c.l.b16 %v3453
      %v4120 = vunpack.c.h.b16 %v3453
      %v4121 = vunpack.c.l.b16 %v3454
      %v4122 = vunpack.c.h.b16 %v3454
      %v4123 = vunpack.c.l.b16 %v3455
      %v4124 = vunpack.c.h.b16 %v3455
      %v4125 = vunpack.c.l.b16 %v3456
      %v4126 = vunpack.c.h.b16 %v3456
      %v4127 = vunpack.c.l.b16 %v3457
      %v4128 = vunpack.c.h.b16 %v3457
      %v4129 = vunpack.c.l.b16 %v3458
      %v4130 = vunpack.c.h.b16 %v3458
      %v4131 = vunpack.c.l.b16 %v3459
      %v4132 = vunpack.c.h.b16 %v3459
      %v4133 = vunpack.c.l.b16 %v3460
      %v4134 = vunpack.c.h.b16 %v3460
      %v4135 = vunpack.c.l.b16 %v3461
      %v4136 = vunpack.c.h.b16 %v3461
      %v4137 = vunpack.c.l.b16 %v3462
      %v4138 = vunpack.c.h.b16 %v3462
      %v4139 = vunpack.c.l.b16 %v3463
      %v4140 = vunpack.c.h.b16 %v3463
      %v4141 = vunpack.c.l.b16 %v3464
      %v4142 = vunpack.c.h.b16 %v3464
      %v4143 = vunpack.c.l.b16 %v3465
      %v4144 = vunpack.c.h.b16 %v3465
      %v4145 = vunpack.c.l.b16 %v3466
      %v4146 = vunpack.c.h.b16 %v3466
      %v4147 = vunpack.c.l.b16 %v3467
      %v4148 = vunpack.c.h.b16 %v3467
      %v4149 = vunpack.c.l.b16 %v3468
      %v4150 = vunpack.c.h.b16 %v3468
      %v4151 = vunpack.c.l.b16 %v3469
      %v4152 = vunpack.c.h.b16 %v3469
      %v4153 = vunpack.c.l.b16 %v3470
      %v4154 = vunpack.c.h.b16 %v3470
      %v4155 = vunpack.c.l.b16 %v3471
      %v4156 = vunpack.c.h.b16 %v3471
      %v4157 = vunpack.c.l.b16 %v3472
      %v4158 = vunpack.c.h.b16 %v3472
      %v4159 = vunpack.c.l.b16 %v3473
      %v4160 = vunpack.c.h.b16 %v3473
      %v4161 = vunpack.c.l.b16 %v3474
      %v4162 = vunpack.c.h.b16 %v3474
      %v4163 = vunpack.c.l.b16 %v3475
      %v4164 = vunpack.c.h.b16 %v3475
      %v4165 = vunpack.c.l.b16 %v3476
      %v4166 = vunpack.c.h.b16 %v3476
      %v4167 = vunpack.c.l.b16 %v3477
      %v4168 = vunpack.c.h.b16 %v3477
      %v4169 = vunpack.c.l.b16 %v3478
      %v4170 = vunpack.c.h.b16 %v3478
      %v4171 = vunpack.c.l.b16 %v3479
      %v4172 = vunpack.c.h.b16 %v3479
      %v4173 = vunpack.c.l.b16 %v3480
      %v4174 = vunpack.c.h.b16 %v3480
      %v4175 = vunpack.c.l.b16 %v3481
      %v4176 = vunpack.c.h.b16 %v3481
      %v4177 = vunpack.c.l.b16 %v3482
      %v4178 = vunpack.c.h.b16 %v3482
      %v4179 = vunpack.c.l.b16 %v3483
      %v4180 = vunpack.c.h.b16 %v3483
      %v4181 = vunpack.c.l.b16 %v3484
      %v4182 = vunpack.c.h.b16 %v3484
      %v4183 = vunpack.c.l.b16 %v3485
      %v4184 = vunpack.c.h.b16 %v3485
      %v4185 = vunpack.c.l.b16 %v3486
      %v4186 = vunpack.c.h.b16 %v3486
      %v4187 = vunpack.c.l.b16 %v3487
      %v4188 = vunpack.c.h.b16 %v3487
      %v4189 = vunpack.c.l.b16 %v3488
      %v4190 = vunpack.c.h.b16 %v3488
      %v4191 = vunpack.c.l.b16 %v3489
      %v4192 = vunpack.c.h.b16 %v3489
      %v4193 = vunpack.c.l.b16 %v3490
      %v4194 = vunpack.c.h.b16 %v3490
      %v4195 = vunpack.c.l.b16 %v3491
      %v4196 = vunpack.c.h.b16 %v3491
      %v4197 = vunpack.c.l.b16 %v3492
      %v4198 = vunpack.c.h.b16 %v3492
      %v4199 = vunpack.c.l.b16 %v3493
      %v4200 = vunpack.c.h.b16 %v3493
      %v4201 = vunpack.c.l.b16 %v3494
      %v4202 = vunpack.c.h.b16 %v3494
      %v4203 = vunpack.c.l.b16 %v3495
      %v4204 = vunpack.c.h.b16 %v3495
      %v4205 = vunpack.c.l.b16 %v3496
      %v4206 = vunpack.c.h.b16 %v3496
      %v4207 = vunpack.c.l.b16 %v3497
      %v4208 = vunpack.c.h.b16 %v3497
      %v4209 = vunpack.c.l.b16 %v3498
      %v4210 = vunpack.c.h.b16 %v3498
      %v4211 = vunpack.c.l.b16 %v3499
      %v4212 = vunpack.c.h.b16 %v3499
      %v4213 = vunpack.c.l.b16 %v3500
      %v4214 = vunpack.c.h.b16 %v3500
      %v4215 = vunpack.c.l.b16 %v3501
      %v4216 = vunpack.c.h.b16 %v3501
      %v4217 = vunpack.c.l.b16 %v3502
      %v4218 = vunpack.c.h.b16 %v3502
      %v4219 = vunpack.c.l.b16 %v3503
      %v4220 = vunpack.c.h.b16 %v3503
      %v4221 = vunpack.c.l.b16 %v3504
      %v4222 = vunpack.c.h.b16 %v3504
      %v4223 = vunpack.c.l.b16 %v3505
      %v4224 = vunpack.c.h.b16 %v3505
      %v4225 = vunpack.c.l.b16 %v3506
      %v4226 = vunpack.c.h.b16 %v3506
      %v4227 = vunpack.c.l.b16 %v3507
      %v4228 = vunpack.c.h.b16 %v3507
      %v4229 = vunpack.c.l.b16 %v3508
      %v4230 = vunpack.c.h.b16 %v3508
      %v4231 = vunpack.c.l.b16 %v3509
      %v4232 = vunpack.c.h.b16 %v3509
      %v4233 = vunpack.c.l.b16 %v3510
      %v4234 = vunpack.c.h.b16 %v3510
      %v4235 = vunpack.c.l.b16 %v3511
      %v4236 = vunpack.c.h.b16 %v3511
      %v4237 = vunpack.c.l.b16 %v3512
      %v4238 = vunpack.c.h.b16 %v3512
      %v4239 = vunpack.c.l.b16 %v3513
      %v4240 = vunpack.c.h.b16 %v3513
      %v4241 = vunpack.c.l.b16 %v3514
      %v4242 = vunpack.c.h.b16 %v3514
      %v4243 = vunpack.c.l.b16 %v3515
      %v4244 = vunpack.c.h.b16 %v3515
      %v4245 = vunpack.c.l.b16 %v3516
      %v4246 = vunpack.c.h.b16 %v3516
      %v4247 = vunpack.c.l.b16 %v3517
      %v4248 = vunpack.c.h.b16 %v3517
      %v4249 = vunpack.c.l.b16 %v3518
      %v4250 = vunpack.c.h.b16 %v3518
      %v4251 = vunpack.c.l.b16 %v3519
      %v4252 = vunpack.c.h.b16 %v3519
      %v4253 = vunpack.c.l.b16 %v3520
      %v4254 = vunpack.c.h.b16 %v3520
      %v4255 = vunpack.c.l.b16 %v3521
      %v4256 = vunpack.c.h.b16 %v3521
      %v4257 = vunpack.c.l.b16 %v3522
      %v4258 = vunpack.c.h.b16 %v3522
      %v4259 = vunpack.c.l.b16 %v3523
      %v4260 = vunpack.c.h.b16 %v3523
      %v4261 = vunpack.c.l.b16 %v3524
      %v4262 = vunpack.c.h.b16 %v3524
      %v4263 = vunpack.c.l.b16 %v3525
      %v4264 = vunpack.c.h.b16 %v3525
      %v4265 = vunpack.c.l.b16 %v3526
      %v4266 = vunpack.c.h.b16 %v3526
      %v4267 = vunpack.c.l.b16 %v3527
      %v4268 = vunpack.c.h.b16 %v3527
      %v4269 = vunpack.c.l.b16 %v3528
      %v4270 = vunpack.c.h.b16 %v3528
      %v4271 = vunpack.c.l.b16 %v3529
      %v4272 = vunpack.c.h.b16 %v3529
      %v4273 = vunpack.c.l.b16 %v3530
      %v4274 = vunpack.c.h.b16 %v3530
      %v4275 = vunpack.c.l.b16 %v3531
      %v4276 = vunpack.c.h.b16 %v3531
      %v4277 = vunpack.c.l.b16 %v3532
      %v4278 = vunpack.c.h.b16 %v3532
      %v4279 = vunpack.c.l.b16 %v3533
      %v4280 = vunpack.c.h.b16 %v3533
      %v4281 = vunpack.c.l.b16 %v3534
      %v4282 = vunpack.c.h.b16 %v3534
      %v4283 = vunpack.c.l.b16 %v3535
      %v4284 = vunpack.c.h.b16 %v3535
      %v4285 = vunpack.c.l.b16 %v3536
      %v4286 = vunpack.c.h.b16 %v3536
      %v4287 = vunpack.c.l.b16 %v3537
      %v4288 = vunpack.c.h.b16 %v3537
      %v4289 = vunpack.c.l.b16 %v3538
      %v4290 = vunpack.c.h.b16 %v3538
      %v4291 = vunpack.c.l.b16 %v3539
      %v4292 = vunpack.c.h.b16 %v3539
      %v4293 = vunpack.c.l.b16 %v3540
      %v4294 = vunpack.c.h.b16 %v3540
      %v4295 = vunpack.c.l.b16 %v3541
      %v4296 = vunpack.c.h.b16 %v3541
      %v4297 = vunpack.c.l.b16 %v3542
      %v4298 = vunpack.c.h.b16 %v3542
      %v4299 = vunpack.c.l.b16 %v3543
      %v4300 = vunpack.c.h.b16 %v3543
      %v4301 = vunpack.c.l.b16 %v3544
      %v4302 = vunpack.c.h.b16 %v3544
      %v4303 = vunpack.c.l.b16 %v3545
      %v4304 = vunpack.c.h.b16 %v3545
      %v4305 = vunpack.c.l.b16 %v3546
      %v4306 = vunpack.c.h.b16 %v3546
      %v4307 = vunpack.c.l.b16 %v3547
      %v4308 = vunpack.c.h.b16 %v3547
      %v4309 = vunpack.c.l.b16 %v3548
      %v4310 = vunpack.c.h.b16 %v3548
      %v4311 = vunpack.c.l.b16 %v3549
      %v4312 = vunpack.c.h.b16 %v3549
      %v4313 = vunpack.c.l.b16 %v3550
      %v4314 = vunpack.c.h.b16 %v3550
      %v4315 = vunpack.c.l.b16 %v3551
      %v4316 = vunpack.c.h.b16 %v3551
      %v4317 = vunpack.c.l.b16 %v3552
      %v4318 = vunpack.c.h.b16 %v3552
      %v4319 = vunpack.c.l.b16 %v3553
      %v4320 = vunpack.c.h.b16 %v3553
      %v4321 = vunpack.c.l.b16 %v3554
      %v4322 = vunpack.c.h.b16 %v3554
      %v4323 = vunpack.c.l.b16 %v3555
      %v4324 = vunpack.c.h.b16 %v3555
      %v4325 = vpack.c.b16 %v3817, %v3813
      %v4326 = vpack.c.b16 %v3818, %v3814
      %v4327 = vpack.c.b16 %v3819, %v3815
      %v4328 = vpack.c.b16 %v3820, %v3816
      %v4329 = vpack.c.b16 %v3825, %v3821
      %v4330 = vpack.c.b16 %v3826, %v3822
      %v4331 = vpack.c.b16 %v3827, %v3823
      %v4332 = vpack.c.b16 %v3828, %v3824
      %v4333 = vpack.c.b16 %v3833, %v3829
      %v4334 = vpack.c.b16 %v3834, %v3830
      %v4335 = vpack.c.b16 %v3835, %v3831
      %v4336 = vpack.c.b16 %v3836, %v3832
      %v4337 = vpack.c.b16 %v3841, %v3837
      %v4338 = vpack.c.b16 %v3842, %v3838
      %v4339 = vpack.c.b16 %v3843, %v3839
      %v4340 = vpack.c.b16 %v3844, %v3840
      %v4341 = vpack.c.b16 %v3849, %v3845
      %v4342 = vpack.c.b16 %v3850, %v3846
      %v4343 = vpack.c.b16 %v3851, %v3847
      %v4344 = vpack.c.b16 %v3852, %v3848
      %v4345 = vpack.c.b16 %v3857, %v3853
      %v4346 = vpack.c.b16 %v3858, %v3854
      %v4347 = vpack.c.b16 %v3859, %v3855
      %v4348 = vpack.c.b16 %v3860, %v3856
      %v4349 = vpack.c.b16 %v3865, %v3861
      %v4350 = vpack.c.b16 %v3866, %v3862
      %v4351 = vpack.c.b16 %v3867, %v3863
      %v4352 = vpack.c.b16 %v3868, %v3864
      %v4353 = vpack.c.b16 %v3873, %v3869
      %v4354 = vpack.c.b16 %v3874, %v3870
      %v4355 = vpack.c.b16 %v3875, %v3871
      %v4356 = vpack.c.b16 %v3876, %v3872
      %v4357 = vpack.c.b16 %v3881, %v3877
      %v4358 = vpack.c.b16 %v3882, %v3878
      %v4359 = vpack.c.b16 %v3883, %v3879
      %v4360 = vpack.c.b16 %v3884, %v3880
      %v4361 = vpack.c.b16 %v3889, %v3885
      %v4362 = vpack.c.b16 %v3890, %v3886
      %v4363 = vpack.c.b16 %v3891, %v3887
      %v4364 = vpack.c.b16 %v3892, %v3888
      %v4365 = vpack.c.b16 %v3897, %v3893
      %v4366 = vpack.c.b16 %v3898, %v3894
      %v4367 = vpack.c.b16 %v3899, %v3895
      %v4368 = vpack.c.b16 %v3900, %v3896
      %v4369 = vpack.c.b16 %v3905, %v3901
      %v4370 = vpack.c.b16 %v3906, %v3902
      %v4371 = vpack.c.b16 %v3907, %v3903
      %v4372 = vpack.c.b16 %v3908, %v3904
      %v4373 = vpack.c.b16 %v3913, %v3909
      %v4374 = vpack.c.b16 %v3914, %v3910
      %v4375 = vpack.c.b16 %v3915, %v3911
      %v4376 = vpack.c.b16 %v3916, %v3912
      %v4377 = vpack.c.b16 %v3921, %v3917
      %v4378 = vpack.c.b16 %v3922, %v3918
      %v4379 = vpack.c.b16 %v3923, %v3919
      %v4380 = vpack.c.b16 %v3924, %v3920
      %v4381 = vpack.c.b16 %v3929, %v3925
      %v4382 = vpack.c.b16 %v3930, %v3926
      %v4383 = vpack.c.b16 %v3931, %v3927
      %v4384 = vpack.c.b16 %v3932, %v3928
      %v4385 = vpack.c.b16 %v3937, %v3933
      %v4386 = vpack.c.b16 %v3938, %v3934
      %v4387 = vpack.c.b16 %v3939, %v3935
      %v4388 = vpack.c.b16 %v3940, %v3936
      %v4389 = vpack.c.b16 %v3945, %v3941
      %v4390 = vpack.c.b16 %v3946, %v3942
      %v4391 = vpack.c.b16 %v3947, %v3943
      %v4392 = vpack.c.b16 %v3948, %v3944
      %v4393 = vpack.c.b16 %v3953, %v3949
      %v4394 = vpack.c.b16 %v3954, %v3950
      %v4395 = vpack.c.b16 %v3955, %v3951
      %v4396 = vpack.c.b16 %v3956, %v3952
      %v4397 = vpack.c.b16 %v3961, %v3957
      %v4398 = vpack.c.b16 %v3962, %v3958
      %v4399 = vpack.c.b16 %v3963, %v3959
      %v4400 = vpack.c.b16 %v3964, %v3960
      %v4401 = vpack.c.b16 %v3969, %v3965
      %v4402 = vpack.c.b16 %v3970, %v3966
      %v4403 = vpack.c.b16 %v3971, %v3967
      %v4404 = vpack.c.b16 %v3972, %v3968
      %v4405 = vpack.c.b16 %v3977, %v3973
      %v4406 = vpack.c.b16 %v3978, %v3974
      %v4407 = vpack.c.b16 %v3979, %v3975
      %v4408 = vpack.c.b16 %v3980, %v3976
      %v4409 = vpack.c.b16 %v3985, %v3981
      %v4410 = vpack.c.b16 %v3986, %v3982
      %v4411 = vpack.c.b16 %v3987, %v3983
      %v4412 = vpack.c.b16 %v3988, %v3984
      %v4413 = vpack.c.b16 %v3993, %v3989
      %v4414 = vpack.c.b16 %v3994, %v3990
      %v4415 = vpack.c.b16 %v3995, %v3991
      %v4416 = vpack.c.b16 %v3996, %v3992
      %v4417 = vpack.c.b16 %v4001, %v3997
      %v4418 = vpack.c.b16 %v4002, %v3998
      %v4419 = vpack.c.b16 %v4003, %v3999
      %v4420 = vpack.c.b16 %v4004, %v4000
      %v4421 = vpack.c.b16 %v4009, %v4005
      %v4422 = vpack.c.b16 %v4010, %v4006
      %v4423 = vpack.c.b16 %v4011, %v4007
      %v4424 = vpack.c.b16 %v4012, %v4008
      %v4425 = vpack.c.b16 %v4017, %v4013
      %v4426 = vpack.c.b16 %v4018, %v4014
      %v4427 = vpack.c.b16 %v4019, %v4015
      %v4428 = vpack.c.b16 %v4020, %v4016
      %v4429 = vpack.c.b16 %v4025, %v4021
      %v4430 = vpack.c.b16 %v4026, %v4022
      %v4431 = vpack.c.b16 %v4027, %v4023
      %v4432 = vpack.c.b16 %v4028, %v4024
      %v4433 = vpack.c.b16 %v4033, %v4029
      %v4434 = vpack.c.b16 %v4034, %v4030
      %v4435 = vpack.c.b16 %v4035, %v4031
      %v4436 = vpack.c.b16 %v4036, %v4032
      %v4437 = vpack.c.b16 %v4041, %v4037
      %v4438 = vpack.c.b16 %v4042, %v4038
      %v4439 = vpack.c.b16 %v4043, %v4039
      %v4440 = vpack.c.b16 %v4044, %v4040
      %v4441 = vpack.c.b16 %v4049, %v4045
      %v4442 = vpack.c.b16 %v4050, %v4046
      %v4443 = vpack.c.b16 %v4051, %v4047
      %v4444 = vpack.c.b16 %v4052, %v4048
      %v4445 = vpack.c.b16 %v4057, %v4053
      %v4446 = vpack.c.b16 %v4058, %v4054
      %v4447 = vpack.c.b16 %v4059, %v4055
      %v4448 = vpack.c.b16 %v4060, %v4056
      %v4449 = vpack.c.b16 %v4065, %v4061
      %v4450 = vpack.c.b16 %v4066, %v4062
      %v4451 = vpack.c.b16 %v4067, %v4063
      %v4452 = vpack.c.b16 %v4068, %v4064
      %v4453 = vpack.c.b16 %v4073, %v4069
      %v4454 = vpack.c.b16 %v4074, %v4070
      %v4455 = vpack.c.b16 %v4075, %v4071
      %v4456 = vpack.c.b16 %v4076, %v4072
      %v4457 = vpack.c.b16 %v4081, %v4077
      %v4458 = vpack.c.b16 %v4082, %v4078
      %v4459 = vpack.c.b16 %v4083, %v4079
      %v4460 = vpack.c.b16 %v4084, %v4080
      %v4461 = vpack.c.b16 %v4089, %v4085
      %v4462 = vpack.c.b16 %v4090, %v4086
      %v4463 = vpack.c.b16 %v4091, %v4087
      %v4464 = vpack.c.b16 %v4092, %v4088
      %v4465 = vpack.c.b16 %v4097, %v4093
      %v4466 = vpack.c.b16 %v4098, %v4094
      %v4467 = vpack.c.b16 %v4099, %v4095
      %v4468 = vpack.c.b16 %v4100, %v4096
      %v4469 = vpack.c.b16 %v4105, %v4101
      %v4470 = vpack.c.b16 %v4106, %v4102
      %v4471 = vpack.c.b16 %v4107, %v4103
      %v4472 = vpack.c.b16 %v4108, %v4104
      %v4473 = vpack.c.b16 %v4113, %v4109
      %v4474 = vpack.c.b16 %v4114, %v4110
      %v4475 = vpack.c.b16 %v4115, %v4111
      %v4476 = vpack.c.b16 %v4116, %v4112
      %v4477 = vpack.c.b16 %v4121, %v4117
      %v4478 = vpack.c.b16 %v4122, %v4118
      %v4479 = vpack.c.b16 %v4123, %v4119
      %v4480 = vpack.c.b16 %v4124, %v4120
      %v4481 = vpack.c.b16 %v4129, %v4125
      %v4482 = vpack.c.b16 %v4130, %v4126
      %v4483 = vpack.c.b16 %v4131, %v4127
      %v4484 = vpack.c.b16 %v4132, %v4128
      %v4485 = vpack.c.b16 %v4137, %v4133
      %v4486 = vpack.c.b16 %v4138, %v4134
      %v4487 = vpack.c.b16 %v4139, %v4135
      %v4488 = vpack.c.b16 %v4140, %v4136
      %v4489 = vpack.c.b16 %v4145, %v4141
      %v4490 = vpack.c.b16 %v4146, %v4142
      %v4491 = vpack.c.b16 %v4147, %v4143
      %v4492 = vpack.c.b16 %v4148, %v4144
      %v4493 = vpack.c.b16 %v4153, %v4149
      %v4494 = vpack.c.b16 %v4154, %v4150
      %v4495 = vpack.c.b16 %v4155, %v4151
      %v4496 = vpack.c.b16 %v4156, %v4152
      %v4497 = vpack.c.b16 %v4161, %v4157
      %v4498 = vpack.c.b16 %v4162, %v4158
      %v4499 = vpack.c.b16 %v4163, %v4159
      %v4500 = vpack.c.b16 %v4164, %v4160
      %v4501 = vpack.c.b16 %v4169, %v4165
      %v4502 = vpack.c.b16 %v4170, %v4166
      %v4503 = vpack.c.b16 %v4171, %v4167
      %v4504 = vpack.c.b16 %v4172, %v4168
      %v4505 = vpack.c.b16 %v4177, %v4173
      %v4506 = vpack.c.b16 %v4178, %v4174
      %v4507 = vpack.c.b16 %v4179, %v4175
      %v4508 = vpack.c.b16 %v4180, %v4176
      %v4509 = vpack.c.b16 %v4185, %v4181
      %v4510 = vpack.c.b16 %v4186, %v4182
      %v4511 = vpack.c.b16 %v4187, %v4183
      %v4512 = vpack.c.b16 %v4188, %v4184
      %v4513 = vpack.c.b16 %v4193, %v4189
      %v4514 = vpack.c.b16 %v4194, %v4190
      %v4515 = vpack.c.b16 %v4195, %v4191
      %v4516 = vpack.c.b16 %v4196, %v4192
      %v4517 = vpack.c.b16 %v4201, %v4197
      %v4518 = vpack.c.b16 %v4202, %v4198
      %v4519 = vpack.c.b16 %v4203, %v4199
      %v4520 = vpack.c.b16 %v4204, %v4200
      %v4521 = vpack.c.b16 %v4209, %v4205
      %v4522 = vpack.c.b16 %v4210, %v4206
      %v4523 = vpack.c.b16 %v4211, %v4207
      %v4524 = vpack.c.b16 %v4212, %v4208
      %v4525 = vpack.c.b16 %v4217, %v4213
      %v4526 = vpack.c.b16 %v4218, %v4214
      %v4527 = vpack.c.b16 %v4219, %v4215
      %v4528 = vpack.c.b16 %v4220, %v4216
      %v4529 = vpack.c.b16 %v4225, %v4221
      %v4530 = vpack.c.b16 %v4226, %v4222
      %v4531 = vpack.c.b16 %v4227, %v4223
      %v4532 = vpack.c.b16 %v4228, %v4224
      %v4533 = vpack.c.b16 %v4233, %v4229
      %v4534 = vpack.c.b16 %v4234, %v4230
      %v4535 = vpack.c.b16 %v4235, %v4231
      %v4536 = vpack.c.b16 %v4236, %v4232
      %v4537 = vpack.c.b16 %v4241, %v4237
      %v4538 = vpack.c.b16 %v4242, %v4238
      %v4539 = vpack.c.b16 %v4243, %v4239
      %v4540 = vpack.c.b16 %v4244, %v4240
      %v4541 = vpack.c.b16 %v4249, %v4245
      %v4542 = vpack.c.b16 %v4250, %v4246
      %v4543 = vpack.c.b16 %v4251, %v4247
      %v4544 = vpack.c.b16 %v4252, %v4248
      %v4545 = vpack.c.b16 %v4257, %v4253
      %v4546 = vpack.c.b16 %v4258, %v4254
      %v4547 = vpack.c.b16 %v4259, %v4255
      %v4548 = vpack.c.b16 %v4260, %v4256
      %v4549 = vpack.c.b16 %v4265, %v4261
      %v4550 = vpack.c.b16 %v4266, %v4262
      %v4551 = vpack.c.b16 %v4267, %v4263
      %v4552 = vpack.c.b16 %v4268, %v4264
      %v4553 = vpack.c.b16 %v4273, %v4269
      %v4554 = vpack.c.b16 %v4274, %v4270
      %v4555 = vpack.c.b16 %v4275, %v4271
      %v4556 = vpack.c.b16 %v4276, %v4272
      %v4557 = vpack.c.b16 %v4281, %v4277
      %v4558 = vpack.c.b16 %v4282, %v4278
      %v4559 = vpack.c.b16 %v4283, %v4279
      %v4560 = vpack.c.b16 %v4284, %v4280
      %v4561 = vpack.c.b16 %v4289, %v4285
      %v4562 = vpack.c.b16 %v4290, %v4286
      %v4563 = vpack.c.b16 %v4291, %v4287
      %v4564 = vpack.c.b16 %v4292, %v4288
      %v4565 = vpack.c.b16 %v4297, %v4293
      %v4566 = vpack.c.b16 %v4298, %v4294
      %v4567 = vpack.c.b16 %v4299, %v4295
      %v4568 = vpack.c.b16 %v4300, %v4296
      %v4569 = vpack.c.b16 %v4305, %v4301
      %v4570 = vpack.c.b16 %v4306, %v4302
      %v4571 = vpack.c.b16 %v4307, %v4303
      %v4572 = vpack.c.b16 %v4308, %v4304
      %v4573 = vpack.c.b16 %v4313, %v4309
      %v4574 = vpack.c.b16 %v4314, %v4310
      %v4575 = vpack.c.b16 %v4315, %v4311
      %v4576 = vpack.c.b16 %v4316, %v4312
      %v4577 = vpack.c.b16 %v4321, %v4317
      %v4578 = vpack.c.b16 %v4322, %v4318
      %v4579 = vpack.c.b16 %v4323, %v4319
      %v4580 = vpack.c.b16 %v4324, %v4320
      %v4838 = vlaneseq
      %v4839 = vshrl.u32 %v4838, 7
      %v4840 = vsub.s32 0, %v4839
      %v4841 = vrot.slane %v3556, %v4840
      %v4842 = vlaneseq
      %v4843 = vshrl.u32 %v4842, 7
      %v4844 = vsub.s32 1, %v4843
      %v4845 = vrot.slane %v3556, %v4844
      %v4846 = vlaneseq
      %v4847 = vshrl.u32 %v4846, 7
      %v4848 = vsub.s32 2, %v4847
      %v4849 = vrot.slane %v3556, %v4848
      %v4850 = vlaneseq
      %v4851 = vshrl.u32 %v4850, 7
      %v4852 = vsub.s32 3, %v4851
      %v4853 = vrot.slane %v3556, %v4852
      %4858 = vmatprep.subr.bf16.mxu0 %v4326
      %4859 = vmatpush1.bf16.msra.mxu0 %v4325
      %4860 = vmatprep.subr.bf16.mxu0 %v4330
      %4861 = vmatpush1.bf16.msra.mxu0 %v4329
      %4862 = vmatprep.subr.bf16.mxu0 %v4334
      %4863 = vmatpush1.bf16.msra.mxu0 %v4333
      %4864 = vmatprep.subr.bf16.mxu0 %v4338
      %4865 = vmatpush1.bf16.msra.mxu0 %v4337
      %4866 = vmatprep.subr.bf16.mxu0 %v4342
      %4867 = vmatpush1.bf16.msra.mxu0 %v4341
      %4868 = vmatprep.subr.bf16.mxu0 %v4346
      %4869 = vmatpush1.bf16.msra.mxu0 %v4345
      %4870 = vmatprep.subr.bf16.mxu0 %v4350
      %4871 = vmatpush1.bf16.msra.mxu0 %v4349
      %4872 = vmatprep.subr.bf16.mxu0 %v4354
      %4873 = vmatpush1.bf16.msra.mxu0 %v4353
      %4874 = vmatprep.subr.bf16.mxu0 %v4358
      %4875 = vmatpush1.bf16.msra.mxu0 %v4357
      %4876 = vmatprep.subr.bf16.mxu0 %v4362
      %4877 = vmatpush1.bf16.msra.mxu0 %v4361
      %4878 = vmatprep.subr.bf16.mxu0 %v4366
      %4879 = vmatpush1.bf16.msra.mxu0 %v4365
      %4880 = vmatprep.subr.bf16.mxu0 %v4370
      %4881 = vmatpush1.bf16.msra.mxu0 %v4369
      %4882 = vmatprep.subr.bf16.mxu0 %v4374
      %4883 = vmatpush1.bf16.msra.mxu0 %v4373
      %4884 = vmatprep.subr.bf16.mxu0 %v4378
      %4885 = vmatpush1.bf16.msra.mxu0 %v4377
      %4886 = vmatprep.subr.bf16.mxu0 %v4382
      %4887 = vmatpush1.bf16.msra.mxu0 %v4381
      %4888 = vmatprep.subr.bf16.mxu0 %v4386
      %4889 = vmatpush1.bf16.msra.mxu0 %v4385
      %4890 = vmatprep.mubr.bf16.mxu0 %v3293
      %4891 = vmatmul.mubr.bf16.gmra.mrb[0].mxu0 %v3292
      %v4892 = vpop.f32.mrb[0].mxu0
      %v4893 = vadd.f32 %v4841, %v4892
      %v4894 = vpop.f32.mrb[0].mxu0
      %v4895 = vadd.f32 %v4845, %v4894
      %v4896 = vpop.f32.mrb[0].mxu0
      %v4897 = vpop.f32.mrb[0].mxu0
      %4898 = vdwg.mxu0
      %4899 = vmatprep.subr.bf16.mxu0 %v4390
      %4900 = vmatpush1.bf16.msra.mxu0 %v4389
      %4901 = vmatprep.subr.bf16.mxu0 %v4394
      %4902 = vmatpush1.bf16.msra.mxu0 %v4393
      %4903 = vmatprep.subr.bf16.mxu0 %v4398
      %4904 = vmatpush1.bf16.msra.mxu0 %v4397
      %4905 = vmatprep.subr.bf16.mxu0 %v4402
      %4906 = vmatpush1.bf16.msra.mxu0 %v4401
      %4907 = vmatprep.subr.bf16.mxu0 %v4406
      %4908 = vmatpush1.bf16.msra.mxu0 %v4405
      %4909 = vmatprep.subr.bf16.mxu0 %v4410
      %4910 = vmatpush1.bf16.msra.mxu0 %v4409
      %4911 = vmatprep.subr.bf16.mxu0 %v4414
      %4912 = vmatpush1.bf16.msra.mxu0 %v4413
      %4913 = vmatprep.subr.bf16.mxu0 %v4418
      %4914 = vmatpush1.bf16.msra.mxu0 %v4417
      %4915 = vmatprep.subr.bf16.mxu0 %v4422
      %4916 = vmatpush1.bf16.msra.mxu0 %v4421
      %4917 = vmatprep.subr.bf16.mxu0 %v4426
      %4918 = vmatpush1.bf16.msra.mxu0 %v4425
      %4919 = vmatprep.subr.bf16.mxu0 %v4430
      %4920 = vmatpush1.bf16.msra.mxu0 %v4429
      %4921 = vmatprep.subr.bf16.mxu0 %v4434
      %4922 = vmatpush1.bf16.msra.mxu0 %v4433
      %4923 = vmatprep.subr.bf16.mxu0 %v4438
      %4924 = vmatpush1.bf16.msra.mxu0 %v4437
      %4925 = vmatprep.subr.bf16.mxu0 %v4442
      %4926 = vmatpush1.bf16.msra.mxu0 %v4441
      %4927 = vmatprep.subr.bf16.mxu0 %v4446
      %4928 = vmatpush1.bf16.msra.mxu0 %v4445
      %4929 = vmatprep.subr.bf16.mxu0 %v4450
      %4930 = vmatpush1.bf16.msra.mxu0 %v4449
      %4931 = vmatprep.mubr.bf16.mxu0 %v3295
      %4932 = vmatmul.mubr.bf16.gmra.mrb[0].mxu0 %v3294
      %v4933 = vpop.f32.mrb[0].mxu0
      %v4934 = vadd.f32 %v4893, %v4933
      %v4935 = vpop.f32.mrb[0].mxu0
      %v4936 = vadd.f32 %v4895, %v4935
      %v4937 = vpop.f32.mrb[0].mxu0
      %v4938 = vpop.f32.mrb[0].mxu0
      %4939 = vdwg.mxu0
      %4940 = vmatprep.subr.bf16.mxu0 %v4454
      %4941 = vmatpush1.bf16.msra.mxu0 %v4453
      %4942 = vmatprep.subr.bf16.mxu0 %v4458
      %4943 = vmatpush1.bf16.msra.mxu0 %v4457
      %4944 = vmatprep.subr.bf16.mxu0 %v4462
      %4945 = vmatpush1.bf16.msra.mxu0 %v4461
      %4946 = vmatprep.subr.bf16.mxu0 %v4466
      %4947 = vmatpush1.bf16.msra.mxu0 %v4465
      %4948 = vmatprep.subr.bf16.mxu0 %v4470
      %4949 = vmatpush1.bf16.msra.mxu0 %v4469
      %4950 = vmatprep.subr.bf16.mxu0 %v4474
      %4951 = vmatpush1.bf16.msra.mxu0 %v4473
      %4952 = vmatprep.subr.bf16.mxu0 %v4478
      %4953 = vmatpush1.bf16.msra.mxu0 %v4477
      %4954 = vmatprep.subr.bf16.mxu0 %v4482
      %4955 = vmatpush1.bf16.msra.mxu0 %v4481
      %4956 = vmatprep.subr.bf16.mxu0 %v4486
      %4957 = vmatpush1.bf16.msra.mxu0 %v4485
      %4958 = vmatprep.subr.bf16.mxu0 %v4490
      %4959 = vmatpush1.bf16.msra.mxu0 %v4489
      %4960 = vmatprep.subr.bf16.mxu0 %v4494
      %4961 = vmatpush1.bf16.msra.mxu0 %v4493
      %4962 = vmatprep.subr.bf16.mxu0 %v4498
      %4963 = vmatpush1.bf16.msra.mxu0 %v4497
      %4964 = vmatprep.subr.bf16.mxu0 %v4502
      %4965 = vmatpush1.bf16.msra.mxu0 %v4501
      %4966 = vmatprep.subr.bf16.mxu0 %v4506
      %4967 = vmatpush1.bf16.msra.mxu0 %v4505
      %4968 = vmatprep.subr.bf16.mxu0 %v4510
      %4969 = vmatpush1.bf16.msra.mxu0 %v4509
      %4970 = vmatprep.subr.bf16.mxu0 %v4514
      %4971 = vmatpush1.bf16.msra.mxu0 %v4513
      %4972 = vmatprep.mubr.bf16.mxu0 %v3297
      %4973 = vmatmul.mubr.bf16.gmra.mrb[0].mxu0 %v3296
      %v4974 = vpop.f32.mrb[0].mxu0
      %v4975 = vadd.f32 %v4934, %v4974
      %v4976 = vpop.f32.mrb[0].mxu0
      %v4977 = vadd.f32 %v4936, %v4976
      %v4978 = vpop.f32.mrb[0].mxu0
      %v4979 = vpop.f32.mrb[0].mxu0
      %4980 = vdwg.mxu0
      %4981 = vmatprep.subr.bf16.mxu0 %v4518
      %4982 = vmatpush1.bf16.msra.mxu0 %v4517
      %4983 = vmatprep.subr.bf16.mxu0 %v4522
      %4984 = vmatpush1.bf16.msra.mxu0 %v4521
      %4985 = vmatprep.subr.bf16.mxu0 %v4526
      %4986 = vmatpush1.bf16.msra.mxu0 %v4525
      %4987 = vmatprep.subr.bf16.mxu0 %v4530
      %4988 = vmatpush1.bf16.msra.mxu0 %v4529
      %4989 = vmatprep.subr.bf16.mxu0 %v4534
      %4990 = vmatpush1.bf16.msra.mxu0 %v4533
      %4991 = vmatprep.subr.bf16.mxu0 %v4538
      %4992 = vmatpush1.bf16.msra.mxu0 %v4537
      %4993 = vmatprep.subr.bf16.mxu0 %v4542
      %4994 = vmatpush1.bf16.msra.mxu0 %v4541
      %4995 = vmatprep.subr.bf16.mxu0 %v4546
      %4996 = vmatpush1.bf16.msra.mxu0 %v4545
      %4997 = vmatprep.subr.bf16.mxu0 %v4550
      %4998 = vmatpush1.bf16.msra.mxu0 %v4549
      %4999 = vmatprep.subr.bf16.mxu0 %v4554
      %5000 = vmatpush1.bf16.msra.mxu0 %v4553
      %5001 = vmatprep.subr.bf16.mxu0 %v4558
      %5002 = vmatpush1.bf16.msra.mxu0 %v4557
      %5003 = vmatprep.subr.bf16.mxu0 %v4562
      %5004 = vmatpush1.bf16.msra.mxu0 %v4561
      %5005 = vmatprep.subr.bf16.mxu0 %v4566
      %5006 = vmatpush1.bf16.msra.mxu0 %v4565
      %5007 = vmatprep.subr.bf16.mxu0 %v4570
      %5008 = vmatpush1.bf16.msra.mxu0 %v4569
      %5009 = vmatprep.subr.bf16.mxu0 %v4574
      %5010 = vmatpush1.bf16.msra.mxu0 %v4573
      %5011 = vmatprep.subr.bf16.mxu0 %v4578
      %5012 = vmatpush1.bf16.msra.mxu0 %v4577
      %5013 = vmatprep.mubr.bf16.mxu0 %v3299
      %5014 = vmatmul.mubr.bf16.gmra.mrb[0].mxu0 %v3298
      %v5015 = vpop.f32.mrb[0].mxu0
      %v5016 = vadd.f32 %v4975, %v5015
      %v5017 = vpop.f32.mrb[0].mxu0
      %v5018 = vadd.f32 %v4977, %v5017
      %v5019 = vpop.f32.mrb[0].mxu0
      %v5020 = vpop.f32.mrb[0].mxu0
      %5021 = vdwg.mxu0
      %5022 = vmatprep.subr.bf16.mxu0 %v4328
      %5023 = vmatpush1.bf16.msra.mxu0 %v4327
      %5024 = vmatprep.subr.bf16.mxu0 %v4332
      %5025 = vmatpush1.bf16.msra.mxu0 %v4331
      %5026 = vmatprep.subr.bf16.mxu0 %v4336
      %5027 = vmatpush1.bf16.msra.mxu0 %v4335
      %5028 = vmatprep.subr.bf16.mxu0 %v4340
      %5029 = vmatpush1.bf16.msra.mxu0 %v4339
      %5030 = vmatprep.subr.bf16.mxu0 %v4344
      %5031 = vmatpush1.bf16.msra.mxu0 %v4343
      %5032 = vmatprep.subr.bf16.mxu0 %v4348
      %5033 = vmatpush1.bf16.msra.mxu0 %v4347
      %5034 = vmatprep.subr.bf16.mxu0 %v4352
      %5035 = vmatpush1.bf16.msra.mxu0 %v4351
      %5036 = vmatprep.subr.bf16.mxu0 %v4356
      %5037 = vmatpush1.bf16.msra.mxu0 %v4355
      %5038 = vmatprep.subr.bf16.mxu0 %v4360
      %5039 = vmatpush1.bf16.msra.mxu0 %v4359
      %5040 = vmatprep.subr.bf16.mxu0 %v4364
      %5041 = vmatpush1.bf16.msra.mxu0 %v4363
      %5042 = vmatprep.subr.bf16.mxu0 %v4368
      %5043 = vmatpush1.bf16.msra.mxu0 %v4367
      %5044 = vmatprep.subr.bf16.mxu0 %v4372
      %5045 = vmatpush1.bf16.msra.mxu0 %v4371
      %5046 = vmatprep.subr.bf16.mxu0 %v4376
      %5047 = vmatpush1.bf16.msra.mxu0 %v4375
      %5048 = vmatprep.subr.bf16.mxu0 %v4380
      %5049 = vmatpush1.bf16.msra.mxu0 %v4379
      %5050 = vmatprep.subr.bf16.mxu0 %v4384
      %5051 = vmatpush1.bf16.msra.mxu0 %v4383
      %5052 = vmatprep.subr.bf16.mxu0 %v4388
      %5053 = vmatpush1.bf16.msra.mxu0 %v4387
      %5054 = vmatprep.mubr.bf16.mxu0 %v3293
      %5055 = vmatmul.mubr.bf16.gmra.mrb[0].mxu0 %v3292
      %v5056 = vpop.f32.mrb[0].mxu0
      %v5057 = vadd.f32 %v4849, %v5056
      %v5058 = vpop.f32.mrb[0].mxu0
      %v5059 = vadd.f32 %v4853, %v5058
      %v5060 = vpop.f32.mrb[0].mxu0
      %v5061 = vpop.f32.mrb[0].mxu0
      %5062 = vdwg.mxu0
      %5063 = vmatprep.subr.bf16.mxu0 %v4392
      %5064 = vmatpush1.bf16.msra.mxu0 %v4391
      %5065 = vmatprep.subr.bf16.mxu0 %v4396
      %5066 = vmatpush1.bf16.msra.mxu0 %v4395
      %5067 = vmatprep.subr.bf16.mxu0 %v4400
      %5068 = vmatpush1.bf16.msra.mxu0 %v4399
      %5069 = vmatprep.subr.bf16.mxu0 %v4404
      %5070 = vmatpush1.bf16.msra.mxu0 %v4403
      %5071 = vmatprep.subr.bf16.mxu0 %v4408
      %5072 = vmatpush1.bf16.msra.mxu0 %v4407
      %5073 = vmatprep.subr.bf16.mxu0 %v4412
      %5074 = vmatpush1.bf16.msra.mxu0 %v4411
      %5075 = vmatprep.subr.bf16.mxu0 %v4416
      %5076 = vmatpush1.bf16.msra.mxu0 %v4415
      %5077 = vmatprep.subr.bf16.mxu0 %v4420
      %5078 = vmatpush1.bf16.msra.mxu0 %v4419
      %5079 = vmatprep.subr.bf16.mxu0 %v4424
      %5080 = vmatpush1.bf16.msra.mxu0 %v4423
      %5081 = vmatprep.subr.bf16.mxu0 %v4428
      %5082 = vmatpush1.bf16.msra.mxu0 %v4427
      %5083 = vmatprep.subr.bf16.mxu0 %v4432
      %5084 = vmatpush1.bf16.msra.mxu0 %v4431
      %5085 = vmatprep.subr.bf16.mxu0 %v4436
      %5086 = vmatpush1.bf16.msra.mxu0 %v4435
      %5087 = vmatprep.subr.bf16.mxu0 %v4440
      %5088 = vmatpush1.bf16.msra.mxu0 %v4439
      %5089 = vmatprep.subr.bf16.mxu0 %v4444
      %5090 = vmatpush1.bf16.msra.mxu0 %v4443
      %5091 = vmatprep.subr.bf16.mxu0 %v4448
      %5092 = vmatpush1.bf16.msra.mxu0 %v4447
      %5093 = vmatprep.subr.bf16.mxu0 %v4452
      %5094 = vmatpush1.bf16.msra.mxu0 %v4451
      %5095 = vmatprep.mubr.bf16.mxu0 %v3295
      %5096 = vmatmul.mubr.bf16.gmra.mrb[0].mxu0 %v3294
      %v5097 = vpop.f32.mrb[0].mxu0
      %v5098 = vadd.f32 %v5057, %v5097
      %v5099 = vpop.f32.mrb[0].mxu0
      %v5100 = vadd.f32 %v5059, %v5099
      %v5101 = vpop.f32.mrb[0].mxu0
      %v5102 = vpop.f32.mrb[0].mxu0
      %5103 = vdwg.mxu0
      %5104 = vmatprep.subr.bf16.mxu0 %v4456
      %5105 = vmatpush1.bf16.msra.mxu0 %v4455
      %5106 = vmatprep.subr.bf16.mxu0 %v4460
      %5107 = vmatpush1.bf16.msra.mxu0 %v4459
      %5108 = vmatprep.subr.bf16.mxu0 %v4464
      %5109 = vmatpush1.bf16.msra.mxu0 %v4463
      %5110 = vmatprep.subr.bf16.mxu0 %v4468
      %5111 = vmatpush1.bf16.msra.mxu0 %v4467
      %5112 = vmatprep.subr.bf16.mxu0 %v4472
      %5113 = vmatpush1.bf16.msra.mxu0 %v4471
      %5114 = vmatprep.subr.bf16.mxu0 %v4476
      %5115 = vmatpush1.bf16.msra.mxu0 %v4475
      %5116 = vmatprep.subr.bf16.mxu0 %v4480
      %5117 = vmatpush1.bf16.msra.mxu0 %v4479
      %5118 = vmatprep.subr.bf16.mxu0 %v4484
      %5119 = vmatpush1.bf16.msra.mxu0 %v4483
      %5120 = vmatprep.subr.bf16.mxu0 %v4488
      %5121 = vmatpush1.bf16.msra.mxu0 %v4487
      %5122 = vmatprep.subr.bf16.mxu0 %v4492
      %5123 = vmatpush1.bf16.msra.mxu0 %v4491
      %5124 = vmatprep.subr.bf16.mxu0 %v4496
      %5125 = vmatpush1.bf16.msra.mxu0 %v4495
      %5126 = vmatprep.subr.bf16.mxu0 %v4500
      %5127 = vmatpush1.bf16.msra.mxu0 %v4499
      %5128 = vmatprep.subr.bf16.mxu0 %v4504
      %5129 = vmatpush1.bf16.msra.mxu0 %v4503
      %5130 = vmatprep.subr.bf16.mxu0 %v4508
      %5131 = vmatpush1.bf16.msra.mxu0 %v4507
      %5132 = vmatprep.subr.bf16.mxu0 %v4512
      %5133 = vmatpush1.bf16.msra.mxu0 %v4511
      %5134 = vmatprep.subr.bf16.mxu0 %v4516
      %5135 = vmatpush1.bf16.msra.mxu0 %v4515
      %5136 = vmatprep.mubr.bf16.mxu0 %v3297
      %5137 = vmatmul.mubr.bf16.gmra.mrb[0].mxu0 %v3296
      %v5138 = vpop.f32.mrb[0].mxu0
      %v5139 = vadd.f32 %v5098, %v5138
      %v5140 = vpop.f32.mrb[0].mxu0
      %v5141 = vadd.f32 %v5100, %v5140
      %v5142 = vpop.f32.mrb[0].mxu0
      %v5143 = vpop.f32.mrb[0].mxu0
      %5144 = vdwg.mxu0
      %5145 = vmatprep.subr.bf16.mxu0 %v4520
      %5146 = vmatpush1.bf16.msra.mxu0 %v4519
      %5147 = vmatprep.subr.bf16.mxu0 %v4524
      %5148 = vmatpush1.bf16.msra.mxu0 %v4523
      %5149 = vmatprep.subr.bf16.mxu0 %v4528
      %5150 = vmatpush1.bf16.msra.mxu0 %v4527
      %5151 = vmatprep.subr.bf16.mxu0 %v4532
      %5152 = vmatpush1.bf16.msra.mxu0 %v4531
      %5153 = vmatprep.subr.bf16.mxu0 %v4536
      %5154 = vmatpush1.bf16.msra.mxu0 %v4535
      %5155 = vmatprep.subr.bf16.mxu0 %v4540
      %5156 = vmatpush1.bf16.msra.mxu0 %v4539
      %5157 = vmatprep.subr.bf16.mxu0 %v4544
      %5158 = vmatpush1.bf16.msra.mxu0 %v4543
      %5159 = vmatprep.subr.bf16.mxu0 %v4548
      %5160 = vmatpush1.bf16.msra.mxu0 %v4547
      %5161 = vmatprep.subr.bf16.mxu0 %v4552
      %5162 = vmatpush1.bf16.msra.mxu0 %v4551
      %5163 = vmatprep.subr.bf16.mxu0 %v4556
      %5164 = vmatpush1.bf16.msra.mxu0 %v4555
      %5165 = vmatprep.subr.bf16.mxu0 %v4560
      %5166 = vmatpush1.bf16.msra.mxu0 %v4559
      %5167 = vmatprep.subr.bf16.mxu0 %v4564
      %5168 = vmatpush1.bf16.msra.mxu0 %v4563
      %5169 = vmatprep.subr.bf16.mxu0 %v4568
      %5170 = vmatpush1.bf16.msra.mxu0 %v4567
      %5171 = vmatprep.subr.bf16.mxu0 %v4572
      %5172 = vmatpush1.bf16.msra.mxu0 %v4571
      %5173 = vmatprep.subr.bf16.mxu0 %v4576
      %5174 = vmatpush1.bf16.msra.mxu0 %v4575
      %5175 = vmatprep.subr.bf16.mxu0 %v4580
      %5176 = vmatpush1.bf16.msra.mxu0 %v4579
      %5177 = vmatprep.mubr.bf16.mxu0 %v3299
      %5178 = vmatmul.mubr.bf16.gmra.mrb[0].mxu0 %v3298
      %v5179 = vpop.f32.mrb[0].mxu0
      %v5180 = vadd.f32 %v5139, %v5179
      %v5181 = vpop.f32.mrb[0].mxu0
      %v5182 = vadd.f32 %v5141, %v5181
      %v5183 = vpop.f32.mrb[0].mxu0
      %v5184 = vpop.f32.mrb[0].mxu0
      %5185 = vdwg.mxu0
      %v5186 = vld [vmem:[%s23] sm:$0xf]
      %v5188 = vlaneseq
      %v5189 = vshrl.u32 %v5188, 7
      %v5190 = vsub.s32 0, %v5189
      %v5191 = vrot.slane %v5186, %v5190
      %v5192 = vlaneseq
      %v5193 = vshrl.u32 %v5192, 7
      %v5194 = vsub.s32 1, %v5193
      %v5195 = vrot.slane %v5186, %v5194
      %v5196 = vlaneseq
      %v5197 = vshrl.u32 %v5196, 7
      %v5198 = vsub.s32 2, %v5197
      %v5199 = vrot.slane %v5186, %v5198
      %v5200 = vlaneseq
      %v5201 = vshrl.u32 %v5200, 7
      %v5202 = vsub.s32 3, %v5201
      %v5203 = vrot.slane %v5186, %v5202
      %v5208 = vmul.f32 %v5016, %v5191
      %v5209 = vmul.f32 %v5018, %v5195
      %v5210 = vmul.f32 %v5180, %v5199
      %v5211 = vmul.f32 %v5182, %v5203
      %v5212 = vld [vmem:[%s25] sm:$0xf]
      %v5214 = vlaneseq
      %v5215 = vshrl.u32 %v5214, 7
      %v5216 = vsub.s32 0, %v5215
      %v5217 = vrot.slane %v5212, %v5216
      %v5218 = vlaneseq
      %v5219 = vshrl.u32 %v5218, 7
      %v5220 = vsub.s32 1, %v5219
      %v5221 = vrot.slane %v5212, %v5220
      %v5222 = vlaneseq
      %v5223 = vshrl.u32 %v5222, 7
      %v5224 = vsub.s32 2, %v5223
      %v5225 = vrot.slane %v5212, %v5224
      %v5226 = vlaneseq
      %v5227 = vshrl.u32 %v5226, 7
      %v5228 = vsub.s32 3, %v5227
      %v5229 = vrot.slane %v5212, %v5228
      %v5234 = vadd.f32 %v5208, %v5217
      %v5235 = vadd.f32 %v5209, %v5221
      %v5236 = vadd.f32 %v5210, %v5225
      %v5237 = vadd.f32 %v5211, %v5229
      %v5238 = vmul.f32 %v5234, 0.5
      %v5239 = vmul.f32 %v5235, 0.5
      %v5240 = vmul.f32 %v5236, 0.5
      %v5241 = vmul.f32 %v5237, 0.5
      %v5242 = vmul.f32 %v5234, 0.044715
      %v5243 = vmul.f32 %v5235, 0.044715
      %v5244 = vmul.f32 %v5236, 0.044715
      %v5245 = vmul.f32 %v5237, 0.044715
      %v5246 = vmul.f32 %v5242, %v5234
      %v5247 = vmul.f32 %v5243, %v5235
      %v5248 = vmul.f32 %v5244, %v5236
      %v5249 = vmul.f32 %v5245, %v5237
      %v5250 = vmul.f32 %v5246, %v5234
      %v5251 = vmul.f32 %v5247, %v5235
      %v5252 = vmul.f32 %v5248, %v5236
      %v5253 = vmul.f32 %v5249, %v5237
      %v5254 = vadd.f32 %v5234, %v5250
      %v5255 = vadd.f32 %v5235, %v5251
      %v5256 = vadd.f32 %v5236, %v5252
      %v5257 = vadd.f32 %v5237, %v5253
      %v5258 = vmul.f32 %v5254, 0.7978846
      %v5259 = vmul.f32 %v5255, 0.7978846
      %v5260 = vmul.f32 %v5256, 0.7978846
      %v5261 = vmul.f32 %v5257, 0.7978846
      %v5262 = vtanh.pop %v5258
      %v5263 = vtanh.pop %v5259
      %v5264 = vtanh.pop %v5260
      %v5265 = vtanh.pop %v5261
      %v5266 = vadd.f32 %v5262, 1.0
      %v5267 = vadd.f32 %v5263, 1.0
      %v5268 = vadd.f32 %v5264, 1.0
      %v5269 = vadd.f32 %v5265, 1.0
      %v5270 = vmul.f32 %v5238, %v5266
      %v5271 = vmul.f32 %v5239, %v5267
      %v5272 = vmul.f32 %v5240, %v5268
      %v5273 = vmul.f32 %v5241, %v5269
      %v5274 = vld [vmem:[%s27] sm:$0xff]
      %v5275 = vld [vmem:[%s27 + $0x8] sm:$0xff]
      %v5276 = vld [vmem:[%s27 + $0x10] sm:$0xff]
      %v5277 = vld [vmem:[%s27 + $0x18] sm:$0xff]
      %v5278 = vld [vmem:[%s27 + $0x20] sm:$0xff]
      %v5279 = vld [vmem:[%s27 + $0x28] sm:$0xff]
      %v5280 = vld [vmem:[%s27 + $0x30] sm:$0xff]
      %v5281 = vld [vmem:[%s27 + $0x38] sm:$0xff]
      %v5282 = vld [vmem:[%s27 + $0x40] sm:$0xff]
      %v5283 = vld [vmem:[%s27 + $0x48] sm:$0xff]
      %v5284 = vld [vmem:[%s27 + $0x50] sm:$0xff]
      %v5285 = vld [vmem:[%s27 + $0x58] sm:$0xff]
      %v5286 = vld [vmem:[%s27 + $0x60] sm:$0xff]
      %v5287 = vld [vmem:[%s27 + $0x68] sm:$0xff]
      %v5288 = vld [vmem:[%s27 + $0x70] sm:$0xff]
      %v5289 = vld [vmem:[%s27 + $0x78] sm:$0xff]
      %v5290 = vld [vmem:[%s27 + $0x80] sm:$0xff]
      %v5291 = vld [vmem:[%s27 + $0x88] sm:$0xff]
      %v5292 = vld [vmem:[%s27 + $0x90] sm:$0xff]
      %v5293 = vld [vmem:[%s27 + $0x98] sm:$0xff]
      %v5294 = vld [vmem:[%s27 + $0xa0] sm:$0xff]
      %v5295 = vld [vmem:[%s27 + $0xa8] sm:$0xff]
      %v5296 = vld [vmem:[%s27 + $0xb0] sm:$0xff]
      %v5297 = vld [vmem:[%s27 + $0xb8] sm:$0xff]
      %v5298 = vld [vmem:[%s27 + $0xc0] sm:$0xff]
      %v5299 = vld [vmem:[%s27 + $0xc8] sm:$0xff]
      %v5300 = vld [vmem:[%s27 + $0xd0] sm:$0xff]
      %v5301 = vld [vmem:[%s27 + $0xd8] sm:$0xff]
      %v5302 = vld [vmem:[%s27 + $0xe0] sm:$0xff]
      %v5303 = vld [vmem:[%s27 + $0xe8] sm:$0xff]
      %v5304 = vld [vmem:[%s27 + $0xf0] sm:$0xff]
      %v5305 = vld [vmem:[%s27 + $0xf8] sm:$0xff]
      %v5306 = vld [vmem:[%s27 + $0x100] sm:$0xff]
      %v5307 = vld [vmem:[%s27 + $0x108] sm:$0xff]
      %v5308 = vld [vmem:[%s27 + $0x110] sm:$0xff]
      %v5309 = vld [vmem:[%s27 + $0x118] sm:$0xff]
      %v5310 = vld [vmem:[%s27 + $0x120] sm:$0xff]
      %v5311 = vld [vmem:[%s27 + $0x128] sm:$0xff]
      %v5312 = vld [vmem:[%s27 + $0x130] sm:$0xff]
      %v5313 = vld [vmem:[%s27 + $0x138] sm:$0xff]
      %v5314 = vld [vmem:[%s27 + $0x140] sm:$0xff]
      %v5315 = vld [vmem:[%s27 + $0x148] sm:$0xff]
      %v5316 = vld [vmem:[%s27 + $0x150] sm:$0xff]
      %v5317 = vld [vmem:[%s27 + $0x158] sm:$0xff]
      %v5318 = vld [vmem:[%s27 + $0x160] sm:$0xff]
      %v5319 = vld [vmem:[%s27 + $0x168] sm:$0xff]
      %v5320 = vld [vmem:[%s27 + $0x170] sm:$0xff]
      %v5321 = vld [vmem:[%s27 + $0x178] sm:$0xff]
      %v5322 = vld [vmem:[%s27 + $0x180] sm:$0xff]
      %v5323 = vld [vmem:[%s27 + $0x188] sm:$0xff]
      %v5324 = vld [vmem:[%s27 + $0x190] sm:$0xff]
      %v5325 = vld [vmem:[%s27 + $0x198] sm:$0xff]
      %v5326 = vld [vmem:[%s27 + $0x1a0] sm:$0xff]
      %v5327 = vld [vmem:[%s27 + $0x1a8] sm:$0xff]
      %v5328 = vld [vmem:[%s27 + $0x1b0] sm:$0xff]
      %v5329 = vld [vmem:[%s27 + $0x1b8] sm:$0xff]
      %v5330 = vld [vmem:[%s27 + $0x1c0] sm:$0xff]
      %v5331 = vld [vmem:[%s27 + $0x1c8] sm:$0xff]
      %v5332 = vld [vmem:[%s27 + $0x1d0] sm:$0xff]
      %v5333 = vld [vmem:[%s27 + $0x1d8] sm:$0xff]
      %v5334 = vld [vmem:[%s27 + $0x1e0] sm:$0xff]
      %v5335 = vld [vmem:[%s27 + $0x1e8] sm:$0xff]
      %v5336 = vld [vmem:[%s27 + $0x1f0] sm:$0xff]
      %v5337 = vld [vmem:[%s27 + $0x1f8] sm:$0xff]
      %v5338 = vld [vmem:[%s29] sm:$0x1]
      %5339 = vmatprep.subr.mxu0 0.0
      %5340 = vmatpush1.msra.mxu0 %v5274
      %5341 = vmatprep.subr.mxu0 0.0
      %5342 = vmatpush1.msra.mxu0 %v5275
      %5343 = vmatprep.subr.mxu0 0.0
      %5344 = vmatpush1.msra.mxu0 %v5276
      %5345 = vmatprep.subr.mxu0 0.0
      %5346 = vmatpush1.msra.mxu0 %v5277
      %5347 = vmatprep.subr.mxu0 0.0
      %5348 = vmatpush1.msra.mxu0 %v5278
      %5349 = vmatprep.subr.mxu0 0.0
      %5350 = vmatpush1.msra.mxu0 %v5279
      %5351 = vmatprep.subr.mxu0 0.0
      %5352 = vmatpush1.msra.mxu0 %v5280
      %5353 = vmatprep.subr.mxu0 0.0
      %5354 = vmatpush1.msra.mxu0 %v5281
      %5355 = vmatprep.subr.mxu0 0.0
      %5356 = vmatpush1.msra.mxu0 %v5282
      %5357 = vmatprep.subr.mxu0 0.0
      %5358 = vmatpush1.msra.mxu0 %v5283
      %5359 = vmatprep.subr.mxu0 0.0
      %5360 = vmatpush1.msra.mxu0 %v5284
      %5361 = vmatprep.subr.mxu0 0.0
      %5362 = vmatpush1.msra.mxu0 %v5285
      %5363 = vmatprep.subr.mxu0 0.0
      %5364 = vmatpush1.msra.mxu0 %v5286
      %5365 = vmatprep.subr.mxu0 0.0
      %5366 = vmatpush1.msra.mxu0 %v5287
      %5367 = vmatprep.subr.mxu0 0.0
      %5368 = vmatpush1.msra.mxu0 %v5288
      %5369 = vmatprep.subr.mxu0 0.0
      %5370 = vmatpush1.msra.mxu0 %v5289
      %5371 = vmatprep.subr.mxu0 0.0
      %5372 = vmatpush1.msra.mxu0 %v5290
      %5373 = vmatprep.subr.mxu0 0.0
      %5374 = vmatpush1.msra.mxu0 %v5291
      %5375 = vmatprep.subr.mxu0 0.0
      %5376 = vmatpush1.msra.mxu0 %v5292
      %5377 = vmatprep.subr.mxu0 0.0
      %5378 = vmatpush1.msra.mxu0 %v5293
      %5379 = vmatprep.subr.mxu0 0.0
      %5380 = vmatpush1.msra.mxu0 %v5294
      %5381 = vmatprep.subr.mxu0 0.0
      %5382 = vmatpush1.msra.mxu0 %v5295
      %5383 = vmatprep.subr.mxu0 0.0
      %5384 = vmatpush1.msra.mxu0 %v5296
      %5385 = vmatprep.subr.mxu0 0.0
      %5386 = vmatpush1.msra.mxu0 %v5297
      %5387 = vmatprep.subr.mxu0 0.0
      %5388 = vmatpush1.msra.mxu0 %v5298
      %5389 = vmatprep.subr.mxu0 0.0
      %5390 = vmatpush1.msra.mxu0 %v5299
      %5391 = vmatprep.subr.mxu0 0.0
      %5392 = vmatpush1.msra.mxu0 %v5300
      %5393 = vmatprep.subr.mxu0 0.0
      %5394 = vmatpush1.msra.mxu0 %v5301
      %5395 = vmatprep.subr.mxu0 0.0
      %5396 = vmatpush1.msra.mxu0 %v5302
      %5397 = vmatprep.subr.mxu0 0.0
      %5398 = vmatpush1.msra.mxu0 %v5303
      %5399 = vmatprep.subr.mxu0 0.0
      %5400 = vmatpush1.msra.mxu0 %v5304
      %5401 = vmatprep.subr.mxu0 0.0
      %5402 = vmatpush1.msra.mxu0 %v5305
      %5403 = vmatprep.mubr.f32.mxu0 %v5271
      %5404 = vmatmul.mubr.f32.gmra.mrb[0].mxu0 %v5270
      %v5405 = vpop.f32.mrb[0].mxu0
      %v5406 = vadd.f32 %v5338, %v5405
      %v5407 = vpop.f32.mrb[0].mxu0
      %5408 = vdwg.mxu0
      %5409 = vmatprep.subr.mxu0 0.0
      %5410 = vmatpush1.msra.mxu0 %v5306
      %5411 = vmatprep.subr.mxu0 0.0
      %5412 = vmatpush1.msra.mxu0 %v5307
      %5413 = vmatprep.subr.mxu0 0.0
      %5414 = vmatpush1.msra.mxu0 %v5308
      %5415 = vmatprep.subr.mxu0 0.0
      %5416 = vmatpush1.msra.mxu0 %v5309
      %5417 = vmatprep.subr.mxu0 0.0
      %5418 = vmatpush1.msra.mxu0 %v5310
      %5419 = vmatprep.subr.mxu0 0.0
      %5420 = vmatpush1.msra.mxu0 %v5311
      %5421 = vmatprep.subr.mxu0 0.0
      %5422 = vmatpush1.msra.mxu0 %v5312
      %5423 = vmatprep.subr.mxu0 0.0
      %5424 = vmatpush1.msra.mxu0 %v5313
      %5425 = vmatprep.subr.mxu0 0.0
      %5426 = vmatpush1.msra.mxu0 %v5314
      %5427 = vmatprep.subr.mxu0 0.0
      %5428 = vmatpush1.msra.mxu0 %v5315
      %5429 = vmatprep.subr.mxu0 0.0
      %5430 = vmatpush1.msra.mxu0 %v5316
      %5431 = vmatprep.subr.mxu0 0.0
      %5432 = vmatpush1.msra.mxu0 %v5317
      %5433 = vmatprep.subr.mxu0 0.0
      %5434 = vmatpush1.msra.mxu0 %v5318
      %5435 = vmatprep.subr.mxu0 0.0
      %5436 = vmatpush1.msra.mxu0 %v5319
      %5437 = vmatprep.subr.mxu0 0.0
      %5438 = vmatpush1.msra.mxu0 %v5320
      %5439 = vmatprep.subr.mxu0 0.0
      %5440 = vmatpush1.msra.mxu0 %v5321
      %5441 = vmatprep.subr.mxu0 0.0
      %5442 = vmatpush1.msra.mxu0 %v5322
      %5443 = vmatprep.subr.mxu0 0.0
      %5444 = vmatpush1.msra.mxu0 %v5323
      %5445 = vmatprep.subr.mxu0 0.0
      %5446 = vmatpush1.msra.mxu0 %v5324
      %5447 = vmatprep.subr.mxu0 0.0
      %5448 = vmatpush1.msra.mxu0 %v5325
      %5449 = vmatprep.subr.mxu0 0.0
      %5450 = vmatpush1.msra.mxu0 %v5326
      %5451 = vmatprep.subr.mxu0 0.0
      %5452 = vmatpush1.msra.mxu0 %v5327
      %5453 = vmatprep.subr.mxu0 0.0
      %5454 = vmatpush1.msra.mxu0 %v5328
      %5455 = vmatprep.subr.mxu0 0.0
      %5456 = vmatpush1.msra.mxu0 %v5329
      %5457 = vmatprep.subr.mxu0 0.0
      %5458 = vmatpush1.msra.mxu0 %v5330
      %5459 = vmatprep.subr.mxu0 0.0
      %5460 = vmatpush1.msra.mxu0 %v5331
      %5461 = vmatprep.subr.mxu0 0.0
      %5462 = vmatpush1.msra.mxu0 %v5332
      %5463 = vmatprep.subr.mxu0 0.0
      %5464 = vmatpush1.msra.mxu0 %v5333
      %5465 = vmatprep.subr.mxu0 0.0
      %5466 = vmatpush1.msra.mxu0 %v5334
      %5467 = vmatprep.subr.mxu0 0.0
      %5468 = vmatpush1.msra.mxu0 %v5335
      %5469 = vmatprep.subr.mxu0 0.0
      %5470 = vmatpush1.msra.mxu0 %v5336
      %5471 = vmatprep.subr.mxu0 0.0
      %5472 = vmatpush1.msra.mxu0 %v5337
      %5473 = vmatprep.mubr.f32.mxu0 %v5273
      %5474 = vmatmul.mubr.f32.gmra.mrb[0].mxu0 %v5272
      %v5475 = vpop.f32.mrb[0].mxu0
      %v5476 = vadd.f32 %v5406, %v5475
      %v5477 = vpop.f32.mrb[0].mxu0
      %5478 = vdwg.mxu0
      %v5479 = vld [vmem:[%s31] sm:$0xff]
      %v5480 = vld [vmem:[%s31 + $0x8] sm:$0xff]
      %v5481 = vld [vmem:[%s31 + $0x10] sm:$0xff]
      %v5482 = vld [vmem:[%s31 + $0x18] sm:$0xff]
      %v5483 = vld [vmem:[%s31 + $0x20] sm:$0xff]
      %v5484 = vld [vmem:[%s31 + $0x28] sm:$0xff]
      %v5485 = vld [vmem:[%s31 + $0x30] sm:$0xff]
      %v5486 = vld [vmem:[%s31 + $0x38] sm:$0xff]
      %v5487 = vld [vmem:[%s31 + $0x40] sm:$0xff]
      %v5488 = vld [vmem:[%s31 + $0x48] sm:$0xff]
      %v5489 = vld [vmem:[%s31 + $0x50] sm:$0xff]
      %v5490 = vld [vmem:[%s31 + $0x58] sm:$0xff]
      %v5491 = vld [vmem:[%s31 + $0x60] sm:$0xff]
      %v5492 = vld [vmem:[%s31 + $0x68] sm:$0xff]
      %v5493 = vld [vmem:[%s31 + $0x70] sm:$0xff]
      %v5494 = vld [vmem:[%s31 + $0x78] sm:$0xff]
      %v5495 = vld [vmem:[%s33] sm:$0xf]
      %v5512 = vunpack.c.l.b16 %v5479
      %v5513 = vunpack.c.h.b16 %v5479
      %v5514 = vunpack.c.l.b16 %v5480
      %v5515 = vunpack.c.h.b16 %v5480
      %v5516 = vunpack.c.l.b16 %v5481
      %v5517 = vunpack.c.h.b16 %v5481
      %v5518 = vunpack.c.l.b16 %v5482
      %v5519 = vunpack.c.h.b16 %v5482
      %v5520 = vunpack.c.l.b16 %v5483
      %v5521 = vunpack.c.h.b16 %v5483
      %v5522 = vunpack.c.l.b16 %v5484
      %v5523 = vunpack.c.h.b16 %v5484
      %v5524 = vunpack.c.l.b16 %v5485
      %v5525 = vunpack.c.h.b16 %v5485
      %v5526 = vunpack.c.l.b16 %v5486
      %v5527 = vunpack.c.h.b16 %v5486
      %v5528 = vunpack.c.l.b16 %v5487
      %v5529 = vunpack.c.h.b16 %v5487
      %v5530 = vunpack.c.l.b16 %v5488
      %v5531 = vunpack.c.h.b16 %v5488
      %v5532 = vunpack.c.l.b16 %v5489
      %v5533 = vunpack.c.h.b16 %v5489
      %v5534 = vunpack.c.l.b16 %v5490
      %v5535 = vunpack.c.h.b16 %v5490
      %v5536 = vunpack.c.l.b16 %v5491
      %v5537 = vunpack.c.h.b16 %v5491
      %v5538 = vunpack.c.l.b16 %v5492
      %v5539 = vunpack.c.h.b16 %v5492
      %v5540 = vunpack.c.l.b16 %v5493
      %v5541 = vunpack.c.h.b16 %v5493
      %v5542 = vunpack.c.l.b16 %v5494
      %v5543 = vunpack.c.h.b16 %v5494
      %v5544 = vpack.c.b16 %v5516, %v5512
      %v5545 = vpack.c.b16 %v5517, %v5513
      %v5546 = vpack.c.b16 %v5518, %v5514
      %v5547 = vpack.c.b16 %v5519, %v5515
      %v5548 = vpack.c.b16 %v5524, %v5520
      %v5549 = vpack.c.b16 %v5525, %v5521
      %v5550 = vpack.c.b16 %v5526, %v5522
      %v5551 = vpack.c.b16 %v5527, %v5523
      %v5552 = vpack.c.b16 %v5532, %v5528
      %v5553 = vpack.c.b16 %v5533, %v5529
      %v5554 = vpack.c.b16 %v5534, %v5530
      %v5555 = vpack.c.b16 %v5535, %v5531
      %v5556 = vpack.c.b16 %v5540, %v5536
      %v5557 = vpack.c.b16 %v5541, %v5537
      %v5558 = vpack.c.b16 %v5542, %v5538
      %v5559 = vpack.c.b16 %v5543, %v5539
      %v5577 = vlaneseq
      %v5578 = vshrl.u32 %v5577, 7
      %v5579 = vsub.s32 0, %v5578
      %v5580 = vrot.slane %v5495, %v5579
      %v5581 = vlaneseq
      %v5582 = vshrl.u32 %v5581, 7
      %v5583 = vsub.s32 1, %v5582
      %v5584 = vrot.slane %v5495, %v5583
      %v5585 = vlaneseq
      %v5586 = vshrl.u32 %v5585, 7
      %v5587 = vsub.s32 2, %v5586
      %v5588 = vrot.slane %v5495, %v5587
      %v5589 = vlaneseq
      %v5590 = vshrl.u32 %v5589, 7
      %v5591 = vsub.s32 3, %v5590
      %v5592 = vrot.slane %v5495, %v5591
      %5597 = vmatprep.subr.bf16.mxu0 %v5545
      %5598 = vmatpush1.bf16.msra.mxu0 %v5544
      %5599 = vmatprep.subr.bf16.mxu0 %v5549
      %5600 = vmatpush1.bf16.msra.mxu0 %v5548
      %5601 = vmatprep.subr.bf16.mxu0 %v5553
      %5602 = vmatpush1.bf16.msra.mxu0 %v5552
      %5603 = vmatprep.subr.bf16.mxu0 %v5557
      %5604 = vmatpush1.bf16.msra.mxu0 %v5556
      %5605 = vmatprep.subr.bf16.mxu0 0
      %5606 = vmatpush1.bf16.msra.mxu0 0
      %5607 = vmatprep.subr.bf16.mxu0 0
      %5608 = vmatpush1.bf16.msra.mxu0 0
      %5609 = vmatprep.subr.bf16.mxu0 0
      %5610 = vmatpush1.bf16.msra.mxu0 0
      %5611 = vmatprep.subr.bf16.mxu0 0
      %5612 = vmatpush1.bf16.msra.mxu0 0
      %5613 = vmatprep.subr.bf16.mxu0 0
      %5614 = vmatpush1.bf16.msra.mxu0 0
      %5615 = vmatprep.subr.bf16.mxu0 0
      %5616 = vmatpush1.bf16.msra.mxu0 0
      %5617 = vmatprep.subr.bf16.mxu0 0
      %5618 = vmatpush1.bf16.msra.mxu0 0
      %5619 = vmatprep.subr.bf16.mxu0 0
      %5620 = vmatpush1.bf16.msra.mxu0 0
      %5621 = vmatprep.subr.bf16.mxu0 0
      %5622 = vmatpush1.bf16.msra.mxu0 0
      %5623 = vmatprep.subr.bf16.mxu0 0
      %5624 = vmatpush1.bf16.msra.mxu0 0
      %5625 = vmatprep.subr.bf16.mxu0 0
      %5626 = vmatpush1.bf16.msra.mxu0 0
      %5627 = vmatprep.subr.bf16.mxu0 0
      %5628 = vmatpush1.bf16.msra.mxu0 0
      %5629 = vmatprep.mubr.bf16.mxu0 0
      %5630 = vmatmul.mubr.bf16.gmra.mrb[0].mxu0 %v2954
      %v5631 = vpop.f32.mrb[0].mxu0
      %v5632 = vadd.f32 %v5580, %v5631
      %v5633 = vpop.f32.mrb[0].mxu0
      %v5634 = vadd.f32 %v5584, %v5633
      %v5635 = vpop.f32.mrb[0].mxu0
      %v5636 = vpop.f32.mrb[0].mxu0
      %5637 = vdwg.mxu0
      %5638 = vmatprep.subr.bf16.mxu0 %v5547
      %5639 = vmatpush1.bf16.msra.mxu0 %v5546
      %5640 = vmatprep.subr.bf16.mxu0 %v5551
      %5641 = vmatpush1.bf16.msra.mxu0 %v5550
      %5642 = vmatprep.subr.bf16.mxu0 %v5555
      %5643 = vmatpush1.bf16.msra.mxu0 %v5554
      %5644 = vmatprep.subr.bf16.mxu0 %v5559
      %5645 = vmatpush1.bf16.msra.mxu0 %v5558
      %5646 = vmatprep.subr.bf16.mxu0 0
      %5647 = vmatpush1.bf16.msra.mxu0 0
      %5648 = vmatprep.subr.bf16.mxu0 0
      %5649 = vmatpush1.bf16.msra.mxu0 0
      %5650 = vmatprep.subr.bf16.mxu0 0
      %5651 = vmatpush1.bf16.msra.mxu0 0
      %5652 = vmatprep.subr.bf16.mxu0 0
      %5653 = vmatpush1.bf16.msra.mxu0 0
      %5654 = vmatprep.subr.bf16.mxu0 0
      %5655 = vmatpush1.bf16.msra.mxu0 0
      %5656 = vmatprep.subr.bf16.mxu0 0
      %5657 = vmatpush1.bf16.msra.mxu0 0
      %5658 = vmatprep.subr.bf16.mxu0 0
      %5659 = vmatpush1.bf16.msra.mxu0 0
      %5660 = vmatprep.subr.bf16.mxu0 0
      %5661 = vmatpush1.bf16.msra.mxu0 0
      %5662 = vmatprep.subr.bf16.mxu0 0
      %5663 = vmatpush1.bf16.msra.mxu0 0
      %5664 = vmatprep.subr.bf16.mxu0 0
      %5665 = vmatpush1.bf16.msra.mxu0 0
      %5666 = vmatprep.subr.bf16.mxu0 0
      %5667 = vmatpush1.bf16.msra.mxu0 0
      %5668 = vmatprep.subr.bf16.mxu0 0
      %5669 = vmatpush1.bf16.msra.mxu0 0
      %5670 = vmatprep.mubr.bf16.mxu0 0
      %5671 = vmatmul.mubr.bf16.gmra.mrb[0].mxu0 %v2954
      %v5672 = vpop.f32.mrb[0].mxu0
      %v5673 = vadd.f32 %v5588, %v5672
      %v5674 = vpop.f32.mrb[0].mxu0
      %v5675 = vadd.f32 %v5592, %v5674
      %v5676 = vpop.f32.mrb[0].mxu0
      %v5677 = vpop.f32.mrb[0].mxu0
      %5678 = vdwg.mxu0
      %v5679 = vld [vmem:[%s35] sm:$0xf]
      %v5681 = vlaneseq
      %v5682 = vshrl.u32 %v5681, 7
      %v5683 = vsub.s32 0, %v5682
      %v5684 = vrot.slane %v5679, %v5683
      %v5685 = vlaneseq
      %v5686 = vshrl.u32 %v5685, 7
      %v5687 = vsub.s32 1, %v5686
      %v5688 = vrot.slane %v5679, %v5687
      %v5689 = vlaneseq
      %v5690 = vshrl.u32 %v5689, 7
      %v5691 = vsub.s32 2, %v5690
      %v5692 = vrot.slane %v5679, %v5691
      %v5693 = vlaneseq
      %v5694 = vshrl.u32 %v5693, 7
      %v5695 = vsub.s32 3, %v5694
      %v5696 = vrot.slane %v5679, %v5695
      %v5701 = vmul.f32 %v5632, %v5684
      %v5702 = vmul.f32 %v5634, %v5688
      %v5703 = vmul.f32 %v5673, %v5692
      %v5704 = vmul.f32 %v5675, %v5696
      %v5705 = vld [vmem:[%s37] sm:$0xf]
      %v5707 = vlaneseq
      %v5708 = vshrl.u32 %v5707, 7
      %v5709 = vsub.s32 0, %v5708
      %v5710 = vrot.slane %v5705, %v5709
      %v5711 = vlaneseq
      %v5712 = vshrl.u32 %v5711, 7
      %v5713 = vsub.s32 1, %v5712
      %v5714 = vrot.slane %v5705, %v5713
      %v5715 = vlaneseq
      %v5716 = vshrl.u32 %v5715, 7
      %v5717 = vsub.s32 2, %v5716
      %v5718 = vrot.slane %v5705, %v5717
      %v5719 = vlaneseq
      %v5720 = vshrl.u32 %v5719, 7
      %v5721 = vsub.s32 3, %v5720
      %v5722 = vrot.slane %v5705, %v5721
      %v5727 = vadd.f32 %v5701, %v5710
      %v5728 = vadd.f32 %v5702, %v5714
      %v5729 = vadd.f32 %v5703, %v5718
      %v5730 = vadd.f32 %v5704, %v5722
      %v5731 = vmul.f32 %v5727, 0.5
      %v5732 = vmul.f32 %v5728, 0.5
      %v5733 = vmul.f32 %v5729, 0.5
      %v5734 = vmul.f32 %v5730, 0.5
      %v5735 = vmul.f32 %v5727, 0.044715
      %v5736 = vmul.f32 %v5728, 0.044715
      %v5737 = vmul.f32 %v5729, 0.044715
      %v5738 = vmul.f32 %v5730, 0.044715
      %v5739 = vmul.f32 %v5735, %v5727
      %v5740 = vmul.f32 %v5736, %v5728
      %v5741 = vmul.f32 %v5737, %v5729
      %v5742 = vmul.f32 %v5738, %v5730
      %v5743 = vmul.f32 %v5739, %v5727
      %v5744 = vmul.f32 %v5740, %v5728
      %v5745 = vmul.f32 %v5741, %v5729
      %v5746 = vmul.f32 %v5742, %v5730
      %v5747 = vadd.f32 %v5727, %v5743
      %v5748 = vadd.f32 %v5728, %v5744
      %v5749 = vadd.f32 %v5729, %v5745
      %v5750 = vadd.f32 %v5730, %v5746
      %v5751 = vmul.f32 %v5747, 0.7978846
      %v5752 = vmul.f32 %v5748, 0.7978846
      %v5753 = vmul.f32 %v5749, 0.7978846
      %v5754 = vmul.f32 %v5750, 0.7978846
      %v5755 = vtanh.pop %v5751
      %v5756 = vtanh.pop %v5752
      %v5757 = vtanh.pop %v5753
      %v5758 = vtanh.pop %v5754
      %v5759 = vadd.f32 %v5755, 1.0
      %v5760 = vadd.f32 %v5756, 1.0
      %v5761 = vadd.f32 %v5757, 1.0
      %v5762 = vadd.f32 %v5758, 1.0
      %v5763 = vmul.f32 %v5731, %v5759
      %v5764 = vmul.f32 %v5732, %v5760
      %v5765 = vmul.f32 %v5733, %v5761
      %v5766 = vmul.f32 %v5734, %v5762
      %v5767 = vpack.c.bf16 %v5763, %v5763
      %v5768 = vpack.c.bf16 %v5764, %v5764
      %v5769 = vpack.c.bf16 %v5765, %v5765
      %v5770 = vpack.c.bf16 %v5766, %v5766
      %v5771 = vld [vmem:[%s39] sm:$0xff]
      %v5772 = vld [vmem:[%s39 + $0x8] sm:$0xff]
      %v5773 = vld [vmem:[%s39 + $0x10] sm:$0xff]
      %v5774 = vld [vmem:[%s39 + $0x18] sm:$0xff]
      %v5775 = vld [vmem:[%s39 + $0x20] sm:$0xff]
      %v5776 = vld [vmem:[%s39 + $0x28] sm:$0xff]
      %v5777 = vld [vmem:[%s39 + $0x30] sm:$0xff]
      %v5778 = vld [vmem:[%s39 + $0x38] sm:$0xff]
      %v5779 = vld [vmem:[%s39 + $0x40] sm:$0xff]
      %v5780 = vld [vmem:[%s39 + $0x48] sm:$0xff]
      %v5781 = vld [vmem:[%s39 + $0x50] sm:$0xff]
      %v5782 = vld [vmem:[%s39 + $0x58] sm:$0xff]
      %v5783 = vld [vmem:[%s39 + $0x60] sm:$0xff]
      %v5784 = vld [vmem:[%s39 + $0x68] sm:$0xff]
      %v5785 = vld [vmem:[%s39 + $0x70] sm:$0xff]
      %v5786 = vld [vmem:[%s39 + $0x78] sm:$0xff]
      %v5787 = vld [vmem:[%s39 + $0x80] sm:$0xff]
      %v5788 = vld [vmem:[%s39 + $0x88] sm:$0xff]
      %v5789 = vld [vmem:[%s39 + $0x90] sm:$0xff]
      %v5790 = vld [vmem:[%s39 + $0x98] sm:$0xff]
      %v5791 = vld [vmem:[%s39 + $0xa0] sm:$0xff]
      %v5792 = vld [vmem:[%s39 + $0xa8] sm:$0xff]
      %v5793 = vld [vmem:[%s39 + $0xb0] sm:$0xff]
      %v5794 = vld [vmem:[%s39 + $0xb8] sm:$0xff]
      %v5795 = vld [vmem:[%s39 + $0xc0] sm:$0xff]
      %v5796 = vld [vmem:[%s39 + $0xc8] sm:$0xff]
      %v5797 = vld [vmem:[%s39 + $0xd0] sm:$0xff]
      %v5798 = vld [vmem:[%s39 + $0xd8] sm:$0xff]
      %v5799 = vld [vmem:[%s39 + $0xe0] sm:$0xff]
      %v5800 = vld [vmem:[%s39 + $0xe8] sm:$0xff]
      %v5801 = vld [vmem:[%s39 + $0xf0] sm:$0xff]
      %v5802 = vld [vmem:[%s39 + $0xf8] sm:$0xff]
      %v5803 = vld [vmem:[%s39 + $0x100] sm:$0xff]
      %v5804 = vld [vmem:[%s39 + $0x108] sm:$0xff]
      %v5805 = vld [vmem:[%s39 + $0x110] sm:$0xff]
      %v5806 = vld [vmem:[%s39 + $0x118] sm:$0xff]
      %v5807 = vld [vmem:[%s39 + $0x120] sm:$0xff]
      %v5808 = vld [vmem:[%s39 + $0x128] sm:$0xff]
      %v5809 = vld [vmem:[%s39 + $0x130] sm:$0xff]
      %v5810 = vld [vmem:[%s39 + $0x138] sm:$0xff]
      %v5811 = vld [vmem:[%s39 + $0x140] sm:$0xff]
      %v5812 = vld [vmem:[%s39 + $0x148] sm:$0xff]
      %v5813 = vld [vmem:[%s39 + $0x150] sm:$0xff]
      %v5814 = vld [vmem:[%s39 + $0x158] sm:$0xff]
      %v5815 = vld [vmem:[%s39 + $0x160] sm:$0xff]
      %v5816 = vld [vmem:[%s39 + $0x168] sm:$0xff]
      %v5817 = vld [vmem:[%s39 + $0x170] sm:$0xff]
      %v5818 = vld [vmem:[%s39 + $0x178] sm:$0xff]
      %v5819 = vld [vmem:[%s39 + $0x180] sm:$0xff]
      %v5820 = vld [vmem:[%s39 + $0x188] sm:$0xff]
      %v5821 = vld [vmem:[%s39 + $0x190] sm:$0xff]
      %v5822 = vld [vmem:[%s39 + $0x198] sm:$0xff]
      %v5823 = vld [vmem:[%s39 + $0x1a0] sm:$0xff]
      %v5824 = vld [vmem:[%s39 + $0x1a8] sm:$0xff]
      %v5825 = vld [vmem:[%s39 + $0x1b0] sm:$0xff]
      %v5826 = vld [vmem:[%s39 + $0x1b8] sm:$0xff]
      %v5827 = vld [vmem:[%s39 + $0x1c0] sm:$0xff]
      %v5828 = vld [vmem:[%s39 + $0x1c8] sm:$0xff]
      %v5829 = vld [vmem:[%s39 + $0x1d0] sm:$0xff]
      %v5830 = vld [vmem:[%s39 + $0x1d8] sm:$0xff]
      %v5831 = vld [vmem:[%s39 + $0x1e0] sm:$0xff]
      %v5832 = vld [vmem:[%s39 + $0x1e8] sm:$0xff]
      %v5833 = vld [vmem:[%s39 + $0x1f0] sm:$0xff]
      %v5834 = vld [vmem:[%s39 + $0x1f8] sm:$0xff]
      %v5835 = vld [vmem:[%s41] sm:$0x3]
      %v5900 = vunpack.c.l.b16 %v5771
      %v5901 = vunpack.c.h.b16 %v5771
      %v5902 = vunpack.c.l.b16 %v5772
      %v5903 = vunpack.c.h.b16 %v5772
      %v5904 = vunpack.c.l.b16 %v5773
      %v5905 = vunpack.c.h.b16 %v5773
      %v5906 = vunpack.c.l.b16 %v5774
      %v5907 = vunpack.c.h.b16 %v5774
      %v5908 = vunpack.c.l.b16 %v5775
      %v5909 = vunpack.c.h.b16 %v5775
      %v5910 = vunpack.c.l.b16 %v5776
      %v5911 = vunpack.c.h.b16 %v5776
      %v5912 = vunpack.c.l.b16 %v5777
      %v5913 = vunpack.c.h.b16 %v5777
      %v5914 = vunpack.c.l.b16 %v5778
      %v5915 = vunpack.c.h.b16 %v5778
      %v5916 = vunpack.c.l.b16 %v5779
      %v5917 = vunpack.c.h.b16 %v5779
      %v5918 = vunpack.c.l.b16 %v5780
      %v5919 = vunpack.c.h.b16 %v5780
      %v5920 = vunpack.c.l.b16 %v5781
      %v5921 = vunpack.c.h.b16 %v5781
      %v5922 = vunpack.c.l.b16 %v5782
      %v5923 = vunpack.c.h.b16 %v5782
      %v5924 = vunpack.c.l.b16 %v5783
      %v5925 = vunpack.c.h.b16 %v5783
      %v5926 = vunpack.c.l.b16 %v5784
      %v5927 = vunpack.c.h.b16 %v5784
      %v5928 = vunpack.c.l.b16 %v5785
      %v5929 = vunpack.c.h.b16 %v5785
      %v5930 = vunpack.c.l.b16 %v5786
      %v5931 = vunpack.c.h.b16 %v5786
      %v5932 = vunpack.c.l.b16 %v5787
      %v5933 = vunpack.c.h.b16 %v5787
      %v5934 = vunpack.c.l.b16 %v5788
      %v5935 = vunpack.c.h.b16 %v5788
      %v5936 = vunpack.c.l.b16 %v5789
      %v5937 = vunpack.c.h.b16 %v5789
      %v5938 = vunpack.c.l.b16 %v5790
      %v5939 = vunpack.c.h.b16 %v5790
      %v5940 = vunpack.c.l.b16 %v5791
      %v5941 = vunpack.c.h.b16 %v5791
      %v5942 = vunpack.c.l.b16 %v5792
      %v5943 = vunpack.c.h.b16 %v5792
      %v5944 = vunpack.c.l.b16 %v5793
      %v5945 = vunpack.c.h.b16 %v5793
      %v5946 = vunpack.c.l.b16 %v5794
      %v5947 = vunpack.c.h.b16 %v5794
      %v5948 = vunpack.c.l.b16 %v5795
      %v5949 = vunpack.c.h.b16 %v5795
      %v5950 = vunpack.c.l.b16 %v5796
      %v5951 = vunpack.c.h.b16 %v5796
      %v5952 = vunpack.c.l.b16 %v5797
      %v5953 = vunpack.c.h.b16 %v5797
      %v5954 = vunpack.c.l.b16 %v5798
      %v5955 = vunpack.c.h.b16 %v5798
      %v5956 = vunpack.c.l.b16 %v5799
      %v5957 = vunpack.c.h.b16 %v5799
      %v5958 = vunpack.c.l.b16 %v5800
      %v5959 = vunpack.c.h.b16 %v5800
      %v5960 = vunpack.c.l.b16 %v5801
      %v5961 = vunpack.c.h.b16 %v5801
      %v5962 = vunpack.c.l.b16 %v5802
      %v5963 = vunpack.c.h.b16 %v5802
      %v5964 = vunpack.c.l.b16 %v5803
      %v5965 = vunpack.c.h.b16 %v5803
      %v5966 = vunpack.c.l.b16 %v5804
      %v5967 = vunpack.c.h.b16 %v5804
      %v5968 = vunpack.c.l.b16 %v5805
      %v5969 = vunpack.c.h.b16 %v5805
      %v5970 = vunpack.c.l.b16 %v5806
      %v5971 = vunpack.c.h.b16 %v5806
      %v5972 = vunpack.c.l.b16 %v5807
      %v5973 = vunpack.c.h.b16 %v5807
      %v5974 = vunpack.c.l.b16 %v5808
      %v5975 = vunpack.c.h.b16 %v5808
      %v5976 = vunpack.c.l.b16 %v5809
      %v5977 = vunpack.c.h.b16 %v5809
      %v5978 = vunpack.c.l.b16 %v5810
      %v5979 = vunpack.c.h.b16 %v5810
      %v5980 = vunpack.c.l.b16 %v5811
      %v5981 = vunpack.c.h.b16 %v5811
      %v5982 = vunpack.c.l.b16 %v5812
      %v5983 = vunpack.c.h.b16 %v5812
      %v5984 = vunpack.c.l.b16 %v5813
      %v5985 = vunpack.c.h.b16 %v5813
      %v5986 = vunpack.c.l.b16 %v5814
      %v5987 = vunpack.c.h.b16 %v5814
      %v5988 = vunpack.c.l.b16 %v5815
      %v5989 = vunpack.c.h.b16 %v5815
      %v5990 = vunpack.c.l.b16 %v5816
      %v5991 = vunpack.c.h.b16 %v5816
      %v5992 = vunpack.c.l.b16 %v5817
      %v5993 = vunpack.c.h.b16 %v5817
      %v5994 = vunpack.c.l.b16 %v5818
      %v5995 = vunpack.c.h.b16 %v5818
      %v5996 = vunpack.c.l.b16 %v5819
      %v5997 = vunpack.c.h.b16 %v5819
      %v5998 = vunpack.c.l.b16 %v5820
      %v5999 = vunpack.c.h.b16 %v5820
      %v6000 = vunpack.c.l.b16 %v5821
      %v6001 = vunpack.c.h.b16 %v5821
      %v6002 = vunpack.c.l.b16 %v5822
      %v6003 = vunpack.c.h.b16 %v5822
      %v6004 = vunpack.c.l.b16 %v5823
      %v6005 = vunpack.c.h.b16 %v5823
      %v6006 = vunpack.c.l.b16 %v5824
      %v6007 = vunpack.c.h.b16 %v5824
      %v6008 = vunpack.c.l.b16 %v5825
      %v6009 = vunpack.c.h.b16 %v5825
      %v6010 = vunpack.c.l.b16 %v5826
      %v6011 = vunpack.c.h.b16 %v5826
      %v6012 = vunpack.c.l.b16 %v5827
      %v6013 = vunpack.c.h.b16 %v5827
      %v6014 = vunpack.c.l.b16 %v5828
      %v6015 = vunpack.c.h.b16 %v5828
      %v6016 = vunpack.c.l.b16 %v5829
      %v6017 = vunpack.c.h.b16 %v5829
      %v6018 = vunpack.c.l.b16 %v5830
      %v6019 = vunpack.c.h.b16 %v5830
      %v6020 = vunpack.c.l.b16 %v5831
      %v6021 = vunpack.c.h.b16 %v5831
      %v6022 = vunpack.c.l.b16 %v5832
      %v6023 = vunpack.c.h.b16 %v5832
      %v6024 = vunpack.c.l.b16 %v5833
      %v6025 = vunpack.c.h.b16 %v5833
      %v6026 = vunpack.c.l.b16 %v5834
      %v6027 = vunpack.c.h.b16 %v5834
      %v6028 = vpack.c.b16 %v5902, %v5900
      %v6029 = vpack.c.b16 %v5903, %v5901
      %v6030 = vpack.c.b16 %v5906, %v5904
      %v6031 = vpack.c.b16 %v5907, %v5905
      %v6032 = vpack.c.b16 %v5910, %v5908
      %v6033 = vpack.c.b16 %v5911, %v5909
      %v6034 = vpack.c.b16 %v5914, %v5912
      %v6035 = vpack.c.b16 %v5915, %v5913
      %v6036 = vpack.c.b16 %v5918, %v5916
      %v6037 = vpack.c.b16 %v5919, %v5917
      %v6038 = vpack.c.b16 %v5922, %v5920
      %v6039 = vpack.c.b16 %v5923, %v5921
      %v6040 = vpack.c.b16 %v5926, %v5924
      %v6041 = vpack.c.b16 %v5927, %v5925
      %v6042 = vpack.c.b16 %v5930, %v5928
      %v6043 = vpack.c.b16 %v5931, %v5929
      %v6044 = vpack.c.b16 %v5934, %v5932
      %v6045 = vpack.c.b16 %v5935, %v5933
      %v6046 = vpack.c.b16 %v5938, %v5936
      %v6047 = vpack.c.b16 %v5939, %v5937
      %v6048 = vpack.c.b16 %v5942, %v5940
      %v6049 = vpack.c.b16 %v5943, %v5941
      %v6050 = vpack.c.b16 %v5946, %v5944
      %v6051 = vpack.c.b16 %v5947, %v5945
      %v6052 = vpack.c.b16 %v5950, %v5948
      %v6053 = vpack.c.b16 %v5951, %v5949
      %v6054 = vpack.c.b16 %v5954, %v5952
      %v6055 = vpack.c.b16 %v5955, %v5953
      %v6056 = vpack.c.b16 %v5958, %v5956
      %v6057 = vpack.c.b16 %v5959, %v5957
      %v6058 = vpack.c.b16 %v5962, %v5960
      %v6059 = vpack.c.b16 %v5963, %v5961
      %v6060 = vpack.c.b16 %v5966, %v5964
      %v6061 = vpack.c.b16 %v5967, %v5965
      %v6062 = vpack.c.b16 %v5970, %v5968
      %v6063 = vpack.c.b16 %v5971, %v5969
      %v6064 = vpack.c.b16 %v5974, %v5972
      %v6065 = vpack.c.b16 %v5975, %v5973
      %v6066 = vpack.c.b16 %v5978, %v5976
      %v6067 = vpack.c.b16 %v5979, %v5977
      %v6068 = vpack.c.b16 %v5982, %v5980
      %v6069 = vpack.c.b16 %v5983, %v5981
      %v6070 = vpack.c.b16 %v5986, %v5984
      %v6071 = vpack.c.b16 %v5987, %v5985
      %v6072 = vpack.c.b16 %v5990, %v5988
      %v6073 = vpack.c.b16 %v5991, %v5989
      %v6074 = vpack.c.b16 %v5994, %v5992
      %v6075 = vpack.c.b16 %v5995, %v5993
      %v6076 = vpack.c.b16 %v5998, %v5996
      %v6077 = vpack.c.b16 %v5999, %v5997
      %v6078 = vpack.c.b16 %v6002, %v6000
      %v6079 = vpack.c.b16 %v6003, %v6001
      %v6080 = vpack.c.b16 %v6006, %v6004
      %v6081 = vpack.c.b16 %v6007, %v6005
      %v6082 = vpack.c.b16 %v6010, %v6008
      %v6083 = vpack.c.b16 %v6011, %v6009
      %v6084 = vpack.c.b16 %v6014, %v6012
      %v6085 = vpack.c.b16 %v6015, %v6013
      %v6086 = vpack.c.b16 %v6018, %v6016
      %v6087 = vpack.c.b16 %v6019, %v6017
      %v6088 = vpack.c.b16 %v6022, %v6020
      %v6089 = vpack.c.b16 %v6023, %v6021
      %v6090 = vpack.c.b16 %v6026, %v6024
      %v6091 = vpack.c.b16 %v6027, %v6025
      %v6157 = vlaneseq
      %v6158 = vshrl.u32 %v6157, 7
      %v6159 = vsub.s32 0, %v6158
      %v6160 = vrot.slane %v5835, %v6159
      %v6161 = vlaneseq
      %v6162 = vshrl.u32 %v6161, 7
      %v6163 = vsub.s32 1, %v6162
      %v6164 = vrot.slane %v5835, %v6163
      %6167 = vmatprep.subr.bf16.mxu0 %v6029
      %6168 = vmatpush1.bf16.msra.mxu0 %v6028
      %6169 = vmatprep.subr.bf16.mxu0 %v6031
      %6170 = vmatpush1.bf16.msra.mxu0 %v6030
      %6171 = vmatprep.subr.bf16.mxu0 %v6033
      %6172 = vmatpush1.bf16.msra.mxu0 %v6032
      %6173 = vmatprep.subr.bf16.mxu0 %v6035
      %6174 = vmatpush1.bf16.msra.mxu0 %v6034
      %6175 = vmatprep.subr.bf16.mxu0 %v6037
      %6176 = vmatpush1.bf16.msra.mxu0 %v6036
      %6177 = vmatprep.subr.bf16.mxu0 %v6039
      %6178 = vmatpush1.bf16.msra.mxu0 %v6038
      %6179 = vmatprep.subr.bf16.mxu0 %v6041
      %6180 = vmatpush1.bf16.msra.mxu0 %v6040
      %6181 = vmatprep.subr.bf16.mxu0 %v6043
      %6182 = vmatpush1.bf16.msra.mxu0 %v6042
      %6183 = vmatprep.subr.bf16.mxu0 %v6045
      %6184 = vmatpush1.bf16.msra.mxu0 %v6044
      %6185 = vmatprep.subr.bf16.mxu0 %v6047
      %6186 = vmatpush1.bf16.msra.mxu0 %v6046
      %6187 = vmatprep.subr.bf16.mxu0 %v6049
      %6188 = vmatpush1.bf16.msra.mxu0 %v6048
      %6189 = vmatprep.subr.bf16.mxu0 %v6051
      %6190 = vmatpush1.bf16.msra.mxu0 %v6050
      %6191 = vmatprep.subr.bf16.mxu0 %v6053
      %6192 = vmatpush1.bf16.msra.mxu0 %v6052
      %6193 = vmatprep.subr.bf16.mxu0 %v6055
      %6194 = vmatpush1.bf16.msra.mxu0 %v6054
      %6195 = vmatprep.subr.bf16.mxu0 %v6057
      %6196 = vmatpush1.bf16.msra.mxu0 %v6056
      %6197 = vmatprep.subr.bf16.mxu0 %v6059
      %6198 = vmatpush1.bf16.msra.mxu0 %v6058
      %6199 = vmatprep.mubr.bf16.mxu0 %v5768
      %6200 = vmatmul.mubr.bf16.gmra.mrb[0].mxu0 %v5767
      %v6201 = vpop.f32.mrb[0].mxu0
      %v6202 = vadd.f32 %v6160, %v6201
      %v6203 = vpop.f32.mrb[0].mxu0
      %v6204 = vadd.f32 %v6164, %v6203
      %v6205 = vpop.f32.mrb[0].mxu0
      %v6206 = vpop.f32.mrb[0].mxu0
      %6207 = vdwg.mxu0
      %6208 = vmatprep.subr.bf16.mxu0 %v6061
      %6209 = vmatpush1.bf16.msra.mxu0 %v6060
      %6210 = vmatprep.subr.bf16.mxu0 %v6063
      %6211 = vmatpush1.bf16.msra.mxu0 %v6062
      %6212 = vmatprep.subr.bf16.mxu0 %v6065
      %6213 = vmatpush1.bf16.msra.mxu0 %v6064
      %6214 = vmatprep.subr.bf16.mxu0 %v6067
      %6215 = vmatpush1.bf16.msra.mxu0 %v6066
      %6216 = vmatprep.subr.bf16.mxu0 %v6069
      %6217 = vmatpush1.bf16.msra.mxu0 %v6068
      %6218 = vmatprep.subr.bf16.mxu0 %v6071
      %6219 = vmatpush1.bf16.msra.mxu0 %v6070
      %6220 = vmatprep.subr.bf16.mxu0 %v6073
      %6221 = vmatpush1.bf16.msra.mxu0 %v6072
      %6222 = vmatprep.subr.bf16.mxu0 %v6075
      %6223 = vmatpush1.bf16.msra.mxu0 %v6074
      %6224 = vmatprep.subr.bf16.mxu0 %v6077
      %6225 = vmatpush1.bf16.msra.mxu0 %v6076
      %6226 = vmatprep.subr.bf16.mxu0 %v6079
      %6227 = vmatpush1.bf16.msra.mxu0 %v6078
      %6228 = vmatprep.subr.bf16.mxu0 %v6081
      %6229 = vmatpush1.bf16.msra.mxu0 %v6080
      %6230 = vmatprep.subr.bf16.mxu0 %v6083
      %6231 = vmatpush1.bf16.msra.mxu0 %v6082
      %6232 = vmatprep.subr.bf16.mxu0 %v6085
      %6233 = vmatpush1.bf16.msra.mxu0 %v6084
      %6234 = vmatprep.subr.bf16.mxu0 %v6087
      %6235 = vmatpush1.bf16.msra.mxu0 %v6086
      %6236 = vmatprep.subr.bf16.mxu0 %v6089
      %6237 = vmatpush1.bf16.msra.mxu0 %v6088
      %6238 = vmatprep.subr.bf16.mxu0 %v6091
      %6239 = vmatpush1.bf16.msra.mxu0 %v6090
      %6240 = vmatprep.mubr.bf16.mxu0 %v5770
      %6241 = vmatmul.mubr.bf16.gmra.mrb[0].mxu0 %v5769
      %v6242 = vpop.f32.mrb[0].mxu0
      %v6243 = vadd.f32 %v6202, %v6242
      %v6244 = vpop.f32.mrb[0].mxu0
      %v6245 = vadd.f32 %v6204, %v6244
      %v6246 = vpop.f32.mrb[0].mxu0
      %v6247 = vpop.f32.mrb[0].mxu0
      %6248 = vdwg.mxu0
      %v6249 = vld [vmem:[%s43] sm:$0x3]
      %v6251 = vlaneseq
      %v6252 = vshrl.u32 %v6251, 7
      %v6253 = vsub.s32 0, %v6252
      %v6254 = vrot.slane %v6249, %v6253
      %v6255 = vlaneseq
      %v6256 = vshrl.u32 %v6255, 7
      %v6257 = vsub.s32 1, %v6256
      %v6258 = vrot.slane %v6249, %v6257
      %v6261 = vmul.f32 %v6243, %v6254
      %v6262 = vmul.f32 %v6245, %v6258
      %v6263 = vld [vmem:[%s45] sm:$0x3]
      %v6265 = vlaneseq
      %v6266 = vshrl.u32 %v6265, 7
      %v6267 = vsub.s32 0, %v6266
      %v6268 = vrot.slane %v6263, %v6267
      %v6269 = vlaneseq
      %v6270 = vshrl.u32 %v6269, 7
      %v6271 = vsub.s32 1, %v6270
      %v6272 = vrot.slane %v6263, %v6271
      %v6275 = vadd.f32 %v6261, %v6268
      %v6276 = vadd.f32 %v6262, %v6272
      %v6277 = vmul.f32 %v6275, 0.5
      %v6278 = vmul.f32 %v6276, 0.5
      %v6279 = vmul.f32 %v6275, 0.044715
      %v6280 = vmul.f32 %v6276, 0.044715
      %v6281 = vmul.f32 %v6279, %v6275
      %v6282 = vmul.f32 %v6280, %v6276
      %v6283 = vmul.f32 %v6281, %v6275
      %v6284 = vmul.f32 %v6282, %v6276
      %v6285 = vadd.f32 %v6275, %v6283
      %v6286 = vadd.f32 %v6276, %v6284
      %v6287 = vmul.f32 %v6285, 0.7978846
      %v6288 = vmul.f32 %v6286, 0.7978846
      %v6289 = vtanh.pop %v6287
      %v6290 = vtanh.pop %v6288
      %v6291 = vadd.f32 %v6289, 1.0
      %v6292 = vadd.f32 %v6290, 1.0
      %v6293 = vmul.f32 %v6277, %v6291
      %v6294 = vmul.f32 %v6278, %v6292
      %v6295 = vld [vmem:[%s47] sm:$0xff]
      %v6296 = vld [vmem:[%s47 + $0x8] sm:$0xff]
      %v6297 = vld [vmem:[%s47 + $0x10] sm:$0xff]
      %v6298 = vld [vmem:[%s47 + $0x18] sm:$0xff]
      %v6299 = vld [vmem:[%s47 + $0x20] sm:$0xff]
      %v6300 = vld [vmem:[%s47 + $0x28] sm:$0xff]
      %v6301 = vld [vmem:[%s47 + $0x30] sm:$0xff]
      %v6302 = vld [vmem:[%s47 + $0x38] sm:$0xff]
      %v6303 = vld [vmem:[%s47 + $0x40] sm:$0xff]
      %v6304 = vld [vmem:[%s47 + $0x48] sm:$0xff]
      %v6305 = vld [vmem:[%s47 + $0x50] sm:$0xff]
      %v6306 = vld [vmem:[%s47 + $0x58] sm:$0xff]
      %v6307 = vld [vmem:[%s47 + $0x60] sm:$0xff]
      %v6308 = vld [vmem:[%s47 + $0x68] sm:$0xff]
      %v6309 = vld [vmem:[%s47 + $0x70] sm:$0xff]
      %v6310 = vld [vmem:[%s47 + $0x78] sm:$0xff]
      %v6311 = vld [vmem:[%s47 + $0x80] sm:$0xff]
      %v6312 = vld [vmem:[%s47 + $0x88] sm:$0xff]
      %v6313 = vld [vmem:[%s47 + $0x90] sm:$0xff]
      %v6314 = vld [vmem:[%s47 + $0x98] sm:$0xff]
      %v6315 = vld [vmem:[%s47 + $0xa0] sm:$0xff]
      %v6316 = vld [vmem:[%s47 + $0xa8] sm:$0xff]
      %v6317 = vld [vmem:[%s47 + $0xb0] sm:$0xff]
      %v6318 = vld [vmem:[%s47 + $0xb8] sm:$0xff]
      %v6319 = vld [vmem:[%s47 + $0xc0] sm:$0xff]
      %v6320 = vld [vmem:[%s47 + $0xc8] sm:$0xff]
      %v6321 = vld [vmem:[%s47 + $0xd0] sm:$0xff]
      %v6322 = vld [vmem:[%s47 + $0xd8] sm:$0xff]
      %v6323 = vld [vmem:[%s47 + $0xe0] sm:$0xff]
      %v6324 = vld [vmem:[%s47 + $0xe8] sm:$0xff]
      %v6325 = vld [vmem:[%s47 + $0xf0] sm:$0xff]
      %v6326 = vld [vmem:[%s47 + $0xf8] sm:$0xff]
      %v6327 = vld [vmem:[%s49] sm:$0x1]
      %6328 = vmatprep.subr.mxu0 0.0
      %6329 = vmatpush1.msra.mxu0 %v6295
      %6330 = vmatprep.subr.mxu0 0.0
      %6331 = vmatpush1.msra.mxu0 %v6296
      %6332 = vmatprep.subr.mxu0 0.0
      %6333 = vmatpush1.msra.mxu0 %v6297
      %6334 = vmatprep.subr.mxu0 0.0
      %6335 = vmatpush1.msra.mxu0 %v6298
      %6336 = vmatprep.subr.mxu0 0.0
      %6337 = vmatpush1.msra.mxu0 %v6299
      %6338 = vmatprep.subr.mxu0 0.0
      %6339 = vmatpush1.msra.mxu0 %v6300
      %6340 = vmatprep.subr.mxu0 0.0
      %6341 = vmatpush1.msra.mxu0 %v6301
      %6342 = vmatprep.subr.mxu0 0.0
      %6343 = vmatpush1.msra.mxu0 %v6302
      %6344 = vmatprep.subr.mxu0 0.0
      %6345 = vmatpush1.msra.mxu0 %v6303
      %6346 = vmatprep.subr.mxu0 0.0
      %6347 = vmatpush1.msra.mxu0 %v6304
      %6348 = vmatprep.subr.mxu0 0.0
      %6349 = vmatpush1.msra.mxu0 %v6305
      %6350 = vmatprep.subr.mxu0 0.0
      %6351 = vmatpush1.msra.mxu0 %v6306
      %6352 = vmatprep.subr.mxu0 0.0
      %6353 = vmatpush1.msra.mxu0 %v6307
      %6354 = vmatprep.subr.mxu0 0.0
      %6355 = vmatpush1.msra.mxu0 %v6308
      %6356 = vmatprep.subr.mxu0 0.0
      %6357 = vmatpush1.msra.mxu0 %v6309
      %6358 = vmatprep.subr.mxu0 0.0
      %6359 = vmatpush1.msra.mxu0 %v6310
      %6360 = vmatprep.subr.mxu0 0.0
      %6361 = vmatpush1.msra.mxu0 %v6311
      %6362 = vmatprep.subr.mxu0 0.0
      %6363 = vmatpush1.msra.mxu0 %v6312
      %6364 = vmatprep.subr.mxu0 0.0
      %6365 = vmatpush1.msra.mxu0 %v6313
      %6366 = vmatprep.subr.mxu0 0.0
      %6367 = vmatpush1.msra.mxu0 %v6314
      %6368 = vmatprep.subr.mxu0 0.0
      %6369 = vmatpush1.msra.mxu0 %v6315
      %6370 = vmatprep.subr.mxu0 0.0
      %6371 = vmatpush1.msra.mxu0 %v6316
      %6372 = vmatprep.subr.mxu0 0.0
      %6373 = vmatpush1.msra.mxu0 %v6317
      %6374 = vmatprep.subr.mxu0 0.0
      %6375 = vmatpush1.msra.mxu0 %v6318
      %6376 = vmatprep.subr.mxu0 0.0
      %6377 = vmatpush1.msra.mxu0 %v6319
      %6378 = vmatprep.subr.mxu0 0.0
      %6379 = vmatpush1.msra.mxu0 %v6320
      %6380 = vmatprep.subr.mxu0 0.0
      %6381 = vmatpush1.msra.mxu0 %v6321
      %6382 = vmatprep.subr.mxu0 0.0
      %6383 = vmatpush1.msra.mxu0 %v6322
      %6384 = vmatprep.subr.mxu0 0.0
      %6385 = vmatpush1.msra.mxu0 %v6323
      %6386 = vmatprep.subr.mxu0 0.0
      %6387 = vmatpush1.msra.mxu0 %v6324
      %6388 = vmatprep.subr.mxu0 0.0
      %6389 = vmatpush1.msra.mxu0 %v6325
      %6390 = vmatprep.subr.mxu0 0.0
      %6391 = vmatpush1.msra.mxu0 %v6326
      %6392 = vmatprep.mubr.f32.mxu0 %v6294
      %6393 = vmatmul.mubr.f32.gmra.mrb[0].mxu0 %v6293
      %v6394 = vpop.f32.mrb[0].mxu0
      %v6395 = vadd.f32 %v6327, %v6394
      %v6396 = vpop.f32.mrb[0].mxu0
      %6397 = vdwg.mxu0
      %v6398 = vld [vmem:[%s51] sm:$0xff]
      %v6399 = vld [vmem:[%s51 + $0x8] sm:$0xff]
      %v6400 = vld [vmem:[%s51 + $0x10] sm:$0xff]
      %v6401 = vld [vmem:[%s51 + $0x18] sm:$0xff]
      %v6402 = vld [vmem:[%s51 + $0x20] sm:$0xff]
      %v6403 = vld [vmem:[%s51 + $0x28] sm:$0xff]
      %v6404 = vld [vmem:[%s51 + $0x30] sm:$0xff]
      %v6405 = vld [vmem:[%s51 + $0x38] sm:$0xff]
      %v6406 = vld [vmem:[%s53] sm:$0x3]
      %v6415 = vunpack.c.l.b16 %v6398
      %v6416 = vunpack.c.h.b16 %v6398
      %v6417 = vunpack.c.l.b16 %v6399
      %v6418 = vunpack.c.h.b16 %v6399
      %v6419 = vunpack.c.l.b16 %v6400
      %v6420 = vunpack.c.h.b16 %v6400
      %v6421 = vunpack.c.l.b16 %v6401
      %v6422 = vunpack.c.h.b16 %v6401
      %v6423 = vunpack.c.l.b16 %v6402
      %v6424 = vunpack.c.h.b16 %v6402
      %v6425 = vunpack.c.l.b16 %v6403
      %v6426 = vunpack.c.h.b16 %v6403
      %v6427 = vunpack.c.l.b16 %v6404
      %v6428 = vunpack.c.h.b16 %v6404
      %v6429 = vunpack.c.l.b16 %v6405
      %v6430 = vunpack.c.h.b16 %v6405
      %v6431 = vpack.c.b16 %v6417, %v6415
      %v6432 = vpack.c.b16 %v6418, %v6416
      %v6433 = vpack.c.b16 %v6421, %v6419
      %v6434 = vpack.c.b16 %v6422, %v6420
      %v6435 = vpack.c.b16 %v6425, %v6423
      %v6436 = vpack.c.b16 %v6426, %v6424
      %v6437 = vpack.c.b16 %v6429, %v6427
      %v6438 = vpack.c.b16 %v6430, %v6428
      %v6448 = vlaneseq
      %v6449 = vshrl.u32 %v6448, 7
      %v6450 = vsub.s32 0, %v6449
      %v6451 = vrot.slane %v6406, %v6450
      %v6452 = vlaneseq
      %v6453 = vshrl.u32 %v6452, 7
      %v6454 = vsub.s32 1, %v6453
      %v6455 = vrot.slane %v6406, %v6454
      %6458 = vmatprep.subr.bf16.mxu0 %v6432
      %6459 = vmatpush1.bf16.msra.mxu0 %v6431
      %6460 = vmatprep.subr.bf16.mxu0 %v6434
      %6461 = vmatpush1.bf16.msra.mxu0 %v6433
      %6462 = vmatprep.subr.bf16.mxu0 %v6436
      %6463 = vmatpush1.bf16.msra.mxu0 %v6435
      %6464 = vmatprep.subr.bf16.mxu0 %v6438
      %6465 = vmatpush1.bf16.msra.mxu0 %v6437
      %6466 = vmatprep.subr.bf16.mxu0 0
      %6467 = vmatpush1.bf16.msra.mxu0 0
      %6468 = vmatprep.subr.bf16.mxu0 0
      %6469 = vmatpush1.bf16.msra.mxu0 0
      %6470 = vmatprep.subr.bf16.mxu0 0
      %6471 = vmatpush1.bf16.msra.mxu0 0
      %6472 = vmatprep.subr.bf16.mxu0 0
      %6473 = vmatpush1.bf16.msra.mxu0 0
      %6474 = vmatprep.subr.bf16.mxu0 0
      %6475 = vmatpush1.bf16.msra.mxu0 0
      %6476 = vmatprep.subr.bf16.mxu0 0
      %6477 = vmatpush1.bf16.msra.mxu0 0
      %6478 = vmatprep.subr.bf16.mxu0 0
      %6479 = vmatpush1.bf16.msra.mxu0 0
      %6480 = vmatprep.subr.bf16.mxu0 0
      %6481 = vmatpush1.bf16.msra.mxu0 0
      %6482 = vmatprep.subr.bf16.mxu0 0
      %6483 = vmatpush1.bf16.msra.mxu0 0
      %6484 = vmatprep.subr.bf16.mxu0 0
      %6485 = vmatpush1.bf16.msra.mxu0 0
      %6486 = vmatprep.subr.bf16.mxu0 0
      %6487 = vmatpush1.bf16.msra.mxu0 0
      %6488 = vmatprep.subr.bf16.mxu0 0
      %6489 = vmatpush1.bf16.msra.mxu0 0
      %6490 = vmatprep.mubr.bf16.mxu0 0
      %6491 = vmatmul.mubr.bf16.gmra.mrb[0].mxu0 %v2954
      %v6492 = vpop.f32.mrb[0].mxu0
      %v6493 = vadd.f32 %v6451, %v6492
      %v6494 = vpop.f32.mrb[0].mxu0
      %v6495 = vadd.f32 %v6455, %v6494
      %v6496 = vpop.f32.mrb[0].mxu0
      %v6497 = vpop.f32.mrb[0].mxu0
      %6498 = vdwg.mxu0
      %v6499 = vmul.f32 %v6493, 0.5
      %v6500 = vmul.f32 %v6495, 0.5
      %v6501 = vmul.f32 %v6493, 0.044715
      %v6502 = vmul.f32 %v6495, 0.044715
      %v6503 = vmul.f32 %v6501, %v6493
      %v6504 = vmul.f32 %v6502, %v6495
      %v6505 = vmul.f32 %v6503, %v6493
      %v6506 = vmul.f32 %v6504, %v6495
      %v6507 = vadd.f32 %v6493, %v6505
      %v6508 = vadd.f32 %v6495, %v6506
      %v6509 = vmul.f32 %v6507, 0.7978846
      %v6510 = vmul.f32 %v6508, 0.7978846
      %v6511 = vtanh.pop %v6509
      %v6512 = vtanh.pop %v6510
      %v6513 = vadd.f32 %v6511, 1.0
      %v6514 = vadd.f32 %v6512, 1.0
      %v6515 = vmul.f32 %v6499, %v6513
      %v6516 = vmul.f32 %v6500, %v6514
      %v6517 = vld [vmem:[%s55] sm:$0xff]
      %v6518 = vld [vmem:[%s55 + $0x8] sm:$0xff]
      %v6519 = vld [vmem:[%s55 + $0x10] sm:$0xff]
      %v6520 = vld [vmem:[%s55 + $0x18] sm:$0xff]
      %v6521 = vld [vmem:[%s55 + $0x20] sm:$0xff]
      %v6522 = vld [vmem:[%s55 + $0x28] sm:$0xff]
      %v6523 = vld [vmem:[%s55 + $0x30] sm:$0xff]
      %v6524 = vld [vmem:[%s55 + $0x38] sm:$0xff]
      %v6525 = vld [vmem:[%s55 + $0x40] sm:$0xff]
      %v6526 = vld [vmem:[%s55 + $0x48] sm:$0xff]
      %v6527 = vld [vmem:[%s55 + $0x50] sm:$0xff]
      %v6528 = vld [vmem:[%s55 + $0x58] sm:$0xff]
      %v6529 = vld [vmem:[%s55 + $0x60] sm:$0xff]
      %v6530 = vld [vmem:[%s55 + $0x68] sm:$0xff]
      %v6531 = vld [vmem:[%s55 + $0x70] sm:$0xff]
      %v6532 = vld [vmem:[%s55 + $0x78] sm:$0xff]
      %v6533 = vld [vmem:[%s55 + $0x80] sm:$0xff]
      %v6534 = vld [vmem:[%s55 + $0x88] sm:$0xff]
      %v6535 = vld [vmem:[%s55 + $0x90] sm:$0xff]
      %v6536 = vld [vmem:[%s55 + $0x98] sm:$0xff]
      %v6537 = vld [vmem:[%s55 + $0xa0] sm:$0xff]
      %v6538 = vld [vmem:[%s55 + $0xa8] sm:$0xff]
      %v6539 = vld [vmem:[%s55 + $0xb0] sm:$0xff]
      %v6540 = vld [vmem:[%s55 + $0xb8] sm:$0xff]
      %v6541 = vld [vmem:[%s55 + $0xc0] sm:$0xff]
      %v6542 = vld [vmem:[%s55 + $0xc8] sm:$0xff]
      %v6543 = vld [vmem:[%s55 + $0xd0] sm:$0xff]
      %v6544 = vld [vmem:[%s55 + $0xd8] sm:$0xff]
      %v6545 = vld [vmem:[%s55 + $0xe0] sm:$0xff]
      %v6546 = vld [vmem:[%s55 + $0xe8] sm:$0xff]
      %v6547 = vld [vmem:[%s55 + $0xf0] sm:$0xff]
      %v6548 = vld [vmem:[%s55 + $0xf8] sm:$0xff]
      %v6549 = vld [vmem:[%s57] sm:$0x1]
      %6550 = vmatprep.subr.mxu0 0.0
      %6551 = vmatpush1.msra.mxu0 %v6517
      %6552 = vmatprep.subr.mxu0 0.0
      %6553 = vmatpush1.msra.mxu0 %v6518
      %6554 = vmatprep.subr.mxu0 0.0
      %6555 = vmatpush1.msra.mxu0 %v6519
      %6556 = vmatprep.subr.mxu0 0.0
      %6557 = vmatpush1.msra.mxu0 %v6520
      %6558 = vmatprep.subr.mxu0 0.0
      %6559 = vmatpush1.msra.mxu0 %v6521
      %6560 = vmatprep.subr.mxu0 0.0
      %6561 = vmatpush1.msra.mxu0 %v6522
      %6562 = vmatprep.subr.mxu0 0.0
      %6563 = vmatpush1.msra.mxu0 %v6523
      %6564 = vmatprep.subr.mxu0 0.0
      %6565 = vmatpush1.msra.mxu0 %v6524
      %6566 = vmatprep.subr.mxu0 0.0
      %6567 = vmatpush1.msra.mxu0 %v6525
      %6568 = vmatprep.subr.mxu0 0.0
      %6569 = vmatpush1.msra.mxu0 %v6526
      %6570 = vmatprep.subr.mxu0 0.0
      %6571 = vmatpush1.msra.mxu0 %v6527
      %6572 = vmatprep.subr.mxu0 0.0
      %6573 = vmatpush1.msra.mxu0 %v6528
      %6574 = vmatprep.subr.mxu0 0.0
      %6575 = vmatpush1.msra.mxu0 %v6529
      %6576 = vmatprep.subr.mxu0 0.0
      %6577 = vmatpush1.msra.mxu0 %v6530
      %6578 = vmatprep.subr.mxu0 0.0
      %6579 = vmatpush1.msra.mxu0 %v6531
      %6580 = vmatprep.subr.mxu0 0.0
      %6581 = vmatpush1.msra.mxu0 %v6532
      %6582 = vmatprep.subr.mxu0 0.0
      %6583 = vmatpush1.msra.mxu0 %v6533
      %6584 = vmatprep.subr.mxu0 0.0
      %6585 = vmatpush1.msra.mxu0 %v6534
      %6586 = vmatprep.subr.mxu0 0.0
      %6587 = vmatpush1.msra.mxu0 %v6535
      %6588 = vmatprep.subr.mxu0 0.0
      %6589 = vmatpush1.msra.mxu0 %v6536
      %6590 = vmatprep.subr.mxu0 0.0
      %6591 = vmatpush1.msra.mxu0 %v6537
      %6592 = vmatprep.subr.mxu0 0.0
      %6593 = vmatpush1.msra.mxu0 %v6538
      %6594 = vmatprep.subr.mxu0 0.0
      %6595 = vmatpush1.msra.mxu0 %v6539
      %6596 = vmatprep.subr.mxu0 0.0
      %6597 = vmatpush1.msra.mxu0 %v6540
      %6598 = vmatprep.subr.mxu0 0.0
      %6599 = vmatpush1.msra.mxu0 %v6541
      %6600 = vmatprep.subr.mxu0 0.0
      %6601 = vmatpush1.msra.mxu0 %v6542
      %6602 = vmatprep.subr.mxu0 0.0
      %6603 = vmatpush1.msra.mxu0 %v6543
      %6604 = vmatprep.subr.mxu0 0.0
      %6605 = vmatpush1.msra.mxu0 %v6544
      %6606 = vmatprep.subr.mxu0 0.0
      %6607 = vmatpush1.msra.mxu0 %v6545
      %6608 = vmatprep.subr.mxu0 0.0
      %6609 = vmatpush1.msra.mxu0 %v6546
      %6610 = vmatprep.subr.mxu0 0.0
      %6611 = vmatpush1.msra.mxu0 %v6547
      %6612 = vmatprep.subr.mxu0 0.0
      %6613 = vmatpush1.msra.mxu0 %v6548
      %6614 = vmatprep.mubr.f32.mxu0 %v6516
      %6615 = vmatmul.mubr.f32.gmra.mrb[0].mxu0 %v6515
      %v6616 = vpop.f32.mrb[0].mxu0
      %v6617 = vadd.f32 %v6549, %v6616
      %v6618 = vpop.f32.mrb[0].mxu0
      %6619 = vdwg.mxu0
      %v6620 = vld [vmem:[%s59] sm:$0xff]
      %v6621 = vld [vmem:[%s59 + $0x8] sm:$0xff]
      %v6622 = vld [vmem:[%s59 + $0x10] sm:$0xff]
      %v6623 = vld [vmem:[%s59 + $0x18] sm:$0xff]
      %v6624 = vld [vmem:[%s59 + $0x20] sm:$0xff]
      %v6625 = vld [vmem:[%s59 + $0x28] sm:$0xff]
      %v6626 = vld [vmem:[%s59 + $0x30] sm:$0xff]
      %v6627 = vld [vmem:[%s59 + $0x38] sm:$0xff]
      %v6628 = vld [vmem:[%s61] sm:$0x3]
      %v6637 = vunpack.c.l.b16 %v6620
      %v6638 = vunpack.c.h.b16 %v6620
      %v6639 = vunpack.c.l.b16 %v6621
      %v6640 = vunpack.c.h.b16 %v6621
      %v6641 = vunpack.c.l.b16 %v6622
      %v6642 = vunpack.c.h.b16 %v6622
      %v6643 = vunpack.c.l.b16 %v6623
      %v6644 = vunpack.c.h.b16 %v6623
      %v6645 = vunpack.c.l.b16 %v6624
      %v6646 = vunpack.c.h.b16 %v6624
      %v6647 = vunpack.c.l.b16 %v6625
      %v6648 = vunpack.c.h.b16 %v6625
      %v6649 = vunpack.c.l.b16 %v6626
      %v6650 = vunpack.c.h.b16 %v6626
      %v6651 = vunpack.c.l.b16 %v6627
      %v6652 = vunpack.c.h.b16 %v6627
      %v6653 = vpack.c.b16 %v6639, %v6637
      %v6654 = vpack.c.b16 %v6640, %v6638
      %v6655 = vpack.c.b16 %v6643, %v6641
      %v6656 = vpack.c.b16 %v6644, %v6642
      %v6657 = vpack.c.b16 %v6647, %v6645
      %v6658 = vpack.c.b16 %v6648, %v6646
      %v6659 = vpack.c.b16 %v6651, %v6649
      %v6660 = vpack.c.b16 %v6652, %v6650
      %v6670 = vlaneseq
      %v6671 = vshrl.u32 %v6670, 7
      %v6672 = vsub.s32 0, %v6671
      %v6673 = vrot.slane %v6628, %v6672
      %v6674 = vlaneseq
      %v6675 = vshrl.u32 %v6674, 7
      %v6676 = vsub.s32 1, %v6675
      %v6677 = vrot.slane %v6628, %v6676
      %6680 = vmatprep.subr.bf16.mxu0 %v6654
      %6681 = vmatpush1.bf16.msra.mxu0 %v6653
      %6682 = vmatprep.subr.bf16.mxu0 %v6656
      %6683 = vmatpush1.bf16.msra.mxu0 %v6655
      %6684 = vmatprep.subr.bf16.mxu0 %v6658
      %6685 = vmatpush1.bf16.msra.mxu0 %v6657
      %6686 = vmatprep.subr.bf16.mxu0 %v6660
      %6687 = vmatpush1.bf16.msra.mxu0 %v6659
      %6688 = vmatprep.subr.bf16.mxu0 0
      %6689 = vmatpush1.bf16.msra.mxu0 0
      %6690 = vmatprep.subr.bf16.mxu0 0
      %6691 = vmatpush1.bf16.msra.mxu0 0
      %6692 = vmatprep.subr.bf16.mxu0 0
      %6693 = vmatpush1.bf16.msra.mxu0 0
      %6694 = vmatprep.subr.bf16.mxu0 0
      %6695 = vmatpush1.bf16.msra.mxu0 0
      %6696 = vmatprep.subr.bf16.mxu0 0
      %6697 = vmatpush1.bf16.msra.mxu0 0
      %6698 = vmatprep.subr.bf16.mxu0 0
      %6699 = vmatpush1.bf16.msra.mxu0 0
      %6700 = vmatprep.subr.bf16.mxu0 0
      %6701 = vmatpush1.bf16.msra.mxu0 0
      %6702 = vmatprep.subr.bf16.mxu0 0
      %6703 = vmatpush1.bf16.msra.mxu0 0
      %6704 = vmatprep.subr.bf16.mxu0 0
      %6705 = vmatpush1.bf16.msra.mxu0 0
      %6706 = vmatprep.subr.bf16.mxu0 0
      %6707 = vmatpush1.bf16.msra.mxu0 0
      %6708 = vmatprep.subr.bf16.mxu0 0
      %6709 = vmatpush1.bf16.msra.mxu0 0
      %6710 = vmatprep.subr.bf16.mxu0 0
      %6711 = vmatpush1.bf16.msra.mxu0 0
      %6712 = vmatprep.mubr.bf16.mxu0 0
      %6713 = vmatmul.mubr.bf16.gmra.mrb[0].mxu0 %v2954
      %v6714 = vpop.f32.mrb[0].mxu0
      %v6715 = vadd.f32 %v6673, %v6714
      %v6716 = vpop.f32.mrb[0].mxu0
      %v6717 = vadd.f32 %v6677, %v6716
      %v6718 = vpop.f32.mrb[0].mxu0
      %v6719 = vpop.f32.mrb[0].mxu0
      %6720 = vdwg.mxu0
      %v6721 = vmax.f32 %v6715, 0.0
      %v6722 = vmax.f32 %v6717, 0.0
      %v6723 = vld [vmem:[%s63] sm:$0xff]
      %v6724 = vld [vmem:[%s63 + $0x8] sm:$0xff]
      %v6725 = vld [vmem:[%s63 + $0x10] sm:$0xff]
      %v6726 = vld [vmem:[%s63 + $0x18] sm:$0xff]
      %v6727 = vld [vmem:[%s63 + $0x20] sm:$0xff]
      %v6728 = vld [vmem:[%s63 + $0x28] sm:$0xff]
      %v6729 = vld [vmem:[%s63 + $0x30] sm:$0xff]
      %v6730 = vld [vmem:[%s63 + $0x38] sm:$0xff]
      %v6731 = vld [vmem:[%s63 + $0x40] sm:$0xff]
      %v6732 = vld [vmem:[%s63 + $0x48] sm:$0xff]
      %v6733 = vld [vmem:[%s63 + $0x50] sm:$0xff]
      %v6734 = vld [vmem:[%s63 + $0x58] sm:$0xff]
      %v6735 = vld [vmem:[%s63 + $0x60] sm:$0xff]
      %v6736 = vld [vmem:[%s63 + $0x68] sm:$0xff]
      %v6737 = vld [vmem:[%s63 + $0x70] sm:$0xff]
      %v6738 = vld [vmem:[%s63 + $0x78] sm:$0xff]
      %v6739 = vld [vmem:[%s63 + $0x80] sm:$0xff]
      %v6740 = vld [vmem:[%s63 + $0x88] sm:$0xff]
      %v6741 = vld [vmem:[%s63 + $0x90] sm:$0xff]
      %v6742 = vld [vmem:[%s63 + $0x98] sm:$0xff]
      %v6743 = vld [vmem:[%s63 + $0xa0] sm:$0xff]
      %v6744 = vld [vmem:[%s63 + $0xa8] sm:$0xff]
      %v6745 = vld [vmem:[%s63 + $0xb0] sm:$0xff]
      %v6746 = vld [vmem:[%s63 + $0xb8] sm:$0xff]
      %v6747 = vld [vmem:[%s63 + $0xc0] sm:$0xff]
      %v6748 = vld [vmem:[%s63 + $0xc8] sm:$0xff]
      %v6749 = vld [vmem:[%s63 + $0xd0] sm:$0xff]
      %v6750 = vld [vmem:[%s63 + $0xd8] sm:$0xff]
      %v6751 = vld [vmem:[%s63 + $0xe0] sm:$0xff]
      %v6752 = vld [vmem:[%s63 + $0xe8] sm:$0xff]
      %v6753 = vld [vmem:[%s63 + $0xf0] sm:$0xff]
      %v6754 = vld [vmem:[%s63 + $0xf8] sm:$0xff]
      %v6755 = vld [vmem:[%s65] sm:$0x1]
      %6756 = vmatprep.subr.mxu0 0.0
      %6757 = vmatpush1.msra.mxu0 %v6723
      %6758 = vmatprep.subr.mxu0 0.0
      %6759 = vmatpush1.msra.mxu0 %v6724
      %6760 = vmatprep.subr.mxu0 0.0
      %6761 = vmatpush1.msra.mxu0 %v6725
      %6762 = vmatprep.subr.mxu0 0.0
      %6763 = vmatpush1.msra.mxu0 %v6726
      %6764 = vmatprep.subr.mxu0 0.0
      %6765 = vmatpush1.msra.mxu0 %v6727
      %6766 = vmatprep.subr.mxu0 0.0
      %6767 = vmatpush1.msra.mxu0 %v6728
      %6768 = vmatprep.subr.mxu0 0.0
      %6769 = vmatpush1.msra.mxu0 %v6729
      %6770 = vmatprep.subr.mxu0 0.0
      %6771 = vmatpush1.msra.mxu0 %v6730
      %6772 = vmatprep.subr.mxu0 0.0
      %6773 = vmatpush1.msra.mxu0 %v6731
      %6774 = vmatprep.subr.mxu0 0.0
      %6775 = vmatpush1.msra.mxu0 %v6732
      %6776 = vmatprep.subr.mxu0 0.0
      %6777 = vmatpush1.msra.mxu0 %v6733
      %6778 = vmatprep.subr.mxu0 0.0
      %6779 = vmatpush1.msra.mxu0 %v6734
      %6780 = vmatprep.subr.mxu0 0.0
      %6781 = vmatpush1.msra.mxu0 %v6735
      %6782 = vmatprep.subr.mxu0 0.0
      %6783 = vmatpush1.msra.mxu0 %v6736
      %6784 = vmatprep.subr.mxu0 0.0
      %6785 = vmatpush1.msra.mxu0 %v6737
      %6786 = vmatprep.subr.mxu0 0.0
      %6787 = vmatpush1.msra.mxu0 %v6738
      %6788 = vmatprep.subr.mxu0 0.0
      %6789 = vmatpush1.msra.mxu0 %v6739
      %6790 = vmatprep.subr.mxu0 0.0
      %6791 = vmatpush1.msra.mxu0 %v6740
      %6792 = vmatprep.subr.mxu0 0.0
      %6793 = vmatpush1.msra.mxu0 %v6741
      %6794 = vmatprep.subr.mxu0 0.0
      %6795 = vmatpush1.msra.mxu0 %v6742
      %6796 = vmatprep.subr.mxu0 0.0
      %6797 = vmatpush1.msra.mxu0 %v6743
      %6798 = vmatprep.subr.mxu0 0.0
      %6799 = vmatpush1.msra.mxu0 %v6744
      %6800 = vmatprep.subr.mxu0 0.0
      %6801 = vmatpush1.msra.mxu0 %v6745
      %6802 = vmatprep.subr.mxu0 0.0
      %6803 = vmatpush1.msra.mxu0 %v6746
      %6804 = vmatprep.subr.mxu0 0.0
      %6805 = vmatpush1.msra.mxu0 %v6747
      %6806 = vmatprep.subr.mxu0 0.0
      %6807 = vmatpush1.msra.mxu0 %v6748
      %6808 = vmatprep.subr.mxu0 0.0
      %6809 = vmatpush1.msra.mxu0 %v6749
      %6810 = vmatprep.subr.mxu0 0.0
      %6811 = vmatpush1.msra.mxu0 %v6750
      %6812 = vmatprep.subr.mxu0 0.0
      %6813 = vmatpush1.msra.mxu0 %v6751
      %6814 = vmatprep.subr.mxu0 0.0
      %6815 = vmatpush1.msra.mxu0 %v6752
      %6816 = vmatprep.subr.mxu0 0.0
      %6817 = vmatpush1.msra.mxu0 %v6753
      %6818 = vmatprep.subr.mxu0 0.0
      %6819 = vmatpush1.msra.mxu0 %v6754
      %6820 = vmatprep.mubr.f32.mxu0 %v6722
      %6821 = vmatmul.mubr.f32.gmra.mrb[0].mxu0 %v6721
      %v6822 = vpop.f32.mrb[0].mxu0
      %v6823 = vadd.f32 %v6755, %v6822
      %v6824 = vpop.f32.mrb[0].mxu0
      %6825 = vdwg.mxu0
      %v6826 = vlaneseq
      %vm6827 = vcmp.ge.s32.totalorder %v6826, 0
      %vm6828 = vcmp.lt.s32.totalorder %v6826, 512
      %vm6829 = vmand %vm6827, %vm6828
      %6830 = vst.msk [vmem:[%s1012] sm:$0xf] %vm6829, 0.0
      %vm6831 = vcmp.lt.s32.totalorder %v6826, 5
      %vm6832 = vmand %vm6827, %vm6831
      %6833 = vst.msk [vmem:[%s1012] sm:$0x1] %vm6832, %v5476
      %6834 = vst.msk [vmem:[%s1012 + $0x1] sm:$0x1] %vm6832, %v6395
      %vm6835 = vcmp.lt.s32.totalorder %v6826, 4
      %vm6836 = vmand %vm6827, %vm6835
      %6837 = vst.msk [vmem:[%s1012 + $0x2] sm:$0x1] %vm6836, %v6617
      %6838 = vst.msk [vmem:[%s1012 + $0x3] sm:$0x1] %vm6832, %v6823
      %p6839 = scmp.lt.s32.totalorder %s78, 1
      %s6840 = scalar_select %p6839, %s78, 1
      %s6841 = smul.addr %s6840, 4
      %s6842 = scalar_lea.vmem %s67, %s6841
      // Predicated region
      $region153: #{_forward_jit.1} parent=151 // pred_check
        %p6843 = pneg %p794
      $region154: #{_forward_jit.1} parent=151 // pred_check_branch
        %6845 = sbr.rel (%p6843) target = $region156
      $region155: #{_forward_jit.1} parent=151 // pred_region
        _
      $region156: #{_forward_jit.1} parent=151 // pred_fallthru
        _
    $region152: #{_forward_jit.1} parent=5 // pred_fallthru
      _
    %p6846 = scmp.le.s32.totalorder 2, %s73
    // Predicated region
    $region157: #{_forward_jit.1} parent=5 // pred_check
      %p6847 = pneg %p6846
    $region158: #{_forward_jit.1} parent=5 // pred_check_branch
      %6849 = sbr.rel (%p6847) target = $region160
    $region159: #{_forward_jit.1} parent=5 // pred_region
      %s6850 = ssub.s32 %s73, 2
      // Predicated region
      $region161: #{_forward_jit.1} parent=159 // pred_check
        %p6851 = pneg %p800
      $region162: #{_forward_jit.1} parent=159 // pred_check_branch
        %6853 = sbr.rel (%p6851) target = $region164
      $region163: #{_forward_jit.1} parent=159 // pred_region
        %p6854 = scmp.lt.s32.totalorder %s79, 1
        %s6855 = scalar_select %p6854, %s79, 1
        %s6856 = smul.addr %s6855, 4
        %s6857 = scalar_lea.vmem %s67, %s6856
      $region164: #{_forward_jit.1} parent=159 // pred_fallthru
        _
    $region160: #{_forward_jit.1} parent=5 // pred_fallthru
      _
  $region6: #{_forward_jit.1} parent=0 // loop_footer
    %s77 = sadd.s32 1, %s73
  $region7: #{_forward_jit.1} parent=0 // loop_footer_branch
    %72 = sbr.rel target = $region3
  $region8: #{_forward_jit.1} parent=0 // loop_exit
    _

</llo_original>
